<compile_context>
chip_gen: v7x
topology: tpu7x:2x2x1
jax: 0.10.0
libtpu: 0.0.40
codegen_flags: <defaults>
</compile_context>

<pallas_src>
import functools

import jax
import jax.numpy as jnp
from jax.experimental import pallas as pl
from jax.experimental.pallas import tpu as pltpu

HOUT_PAD = 128  # pad both head outputs (16 / 3) to a lane-dense 128-wide store


# ---------------------------------------------------------------------------
# Parameter preparation (BN fold, scale-into-weight fold, bf16 cast, head pad)
# ---------------------------------------------------------------------------
def fold_bn(layer, eps=1e-5):
    # inference BN with running_mean=0, running_var=1 fused with the preceding
    # conv/linear bias; the per-channel scale is folded directly into the weight.
    scale = layer["g"] / jnp.sqrt(1.0 + eps)
    w = layer["w"] * scale[None, :]
    shift = (layer["be"] + layer["b"] * scale).reshape(1, -1)
    return w, shift


def prepare_stage(c1, c2, c3, f1, f2, f3, extra_bias=None):
    """Kernel-ready arrays for one (point-MLP + max-pool + FC head) stage."""
    w1, t1 = fold_bn(c1)                      # layer 1 stays f32 (VPU path)
    w2, t2 = fold_bn(c2)
    w3, t3 = fold_bn(c3)
    w4, t4 = fold_bn(f1)
    w5, t5 = fold_bn(f2)
    hout = f3["w"].shape[1]
    b6 = f3["b"] + (extra_bias if extra_bias is not None else 0.0)
    w6p = jnp.zeros((f3["w"].shape[0], HOUT_PAD), jnp.float32).at[:, :hout].set(f3["w"])
    b6p = jnp.zeros((1, HOUT_PAD), jnp.float32).at[0, :hout].set(b6)
    return dict(
        w1=w1, t1=t1,
        w2=w2.astype(jnp.bfloat16), t2=t2,
        w3=w3.astype(jnp.bfloat16), t3=t3,
        w4=w4.astype(jnp.bfloat16), t4=t4,
        w5=w5.astype(jnp.bfloat16), t5=t5,
        w6=w6p.astype(jnp.bfloat16), b6=b6p, hout=hout)


# ---------------------------------------------------------------------------
# Fused kernel: per-point MLP + max-pool + FC head
# grid = (B, N // tile_n); (8, 1024) VMEM scratch holds the running max.
# ---------------------------------------------------------------------------
def stage_kernel(x_ref, w1_ref, t1_ref, w2_ref, t2_ref, w3_ref, t3_ref,
                 w4_ref, t4_ref, w5_ref, t5_ref, w6_ref, b6_ref,
                 out_ref, acc_ref, *, last_relu):
    k = pl.program_id(1)
    nk = pl.num_programs(1)

    x = x_ref[0]                               # (tile_n, 4) f32
    w1 = w1_ref[0]                             # (4, 64) f32 (per-batch; BN scale and,
                                               #  for stage B, the 4x4 transform folded in)

    # Layer 1 (K=4): VPU broadcast multiply-adds — keeps the MXU free for layers 2/3.
    h = (x[:, 0:1] * w1[0:1, :] + x[:, 1:2] * w1[1:2, :]
         + x[:, 2:3] * w1[2:3, :] + x[:, 3:4] * w1[3:4, :])
    h = jnp.maximum(h + t1_ref[...], 0.0)                              # (tile_n, 64)

    # Layers 2/3: bf16 MXU matmuls, f32 accumulation; BN scale already in the weights.
    h = jnp.maximum(
        jnp.dot(h.astype(jnp.bfloat16), w2_ref[...],
                preferred_element_type=jnp.float32) + t2_ref[...], 0.0)  # (tile_n, 128)
    h = jnp.dot(h.astype(jnp.bfloat16), w3_ref[...],
                preferred_element_type=jnp.float32) + t3_ref[...]        # (tile_n, 1024)
    if last_relu:
        h = jnp.maximum(h, 0.0)

    # Per-tile partial max on the VPU (reduce over sublane groups); the single
    # cross-sublane (XLU) reduce is deferred to the last point tile.
    part = jnp.max(h.reshape(-1, 8, h.shape[-1]), axis=0)               # (8, 1024)

    @pl.when(k == 0)
    def _():
        acc_ref[...] = part          # direct write at k==0 (no -inf init / extra max)

    @pl.when(k > 0)
    def _():
        acc_ref[...] = jnp.maximum(acc_ref[...], part)

    # Last tile of this batch row: finish the max-pool and run the FC head entirely
    # in VMEM — no separate head kernel, no feature HBM round trip.
    @pl.when(k == nk - 1)
    def _():
        feat = jnp.max(acc_ref[...], axis=0, keepdims=True)             # (1, 1024)
        g = jnp.maximum(
            jnp.dot(feat.astype(jnp.bfloat16), w4_ref[...],
                    preferred_element_type=jnp.float32) + t4_ref[...], 0.0)
        g = jnp.maximum(
            jnp.dot(g.astype(jnp.bfloat16), w5_ref[...],
                    preferred_element_type=jnp.float32) + t5_ref[...], 0.0)
        out_ref[0] = (jnp.dot(g.astype(jnp.bfloat16), w6_ref[...],
                              preferred_element_type=jnp.float32) + b6_ref[...])


def run_stage(x_bnc, w1_eff, p, *, last_relu, tile_n):
    B, N, C = x_bnc.shape
    assert N % tile_n == 0 and tile_n % 8 == 0

    def const_spec(arr):
        nd = arr.ndim
        return pl.BlockSpec(arr.shape, lambda b, k, _nd=nd: (0,) * _nd)

    out = pl.pallas_call(
        functools.partial(stage_kernel, last_relu=last_relu),
        out_shape=jax.ShapeDtypeStruct((B, 1, HOUT_PAD), jnp.float32),
        grid_spec=pltpu.PrefetchScalarGridSpec(
            num_scalar_prefetch=0,
            grid=(B, N // tile_n),
            in_specs=[
                pl.BlockSpec((1, tile_n, C), lambda b, k: (b, k, 0)),   # points
                pl.BlockSpec((1, 4, 64), lambda b, k: (b, 0, 0)),       # per-batch W1
                const_spec(p["t1"]),
                const_spec(p["w2"]), const_spec(p["t2"]),
                const_spec(p["w3"]), const_spec(p["t3"]),
                const_spec(p["w4"]), const_spec(p["t4"]),
                const_spec(p["w5"]), const_spec(p["t5"]),
                const_spec(p["w6"]), const_spec(p["b6"]),
            ],
            out_specs=pl.BlockSpec((1, 1, HOUT_PAD), lambda b, k: (b, 0, 0)),
            scratch_shapes=[pltpu.VMEM((8, 1024), jnp.float32)],
        ),
        compiler_params=pltpu.CompilerParams(
            dimension_semantics=("parallel", "arbitrary")),
    )(x_bnc, w1_eff, p["t1"], p["w2"], p["t2"], p["w3"], p["t3"],
      p["w4"], p["t4"], p["w5"], p["t5"], p["w6"], p["b6"])
    return out[:, 0, :p["hout"]]


# ---------------------------------------------------------------------------
# Full PointNetReg forward
# ---------------------------------------------------------------------------
def pointnet_reg_forward(x_ncw, params, *, tile_n=512):
    """x_ncw: (B, 4, N) float32 (same layout as the PyTorch module input)."""
    B, C, N = x_ncw.shape
    tile_n = min(tile_n, N)
    x_bnc = jnp.transpose(x_ncw, (0, 2, 1)).astype(jnp.float32)      # (B, N, 4)

    iden = jnp.eye(4, dtype=jnp.float32).reshape(16)
    p_stn = prepare_stage(params["stn_c1"], params["stn_c2"], params["stn_c3"],
                          params["stn_f1"], params["stn_f2"], params["stn_f3"],
                          extra_bias=iden)                           # "x + iden" -> bias
    p_feat = prepare_stage(params["feat_c1"], params["feat_c2"], params["feat_c3"],
                           params["reg_f1"], params["reg_f2"], params["reg_f3"])

    # Stage A: STN4d (point MLP + max-pool + FC head fused in one kernel).
    w1_stn = jnp.tile(p_stn["w1"][None], (B, 1, 1))                  # (B, 4, 64)
    trans = run_stage(x_bnc, w1_stn, p_stn,
                      last_relu=True, tile_n=tile_n).reshape(B, 4, 4)

    # Stage B: fold the learned transform into layer 1: (x @ T) @ W1 == x @ (T @ W1),
    # so the transformed point cloud never touches HBM.
    w1_feat = jnp.einsum("bij,jo->bio", trans, p_feat["w1"],
                         precision=jax.lax.Precision.HIGHEST)        # (B, 4, 64)
    out = run_stage(x_bnc, w1_feat, p_feat, last_relu=False, tile_n=tile_n)  # (B, 3)
    return out, trans


# ---------------------------------------------------------------------------
# Pure-JAX reference mirroring the kernel math (same folded / bf16 weights)
# ---------------------------------------------------------------------------
def pointnet_reg_reference(x_ncw, params):
    B, C, N = x_ncw.shape
    x = jnp.transpose(x_ncw, (0, 2, 1)).astype(jnp.float32)
    hp = jax.lax.Precision.HIGHEST

    iden = jnp.eye(4, dtype=jnp.float32).reshape(16)
    p_stn = prepare_stage(params["stn_c1"], params["stn_c2"], params["stn_c3"],
                          params["stn_f1"], params["stn_f2"], params["stn_f3"],
                          extra_bias=iden)
    p_feat = prepare_stage(params["feat_c1"], params["feat_c2"], params["feat_c3"],
                           params["reg_f1"], params["reg_f2"], params["reg_f3"])

    def mm(a, w):  # bf16 inputs, f32 accumulation (matches the kernel)
        return jnp.dot(a.astype(jnp.bfloat16), w, preferred_element_type=jnp.float32)

    def stage(xb, p, last_relu):
        h = jnp.maximum(jnp.einsum("bnc,co->bno", xb, p["w1"], precision=hp)
                        + p["t1"], 0.0)
        h = jnp.maximum(mm(h, p["w2"]) + p["t2"], 0.0)
        h = mm(h, p["w3"]) + p["t3"]
        if last_relu:
            h = jnp.maximum(h, 0.0)
        f = jnp.max(h, axis=1)                                       # max over points
        g = jnp.maximum(mm(f, p["w4"]) + p["t4"], 0.0)
        g = jnp.maximum(mm(g, p["w5"]) + p["t5"], 0.0)
        return mm(g, p["w6"]) + p["b6"]

    trans = stage(x, p_stn, True)[:, :16].reshape(B, 4, 4)
    x_t = jnp.einsum("bnc,bcd->bnd", x, trans, precision=hp)
    out = stage(x_t, p_feat, False)[:, :3]
    return out, trans


# ---------------------------------------------------------------------------
# Deterministic parameters + demo
# ---------------------------------------------------------------------------
def make_params(key):
    def conv_block(k, cin, cout):        # conv/linear + BN
        kw, kb, kg, kbe = jax.random.split(k, 4)
        return dict(
            w=(0.1 * jax.random.normal(kw, (cin, cout))).astype(jnp.float32),
            b=(0.05 * jax.random.normal(kb, (cout,))).astype(jnp.float32),
            g=(1.0 + 0.1 * jax.random.normal(kg, (cout,))).astype(jnp.float32),
            be=(0.05 * jax.random.normal(kbe, (cout,))).astype(jnp.float32))

    def fc_block(k, cin, cout):          # final linear (no BN)
        kw, kb = jax.random.split(k, 2)
        return dict(
            w=(0.1 * jax.random.normal(kw, (cin, cout))).astype(jnp.float32),
            b=(0.05 * jax.random.normal(kb, (cout,))).astype(jnp.float32))

    keys = iter(jax.random.split(key, 12))
    return {
        # STN4d
        "stn_c1": conv_block(next(keys), 4, 64),
        "stn_c2": conv_block(next(keys), 64, 128),
        "stn_c3": conv_block(next(keys), 128, 1024),
        "stn_f1": conv_block(next(keys), 1024, 512),
        "stn_f2": conv_block(next(keys), 512, 256),
        "stn_f3": fc_block(next(keys), 256, 16),
        # PointNetfeat4D
        "feat_c1": conv_block(next(keys), 4, 64),
        "feat_c2": conv_block(next(keys), 64, 128),
        "feat_c3": conv_block(next(keys), 128, 1024),
        # PointNetReg head
        "reg_f1": conv_block(next(keys), 1024, 512),
        "reg_f2": conv_block(next(keys), 512, 256),
        "reg_f3": fc_block(next(keys), 256, 3),
    }


if __name__ == "__main__":
    B, C, N = 2, 4, 1024                       # small demo shapes (module default N=2500)
    key = jax.random.PRNGKey(0)
    kx, kp = jax.random.split(key)
    x = jax.random.normal(kx, (B, C, N), dtype=jnp.float32)
    params = make_params(kp)

    out, trans = pointnet_reg_forward(x, params, tile_n=512)
    out = jax.block_until_ready(out)
    trans = jax.block_until_ready(trans)

    ref_out, ref_trans = pointnet_reg_reference(x, params)
    ref_out = jax.block_until_ready(ref_out)
    ref_trans = jax.block_until_ready(ref_trans)

    assert out.shape == (B, 3) and trans.shape == (B, 4, 4)
    assert jnp.allclose(trans, ref_trans, rtol=2e-2, atol=2e-2), "trans mismatch"
    assert jnp.allclose(out, ref_out, rtol=2e-2, atol=2e-2), "output mismatch"
    print("KERNEL_OK")
</pallas_src>

<mosaic_0001>
module attributes {stable_mosaic.version = 11 : i64} {
  func.func @stage_kernel(%arg0: i32, %arg1: i32, %arg2: memref<1x512x4xf32, #tpu.memory_space<vmem>>, %arg3: memref<1x4x64xf32, #tpu.memory_space<vmem>>, %arg4: memref<1x64xf32, #tpu.memory_space<vmem>>, %arg5: memref<64x128xbf16, #tpu.memory_space<vmem>>, %arg6: memref<1x128xf32, #tpu.memory_space<vmem>>, %arg7: memref<128x1024xbf16, #tpu.memory_space<vmem>>, %arg8: memref<1x1024xf32, #tpu.memory_space<vmem>>, %arg9: memref<1024x512xbf16, #tpu.memory_space<vmem>>, %arg10: memref<1x512xf32, #tpu.memory_space<vmem>>, %arg11: memref<512x256xbf16, #tpu.memory_space<vmem>>, %arg12: memref<1x256xf32, #tpu.memory_space<vmem>>, %arg13: memref<256x128xbf16, #tpu.memory_space<vmem>>, %arg14: memref<1x128xf32, #tpu.memory_space<vmem>>, %arg15: memref<1x1x128xf32, #tpu.memory_space<vmem>>, %arg16: memref<8x1024xf32, #tpu.memory_space<vmem>>) attributes {dimension_semantics = [#tpu.dimension_semantics<parallel>, #tpu.dimension_semantics<arbitrary>], iteration_bounds = array<i64: 2, 2>, scalar_prefetch = 0 : i64, scratch_operands = 1 : i64, tpu.core_type = #tpu.core_type<tc>, window_params = [{transform_indices = @transform_0, window_bounds = array<i64: 1, 512, 4>}, {transform_indices = @transform_1, window_bounds = array<i64: 1, 4, 64>}, {pipeline_mode = #tpu.pipeline_mode<synchronous>, transform_indices = @transform_2, window_bounds = array<i64: 1, 64>}, {pipeline_mode = #tpu.pipeline_mode<synchronous>, transform_indices = @transform_3, window_bounds = array<i64: 64, 128>}, {pipeline_mode = #tpu.pipeline_mode<synchronous>, transform_indices = @transform_4, window_bounds = array<i64: 1, 128>}, {pipeline_mode = #tpu.pipeline_mode<synchronous>, transform_indices = @transform_5, window_bounds = array<i64: 128, 1024>}, {pipeline_mode = #tpu.pipeline_mode<synchronous>, transform_indices = @transform_6, window_bounds = array<i64: 1, 1024>}, {pipeline_mode = #tpu.pipeline_mode<synchronous>, transform_indices = @transform_7, window_bounds = array<i64: 1024, 512>}, {pipeline_mode = #tpu.pipeline_mode<synchronous>, transform_indices = @transform_8, window_bounds = array<i64: 1, 512>}, {pipeline_mode = #tpu.pipeline_mode<synchronous>, transform_indices = @transform_9, window_bounds = array<i64: 512, 256>}, {pipeline_mode = #tpu.pipeline_mode<synchronous>, transform_indices = @transform_10, window_bounds = array<i64: 1, 256>}, {pipeline_mode = #tpu.pipeline_mode<synchronous>, transform_indices = @transform_11, window_bounds = array<i64: 256, 128>}, {pipeline_mode = #tpu.pipeline_mode<synchronous>, transform_indices = @transform_12, window_bounds = array<i64: 1, 128>}, {transform_indices = @transform_13, window_bounds = array<i64: 1, 1, 128>}]} {
    %c0 = arith.constant 0 : index
    %c0_0 = arith.constant 0 : index
    %c0_1 = arith.constant 0 : index
    %0 = vector.load %arg2[%c0, %c0_0, %c0_1] : memref<1x512x4xf32, #tpu.memory_space<vmem>>, vector<1x512x4xf32>
    %1 = vector.shape_cast %0 : vector<1x512x4xf32> to vector<512x4xf32>
    %c0_2 = arith.constant 0 : index
    %c0_3 = arith.constant 0 : index
    %c0_4 = arith.constant 0 : index
    %2 = vector.load %arg3[%c0_2, %c0_3, %c0_4] : memref<1x4x64xf32, #tpu.memory_space<vmem>>, vector<1x4x64xf32>
    %3 = vector.shape_cast %2 : vector<1x4x64xf32> to vector<4x64xf32>
    %4 = vector.extract_strided_slice %1 {offsets = [0, 0], sizes = [512, 1], strides = [1, 1]} : vector<512x4xf32> to vector<512x1xf32>
    %5 = vector.extract_strided_slice %3 {offsets = [0, 0], sizes = [1, 64], strides = [1, 1]} : vector<4x64xf32> to vector<1x64xf32>
    %6 = vector.broadcast %4 : vector<512x1xf32> to vector<512x64xf32>
    %7 = vector.broadcast %5 : vector<1x64xf32> to vector<512x64xf32>
    %8 = arith.mulf %6, %7 : vector<512x64xf32>
    %9 = vector.extract_strided_slice %1 {offsets = [0, 1], sizes = [512, 1], strides = [1, 1]} : vector<512x4xf32> to vector<512x1xf32>
    %10 = vector.extract_strided_slice %3 {offsets = [1, 0], sizes = [1, 64], strides = [1, 1]} : vector<4x64xf32> to vector<1x64xf32>
    %11 = vector.broadcast %9 : vector<512x1xf32> to vector<512x64xf32>
    %12 = vector.broadcast %10 : vector<1x64xf32> to vector<512x64xf32>
    %13 = arith.mulf %11, %12 : vector<512x64xf32>
    %14 = arith.addf %8, %13 : vector<512x64xf32>
    %15 = vector.extract_strided_slice %1 {offsets = [0, 2], sizes = [512, 1], strides = [1, 1]} : vector<512x4xf32> to vector<512x1xf32>
    %16 = vector.extract_strided_slice %3 {offsets = [2, 0], sizes = [1, 64], strides = [1, 1]} : vector<4x64xf32> to vector<1x64xf32>
    %17 = vector.broadcast %15 : vector<512x1xf32> to vector<512x64xf32>
    %18 = vector.broadcast %16 : vector<1x64xf32> to vector<512x64xf32>
    %19 = arith.mulf %17, %18 : vector<512x64xf32>
    %20 = arith.addf %14, %19 : vector<512x64xf32>
    %21 = vector.extract_strided_slice %1 {offsets = [0, 3], sizes = [512, 1], strides = [1, 1]} : vector<512x4xf32> to vector<512x1xf32>
    %22 = vector.extract_strided_slice %3 {offsets = [3, 0], sizes = [1, 64], strides = [1, 1]} : vector<4x64xf32> to vector<1x64xf32>
    %23 = vector.broadcast %21 : vector<512x1xf32> to vector<512x64xf32>
    %24 = vector.broadcast %22 : vector<1x64xf32> to vector<512x64xf32>
    %25 = arith.mulf %23, %24 : vector<512x64xf32>
    %26 = arith.addf %20, %25 : vector<512x64xf32>
    %c0_5 = arith.constant 0 : index
    %c0_6 = arith.constant 0 : index
    %27 = vector.load %arg4[%c0_5, %c0_6] : memref<1x64xf32, #tpu.memory_space<vmem>>, vector<1x64xf32>
    %28 = vector.broadcast %27 : vector<1x64xf32> to vector<512x64xf32>
    %29 = arith.addf %26, %28 : vector<512x64xf32>
    %cst = arith.constant 0.000000e+00 : f32
    %30 = vector.broadcast %cst : f32 to vector<512x64xf32>
    %31 = arith.maximumf %29, %30 : vector<512x64xf32>
    %32 = arith.truncf %31 : vector<512x64xf32> to vector<512x64xbf16>
    %c0_7 = arith.constant 0 : index
    %c0_8 = arith.constant 0 : index
    %33 = vector.load %arg5[%c0_7, %c0_8] : memref<64x128xbf16, #tpu.memory_space<vmem>>, vector<64x128xbf16>
    %cst_9 = arith.constant dense<0.000000e+00> : vector<512x128xf32>
    %34 = tpu.matmul %32, %33, %cst_9 {dimension_numbers = #tpu.dot_dimension_numbers<[1], [0], [0], [1], [0, 0, 1, 1], [], []>} : vector<512x64xbf16>, vector<64x128xbf16>, vector<512x128xf32> -> vector<512x128xf32>
    %c0_10 = arith.constant 0 : index
    %c0_11 = arith.constant 0 : index
    %35 = vector.load %arg6[%c0_10, %c0_11] : memref<1x128xf32, #tpu.memory_space<vmem>>, vector<1x128xf32>
    %36 = vector.broadcast %35 : vector<1x128xf32> to vector<512x128xf32>
    %37 = arith.addf %34, %36 : vector<512x128xf32>
    %cst_12 = arith.constant 0.000000e+00 : f32
    %38 = vector.broadcast %cst_12 : f32 to vector<512x128xf32>
    %39 = arith.maximumf %37, %38 : vector<512x128xf32>
    %40 = arith.truncf %39 : vector<512x128xf32> to vector<512x128xbf16>
    %c0_13 = arith.constant 0 : index
    %c0_14 = arith.constant 0 : index
    %41 = vector.load %arg7[%c0_13, %c0_14] : memref<128x1024xbf16, #tpu.memory_space<vmem>>, vector<128x1024xbf16>
    %cst_15 = arith.constant dense<0.000000e+00> : vector<512x1024xf32>
    %42 = tpu.matmul %40, %41, %cst_15 {dimension_numbers = #tpu.dot_dimension_numbers<[1], [0], [0], [1], [0, 0, 1, 1], [], []>} : vector<512x128xbf16>, vector<128x1024xbf16>, vector<512x1024xf32> -> vector<512x1024xf32>
    %c0_16 = arith.constant 0 : index
    %c0_17 = arith.constant 0 : index
    %43 = vector.load %arg8[%c0_16, %c0_17] : memref<1x1024xf32, #tpu.memory_space<vmem>>, vector<1x1024xf32>
    %44 = vector.broadcast %43 : vector<1x1024xf32> to vector<512x1024xf32>
    %45 = arith.addf %42, %44 : vector<512x1024xf32>
    %cst_18 = arith.constant 0.000000e+00 : f32
    %46 = vector.broadcast %cst_18 : f32 to vector<512x1024xf32>
    %47 = arith.maximumf %45, %46 : vector<512x1024xf32>
    %48 = vector.shape_cast %47 : vector<512x1024xf32> to vector<64x8x1024xf32>
    %cst_19 = arith.constant dense<0xFF800000> : vector<8x1024xf32>
    %49 = vector.multi_reduction <maximumf>, %48, %cst_19 [0] : vector<64x8x1024xf32> to vector<8x1024xf32>
    %c0_i32 = arith.constant 0 : i32
    %50 = arith.cmpi eq, %arg1, %c0_i32 : i32
    %51 = arith.extui %50 : i1 to i32
    %c0_i32_20 = arith.constant 0 : i32
    %52 = arith.cmpi ne, %51, %c0_i32_20 : i32
    scf.if %52 {
      %c0_24 = arith.constant 0 : index
      %c0_25 = arith.constant 0 : index
      %59 = vector.load %arg16[%c0_24, %c0_25] : memref<8x1024xf32, #tpu.memory_space<vmem>>, vector<8x1024xf32>
      tpu.vector_store %arg16[%c0_24, %c0_25], %49 {strides = array<i32>} : memref<8x1024xf32, #tpu.memory_space<vmem>>, vector<8x1024xf32>,
    } else {
    }
    %c0_i32_21 = arith.constant 0 : i32
    %53 = arith.cmpi sgt, %arg1, %c0_i32_21 : i32
    %54 = arith.extui %53 : i1 to i32
    %c0_i32_22 = arith.constant 0 : i32
    %55 = arith.cmpi ne, %54, %c0_i32_22 : i32
    scf.if %55 {
      %c0_24 = arith.constant 0 : index
      %c0_25 = arith.constant 0 : index
      %59 = vector.load %arg16[%c0_24, %c0_25] : memref<8x1024xf32, #tpu.memory_space<vmem>>, vector<8x1024xf32>
      %60 = arith.maximumf %59, %49 : vector<8x1024xf32>
      %c0_26 = arith.constant 0 : index
      %c0_27 = arith.constant 0 : index
      %61 = vector.load %arg16[%c0_26, %c0_27] : memref<8x1024xf32, #tpu.memory_space<vmem>>, vector<8x1024xf32>
      tpu.vector_store %arg16[%c0_26, %c0_27], %60 {strides = array<i32>} : memref<8x1024xf32, #tpu.memory_space<vmem>>, vector<8x1024xf32>,
    } else {
    }
    %c1_i32 = arith.constant 1 : i32
    %56 = arith.cmpi eq, %arg1, %c1_i32 : i32
    %57 = arith.extui %56 : i1 to i32
    %c0_i32_23 = arith.constant 0 : i32
    %58 = arith.cmpi ne, %57, %c0_i32_23 : i32
    scf.if %58 {
      %c0_24 = arith.constant 0 : index
      %c0_25 = arith.constant 0 : index
      %59 = vector.load %arg16[%c0_24, %c0_25] : memref<8x1024xf32, #tpu.memory_space<vmem>>, vector<8x1024xf32>
      %cst_26 = arith.constant dense<0xFF800000> : vector<1024xf32>
      %60 = vector.multi_reduction <maximumf>, %59, %cst_26 [0] : vector<8x1024xf32> to vector<1024xf32>
      %61 = vector.shape_cast %60 : vector<1024xf32> to vector<1x1024xf32>
      %62 = arith.truncf %61 : vector<1x1024xf32> to vector<1x1024xbf16>
      %c0_27 = arith.constant 0 : index
      %c0_28 = arith.constant 0 : index
      %63 = vector.load %arg9[%c0_27, %c0_28] : memref<1024x512xbf16, #tpu.memory_space<vmem>>, vector<1024x512xbf16>
      %cst_29 = arith.constant dense<0.000000e+00> : vector<1x512xf32>
      %64 = tpu.matmul %62, %63, %cst_29 {dimension_numbers = #tpu.dot_dimension_numbers<[1], [0], [0], [1], [0, 0, 1, 1], [], []>} : vector<1x1024xbf16>, vector<1024x512xbf16>, vector<1x512xf32> -> vector<1x512xf32>
      %c0_30 = arith.constant 0 : index
      %c0_31 = arith.constant 0 : index
      %65 = vector.load %arg10[%c0_30, %c0_31] : memref<1x512xf32, #tpu.memory_space<vmem>>, vector<1x512xf32>
      %66 = arith.addf %64, %65 : vector<1x512xf32>
      %cst_32 = arith.constant 0.000000e+00 : f32
      %67 = vector.broadcast %cst_32 : f32 to vector<1x512xf32>
      %68 = arith.maximumf %66, %67 : vector<1x512xf32>
      %69 = arith.truncf %68 : vector<1x512xf32> to vector<1x512xbf16>
      %c0_33 = arith.constant 0 : index
      %c0_34 = arith.constant 0 : index
      %70 = vector.load %arg11[%c0_33, %c0_34] : memref<512x256xbf16, #tpu.memory_space<vmem>>, vector<512x256xbf16>
      %cst_35 = arith.constant dense<0.000000e+00> : vector<1x256xf32>
      %71 = tpu.matmul %69, %70, %cst_35 {dimension_numbers = #tpu.dot_dimension_numbers<[1], [0], [0], [1], [0, 0, 1, 1], [], []>} : vector<1x512xbf16>, vector<512x256xbf16>, vector<1x256xf32> -> vector<1x256xf32>
      %c0_36 = arith.constant 0 : index
      %c0_37 = arith.constant 0 : index
      %72 = vector.load %arg12[%c0_36, %c0_37] : memref<1x256xf32, #tpu.memory_space<vmem>>, vector<1x256xf32>
      %73 = arith.addf %71, %72 : vector<1x256xf32>
      %cst_38 = arith.constant 0.000000e+00 : f32
      %74 = vector.broadcast %cst_38 : f32 to vector<1x256xf32>
      %75 = arith.maximumf %73, %74 : vector<1x256xf32>
      %76 = arith.truncf %75 : vector<1x256xf32> to vector<1x256xbf16>
      %c0_39 = arith.constant 0 : index
      %c0_40 = arith.constant 0 : index
      %77 = vector.load %arg13[%c0_39, %c0_40] : memref<256x128xbf16, #tpu.memory_space<vmem>>, vector<256x128xbf16>
      %cst_41 = arith.constant dense<0.000000e+00> : vector<1x128xf32>
      %78 = tpu.matmul %76, %77, %cst_41 {dimension_numbers = #tpu.dot_dimension_numbers<[1], [0], [0], [1], [0, 0, 1, 1], [], []>} : vector<1x256xbf16>, vector<256x128xbf16>, vector<1x128xf32> -> vector<1x128xf32>
      %c0_42 = arith.constant 0 : index
      %c0_43 = arith.constant 0 : index
      %79 = vector.load %arg14[%c0_42, %c0_43] : memref<1x128xf32, #tpu.memory_space<vmem>>, vector<1x128xf32>
      %80 = arith.addf %78, %79 : vector<1x128xf32>
      %c0_44 = arith.constant 0 : index
      %c0_45 = arith.constant 0 : index
      %c0_46 = arith.constant 0 : index
      %81 = vector.load %arg15[%c0_44, %c0_45, %c0_46] : memref<1x1x128xf32, #tpu.memory_space<vmem>>, vector<1x1x128xf32>
      %82 = vector.shape_cast %81 : vector<1x1x128xf32> to vector<1x128xf32>
      %83 = vector.shape_cast %80 : vector<1x128xf32> to vector<1x1x128xf32>
      tpu.vector_store %arg15[%c0_44, %c0_45, %c0_46], %83 {strides = array<i32>} : memref<1x1x128xf32, #tpu.memory_space<vmem>>, vector<1x1x128xf32>,
    } else {
    }
    return
  }
  func.func @transform_0(%arg0: i32, %arg1: i32) -> (i32, i32, i32) {
    %c0_i32 = arith.constant 0 : i32
    %c0_i32_0 = arith.constant 0 : i32
    return %arg0, %arg1, %c0_i32 : i32, i32, i32
  }
  func.func @transform_1(%arg0: i32, %arg1: i32) -> (i32, i32, i32) {
    %c0_i32 = arith.constant 0 : i32
    %c0_i32_0 = arith.constant 0 : i32
    %c0_i32_1 = arith.constant 0 : i32
    return %arg0, %c0_i32, %c0_i32_0 : i32, i32, i32
  }
  func.func @transform_2(%arg0: i32, %arg1: i32) -> (i32, i32) {
    %c0_i32 = arith.constant 0 : i32
    %c0_i32_0 = arith.constant 0 : i32
    %c0_i32_1 = arith.constant 0 : i32
    return %c0_i32, %c0_i32_0 : i32, i32
  }
  func.func @transform_3(%arg0: i32, %arg1: i32) -> (i32, i32) {
    %c0_i32 = arith.constant 0 : i32
    %c0_i32_0 = arith.constant 0 : i32
    %c0_i32_1 = arith.constant 0 : i32
    return %c0_i32, %c0_i32_0 : i32, i32
  }
  func.func @transform_4(%arg0: i32, %arg1: i32) -> (i32, i32) {
    %c0_i32 = arith.constant 0 : i32
    %c0_i32_0 = arith.constant 0 : i32
    %c0_i32_1 = arith.constant 0 : i32
    return %c0_i32, %c0_i32_0 : i32, i32
  }
  func.func @transform_5(%arg0: i32, %arg1: i32) -> (i32, i32) {
    %c0_i32 = arith.constant 0 : i32
    %c0_i32_0 = arith.constant 0 : i32
    %c0_i32_1 = arith.constant 0 : i32
    return %c0_i32, %c0_i32_0 : i32, i32
  }
  func.func @transform_6(%arg0: i32, %arg1: i32) -> (i32, i32) {
    %c0_i32 = arith.constant 0 : i32
    %c0_i32_0 = arith.constant 0 : i32
    %c0_i32_1 = arith.constant 0 : i32
    return %c0_i32, %c0_i32_0 : i32, i32
  }
  func.func @transform_7(%arg0: i32, %arg1: i32) -> (i32, i32) {
    %c0_i32 = arith.constant 0 : i32
    %c0_i32_0 = arith.constant 0 : i32
    %c0_i32_1 = arith.constant 0 : i32
    return %c0_i32, %c0_i32_0 : i32, i32
  }
  func.func @transform_8(%arg0: i32, %arg1: i32) -> (i32, i32) {
    %c0_i32 = arith.constant 0 : i32
    %c0_i32_0 = arith.constant 0 : i32
    %c0_i32_1 = arith.constant 0 : i32
    return %c0_i32, %c0_i32_0 : i32, i32
  }
  func.func @transform_9(%arg0: i32, %arg1: i32) -> (i32, i32) {
    %c0_i32 = arith.constant 0 : i32
    %c0_i32_0 = arith.constant 0 : i32
    %c0_i32_1 = arith.constant 0 : i32
    return %c0_i32, %c0_i32_0 : i32, i32
  }
  func.func @transform_10(%arg0: i32, %arg1: i32) -> (i32, i32) {
    %c0_i32 = arith.constant 0 : i32
    %c0_i32_0 = arith.constant 0 : i32
    %c0_i32_1 = arith.constant 0 : i32
    return %c0_i32, %c0_i32_0 : i32, i32
  }
  func.func @transform_11(%arg0: i32, %arg1: i32) -> (i32, i32) {
    %c0_i32 = arith.constant 0 : i32
    %c0_i32_0 = arith.constant 0 : i32
    %c0_i32_1 = arith.constant 0 : i32
    return %c0_i32, %c0_i32_0 : i32, i32
  }
  func.func @transform_12(%arg0: i32, %arg1: i32) -> (i32, i32) {
    %c0_i32 = arith.constant 0 : i32
    %c0_i32_0 = arith.constant 0 : i32
    %c0_i32_1 = arith.constant 0 : i32
    return %c0_i32, %c0_i32_0 : i32, i32
  }
  func.func @transform_13(%arg0: i32, %arg1: i32) -> (i32, i32, i32) {
    %c0_i32 = arith.constant 0 : i32
    %c0_i32_0 = arith.constant 0 : i32
    %c0_i32_1 = arith.constant 0 : i32
    return %arg0, %c0_i32, %c0_i32_0 : i32, i32, i32
  }
}

</mosaic_0001>

<llo_original>
// kernel: tpu_custom_call.1
$region0: #{tpu_custom_call.1}
  #allocation0 [shape = 'u32[]', space=smem, size = 0x4, offset = 0x4, fixed_abs, tag = 'smem constant byte address 0x4 - core index']
  #allocation1 [shape = 'u32[144,128]{1,0:T(1,128)}', space=vmem, size = 0x12000, scoped, tag = 'internal scratch']
  #allocation2 [shape = 'f32[8,1024]{1,0:T(8,128)}', space=vmem, size = 0x8000, scoped, tag = 'scratch operand']
  %s0 = inlined_call_operand.vmem [shape: f32[2,1024,4], index: 0, kind: input, shape index: {}]
  %s1 = inlined_call_operand.vmem [shape: f32[2,4,64], index: 1, kind: input, shape index: {}]
  %s2 = inlined_call_operand.vmem [shape: f32[1,64], index: 2, kind: input, shape index: {}]
  %s3 = inlined_call_operand.vmem [shape: bf16[64,128], index: 3, kind: input, shape index: {}]
  %s4 = inlined_call_operand.vmem [shape: f32[1,128], index: 4, kind: input, shape index: {}]
  %s5 = inlined_call_operand.hbm [shape: bf16[128,1024], index: 5, kind: input, shape index: {}]
  %s6 = inlined_call_operand.vmem [shape: f32[1,1024], index: 6, kind: input, shape index: {}]
  %s7 = inlined_call_operand.vmem [shape: bf16[1024,512], index: 7, kind: input, shape index: {}]
  %s8 = inlined_call_operand.vmem [shape: f32[1,512], index: 8, kind: input, shape index: {}]
  %s9 = inlined_call_operand.hbm [shape: bf16[512,256], index: 9, kind: input, shape index: {}]
  %s10 = inlined_call_operand.vmem [shape: f32[1,256], index: 10, kind: input, shape index: {}]
  %s11 = inlined_call_operand.hbm [shape: bf16[256,128], index: 11, kind: input, shape index: {}]
  %s12 = inlined_call_operand.vmem [shape: f32[1,128], index: 12, kind: input, shape index: {}]
  %s13 = inlined_call_operand.hbm [shape: f32[2,1,128], index: 13, kind: output, shape index: {}]
  %s14 = sld [smem:[#allocation0]]
  $region109: #{tpu_custom_call.1} parent=0
    _
  %s16 = ssub.s32 1, %s14
  %s17 = scalar_select 0, %s16, %s14
  $region1: #{tpu_custom_call.1} parent=0
    #allocation3 [shape = 'u8[262144]{0}', space=vmem, size = 0x40000, scoped, tag = 'input window, operand 5, single buffered']
    #allocation4 [shape = 's32[2]{0}', space=sflag, size = 0x8, scoped, tag = 'scoped memory for tpu_custom_call.1']
    #allocation5 [shape = 's32[2]{0}', space=sflag, size = 0x8, scoped, tag = 'scoped memory for tpu_custom_call.1']
    #allocation6 [shape = 'u8[262144]{0}', space=vmem, size = 0x40000, scoped, tag = 'input window, operand 9, single buffered']
    #allocation7 [shape = 's32[1]{0}', space=sflag, size = 0x4, scoped, tag = 'scoped memory for tpu_custom_call.1']
    #allocation8 [shape = 'u8[65536]{0}', space=vmem, size = 0x10000, scoped, tag = 'input window, operand 11, single buffered']
    #allocation9 [shape = 'u8[1024]{0}', space=vmem, size = 0x400, scoped, tag = 'output window, operand 0']
    %18 = vsyncpa [#allocation4], 0
    %19 = vsyncpa [#allocation7], 0
    %20 = vsyncpa [#allocation5], 0
    %s21 = scalar_lea.sflag [#allocation5], 1
    %22 = vsyncpa %s21, 0
    loop: start=0, step=1, limit=6
    $region2: #{tpu_custom_call.1} parent=1 // loop_pre_header
      _
    $region3: #{tpu_custom_call.1} parent=1 // loop_header
      %s24 = sphi 0, %s28
      %p25 = scmp.ge.s32.totalorder %s24, 6
      %s31 = sphi 0, %s43
      %s32 = sphi 0, %s39
      %s33 = sphi 0, %s31
      %s34 = sphi 0, %s32
      %s35 = sphi 0, %s33
      %s36 = sphi 0, %s34
      %s48 = sphi 0, %s50
      %s51 = sphi 0, %s48
      %s52 = sphi 0, %s51
      %s68 = sphi 0, %s52
      %s74 = sphi 0, %s76
      %s77 = sphi 0, %s74
      %s78 = sphi 0, %s77
      %s94 = sphi 0, %s78
      %s98 = sphi 0, %s98
      %s100 = sphi 0, %s98
      %s101 = sphi 0, %s100
      %s115 = sphi 0, %s101
      %s119 = sphi 0, %s119
      %s121 = sphi 0, %s119
      %s122 = sphi 0, %s121
      %s136 = sphi 0, %s122
      %s140 = sphi 0, %s140
      %s142 = sphi 0, %s140
      %s143 = sphi 0, %s142
      %s157 = sphi 0, %s143
      %s161 = sphi 0, %s161
      %s163 = sphi 0, %s161
      %s164 = sphi 0, %s163
      %s178 = sphi 0, %s164
      %s182 = sphi 0, %s182
      %s184 = sphi 0, %s182
      %s185 = sphi 0, %s184
      %s199 = sphi 0, %s185
      %s203 = sphi 0, %s203
      %s205 = sphi 0, %s203
      %s206 = sphi 0, %s205
      %s220 = sphi 0, %s206
      %s224 = sphi 0, %s224
      %s226 = sphi 0, %s224
      %s227 = sphi 0, %s226
      %s241 = sphi 0, %s227
      %s245 = sphi 0, %s245
      %s247 = sphi 0, %s245
      %s248 = sphi 0, %s247
      %s262 = sphi 0, %s248
      %s266 = sphi 0, %s266
      %s268 = sphi 0, %s266
      %s269 = sphi 0, %s268
      %s283 = sphi 0, %s269
      %s287 = sphi 0, %s287
      %s289 = sphi 0, %s287
      %s290 = sphi 0, %s289
      %s304 = sphi 0, %s290
      %s308 = sphi 0, %s308
      %s310 = sphi 0, %s308
      %s311 = sphi 0, %s310
      %s325 = sphi 0, %s311
      %s331 = sphi 0, %s333
      %s334 = sphi 0, %s331
      %s335 = sphi 0, %s334
      %s351 = sphi 0, %s335
    $region4: #{tpu_custom_call.1} parent=1 // loop_header_branch
      %27 = sbr.rel (%p25) target = $region8
    $region5: #{tpu_custom_call.1} parent=1 // loop_body
      %s29 = ssub.s32 %s24, 1
      %s30 = ssub.s32 %s24, 2
      %s37 = sadd.s32 1, %s32
      %p38 = scmp.ge.s32.totalorder %s37, 2
      %s39 = scalar_select %p38, 0, %s37
      %s40 = sadd.s32 1, %s31
      %s41 = scalar_select %p38, %s40, %s31
      %p42 = scmp.ge.s32.totalorder %s41, 2
      %s43 = scalar_select %p42, 0, %s41
      %s44 = ssub.s32 %s31, %s43
      %s45 = ssub.s32 %s32, %s39
      %s46 = sor.u32 %s44, %s45
      %p47 = scmp.eq.s32.totalorder %s46, 0
      %s49 = sadd.s32 %s48, 1
      %s50 = scalar_select %p47, %s48, %s49
      %p53 = pneg %p47
      %p54 = scmp.eq.s32.totalorder %s24, 3
      %p55 = por %p53, %p54
      %p56 = scmp.ne.s32.totalorder %s48, %s51
      %p57 = scmp.eq.s32.totalorder %s24, 0
      %p58 = por %p56, %p57
      %p59 = scmp.ne.s32.totalorder %s48, %s51
      %p60 = scmp.eq.s32.totalorder %s29, 3
      %p61 = por %p59, %p60
      %p62 = scmp.ne.s32.totalorder %s51, %s52
      %p63 = scmp.eq.s32.totalorder %s29, 0
      %p64 = por %p62, %p63
      %p65 = scmp.ne.s32.totalorder %s51, %s52
      %p66 = scmp.eq.s32.totalorder %s30, 3
      %p67 = por %p65, %p66
      %p69 = scmp.ne.s32.totalorder %s52, %s68
      %p70 = scmp.eq.s32.totalorder %s30, 0
      %p71 = por %p69, %p70
      %s72 = ssub.s32 %s31, %s43
      %p73 = scmp.eq.s32.totalorder %s72, 0
      %s75 = sadd.s32 %s74, 1
      %s76 = scalar_select %p73, %s74, %s75
      %p79 = pneg %p73
      %p80 = scmp.eq.s32.totalorder %s24, 3
      %p81 = por %p79, %p80
      %p82 = scmp.ne.s32.totalorder %s74, %s77
      %p83 = scmp.eq.s32.totalorder %s24, 0
      %p84 = por %p82, %p83
      %p85 = scmp.ne.s32.totalorder %s74, %s77
      %p86 = scmp.eq.s32.totalorder %s29, 3
      %p87 = por %p85, %p86
      %p88 = scmp.ne.s32.totalorder %s77, %s78
      %p89 = scmp.eq.s32.totalorder %s29, 0
      %p90 = por %p88, %p89
      %p91 = scmp.ne.s32.totalorder %s77, %s78
      %p92 = scmp.eq.s32.totalorder %s30, 3
      %p93 = por %p91, %p92
      %p95 = scmp.ne.s32.totalorder %s78, %s94
      %p96 = scmp.eq.s32.totalorder %s30, 0
      %p97 = por %p95, %p96
      %s99 = sadd.s32 %s98, 1
      %p102 = scmp.eq.s32.totalorder %s24, 3
      %p103 = scmp.ne.s32.totalorder %s98, %s100
      %p104 = scmp.eq.s32.totalorder %s24, 0
      %p105 = por %p103, %p104
      %p106 = scmp.ne.s32.totalorder %s98, %s100
      %p107 = scmp.eq.s32.totalorder %s29, 3
      %p108 = por %p106, %p107
      %p109 = scmp.ne.s32.totalorder %s100, %s101
      %p110 = scmp.eq.s32.totalorder %s29, 0
      %p111 = por %p109, %p110
      %p112 = scmp.ne.s32.totalorder %s100, %s101
      %p113 = scmp.eq.s32.totalorder %s30, 3
      %p114 = por %p112, %p113
      %p116 = scmp.ne.s32.totalorder %s101, %s115
      %p117 = scmp.eq.s32.totalorder %s30, 0
      %p118 = por %p116, %p117
      %s120 = sadd.s32 %s119, 1
      %p123 = scmp.eq.s32.totalorder %s24, 3
      %p124 = scmp.ne.s32.totalorder %s119, %s121
      %p125 = scmp.eq.s32.totalorder %s24, 0
      %p126 = por %p124, %p125
      %p127 = scmp.ne.s32.totalorder %s119, %s121
      %p128 = scmp.eq.s32.totalorder %s29, 3
      %p129 = por %p127, %p128
      %p130 = scmp.ne.s32.totalorder %s121, %s122
      %p131 = scmp.eq.s32.totalorder %s29, 0
      %p132 = por %p130, %p131
      %p133 = scmp.ne.s32.totalorder %s121, %s122
      %p134 = scmp.eq.s32.totalorder %s30, 3
      %p135 = por %p133, %p134
      %p137 = scmp.ne.s32.totalorder %s122, %s136
      %p138 = scmp.eq.s32.totalorder %s30, 0
      %p139 = por %p137, %p138
      %s141 = sadd.s32 %s140, 1
      %p144 = scmp.eq.s32.totalorder %s24, 3
      %p145 = scmp.ne.s32.totalorder %s140, %s142
      %p146 = scmp.eq.s32.totalorder %s24, 0
      %p147 = por %p145, %p146
      %p148 = scmp.ne.s32.totalorder %s140, %s142
      %p149 = scmp.eq.s32.totalorder %s29, 3
      %p150 = por %p148, %p149
      %p151 = scmp.ne.s32.totalorder %s142, %s143
      %p152 = scmp.eq.s32.totalorder %s29, 0
      %p153 = por %p151, %p152
      %p154 = scmp.ne.s32.totalorder %s142, %s143
      %p155 = scmp.eq.s32.totalorder %s30, 3
      %p156 = por %p154, %p155
      %p158 = scmp.ne.s32.totalorder %s143, %s157
      %p159 = scmp.eq.s32.totalorder %s30, 0
      %p160 = por %p158, %p159
      %s162 = sadd.s32 %s161, 1
      %p165 = scmp.eq.s32.totalorder %s24, 3
      %p166 = scmp.ne.s32.totalorder %s161, %s163
      %p167 = scmp.eq.s32.totalorder %s24, 0
      %p168 = por %p166, %p167
      %p169 = scmp.ne.s32.totalorder %s161, %s163
      %p170 = scmp.eq.s32.totalorder %s29, 3
      %p171 = por %p169, %p170
      %p172 = scmp.ne.s32.totalorder %s163, %s164
      %p173 = scmp.eq.s32.totalorder %s29, 0
      %p174 = por %p172, %p173
      %p175 = scmp.ne.s32.totalorder %s163, %s164
      %p176 = scmp.eq.s32.totalorder %s30, 3
      %p177 = por %p175, %p176
      %p179 = scmp.ne.s32.totalorder %s164, %s178
      %p180 = scmp.eq.s32.totalorder %s30, 0
      %p181 = por %p179, %p180
      %s183 = sadd.s32 %s182, 1
      %p186 = scmp.eq.s32.totalorder %s24, 3
      %p187 = scmp.ne.s32.totalorder %s182, %s184
      %p188 = scmp.eq.s32.totalorder %s24, 0
      %p189 = por %p187, %p188
      %p190 = scmp.ne.s32.totalorder %s182, %s184
      %p191 = scmp.eq.s32.totalorder %s29, 3
      %p192 = por %p190, %p191
      %p193 = scmp.ne.s32.totalorder %s184, %s185
      %p194 = scmp.eq.s32.totalorder %s29, 0
      %p195 = por %p193, %p194
      %p196 = scmp.ne.s32.totalorder %s184, %s185
      %p197 = scmp.eq.s32.totalorder %s30, 3
      %p198 = por %p196, %p197
      %p200 = scmp.ne.s32.totalorder %s185, %s199
      %p201 = scmp.eq.s32.totalorder %s30, 0
      %p202 = por %p200, %p201
      %s204 = sadd.s32 %s203, 1
      %p207 = scmp.eq.s32.totalorder %s24, 3
      %p208 = scmp.ne.s32.totalorder %s203, %s205
      %p209 = scmp.eq.s32.totalorder %s24, 0
      %p210 = por %p208, %p209
      %p211 = scmp.ne.s32.totalorder %s203, %s205
      %p212 = scmp.eq.s32.totalorder %s29, 3
      %p213 = por %p211, %p212
      %p214 = scmp.ne.s32.totalorder %s205, %s206
      %p215 = scmp.eq.s32.totalorder %s29, 0
      %p216 = por %p214, %p215
      %p217 = scmp.ne.s32.totalorder %s205, %s206
      %p218 = scmp.eq.s32.totalorder %s30, 3
      %p219 = por %p217, %p218
      %p221 = scmp.ne.s32.totalorder %s206, %s220
      %p222 = scmp.eq.s32.totalorder %s30, 0
      %p223 = por %p221, %p222
      %s225 = sadd.s32 %s224, 1
      %p228 = scmp.eq.s32.totalorder %s24, 3
      %p229 = scmp.ne.s32.totalorder %s224, %s226
      %p230 = scmp.eq.s32.totalorder %s24, 0
      %p231 = por %p229, %p230
      %p232 = scmp.ne.s32.totalorder %s224, %s226
      %p233 = scmp.eq.s32.totalorder %s29, 3
      %p234 = por %p232, %p233
      %p235 = scmp.ne.s32.totalorder %s226, %s227
      %p236 = scmp.eq.s32.totalorder %s29, 0
      %p237 = por %p235, %p236
      %p238 = scmp.ne.s32.totalorder %s226, %s227
      %p239 = scmp.eq.s32.totalorder %s30, 3
      %p240 = por %p238, %p239
      %p242 = scmp.ne.s32.totalorder %s227, %s241
      %p243 = scmp.eq.s32.totalorder %s30, 0
      %p244 = por %p242, %p243
      %s246 = sadd.s32 %s245, 1
      %p249 = scmp.eq.s32.totalorder %s24, 3
      %p250 = scmp.ne.s32.totalorder %s245, %s247
      %p251 = scmp.eq.s32.totalorder %s24, 0
      %p252 = por %p250, %p251
      %p253 = scmp.ne.s32.totalorder %s245, %s247
      %p254 = scmp.eq.s32.totalorder %s29, 3
      %p255 = por %p253, %p254
      %p256 = scmp.ne.s32.totalorder %s247, %s248
      %p257 = scmp.eq.s32.totalorder %s29, 0
      %p258 = por %p256, %p257
      %p259 = scmp.ne.s32.totalorder %s247, %s248
      %p260 = scmp.eq.s32.totalorder %s30, 3
      %p261 = por %p259, %p260
      %p263 = scmp.ne.s32.totalorder %s248, %s262
      %p264 = scmp.eq.s32.totalorder %s30, 0
      %p265 = por %p263, %p264
      %s267 = sadd.s32 %s266, 1
      %p270 = scmp.eq.s32.totalorder %s24, 3
      %p271 = scmp.ne.s32.totalorder %s266, %s268
      %p272 = scmp.eq.s32.totalorder %s24, 0
      %p273 = por %p271, %p272
      %p274 = scmp.ne.s32.totalorder %s266, %s268
      %p275 = scmp.eq.s32.totalorder %s29, 3
      %p276 = por %p274, %p275
      %p277 = scmp.ne.s32.totalorder %s268, %s269
      %p278 = scmp.eq.s32.totalorder %s29, 0
      %p279 = por %p277, %p278
      %p280 = scmp.ne.s32.totalorder %s268, %s269
      %p281 = scmp.eq.s32.totalorder %s30, 3
      %p282 = por %p280, %p281
      %p284 = scmp.ne.s32.totalorder %s269, %s283
      %p285 = scmp.eq.s32.totalorder %s30, 0
      %p286 = por %p284, %p285
      %s288 = sadd.s32 %s287, 1
      %p291 = scmp.eq.s32.totalorder %s24, 3
      %p292 = scmp.ne.s32.totalorder %s287, %s289
      %p293 = scmp.eq.s32.totalorder %s24, 0
      %p294 = por %p292, %p293
      %p295 = scmp.ne.s32.totalorder %s287, %s289
      %p296 = scmp.eq.s32.totalorder %s29, 3
      %p297 = por %p295, %p296
      %p298 = scmp.ne.s32.totalorder %s289, %s290
      %p299 = scmp.eq.s32.totalorder %s29, 0
      %p300 = por %p298, %p299
      %p301 = scmp.ne.s32.totalorder %s289, %s290
      %p302 = scmp.eq.s32.totalorder %s30, 3
      %p303 = por %p301, %p302
      %p305 = scmp.ne.s32.totalorder %s290, %s304
      %p306 = scmp.eq.s32.totalorder %s30, 0
      %p307 = por %p305, %p306
      %s309 = sadd.s32 %s308, 1
      %p312 = scmp.eq.s32.totalorder %s24, 3
      %p313 = scmp.ne.s32.totalorder %s308, %s310
      %p314 = scmp.eq.s32.totalorder %s24, 0
      %p315 = por %p313, %p314
      %p316 = scmp.ne.s32.totalorder %s308, %s310
      %p317 = scmp.eq.s32.totalorder %s29, 3
      %p318 = por %p316, %p317
      %p319 = scmp.ne.s32.totalorder %s310, %s311
      %p320 = scmp.eq.s32.totalorder %s29, 0
      %p321 = por %p319, %p320
      %p322 = scmp.ne.s32.totalorder %s310, %s311
      %p323 = scmp.eq.s32.totalorder %s30, 3
      %p324 = por %p322, %p323
      %p326 = scmp.ne.s32.totalorder %s311, %s325
      %p327 = scmp.eq.s32.totalorder %s30, 0
      %p328 = por %p326, %p327
      %s329 = ssub.s32 %s31, %s43
      %p330 = scmp.eq.s32.totalorder %s329, 0
      %s332 = sadd.s32 %s331, 1
      %s333 = scalar_select %p330, %s331, %s332
      %p336 = pneg %p330
      %p337 = scmp.eq.s32.totalorder %s24, 3
      %p338 = por %p336, %p337
      %p339 = scmp.ne.s32.totalorder %s331, %s334
      %p340 = scmp.eq.s32.totalorder %s24, 0
      %p341 = por %p339, %p340
      %p342 = scmp.ne.s32.totalorder %s331, %s334
      %p343 = scmp.eq.s32.totalorder %s29, 3
      %p344 = por %p342, %p343
      %p345 = scmp.ne.s32.totalorder %s334, %s335
      %p346 = scmp.eq.s32.totalorder %s29, 0
      %p347 = por %p345, %p346
      %p348 = scmp.ne.s32.totalorder %s334, %s335
      %p349 = scmp.eq.s32.totalorder %s30, 3
      %p350 = por %p348, %p349
      %p352 = scmp.ne.s32.totalorder %s335, %s351
      %p353 = scmp.eq.s32.totalorder %s30, 0
      %p354 = por %p352, %p353
      %p355 = scmp.le.s32.totalorder 1, %s24
      %p356 = scmp.lt.s32.totalorder %s24, 5
      %p357 = pnand %p355, %p356
      %p358 = pneg %p357
      // Predicated region
      $region9: #{tpu_custom_call.1} parent=5 // pred_check
        _
      $region10: #{tpu_custom_call.1} parent=5 // pred_check_branch
        %360 = sbr.rel (%p357) target = $region12
      $region11: #{tpu_custom_call.1} parent=5 // pred_region
        %s361 = ssub.s32 %s24, 1
        // Predicated region
        $region13: #{tpu_custom_call.1} parent=11 // pred_check
          %p362 = pneg %p111
        $region14: #{tpu_custom_call.1} parent=11 // pred_check_branch
          %364 = sbr.rel (%p362) target = $region16
        $region15: #{tpu_custom_call.1} parent=11 // pred_region
          _
        $region16: #{tpu_custom_call.1} parent=11 // pred_fallthru
          _
        // Predicated region
        $region17: #{tpu_custom_call.1} parent=11 // pred_check
          %p365 = pneg %p132
        $region18: #{tpu_custom_call.1} parent=11 // pred_check_branch
          %367 = sbr.rel (%p365) target = $region20
        $region19: #{tpu_custom_call.1} parent=11 // pred_region
          _
        $region20: #{tpu_custom_call.1} parent=11 // pred_fallthru
          _
        // Predicated region
        $region21: #{tpu_custom_call.1} parent=11 // pred_check
          %p368 = pneg %p153
        $region22: #{tpu_custom_call.1} parent=11 // pred_check_branch
          %370 = sbr.rel (%p368) target = $region24
        $region23: #{tpu_custom_call.1} parent=11 // pred_region
          _
        $region24: #{tpu_custom_call.1} parent=11 // pred_fallthru
          _
        // Predicated region
        $region25: #{tpu_custom_call.1} parent=11 // pred_check
          %p371 = pneg %p174
        $region26: #{tpu_custom_call.1} parent=11 // pred_check_branch
          %373 = sbr.rel (%p371) target = $region28
        $region27: #{tpu_custom_call.1} parent=11 // pred_region
          %s375 = ssub.s32 8192, 8192
          %376 = vsyncadd [#allocation4], %s375
          %s377 = sshll.u32 [#allocation3], 4
          %s378 = int_to_ptr.vmem [resolvable:$true] %s377
          %383 = dma.hbm_to_vmem [thread:$0]  %s5, 8192, %s378, [#allocation4], 512, 512, 32
        $region28: #{tpu_custom_call.1} parent=11 // pred_fallthru
          _
        // Predicated region
        $region29: #{tpu_custom_call.1} parent=11 // pred_check
          %p384 = pneg %p195
        $region30: #{tpu_custom_call.1} parent=11 // pred_check_branch
          %386 = sbr.rel (%p384) target = $region32
        $region31: #{tpu_custom_call.1} parent=11 // pred_region
          _
        $region32: #{tpu_custom_call.1} parent=11 // pred_fallthru
          _
        // Predicated region
        $region33: #{tpu_custom_call.1} parent=11 // pred_check
          %p387 = pneg %p216
        $region34: #{tpu_custom_call.1} parent=11 // pred_check_branch
          %389 = sbr.rel (%p387) target = $region36
        $region35: #{tpu_custom_call.1} parent=11 // pred_region
          _
        $region36: #{tpu_custom_call.1} parent=11 // pred_fallthru
          _
        // Predicated region
        $region37: #{tpu_custom_call.1} parent=11 // pred_check
          %p390 = pneg %p237
        $region38: #{tpu_custom_call.1} parent=11 // pred_check_branch
          %392 = sbr.rel (%p390) target = $region40
        $region39: #{tpu_custom_call.1} parent=11 // pred_region
          _
        $region40: #{tpu_custom_call.1} parent=11 // pred_fallthru
          _
        // Predicated region
        $region41: #{tpu_custom_call.1} parent=11 // pred_check
          %p393 = pneg %p258
        $region42: #{tpu_custom_call.1} parent=11 // pred_check_branch
          %395 = sbr.rel (%p393) target = $region44
        $region43: #{tpu_custom_call.1} parent=11 // pred_region
          %s397 = ssub.s32 8192, 8192
          %398 = vsyncadd [#allocation7], %s397
          %s399 = sshll.u32 [#allocation6], 4
          %s400 = int_to_ptr.vmem [resolvable:$true] %s399
          %405 = dma.hbm_to_vmem [thread:$0]  %s9, 8192, %s400, [#allocation7], 128, 128, 8
        $region44: #{tpu_custom_call.1} parent=11 // pred_fallthru
          _
        // Predicated region
        $region45: #{tpu_custom_call.1} parent=11 // pred_check
          %p406 = pneg %p279
        $region46: #{tpu_custom_call.1} parent=11 // pred_check_branch
          %408 = sbr.rel (%p406) target = $region48
        $region47: #{tpu_custom_call.1} parent=11 // pred_region
          _
        $region48: #{tpu_custom_call.1} parent=11 // pred_fallthru
          _
        // Predicated region
        $region49: #{tpu_custom_call.1} parent=11 // pred_check
          %p409 = pneg %p300
        $region50: #{tpu_custom_call.1} parent=11 // pred_check_branch
          %411 = sbr.rel (%p409) target = $region52
        $region51: #{tpu_custom_call.1} parent=11 // pred_region
          %s413 = ssub.s32 2048, 2048
          %414 = vsyncadd [#allocation7], %s413
          %s415 = sshll.u32 [#allocation8], 4
          %s416 = int_to_ptr.vmem [resolvable:$true] %s415
          %421 = dma.hbm_to_vmem [thread:$0]  %s11, 2048, %s416, [#allocation7], 64, 64, 4
        $region52: #{tpu_custom_call.1} parent=11 // pred_fallthru
          _
        // Predicated region
        $region53: #{tpu_custom_call.1} parent=11 // pred_check
          %p422 = pneg %p321
        $region54: #{tpu_custom_call.1} parent=11 // pred_check_branch
          %424 = sbr.rel (%p422) target = $region56
        $region55: #{tpu_custom_call.1} parent=11 // pred_region
          _
        $region56: #{tpu_custom_call.1} parent=11 // pred_fallthru
          _
      $region12: #{tpu_custom_call.1} parent=5 // pred_fallthru
        _
      %p425 = scmp.lt.s32.totalorder %s24, 4
      // Predicated region
      $region57: #{tpu_custom_call.1} parent=5 // pred_check
        %p426 = pneg %p425
      $region58: #{tpu_custom_call.1} parent=5 // pred_check_branch
        %428 = sbr.rel (%p426) target = $region60
      $region59: #{tpu_custom_call.1} parent=5 // pred_region
        // Predicated region
        $region61: #{tpu_custom_call.1} parent=59 // pred_check
          %p429 = pneg %p58
        $region62: #{tpu_custom_call.1} parent=59 // pred_check_branch
          %431 = sbr.rel (%p429) target = $region64
        $region63: #{tpu_custom_call.1} parent=59 // pred_region
          %s432 = smul.u32 64, %s32
          %p433 = scmp.lt.s32.totalorder %s31, 1
          %s434 = scalar_select %p433, %s31, 1
          %p435 = scmp.lt.s32.totalorder %s432, 127
          %s436 = scalar_select %p435, %s432, 127
          %s437 = smul.addr %s434, 128
          %s438 = sadd.s32 %s436, %s437
          %s439 = smul.addr %s438, 8
          %s440 = scalar_lea.vmem %s0, %s439
          %s441 = smul.u32 64, %s32
        $region64: #{tpu_custom_call.1} parent=59 // pred_fallthru
          _
        // Predicated region
        $region65: #{tpu_custom_call.1} parent=59 // pred_check
          %p442 = pneg %p84
        $region66: #{tpu_custom_call.1} parent=59 // pred_check_branch
          %444 = sbr.rel (%p442) target = $region68
        $region67: #{tpu_custom_call.1} parent=59 // pred_region
          %p445 = scmp.lt.s32.totalorder %s31, 1
          %s446 = scalar_select %p445, %s31, 1
          %s447 = smul.addr %s446, 4
          %s448 = scalar_lea.vmem %s1, %s447
        $region68: #{tpu_custom_call.1} parent=59 // pred_fallthru
          _
      $region60: #{tpu_custom_call.1} parent=5 // pred_fallthru
        _
      %p449 = scmp.le.s32.totalorder 1, %s24
      %p450 = scmp.lt.s32.totalorder %s24, 5
      %p451 = pnand %p449, %p450
      %p452 = pneg %p451
      // Predicated region
      $region69: #{tpu_custom_call.1} parent=5 // pred_check
        _
      $region70: #{tpu_custom_call.1} parent=5 // pred_check_branch
        %454 = sbr.rel (%p451) target = $region72
      $region71: #{tpu_custom_call.1} parent=5 // pred_region
        %s455 = ssub.s32 %s24, 1
        // Predicated region
        $region73: #{tpu_custom_call.1} parent=71 // pred_check
          %p456 = pneg %p174
        $region74: #{tpu_custom_call.1} parent=71 // pred_check_branch
          %458 = sbr.rel (%p456) target = $region76
        $region75: #{tpu_custom_call.1} parent=71 // pred_region
          %459 = dma.done [#allocation4], 8192
        $region76: #{tpu_custom_call.1} parent=71 // pred_fallthru
          _
        // Predicated region
        $region77: #{tpu_custom_call.1} parent=71 // pred_check
          %p460 = pneg %p258
        $region78: #{tpu_custom_call.1} parent=71 // pred_check_branch
          %462 = sbr.rel (%p460) target = $region80
        $region79: #{tpu_custom_call.1} parent=71 // pred_region
          %463 = dma.done [#allocation7], 8192
        $region80: #{tpu_custom_call.1} parent=71 // pred_fallthru
          _
        // Predicated region
        $region81: #{tpu_custom_call.1} parent=71 // pred_check
          %p464 = pneg %p300
        $region82: #{tpu_custom_call.1} parent=71 // pred_check_branch
          %466 = sbr.rel (%p464) target = $region84
        $region83: #{tpu_custom_call.1} parent=71 // pred_region
          %467 = dma.done [#allocation7], 2048
        $region84: #{tpu_custom_call.1} parent=71 // pred_fallthru
          _
        %s468 = smul.u32 64, %s34
        %p469 = scmp.lt.s32.totalorder %s33, 1
        %s470 = scalar_select %p469, %s33, 1
        %p471 = scmp.lt.s32.totalorder %s468, 127
        %s472 = scalar_select %p471, %s468, 127
        %s473 = smul.addr %s470, 128
        %s474 = sadd.s32 %s472, %s473
        %s475 = smul.addr %s474, 8
        %s476 = scalar_lea.vmem %s0, %s475
        %p477 = pneg %p64
        %p478 = pneg %p61
        %p479 = scmp.lt.s32.totalorder %s33, 1
        %s480 = scalar_select %p479, %s33, 1
        %s481 = smul.addr %s480, 4
        %s482 = scalar_lea.vmem %s1, %s481
        %p483 = pneg %p90
        %p484 = pneg %p87
        %p485 = pneg %p111
        %p486 = pneg %p108
        %p487 = pneg %p132
        %p488 = pneg %p129
        %p489 = pneg %p153
        %p490 = pneg %p150
        %p491 = pneg %p174
        %p492 = pneg %p171
        %p493 = pneg %p195
        %p494 = pneg %p192
        %p495 = pneg %p216
        %p496 = pneg %p213
        %p497 = pneg %p237
        %p498 = pneg %p234
        %p499 = pneg %p258
        %p500 = pneg %p255
        %p501 = pneg %p279
        %p502 = pneg %p276
        %p503 = pneg %p300
        %p504 = pneg %p297
        %p505 = pneg %p321
        %p506 = pneg %p318
        %p507 = pneg %p347
        %p508 = pneg %p344
        %s509 = sand.u32 %s334, 1
        %s510 = scalar_lea.sflag [#allocation5], %s509
        %s511 = sand.u32 %s334, 1
        %s512 = scalar_lea.vmem [#allocation9], %s511
        %s513 = smul.u32 64, %s34
        %p514 = scmp.lt.s32.totalorder %s33, 1
        %s515 = scalar_select %p514, %s33, 1
        %p516 = scmp.lt.s32.totalorder %s513, 127
        %s517 = scalar_select %p516, %s513, 127
        %s518 = smul.addr %s515, 128
        %s519 = sadd.s32 %s517, %s518
        %s520 = smul.addr %s519, 8
        %s521 = scalar_lea.vmem %s0, %s520
        %s522 = smul.u32 64, %s34
        %p523 = scmp.lt.s32.totalorder %s33, 1
        %s524 = scalar_select %p523, %s33, 1
        %s525 = smul.addr %s524, 4
        %s526 = scalar_lea.vmem %s1, %s525
        %v528 = vld [vmem:[%s521] sm:$0xff]
        %v529 = vld [vmem:[%s521 + $0x8] sm:$0xff]
        %v530 = vld [vmem:[%s521 + $0x10] sm:$0xff]
        %v531 = vld [vmem:[%s521 + $0x18] sm:$0xff]
        %v532 = vld [vmem:[%s521 + $0x20] sm:$0xff]
        %v533 = vld [vmem:[%s521 + $0x28] sm:$0xff]
        %v534 = vld [vmem:[%s521 + $0x30] sm:$0xff]
        %v535 = vld [vmem:[%s521 + $0x38] sm:$0xff]
        %v536 = vld [vmem:[%s521 + $0x40] sm:$0xff]
        %v537 = vld [vmem:[%s521 + $0x48] sm:$0xff]
        %v538 = vld [vmem:[%s521 + $0x50] sm:$0xff]
        %v539 = vld [vmem:[%s521 + $0x58] sm:$0xff]
        %v540 = vld [vmem:[%s521 + $0x60] sm:$0xff]
        %v541 = vld [vmem:[%s521 + $0x68] sm:$0xff]
        %v542 = vld [vmem:[%s521 + $0x70] sm:$0xff]
        %v543 = vld [vmem:[%s521 + $0x78] sm:$0xff]
        %v544 = vld [vmem:[%s521 + $0x80] sm:$0xff]
        %v545 = vld [vmem:[%s521 + $0x88] sm:$0xff]
        %v546 = vld [vmem:[%s521 + $0x90] sm:$0xff]
        %v547 = vld [vmem:[%s521 + $0x98] sm:$0xff]
        %v548 = vld [vmem:[%s521 + $0xa0] sm:$0xff]
        %v549 = vld [vmem:[%s521 + $0xa8] sm:$0xff]
        %v550 = vld [vmem:[%s521 + $0xb0] sm:$0xff]
        %v551 = vld [vmem:[%s521 + $0xb8] sm:$0xff]
        %v552 = vld [vmem:[%s521 + $0xc0] sm:$0xff]
        %v553 = vld [vmem:[%s521 + $0xc8] sm:$0xff]
        %v554 = vld [vmem:[%s521 + $0xd0] sm:$0xff]
        %v555 = vld [vmem:[%s521 + $0xd8] sm:$0xff]
        %v556 = vld [vmem:[%s521 + $0xe0] sm:$0xff]
        %v557 = vld [vmem:[%s521 + $0xe8] sm:$0xff]
        %v558 = vld [vmem:[%s521 + $0xf0] sm:$0xff]
        %v559 = vld [vmem:[%s521 + $0xf8] sm:$0xff]
        %v560 = vld [vmem:[%s521 + $0x100] sm:$0xff]
        %v561 = vld [vmem:[%s521 + $0x108] sm:$0xff]
        %v562 = vld [vmem:[%s521 + $0x110] sm:$0xff]
        %v563 = vld [vmem:[%s521 + $0x118] sm:$0xff]
        %v564 = vld [vmem:[%s521 + $0x120] sm:$0xff]
        %v565 = vld [vmem:[%s521 + $0x128] sm:$0xff]
        %v566 = vld [vmem:[%s521 + $0x130] sm:$0xff]
        %v567 = vld [vmem:[%s521 + $0x138] sm:$0xff]
        %v568 = vld [vmem:[%s521 + $0x140] sm:$0xff]
        %v569 = vld [vmem:[%s521 + $0x148] sm:$0xff]
        %v570 = vld [vmem:[%s521 + $0x150] sm:$0xff]
        %v571 = vld [vmem:[%s521 + $0x158] sm:$0xff]
        %v572 = vld [vmem:[%s521 + $0x160] sm:$0xff]
        %v573 = vld [vmem:[%s521 + $0x168] sm:$0xff]
        %v574 = vld [vmem:[%s521 + $0x170] sm:$0xff]
        %v575 = vld [vmem:[%s521 + $0x178] sm:$0xff]
        %v576 = vld [vmem:[%s521 + $0x180] sm:$0xff]
        %v577 = vld [vmem:[%s521 + $0x188] sm:$0xff]
        %v578 = vld [vmem:[%s521 + $0x190] sm:$0xff]
        %v579 = vld [vmem:[%s521 + $0x198] sm:$0xff]
        %v580 = vld [vmem:[%s521 + $0x1a0] sm:$0xff]
        %v581 = vld [vmem:[%s521 + $0x1a8] sm:$0xff]
        %v582 = vld [vmem:[%s521 + $0x1b0] sm:$0xff]
        %v583 = vld [vmem:[%s521 + $0x1b8] sm:$0xff]
        %v584 = vld [vmem:[%s521 + $0x1c0] sm:$0xff]
        %v585 = vld [vmem:[%s521 + $0x1c8] sm:$0xff]
        %v586 = vld [vmem:[%s521 + $0x1d0] sm:$0xff]
        %v587 = vld [vmem:[%s521 + $0x1d8] sm:$0xff]
        %v588 = vld [vmem:[%s521 + $0x1e0] sm:$0xff]
        %v589 = vld [vmem:[%s521 + $0x1e8] sm:$0xff]
        %v590 = vld [vmem:[%s521 + $0x1f0] sm:$0xff]
        %v591 = vld [vmem:[%s521 + $0x1f8] sm:$0xff]
        %v592 = vld [vmem:[%s526] sm:$0xf]
        %594 = vset.pattern.permute.xlu0 0
        %595 = vperm.xlu0 %594, %v528
        %v596 = vpop.permute.xlu0 %595
        %599 = vset.pattern.permute.xlu0 0
        %600 = vperm.xlu0 %599, %v529
        %v601 = vpop.permute.xlu0 %600
        %604 = vset.pattern.permute.xlu0 0
        %605 = vperm.xlu0 %604, %v530
        %v606 = vpop.permute.xlu0 %605
        %609 = vset.pattern.permute.xlu0 0
        %610 = vperm.xlu0 %609, %v531
        %v611 = vpop.permute.xlu0 %610
        %614 = vset.pattern.permute.xlu0 0
        %615 = vperm.xlu0 %614, %v532
        %v616 = vpop.permute.xlu0 %615
        %619 = vset.pattern.permute.xlu0 0
        %620 = vperm.xlu0 %619, %v533
        %v621 = vpop.permute.xlu0 %620
        %624 = vset.pattern.permute.xlu0 0
        %625 = vperm.xlu0 %624, %v534
        %v626 = vpop.permute.xlu0 %625
        %629 = vset.pattern.permute.xlu0 0
        %630 = vperm.xlu0 %629, %v535
        %v631 = vpop.permute.xlu0 %630
        %634 = vset.pattern.permute.xlu0 0
        %635 = vperm.xlu0 %634, %v536
        %v636 = vpop.permute.xlu0 %635
        %639 = vset.pattern.permute.xlu0 0
        %640 = vperm.xlu0 %639, %v537
        %v641 = vpop.permute.xlu0 %640
        %644 = vset.pattern.permute.xlu0 0
        %645 = vperm.xlu0 %644, %v538
        %v646 = vpop.permute.xlu0 %645
        %649 = vset.pattern.permute.xlu0 0
        %650 = vperm.xlu0 %649, %v539
        %v651 = vpop.permute.xlu0 %650
        %654 = vset.pattern.permute.xlu0 0
        %655 = vperm.xlu0 %654, %v540
        %v656 = vpop.permute.xlu0 %655
        %659 = vset.pattern.permute.xlu0 0
        %660 = vperm.xlu0 %659, %v541
        %v661 = vpop.permute.xlu0 %660
        %664 = vset.pattern.permute.xlu0 0
        %665 = vperm.xlu0 %664, %v542
        %v666 = vpop.permute.xlu0 %665
        %669 = vset.pattern.permute.xlu0 0
        %670 = vperm.xlu0 %669, %v543
        %v671 = vpop.permute.xlu0 %670
        %674 = vset.pattern.permute.xlu0 0
        %675 = vperm.xlu0 %674, %v544
        %v676 = vpop.permute.xlu0 %675
        %679 = vset.pattern.permute.xlu0 0
        %680 = vperm.xlu0 %679, %v545
        %v681 = vpop.permute.xlu0 %680
        %684 = vset.pattern.permute.xlu0 0
        %685 = vperm.xlu0 %684, %v546
        %v686 = vpop.permute.xlu0 %685
        %689 = vset.pattern.permute.xlu0 0
        %690 = vperm.xlu0 %689, %v547
        %v691 = vpop.permute.xlu0 %690
        %694 = vset.pattern.permute.xlu0 0
        %695 = vperm.xlu0 %694, %v548
        %v696 = vpop.permute.xlu0 %695
        %699 = vset.pattern.permute.xlu0 0
        %700 = vperm.xlu0 %699, %v549
        %v701 = vpop.permute.xlu0 %700
        %704 = vset.pattern.permute.xlu0 0
        %705 = vperm.xlu0 %704, %v550
        %v706 = vpop.permute.xlu0 %705
        %709 = vset.pattern.permute.xlu0 0
        %710 = vperm.xlu0 %709, %v551
        %v711 = vpop.permute.xlu0 %710
        %714 = vset.pattern.permute.xlu0 0
        %715 = vperm.xlu0 %714, %v552
        %v716 = vpop.permute.xlu0 %715
        %719 = vset.pattern.permute.xlu0 0
        %720 = vperm.xlu0 %719, %v553
        %v721 = vpop.permute.xlu0 %720
        %724 = vset.pattern.permute.xlu0 0
        %725 = vperm.xlu0 %724, %v554
        %v726 = vpop.permute.xlu0 %725
        %729 = vset.pattern.permute.xlu0 0
        %730 = vperm.xlu0 %729, %v555
        %v731 = vpop.permute.xlu0 %730
        %734 = vset.pattern.permute.xlu0 0
        %735 = vperm.xlu0 %734, %v556
        %v736 = vpop.permute.xlu0 %735
        %739 = vset.pattern.permute.xlu0 0
        %740 = vperm.xlu0 %739, %v557
        %v741 = vpop.permute.xlu0 %740
        %744 = vset.pattern.permute.xlu0 0
        %745 = vperm.xlu0 %744, %v558
        %v746 = vpop.permute.xlu0 %745
        %749 = vset.pattern.permute.xlu0 0
        %750 = vperm.xlu0 %749, %v559
        %v751 = vpop.permute.xlu0 %750
        %754 = vset.pattern.permute.xlu0 0
        %755 = vperm.xlu0 %754, %v560
        %v756 = vpop.permute.xlu0 %755
        %759 = vset.pattern.permute.xlu0 0
        %760 = vperm.xlu0 %759, %v561
        %v761 = vpop.permute.xlu0 %760
        %764 = vset.pattern.permute.xlu0 0
        %765 = vperm.xlu0 %764, %v562
        %v766 = vpop.permute.xlu0 %765
        %769 = vset.pattern.permute.xlu0 0
        %770 = vperm.xlu0 %769, %v563
        %v771 = vpop.permute.xlu0 %770
        %774 = vset.pattern.permute.xlu0 0
        %775 = vperm.xlu0 %774, %v564
        %v776 = vpop.permute.xlu0 %775
        %779 = vset.pattern.permute.xlu0 0
        %780 = vperm.xlu0 %779, %v565
        %v781 = vpop.permute.xlu0 %780
        %784 = vset.pattern.permute.xlu0 0
        %785 = vperm.xlu0 %784, %v566
        %v786 = vpop.permute.xlu0 %785
        %789 = vset.pattern.permute.xlu0 0
        %790 = vperm.xlu0 %789, %v567
        %v791 = vpop.permute.xlu0 %790
        %794 = vset.pattern.permute.xlu0 0
        %795 = vperm.xlu0 %794, %v568
        %v796 = vpop.permute.xlu0 %795
        %799 = vset.pattern.permute.xlu0 0
        %800 = vperm.xlu0 %799, %v569
        %v801 = vpop.permute.xlu0 %800
        %804 = vset.pattern.permute.xlu0 0
        %805 = vperm.xlu0 %804, %v570
        %v806 = vpop.permute.xlu0 %805
        %809 = vset.pattern.permute.xlu0 0
        %810 = vperm.xlu0 %809, %v571
        %v811 = vpop.permute.xlu0 %810
        %814 = vset.pattern.permute.xlu0 0
        %815 = vperm.xlu0 %814, %v572
        %v816 = vpop.permute.xlu0 %815
        %819 = vset.pattern.permute.xlu0 0
        %820 = vperm.xlu0 %819, %v573
        %v821 = vpop.permute.xlu0 %820
        %824 = vset.pattern.permute.xlu0 0
        %825 = vperm.xlu0 %824, %v574
        %v826 = vpop.permute.xlu0 %825
        %829 = vset.pattern.permute.xlu0 0
        %830 = vperm.xlu0 %829, %v575
        %v831 = vpop.permute.xlu0 %830
        %834 = vset.pattern.permute.xlu0 0
        %835 = vperm.xlu0 %834, %v576
        %v836 = vpop.permute.xlu0 %835
        %839 = vset.pattern.permute.xlu0 0
        %840 = vperm.xlu0 %839, %v577
        %v841 = vpop.permute.xlu0 %840
        %844 = vset.pattern.permute.xlu0 0
        %845 = vperm.xlu0 %844, %v578
        %v846 = vpop.permute.xlu0 %845
        %849 = vset.pattern.permute.xlu0 0
        %850 = vperm.xlu0 %849, %v579
        %v851 = vpop.permute.xlu0 %850
        %854 = vset.pattern.permute.xlu0 0
        %855 = vperm.xlu0 %854, %v580
        %v856 = vpop.permute.xlu0 %855
        %859 = vset.pattern.permute.xlu0 0
        %860 = vperm.xlu0 %859, %v581
        %v861 = vpop.permute.xlu0 %860
        %864 = vset.pattern.permute.xlu0 0
        %865 = vperm.xlu0 %864, %v582
        %v866 = vpop.permute.xlu0 %865
        %869 = vset.pattern.permute.xlu0 0
        %870 = vperm.xlu0 %869, %v583
        %v871 = vpop.permute.xlu0 %870
        %874 = vset.pattern.permute.xlu0 0
        %875 = vperm.xlu0 %874, %v584
        %v876 = vpop.permute.xlu0 %875
        %879 = vset.pattern.permute.xlu0 0
        %880 = vperm.xlu0 %879, %v585
        %v881 = vpop.permute.xlu0 %880
        %884 = vset.pattern.permute.xlu0 0
        %885 = vperm.xlu0 %884, %v586
        %v886 = vpop.permute.xlu0 %885
        %889 = vset.pattern.permute.xlu0 0
        %890 = vperm.xlu0 %889, %v587
        %v891 = vpop.permute.xlu0 %890
        %894 = vset.pattern.permute.xlu0 0
        %895 = vperm.xlu0 %894, %v588
        %v896 = vpop.permute.xlu0 %895
        %899 = vset.pattern.permute.xlu0 0
        %900 = vperm.xlu0 %899, %v589
        %v901 = vpop.permute.xlu0 %900
        %904 = vset.pattern.permute.xlu0 0
        %905 = vperm.xlu0 %904, %v590
        %v906 = vpop.permute.xlu0 %905
        %909 = vset.pattern.permute.xlu0 0
        %910 = vperm.xlu0 %909, %v591
        %v911 = vpop.permute.xlu0 %910
        %v913 = vlaneseq
        %v914 = vshrl.u32 %v913, 7
        %v915 = vsub.s32 0, %v914
        %v916 = vrot.slane %v592, %v915
        %v917 = vmul.f32 %v596, %v916
        %v918 = vmul.f32 %v601, %v916
        %v919 = vmul.f32 %v606, %v916
        %v920 = vmul.f32 %v611, %v916
        %v921 = vmul.f32 %v616, %v916
        %v922 = vmul.f32 %v621, %v916
        %v923 = vmul.f32 %v626, %v916
        %v924 = vmul.f32 %v631, %v916
        %v925 = vmul.f32 %v636, %v916
        %v926 = vmul.f32 %v641, %v916
        %v927 = vmul.f32 %v646, %v916
        %v928 = vmul.f32 %v651, %v916
        %v929 = vmul.f32 %v656, %v916
        %v930 = vmul.f32 %v661, %v916
        %v931 = vmul.f32 %v666, %v916
        %v932 = vmul.f32 %v671, %v916
        %v933 = vmul.f32 %v676, %v916
        %v934 = vmul.f32 %v681, %v916
        %v935 = vmul.f32 %v686, %v916
        %v936 = vmul.f32 %v691, %v916
        %v937 = vmul.f32 %v696, %v916
        %v938 = vmul.f32 %v701, %v916
        %v939 = vmul.f32 %v706, %v916
        %v940 = vmul.f32 %v711, %v916
        %v941 = vmul.f32 %v716, %v916
        %v942 = vmul.f32 %v721, %v916
        %v943 = vmul.f32 %v726, %v916
        %v944 = vmul.f32 %v731, %v916
        %v945 = vmul.f32 %v736, %v916
        %v946 = vmul.f32 %v741, %v916
        %v947 = vmul.f32 %v746, %v916
        %v948 = vmul.f32 %v751, %v916
        %v949 = vmul.f32 %v756, %v916
        %v950 = vmul.f32 %v761, %v916
        %v951 = vmul.f32 %v766, %v916
        %v952 = vmul.f32 %v771, %v916
        %v953 = vmul.f32 %v776, %v916
        %v954 = vmul.f32 %v781, %v916
        %v955 = vmul.f32 %v786, %v916
        %v956 = vmul.f32 %v791, %v916
        %v957 = vmul.f32 %v796, %v916
        %v958 = vmul.f32 %v801, %v916
        %v959 = vmul.f32 %v806, %v916
        %v960 = vmul.f32 %v811, %v916
        %v961 = vmul.f32 %v816, %v916
        %v962 = vmul.f32 %v821, %v916
        %v963 = vmul.f32 %v826, %v916
        %v964 = vmul.f32 %v831, %v916
        %v965 = vmul.f32 %v836, %v916
        %v966 = vmul.f32 %v841, %v916
        %v967 = vmul.f32 %v846, %v916
        %v968 = vmul.f32 %v851, %v916
        %v969 = vmul.f32 %v856, %v916
        %v970 = vmul.f32 %v861, %v916
        %v971 = vmul.f32 %v866, %v916
        %v972 = vmul.f32 %v871, %v916
        %v973 = vmul.f32 %v876, %v916
        %v974 = vmul.f32 %v881, %v916
        %v975 = vmul.f32 %v886, %v916
        %v976 = vmul.f32 %v891, %v916
        %v977 = vmul.f32 %v896, %v916
        %v978 = vmul.f32 %v901, %v916
        %v979 = vmul.f32 %v906, %v916
        %v980 = vmul.f32 %v911, %v916
        %981 = vset.pattern.permute.xlu0 1
        %982 = vperm.xlu0 %981, %v528
        %v983 = vpop.permute.xlu0 %982
        %985 = vset.pattern.permute.xlu0 1
        %986 = vperm.xlu0 %985, %v529
        %v987 = vpop.permute.xlu0 %986
        %989 = vset.pattern.permute.xlu0 1
        %990 = vperm.xlu0 %989, %v530
        %v991 = vpop.permute.xlu0 %990
        %993 = vset.pattern.permute.xlu0 1
        %994 = vperm.xlu0 %993, %v531
        %v995 = vpop.permute.xlu0 %994
        %997 = vset.pattern.permute.xlu0 1
        %998 = vperm.xlu0 %997, %v532
        %v999 = vpop.permute.xlu0 %998
        %1001 = vset.pattern.permute.xlu0 1
        %1002 = vperm.xlu0 %1001, %v533
        %v1003 = vpop.permute.xlu0 %1002
        %1005 = vset.pattern.permute.xlu0 1
        %1006 = vperm.xlu0 %1005, %v534
        %v1007 = vpop.permute.xlu0 %1006
        %1009 = vset.pattern.permute.xlu0 1
        %1010 = vperm.xlu0 %1009, %v535
        %v1011 = vpop.permute.xlu0 %1010
        %1013 = vset.pattern.permute.xlu0 1
        %1014 = vperm.xlu0 %1013, %v536
        %v1015 = vpop.permute.xlu0 %1014
        %1017 = vset.pattern.permute.xlu0 1
        %1018 = vperm.xlu0 %1017, %v537
        %v1019 = vpop.permute.xlu0 %1018
        %1021 = vset.pattern.permute.xlu0 1
        %1022 = vperm.xlu0 %1021, %v538
        %v1023 = vpop.permute.xlu0 %1022
        %1025 = vset.pattern.permute.xlu0 1
        %1026 = vperm.xlu0 %1025, %v539
        %v1027 = vpop.permute.xlu0 %1026
        %1029 = vset.pattern.permute.xlu0 1
        %1030 = vperm.xlu0 %1029, %v540
        %v1031 = vpop.permute.xlu0 %1030
        %1033 = vset.pattern.permute.xlu0 1
        %1034 = vperm.xlu0 %1033, %v541
        %v1035 = vpop.permute.xlu0 %1034
        %1037 = vset.pattern.permute.xlu0 1
        %1038 = vperm.xlu0 %1037, %v542
        %v1039 = vpop.permute.xlu0 %1038
        %1041 = vset.pattern.permute.xlu0 1
        %1042 = vperm.xlu0 %1041, %v543
        %v1043 = vpop.permute.xlu0 %1042
        %1045 = vset.pattern.permute.xlu0 1
        %1046 = vperm.xlu0 %1045, %v544
        %v1047 = vpop.permute.xlu0 %1046
        %1049 = vset.pattern.permute.xlu0 1
        %1050 = vperm.xlu0 %1049, %v545
        %v1051 = vpop.permute.xlu0 %1050
        %1053 = vset.pattern.permute.xlu0 1
        %1054 = vperm.xlu0 %1053, %v546
        %v1055 = vpop.permute.xlu0 %1054
        %1057 = vset.pattern.permute.xlu0 1
        %1058 = vperm.xlu0 %1057, %v547
        %v1059 = vpop.permute.xlu0 %1058
        %1061 = vset.pattern.permute.xlu0 1
        %1062 = vperm.xlu0 %1061, %v548
        %v1063 = vpop.permute.xlu0 %1062
        %1065 = vset.pattern.permute.xlu0 1
        %1066 = vperm.xlu0 %1065, %v549
        %v1067 = vpop.permute.xlu0 %1066
        %1069 = vset.pattern.permute.xlu0 1
        %1070 = vperm.xlu0 %1069, %v550
        %v1071 = vpop.permute.xlu0 %1070
        %1073 = vset.pattern.permute.xlu0 1
        %1074 = vperm.xlu0 %1073, %v551
        %v1075 = vpop.permute.xlu0 %1074
        %1077 = vset.pattern.permute.xlu0 1
        %1078 = vperm.xlu0 %1077, %v552
        %v1079 = vpop.permute.xlu0 %1078
        %1081 = vset.pattern.permute.xlu0 1
        %1082 = vperm.xlu0 %1081, %v553
        %v1083 = vpop.permute.xlu0 %1082
        %1085 = vset.pattern.permute.xlu0 1
        %1086 = vperm.xlu0 %1085, %v554
        %v1087 = vpop.permute.xlu0 %1086
        %1089 = vset.pattern.permute.xlu0 1
        %1090 = vperm.xlu0 %1089, %v555
        %v1091 = vpop.permute.xlu0 %1090
        %1093 = vset.pattern.permute.xlu0 1
        %1094 = vperm.xlu0 %1093, %v556
        %v1095 = vpop.permute.xlu0 %1094
        %1097 = vset.pattern.permute.xlu0 1
        %1098 = vperm.xlu0 %1097, %v557
        %v1099 = vpop.permute.xlu0 %1098
        %1101 = vset.pattern.permute.xlu0 1
        %1102 = vperm.xlu0 %1101, %v558
        %v1103 = vpop.permute.xlu0 %1102
        %1105 = vset.pattern.permute.xlu0 1
        %1106 = vperm.xlu0 %1105, %v559
        %v1107 = vpop.permute.xlu0 %1106
        %1109 = vset.pattern.permute.xlu0 1
        %1110 = vperm.xlu0 %1109, %v560
        %v1111 = vpop.permute.xlu0 %1110
        %1113 = vset.pattern.permute.xlu0 1
        %1114 = vperm.xlu0 %1113, %v561
        %v1115 = vpop.permute.xlu0 %1114
        %1117 = vset.pattern.permute.xlu0 1
        %1118 = vperm.xlu0 %1117, %v562
        %v1119 = vpop.permute.xlu0 %1118
        %1121 = vset.pattern.permute.xlu0 1
        %1122 = vperm.xlu0 %1121, %v563
        %v1123 = vpop.permute.xlu0 %1122
        %1125 = vset.pattern.permute.xlu0 1
        %1126 = vperm.xlu0 %1125, %v564
        %v1127 = vpop.permute.xlu0 %1126
        %1129 = vset.pattern.permute.xlu0 1
        %1130 = vperm.xlu0 %1129, %v565
        %v1131 = vpop.permute.xlu0 %1130
        %1133 = vset.pattern.permute.xlu0 1
        %1134 = vperm.xlu0 %1133, %v566
        %v1135 = vpop.permute.xlu0 %1134
        %1137 = vset.pattern.permute.xlu0 1
        %1138 = vperm.xlu0 %1137, %v567
        %v1139 = vpop.permute.xlu0 %1138
        %1141 = vset.pattern.permute.xlu0 1
        %1142 = vperm.xlu0 %1141, %v568
        %v1143 = vpop.permute.xlu0 %1142
        %1145 = vset.pattern.permute.xlu0 1
        %1146 = vperm.xlu0 %1145, %v569
        %v1147 = vpop.permute.xlu0 %1146
        %1149 = vset.pattern.permute.xlu0 1
        %1150 = vperm.xlu0 %1149, %v570
        %v1151 = vpop.permute.xlu0 %1150
        %1153 = vset.pattern.permute.xlu0 1
        %1154 = vperm.xlu0 %1153, %v571
        %v1155 = vpop.permute.xlu0 %1154
        %1157 = vset.pattern.permute.xlu0 1
        %1158 = vperm.xlu0 %1157, %v572
        %v1159 = vpop.permute.xlu0 %1158
        %1161 = vset.pattern.permute.xlu0 1
        %1162 = vperm.xlu0 %1161, %v573
        %v1163 = vpop.permute.xlu0 %1162
        %1165 = vset.pattern.permute.xlu0 1
        %1166 = vperm.xlu0 %1165, %v574
        %v1167 = vpop.permute.xlu0 %1166
        %1169 = vset.pattern.permute.xlu0 1
        %1170 = vperm.xlu0 %1169, %v575
        %v1171 = vpop.permute.xlu0 %1170
        %1173 = vset.pattern.permute.xlu0 1
        %1174 = vperm.xlu0 %1173, %v576
        %v1175 = vpop.permute.xlu0 %1174
        %1177 = vset.pattern.permute.xlu0 1
        %1178 = vperm.xlu0 %1177, %v577
        %v1179 = vpop.permute.xlu0 %1178
        %1181 = vset.pattern.permute.xlu0 1
        %1182 = vperm.xlu0 %1181, %v578
        %v1183 = vpop.permute.xlu0 %1182
        %1185 = vset.pattern.permute.xlu0 1
        %1186 = vperm.xlu0 %1185, %v579
        %v1187 = vpop.permute.xlu0 %1186
        %1189 = vset.pattern.permute.xlu0 1
        %1190 = vperm.xlu0 %1189, %v580
        %v1191 = vpop.permute.xlu0 %1190
        %1193 = vset.pattern.permute.xlu0 1
        %1194 = vperm.xlu0 %1193, %v581
        %v1195 = vpop.permute.xlu0 %1194
        %1197 = vset.pattern.permute.xlu0 1
        %1198 = vperm.xlu0 %1197, %v582
        %v1199 = vpop.permute.xlu0 %1198
        %1201 = vset.pattern.permute.xlu0 1
        %1202 = vperm.xlu0 %1201, %v583
        %v1203 = vpop.permute.xlu0 %1202
        %1205 = vset.pattern.permute.xlu0 1
        %1206 = vperm.xlu0 %1205, %v584
        %v1207 = vpop.permute.xlu0 %1206
        %1209 = vset.pattern.permute.xlu0 1
        %1210 = vperm.xlu0 %1209, %v585
        %v1211 = vpop.permute.xlu0 %1210
        %1213 = vset.pattern.permute.xlu0 1
        %1214 = vperm.xlu0 %1213, %v586
        %v1215 = vpop.permute.xlu0 %1214
        %1217 = vset.pattern.permute.xlu0 1
        %1218 = vperm.xlu0 %1217, %v587
        %v1219 = vpop.permute.xlu0 %1218
        %1221 = vset.pattern.permute.xlu0 1
        %1222 = vperm.xlu0 %1221, %v588
        %v1223 = vpop.permute.xlu0 %1222
        %1225 = vset.pattern.permute.xlu0 1
        %1226 = vperm.xlu0 %1225, %v589
        %v1227 = vpop.permute.xlu0 %1226
        %1229 = vset.pattern.permute.xlu0 1
        %1230 = vperm.xlu0 %1229, %v590
        %v1231 = vpop.permute.xlu0 %1230
        %1233 = vset.pattern.permute.xlu0 1
        %1234 = vperm.xlu0 %1233, %v591
        %v1235 = vpop.permute.xlu0 %1234
        %v1237 = vlaneseq
        %v1238 = vshrl.u32 %v1237, 7
        %v1239 = vsub.s32 1, %v1238
        %v1240 = vrot.slane %v592, %v1239
        %v1241 = vmul.f32 %v983, %v1240
        %v1242 = vmul.f32 %v987, %v1240
        %v1243 = vmul.f32 %v991, %v1240
        %v1244 = vmul.f32 %v995, %v1240
        %v1245 = vmul.f32 %v999, %v1240
        %v1246 = vmul.f32 %v1003, %v1240
        %v1247 = vmul.f32 %v1007, %v1240
        %v1248 = vmul.f32 %v1011, %v1240
        %v1249 = vmul.f32 %v1015, %v1240
        %v1250 = vmul.f32 %v1019, %v1240
        %v1251 = vmul.f32 %v1023, %v1240
        %v1252 = vmul.f32 %v1027, %v1240
        %v1253 = vmul.f32 %v1031, %v1240
        %v1254 = vmul.f32 %v1035, %v1240
        %v1255 = vmul.f32 %v1039, %v1240
        %v1256 = vmul.f32 %v1043, %v1240
        %v1257 = vmul.f32 %v1047, %v1240
        %v1258 = vmul.f32 %v1051, %v1240
        %v1259 = vmul.f32 %v1055, %v1240
        %v1260 = vmul.f32 %v1059, %v1240
        %v1261 = vmul.f32 %v1063, %v1240
        %v1262 = vmul.f32 %v1067, %v1240
        %v1263 = vmul.f32 %v1071, %v1240
        %v1264 = vmul.f32 %v1075, %v1240
        %v1265 = vmul.f32 %v1079, %v1240
        %v1266 = vmul.f32 %v1083, %v1240
        %v1267 = vmul.f32 %v1087, %v1240
        %v1268 = vmul.f32 %v1091, %v1240
        %v1269 = vmul.f32 %v1095, %v1240
        %v1270 = vmul.f32 %v1099, %v1240
        %v1271 = vmul.f32 %v1103, %v1240
        %v1272 = vmul.f32 %v1107, %v1240
        %v1273 = vmul.f32 %v1111, %v1240
        %v1274 = vmul.f32 %v1115, %v1240
        %v1275 = vmul.f32 %v1119, %v1240
        %v1276 = vmul.f32 %v1123, %v1240
        %v1277 = vmul.f32 %v1127, %v1240
        %v1278 = vmul.f32 %v1131, %v1240
        %v1279 = vmul.f32 %v1135, %v1240
        %v1280 = vmul.f32 %v1139, %v1240
        %v1281 = vmul.f32 %v1143, %v1240
        %v1282 = vmul.f32 %v1147, %v1240
        %v1283 = vmul.f32 %v1151, %v1240
        %v1284 = vmul.f32 %v1155, %v1240
        %v1285 = vmul.f32 %v1159, %v1240
        %v1286 = vmul.f32 %v1163, %v1240
        %v1287 = vmul.f32 %v1167, %v1240
        %v1288 = vmul.f32 %v1171, %v1240
        %v1289 = vmul.f32 %v1175, %v1240
        %v1290 = vmul.f32 %v1179, %v1240
        %v1291 = vmul.f32 %v1183, %v1240
        %v1292 = vmul.f32 %v1187, %v1240
        %v1293 = vmul.f32 %v1191, %v1240
        %v1294 = vmul.f32 %v1195, %v1240
        %v1295 = vmul.f32 %v1199, %v1240
        %v1296 = vmul.f32 %v1203, %v1240
        %v1297 = vmul.f32 %v1207, %v1240
        %v1298 = vmul.f32 %v1211, %v1240
        %v1299 = vmul.f32 %v1215, %v1240
        %v1300 = vmul.f32 %v1219, %v1240
        %v1301 = vmul.f32 %v1223, %v1240
        %v1302 = vmul.f32 %v1227, %v1240
        %v1303 = vmul.f32 %v1231, %v1240
        %v1304 = vmul.f32 %v1235, %v1240
        %v1305 = vadd.f32 %v917, %v1241
        %v1306 = vadd.f32 %v918, %v1242
        %v1307 = vadd.f32 %v919, %v1243
        %v1308 = vadd.f32 %v920, %v1244
        %v1309 = vadd.f32 %v921, %v1245
        %v1310 = vadd.f32 %v922, %v1246
        %v1311 = vadd.f32 %v923, %v1247
        %v1312 = vadd.f32 %v924, %v1248
        %v1313 = vadd.f32 %v925, %v1249
        %v1314 = vadd.f32 %v926, %v1250
        %v1315 = vadd.f32 %v927, %v1251
        %v1316 = vadd.f32 %v928, %v1252
        %v1317 = vadd.f32 %v929, %v1253
        %v1318 = vadd.f32 %v930, %v1254
        %v1319 = vadd.f32 %v931, %v1255
        %v1320 = vadd.f32 %v932, %v1256
        %v1321 = vadd.f32 %v933, %v1257
        %v1322 = vadd.f32 %v934, %v1258
        %v1323 = vadd.f32 %v935, %v1259
        %v1324 = vadd.f32 %v936, %v1260
        %v1325 = vadd.f32 %v937, %v1261
        %v1326 = vadd.f32 %v938, %v1262
        %v1327 = vadd.f32 %v939, %v1263
        %v1328 = vadd.f32 %v940, %v1264
        %v1329 = vadd.f32 %v941, %v1265
        %v1330 = vadd.f32 %v942, %v1266
        %v1331 = vadd.f32 %v943, %v1267
        %v1332 = vadd.f32 %v944, %v1268
        %v1333 = vadd.f32 %v945, %v1269
        %v1334 = vadd.f32 %v946, %v1270
        %v1335 = vadd.f32 %v947, %v1271
        %v1336 = vadd.f32 %v948, %v1272
        %v1337 = vadd.f32 %v949, %v1273
        %v1338 = vadd.f32 %v950, %v1274
        %v1339 = vadd.f32 %v951, %v1275
        %v1340 = vadd.f32 %v952, %v1276
        %v1341 = vadd.f32 %v953, %v1277
        %v1342 = vadd.f32 %v954, %v1278
        %v1343 = vadd.f32 %v955, %v1279
        %v1344 = vadd.f32 %v956, %v1280
        %v1345 = vadd.f32 %v957, %v1281
        %v1346 = vadd.f32 %v958, %v1282
        %v1347 = vadd.f32 %v959, %v1283
        %v1348 = vadd.f32 %v960, %v1284
        %v1349 = vadd.f32 %v961, %v1285
        %v1350 = vadd.f32 %v962, %v1286
        %v1351 = vadd.f32 %v963, %v1287
        %v1352 = vadd.f32 %v964, %v1288
        %v1353 = vadd.f32 %v965, %v1289
        %v1354 = vadd.f32 %v966, %v1290
        %v1355 = vadd.f32 %v967, %v1291
        %v1356 = vadd.f32 %v968, %v1292
        %v1357 = vadd.f32 %v969, %v1293
        %v1358 = vadd.f32 %v970, %v1294
        %v1359 = vadd.f32 %v971, %v1295
        %v1360 = vadd.f32 %v972, %v1296
        %v1361 = vadd.f32 %v973, %v1297
        %v1362 = vadd.f32 %v974, %v1298
        %v1363 = vadd.f32 %v975, %v1299
        %v1364 = vadd.f32 %v976, %v1300
        %v1365 = vadd.f32 %v977, %v1301
        %v1366 = vadd.f32 %v978, %v1302
        %v1367 = vadd.f32 %v979, %v1303
        %v1368 = vadd.f32 %v980, %v1304
        %1369 = vset.pattern.permute.xlu0 2
        %1370 = vperm.xlu0 %1369, %v528
        %v1371 = vpop.permute.xlu0 %1370
        %1373 = vset.pattern.permute.xlu0 2
        %1374 = vperm.xlu0 %1373, %v529
        %v1375 = vpop.permute.xlu0 %1374
        %1377 = vset.pattern.permute.xlu0 2
        %1378 = vperm.xlu0 %1377, %v530
        %v1379 = vpop.permute.xlu0 %1378
        %1381 = vset.pattern.permute.xlu0 2
        %1382 = vperm.xlu0 %1381, %v531
        %v1383 = vpop.permute.xlu0 %1382
        %1385 = vset.pattern.permute.xlu0 2
        %1386 = vperm.xlu0 %1385, %v532
        %v1387 = vpop.permute.xlu0 %1386
        %1389 = vset.pattern.permute.xlu0 2
        %1390 = vperm.xlu0 %1389, %v533
        %v1391 = vpop.permute.xlu0 %1390
        %1393 = vset.pattern.permute.xlu0 2
        %1394 = vperm.xlu0 %1393, %v534
        %v1395 = vpop.permute.xlu0 %1394
        %1397 = vset.pattern.permute.xlu0 2
        %1398 = vperm.xlu0 %1397, %v535
        %v1399 = vpop.permute.xlu0 %1398
        %1401 = vset.pattern.permute.xlu0 2
        %1402 = vperm.xlu0 %1401, %v536
        %v1403 = vpop.permute.xlu0 %1402
        %1405 = vset.pattern.permute.xlu0 2
        %1406 = vperm.xlu0 %1405, %v537
        %v1407 = vpop.permute.xlu0 %1406
        %1409 = vset.pattern.permute.xlu0 2
        %1410 = vperm.xlu0 %1409, %v538
        %v1411 = vpop.permute.xlu0 %1410
        %1413 = vset.pattern.permute.xlu0 2
        %1414 = vperm.xlu0 %1413, %v539
        %v1415 = vpop.permute.xlu0 %1414
        %1417 = vset.pattern.permute.xlu0 2
        %1418 = vperm.xlu0 %1417, %v540
        %v1419 = vpop.permute.xlu0 %1418
        %1421 = vset.pattern.permute.xlu0 2
        %1422 = vperm.xlu0 %1421, %v541
        %v1423 = vpop.permute.xlu0 %1422
        %1425 = vset.pattern.permute.xlu0 2
        %1426 = vperm.xlu0 %1425, %v542
        %v1427 = vpop.permute.xlu0 %1426
        %1429 = vset.pattern.permute.xlu0 2
        %1430 = vperm.xlu0 %1429, %v543
        %v1431 = vpop.permute.xlu0 %1430
        %1433 = vset.pattern.permute.xlu0 2
        %1434 = vperm.xlu0 %1433, %v544
        %v1435 = vpop.permute.xlu0 %1434
        %1437 = vset.pattern.permute.xlu0 2
        %1438 = vperm.xlu0 %1437, %v545
        %v1439 = vpop.permute.xlu0 %1438
        %1441 = vset.pattern.permute.xlu0 2
        %1442 = vperm.xlu0 %1441, %v546
        %v1443 = vpop.permute.xlu0 %1442
        %1445 = vset.pattern.permute.xlu0 2
        %1446 = vperm.xlu0 %1445, %v547
        %v1447 = vpop.permute.xlu0 %1446
        %1449 = vset.pattern.permute.xlu0 2
        %1450 = vperm.xlu0 %1449, %v548
        %v1451 = vpop.permute.xlu0 %1450
        %1453 = vset.pattern.permute.xlu0 2
        %1454 = vperm.xlu0 %1453, %v549
        %v1455 = vpop.permute.xlu0 %1454
        %1457 = vset.pattern.permute.xlu0 2
        %1458 = vperm.xlu0 %1457, %v550
        %v1459 = vpop.permute.xlu0 %1458
        %1461 = vset.pattern.permute.xlu0 2
        %1462 = vperm.xlu0 %1461, %v551
        %v1463 = vpop.permute.xlu0 %1462
        %1465 = vset.pattern.permute.xlu0 2
        %1466 = vperm.xlu0 %1465, %v552
        %v1467 = vpop.permute.xlu0 %1466
        %1469 = vset.pattern.permute.xlu0 2
        %1470 = vperm.xlu0 %1469, %v553
        %v1471 = vpop.permute.xlu0 %1470
        %1473 = vset.pattern.permute.xlu0 2
        %1474 = vperm.xlu0 %1473, %v554
        %v1475 = vpop.permute.xlu0 %1474
        %1477 = vset.pattern.permute.xlu0 2
        %1478 = vperm.xlu0 %1477, %v555
        %v1479 = vpop.permute.xlu0 %1478
        %1481 = vset.pattern.permute.xlu0 2
        %1482 = vperm.xlu0 %1481, %v556
        %v1483 = vpop.permute.xlu0 %1482
        %1485 = vset.pattern.permute.xlu0 2
        %1486 = vperm.xlu0 %1485, %v557
        %v1487 = vpop.permute.xlu0 %1486
        %1489 = vset.pattern.permute.xlu0 2
        %1490 = vperm.xlu0 %1489, %v558
        %v1491 = vpop.permute.xlu0 %1490
        %1493 = vset.pattern.permute.xlu0 2
        %1494 = vperm.xlu0 %1493, %v559
        %v1495 = vpop.permute.xlu0 %1494
        %1497 = vset.pattern.permute.xlu0 2
        %1498 = vperm.xlu0 %1497, %v560
        %v1499 = vpop.permute.xlu0 %1498
        %1501 = vset.pattern.permute.xlu0 2
        %1502 = vperm.xlu0 %1501, %v561
        %v1503 = vpop.permute.xlu0 %1502
        %1505 = vset.pattern.permute.xlu0 2
        %1506 = vperm.xlu0 %1505, %v562
        %v1507 = vpop.permute.xlu0 %1506
        %1509 = vset.pattern.permute.xlu0 2
        %1510 = vperm.xlu0 %1509, %v563
        %v1511 = vpop.permute.xlu0 %1510
        %1513 = vset.pattern.permute.xlu0 2
        %1514 = vperm.xlu0 %1513, %v564
        %v1515 = vpop.permute.xlu0 %1514
        %1517 = vset.pattern.permute.xlu0 2
        %1518 = vperm.xlu0 %1517, %v565
        %v1519 = vpop.permute.xlu0 %1518
        %1521 = vset.pattern.permute.xlu0 2
        %1522 = vperm.xlu0 %1521, %v566
        %v1523 = vpop.permute.xlu0 %1522
        %1525 = vset.pattern.permute.xlu0 2
        %1526 = vperm.xlu0 %1525, %v567
        %v1527 = vpop.permute.xlu0 %1526
        %1529 = vset.pattern.permute.xlu0 2
        %1530 = vperm.xlu0 %1529, %v568
        %v1531 = vpop.permute.xlu0 %1530
        %1533 = vset.pattern.permute.xlu0 2
        %1534 = vperm.xlu0 %1533, %v569
        %v1535 = vpop.permute.xlu0 %1534
        %1537 = vset.pattern.permute.xlu0 2
        %1538 = vperm.xlu0 %1537, %v570
        %v1539 = vpop.permute.xlu0 %1538
        %1541 = vset.pattern.permute.xlu0 2
        %1542 = vperm.xlu0 %1541, %v571
        %v1543 = vpop.permute.xlu0 %1542
        %1545 = vset.pattern.permute.xlu0 2
        %1546 = vperm.xlu0 %1545, %v572
        %v1547 = vpop.permute.xlu0 %1546
        %1549 = vset.pattern.permute.xlu0 2
        %1550 = vperm.xlu0 %1549, %v573
        %v1551 = vpop.permute.xlu0 %1550
        %1553 = vset.pattern.permute.xlu0 2
        %1554 = vperm.xlu0 %1553, %v574
        %v1555 = vpop.permute.xlu0 %1554
        %1557 = vset.pattern.permute.xlu0 2
        %1558 = vperm.xlu0 %1557, %v575
        %v1559 = vpop.permute.xlu0 %1558
        %1561 = vset.pattern.permute.xlu0 2
        %1562 = vperm.xlu0 %1561, %v576
        %v1563 = vpop.permute.xlu0 %1562
        %1565 = vset.pattern.permute.xlu0 2
        %1566 = vperm.xlu0 %1565, %v577
        %v1567 = vpop.permute.xlu0 %1566
        %1569 = vset.pattern.permute.xlu0 2
        %1570 = vperm.xlu0 %1569, %v578
        %v1571 = vpop.permute.xlu0 %1570
        %1573 = vset.pattern.permute.xlu0 2
        %1574 = vperm.xlu0 %1573, %v579
        %v1575 = vpop.permute.xlu0 %1574
        %1577 = vset.pattern.permute.xlu0 2
        %1578 = vperm.xlu0 %1577, %v580
        %v1579 = vpop.permute.xlu0 %1578
        %1581 = vset.pattern.permute.xlu0 2
        %1582 = vperm.xlu0 %1581, %v581
        %v1583 = vpop.permute.xlu0 %1582
        %1585 = vset.pattern.permute.xlu0 2
        %1586 = vperm.xlu0 %1585, %v582
        %v1587 = vpop.permute.xlu0 %1586
        %1589 = vset.pattern.permute.xlu0 2
        %1590 = vperm.xlu0 %1589, %v583
        %v1591 = vpop.permute.xlu0 %1590
        %1593 = vset.pattern.permute.xlu0 2
        %1594 = vperm.xlu0 %1593, %v584
        %v1595 = vpop.permute.xlu0 %1594
        %1597 = vset.pattern.permute.xlu0 2
        %1598 = vperm.xlu0 %1597, %v585
        %v1599 = vpop.permute.xlu0 %1598
        %1601 = vset.pattern.permute.xlu0 2
        %1602 = vperm.xlu0 %1601, %v586
        %v1603 = vpop.permute.xlu0 %1602
        %1605 = vset.pattern.permute.xlu0 2
        %1606 = vperm.xlu0 %1605, %v587
        %v1607 = vpop.permute.xlu0 %1606
        %1609 = vset.pattern.permute.xlu0 2
        %1610 = vperm.xlu0 %1609, %v588
        %v1611 = vpop.permute.xlu0 %1610
        %1613 = vset.pattern.permute.xlu0 2
        %1614 = vperm.xlu0 %1613, %v589
        %v1615 = vpop.permute.xlu0 %1614
        %1617 = vset.pattern.permute.xlu0 2
        %1618 = vperm.xlu0 %1617, %v590
        %v1619 = vpop.permute.xlu0 %1618
        %1621 = vset.pattern.permute.xlu0 2
        %1622 = vperm.xlu0 %1621, %v591
        %v1623 = vpop.permute.xlu0 %1622
        %v1625 = vlaneseq
        %v1626 = vshrl.u32 %v1625, 7
        %v1627 = vsub.s32 2, %v1626
        %v1628 = vrot.slane %v592, %v1627
        %v1629 = vmul.f32 %v1371, %v1628
        %v1630 = vmul.f32 %v1375, %v1628
        %v1631 = vmul.f32 %v1379, %v1628
        %v1632 = vmul.f32 %v1383, %v1628
        %v1633 = vmul.f32 %v1387, %v1628
        %v1634 = vmul.f32 %v1391, %v1628
        %v1635 = vmul.f32 %v1395, %v1628
        %v1636 = vmul.f32 %v1399, %v1628
        %v1637 = vmul.f32 %v1403, %v1628
        %v1638 = vmul.f32 %v1407, %v1628
        %v1639 = vmul.f32 %v1411, %v1628
        %v1640 = vmul.f32 %v1415, %v1628
        %v1641 = vmul.f32 %v1419, %v1628
        %v1642 = vmul.f32 %v1423, %v1628
        %v1643 = vmul.f32 %v1427, %v1628
        %v1644 = vmul.f32 %v1431, %v1628
        %v1645 = vmul.f32 %v1435, %v1628
        %v1646 = vmul.f32 %v1439, %v1628
        %v1647 = vmul.f32 %v1443, %v1628
        %v1648 = vmul.f32 %v1447, %v1628
        %v1649 = vmul.f32 %v1451, %v1628
        %v1650 = vmul.f32 %v1455, %v1628
        %v1651 = vmul.f32 %v1459, %v1628
        %v1652 = vmul.f32 %v1463, %v1628
        %v1653 = vmul.f32 %v1467, %v1628
        %v1654 = vmul.f32 %v1471, %v1628
        %v1655 = vmul.f32 %v1475, %v1628
        %v1656 = vmul.f32 %v1479, %v1628
        %v1657 = vmul.f32 %v1483, %v1628
        %v1658 = vmul.f32 %v1487, %v1628
        %v1659 = vmul.f32 %v1491, %v1628
        %v1660 = vmul.f32 %v1495, %v1628
        %v1661 = vmul.f32 %v1499, %v1628
        %v1662 = vmul.f32 %v1503, %v1628
        %v1663 = vmul.f32 %v1507, %v1628
        %v1664 = vmul.f32 %v1511, %v1628
        %v1665 = vmul.f32 %v1515, %v1628
        %v1666 = vmul.f32 %v1519, %v1628
        %v1667 = vmul.f32 %v1523, %v1628
        %v1668 = vmul.f32 %v1527, %v1628
        %v1669 = vmul.f32 %v1531, %v1628
        %v1670 = vmul.f32 %v1535, %v1628
        %v1671 = vmul.f32 %v1539, %v1628
        %v1672 = vmul.f32 %v1543, %v1628
        %v1673 = vmul.f32 %v1547, %v1628
        %v1674 = vmul.f32 %v1551, %v1628
        %v1675 = vmul.f32 %v1555, %v1628
        %v1676 = vmul.f32 %v1559, %v1628
        %v1677 = vmul.f32 %v1563, %v1628
        %v1678 = vmul.f32 %v1567, %v1628
        %v1679 = vmul.f32 %v1571, %v1628
        %v1680 = vmul.f32 %v1575, %v1628
        %v1681 = vmul.f32 %v1579, %v1628
        %v1682 = vmul.f32 %v1583, %v1628
        %v1683 = vmul.f32 %v1587, %v1628
        %v1684 = vmul.f32 %v1591, %v1628
        %v1685 = vmul.f32 %v1595, %v1628
        %v1686 = vmul.f32 %v1599, %v1628
        %v1687 = vmul.f32 %v1603, %v1628
        %v1688 = vmul.f32 %v1607, %v1628
        %v1689 = vmul.f32 %v1611, %v1628
        %v1690 = vmul.f32 %v1615, %v1628
        %v1691 = vmul.f32 %v1619, %v1628
        %v1692 = vmul.f32 %v1623, %v1628
        %v1693 = vadd.f32 %v1305, %v1629
        %v1694 = vadd.f32 %v1306, %v1630
        %v1695 = vadd.f32 %v1307, %v1631
        %v1696 = vadd.f32 %v1308, %v1632
        %v1697 = vadd.f32 %v1309, %v1633
        %v1698 = vadd.f32 %v1310, %v1634
        %v1699 = vadd.f32 %v1311, %v1635
        %v1700 = vadd.f32 %v1312, %v1636
        %v1701 = vadd.f32 %v1313, %v1637
        %v1702 = vadd.f32 %v1314, %v1638
        %v1703 = vadd.f32 %v1315, %v1639
        %v1704 = vadd.f32 %v1316, %v1640
        %v1705 = vadd.f32 %v1317, %v1641
        %v1706 = vadd.f32 %v1318, %v1642
        %v1707 = vadd.f32 %v1319, %v1643
        %v1708 = vadd.f32 %v1320, %v1644
        %v1709 = vadd.f32 %v1321, %v1645
        %v1710 = vadd.f32 %v1322, %v1646
        %v1711 = vadd.f32 %v1323, %v1647
        %v1712 = vadd.f32 %v1324, %v1648
        %v1713 = vadd.f32 %v1325, %v1649
        %v1714 = vadd.f32 %v1326, %v1650
        %v1715 = vadd.f32 %v1327, %v1651
        %v1716 = vadd.f32 %v1328, %v1652
        %v1717 = vadd.f32 %v1329, %v1653
        %v1718 = vadd.f32 %v1330, %v1654
        %v1719 = vadd.f32 %v1331, %v1655
        %v1720 = vadd.f32 %v1332, %v1656
        %v1721 = vadd.f32 %v1333, %v1657
        %v1722 = vadd.f32 %v1334, %v1658
        %v1723 = vadd.f32 %v1335, %v1659
        %v1724 = vadd.f32 %v1336, %v1660
        %v1725 = vadd.f32 %v1337, %v1661
        %v1726 = vadd.f32 %v1338, %v1662
        %v1727 = vadd.f32 %v1339, %v1663
        %v1728 = vadd.f32 %v1340, %v1664
        %v1729 = vadd.f32 %v1341, %v1665
        %v1730 = vadd.f32 %v1342, %v1666
        %v1731 = vadd.f32 %v1343, %v1667
        %v1732 = vadd.f32 %v1344, %v1668
        %v1733 = vadd.f32 %v1345, %v1669
        %v1734 = vadd.f32 %v1346, %v1670
        %v1735 = vadd.f32 %v1347, %v1671
        %v1736 = vadd.f32 %v1348, %v1672
        %v1737 = vadd.f32 %v1349, %v1673
        %v1738 = vadd.f32 %v1350, %v1674
        %v1739 = vadd.f32 %v1351, %v1675
        %v1740 = vadd.f32 %v1352, %v1676
        %v1741 = vadd.f32 %v1353, %v1677
        %v1742 = vadd.f32 %v1354, %v1678
        %v1743 = vadd.f32 %v1355, %v1679
        %v1744 = vadd.f32 %v1356, %v1680
        %v1745 = vadd.f32 %v1357, %v1681
        %v1746 = vadd.f32 %v1358, %v1682
        %v1747 = vadd.f32 %v1359, %v1683
        %v1748 = vadd.f32 %v1360, %v1684
        %v1749 = vadd.f32 %v1361, %v1685
        %v1750 = vadd.f32 %v1362, %v1686
        %v1751 = vadd.f32 %v1363, %v1687
        %v1752 = vadd.f32 %v1364, %v1688
        %v1753 = vadd.f32 %v1365, %v1689
        %v1754 = vadd.f32 %v1366, %v1690
        %v1755 = vadd.f32 %v1367, %v1691
        %v1756 = vadd.f32 %v1368, %v1692
        %1757 = vset.pattern.permute.xlu0 3
        %1758 = vperm.xlu0 %1757, %v528
        %v1759 = vpop.permute.xlu0 %1758
        %1761 = vset.pattern.permute.xlu0 3
        %1762 = vperm.xlu0 %1761, %v529
        %v1763 = vpop.permute.xlu0 %1762
        %1765 = vset.pattern.permute.xlu0 3
        %1766 = vperm.xlu0 %1765, %v530
        %v1767 = vpop.permute.xlu0 %1766
        %1769 = vset.pattern.permute.xlu0 3
        %1770 = vperm.xlu0 %1769, %v531
        %v1771 = vpop.permute.xlu0 %1770
        %1773 = vset.pattern.permute.xlu0 3
        %1774 = vperm.xlu0 %1773, %v532
        %v1775 = vpop.permute.xlu0 %1774
        %1777 = vset.pattern.permute.xlu0 3
        %1778 = vperm.xlu0 %1777, %v533
        %v1779 = vpop.permute.xlu0 %1778
        %1781 = vset.pattern.permute.xlu0 3
        %1782 = vperm.xlu0 %1781, %v534
        %v1783 = vpop.permute.xlu0 %1782
        %1785 = vset.pattern.permute.xlu0 3
        %1786 = vperm.xlu0 %1785, %v535
        %v1787 = vpop.permute.xlu0 %1786
        %1789 = vset.pattern.permute.xlu0 3
        %1790 = vperm.xlu0 %1789, %v536
        %v1791 = vpop.permute.xlu0 %1790
        %1793 = vset.pattern.permute.xlu0 3
        %1794 = vperm.xlu0 %1793, %v537
        %v1795 = vpop.permute.xlu0 %1794
        %1797 = vset.pattern.permute.xlu0 3
        %1798 = vperm.xlu0 %1797, %v538
        %v1799 = vpop.permute.xlu0 %1798
        %1801 = vset.pattern.permute.xlu0 3
        %1802 = vperm.xlu0 %1801, %v539
        %v1803 = vpop.permute.xlu0 %1802
        %1805 = vset.pattern.permute.xlu0 3
        %1806 = vperm.xlu0 %1805, %v540
        %v1807 = vpop.permute.xlu0 %1806
        %1809 = vset.pattern.permute.xlu0 3
        %1810 = vperm.xlu0 %1809, %v541
        %v1811 = vpop.permute.xlu0 %1810
        %1813 = vset.pattern.permute.xlu0 3
        %1814 = vperm.xlu0 %1813, %v542
        %v1815 = vpop.permute.xlu0 %1814
        %1817 = vset.pattern.permute.xlu0 3
        %1818 = vperm.xlu0 %1817, %v543
        %v1819 = vpop.permute.xlu0 %1818
        %1821 = vset.pattern.permute.xlu0 3
        %1822 = vperm.xlu0 %1821, %v544
        %v1823 = vpop.permute.xlu0 %1822
        %1825 = vset.pattern.permute.xlu0 3
        %1826 = vperm.xlu0 %1825, %v545
        %v1827 = vpop.permute.xlu0 %1826
        %1829 = vset.pattern.permute.xlu0 3
        %1830 = vperm.xlu0 %1829, %v546
        %v1831 = vpop.permute.xlu0 %1830
        %1833 = vset.pattern.permute.xlu0 3
        %1834 = vperm.xlu0 %1833, %v547
        %v1835 = vpop.permute.xlu0 %1834
        %1837 = vset.pattern.permute.xlu0 3
        %1838 = vperm.xlu0 %1837, %v548
        %v1839 = vpop.permute.xlu0 %1838
        %1841 = vset.pattern.permute.xlu0 3
        %1842 = vperm.xlu0 %1841, %v549
        %v1843 = vpop.permute.xlu0 %1842
        %1845 = vset.pattern.permute.xlu0 3
        %1846 = vperm.xlu0 %1845, %v550
        %v1847 = vpop.permute.xlu0 %1846
        %1849 = vset.pattern.permute.xlu0 3
        %1850 = vperm.xlu0 %1849, %v551
        %v1851 = vpop.permute.xlu0 %1850
        %1853 = vset.pattern.permute.xlu0 3
        %1854 = vperm.xlu0 %1853, %v552
        %v1855 = vpop.permute.xlu0 %1854
        %1857 = vset.pattern.permute.xlu0 3
        %1858 = vperm.xlu0 %1857, %v553
        %v1859 = vpop.permute.xlu0 %1858
        %1861 = vset.pattern.permute.xlu0 3
        %1862 = vperm.xlu0 %1861, %v554
        %v1863 = vpop.permute.xlu0 %1862
        %1865 = vset.pattern.permute.xlu0 3
        %1866 = vperm.xlu0 %1865, %v555
        %v1867 = vpop.permute.xlu0 %1866
        %1869 = vset.pattern.permute.xlu0 3
        %1870 = vperm.xlu0 %1869, %v556
        %v1871 = vpop.permute.xlu0 %1870
        %1873 = vset.pattern.permute.xlu0 3
        %1874 = vperm.xlu0 %1873, %v557
        %v1875 = vpop.permute.xlu0 %1874
        %1877 = vset.pattern.permute.xlu0 3
        %1878 = vperm.xlu0 %1877, %v558
        %v1879 = vpop.permute.xlu0 %1878
        %1881 = vset.pattern.permute.xlu0 3
        %1882 = vperm.xlu0 %1881, %v559
        %v1883 = vpop.permute.xlu0 %1882
        %1885 = vset.pattern.permute.xlu0 3
        %1886 = vperm.xlu0 %1885, %v560
        %v1887 = vpop.permute.xlu0 %1886
        %1889 = vset.pattern.permute.xlu0 3
        %1890 = vperm.xlu0 %1889, %v561
        %v1891 = vpop.permute.xlu0 %1890
        %1893 = vset.pattern.permute.xlu0 3
        %1894 = vperm.xlu0 %1893, %v562
        %v1895 = vpop.permute.xlu0 %1894
        %1897 = vset.pattern.permute.xlu0 3
        %1898 = vperm.xlu0 %1897, %v563
        %v1899 = vpop.permute.xlu0 %1898
        %1901 = vset.pattern.permute.xlu0 3
        %1902 = vperm.xlu0 %1901, %v564
        %v1903 = vpop.permute.xlu0 %1902
        %1905 = vset.pattern.permute.xlu0 3
        %1906 = vperm.xlu0 %1905, %v565
        %v1907 = vpop.permute.xlu0 %1906
        %1909 = vset.pattern.permute.xlu0 3
        %1910 = vperm.xlu0 %1909, %v566
        %v1911 = vpop.permute.xlu0 %1910
        %1913 = vset.pattern.permute.xlu0 3
        %1914 = vperm.xlu0 %1913, %v567
        %v1915 = vpop.permute.xlu0 %1914
        %1917 = vset.pattern.permute.xlu0 3
        %1918 = vperm.xlu0 %1917, %v568
        %v1919 = vpop.permute.xlu0 %1918
        %1921 = vset.pattern.permute.xlu0 3
        %1922 = vperm.xlu0 %1921, %v569
        %v1923 = vpop.permute.xlu0 %1922
        %1925 = vset.pattern.permute.xlu0 3
        %1926 = vperm.xlu0 %1925, %v570
        %v1927 = vpop.permute.xlu0 %1926
        %1929 = vset.pattern.permute.xlu0 3
        %1930 = vperm.xlu0 %1929, %v571
        %v1931 = vpop.permute.xlu0 %1930
        %1933 = vset.pattern.permute.xlu0 3
        %1934 = vperm.xlu0 %1933, %v572
        %v1935 = vpop.permute.xlu0 %1934
        %1937 = vset.pattern.permute.xlu0 3
        %1938 = vperm.xlu0 %1937, %v573
        %v1939 = vpop.permute.xlu0 %1938
        %1941 = vset.pattern.permute.xlu0 3
        %1942 = vperm.xlu0 %1941, %v574
        %v1943 = vpop.permute.xlu0 %1942
        %1945 = vset.pattern.permute.xlu0 3
        %1946 = vperm.xlu0 %1945, %v575
        %v1947 = vpop.permute.xlu0 %1946
        %1949 = vset.pattern.permute.xlu0 3
        %1950 = vperm.xlu0 %1949, %v576
        %v1951 = vpop.permute.xlu0 %1950
        %1953 = vset.pattern.permute.xlu0 3
        %1954 = vperm.xlu0 %1953, %v577
        %v1955 = vpop.permute.xlu0 %1954
        %1957 = vset.pattern.permute.xlu0 3
        %1958 = vperm.xlu0 %1957, %v578
        %v1959 = vpop.permute.xlu0 %1958
        %1961 = vset.pattern.permute.xlu0 3
        %1962 = vperm.xlu0 %1961, %v579
        %v1963 = vpop.permute.xlu0 %1962
        %1965 = vset.pattern.permute.xlu0 3
        %1966 = vperm.xlu0 %1965, %v580
        %v1967 = vpop.permute.xlu0 %1966
        %1969 = vset.pattern.permute.xlu0 3
        %1970 = vperm.xlu0 %1969, %v581
        %v1971 = vpop.permute.xlu0 %1970
        %1973 = vset.pattern.permute.xlu0 3
        %1974 = vperm.xlu0 %1973, %v582
        %v1975 = vpop.permute.xlu0 %1974
        %1977 = vset.pattern.permute.xlu0 3
        %1978 = vperm.xlu0 %1977, %v583
        %v1979 = vpop.permute.xlu0 %1978
        %1981 = vset.pattern.permute.xlu0 3
        %1982 = vperm.xlu0 %1981, %v584
        %v1983 = vpop.permute.xlu0 %1982
        %1985 = vset.pattern.permute.xlu0 3
        %1986 = vperm.xlu0 %1985, %v585
        %v1987 = vpop.permute.xlu0 %1986
        %1989 = vset.pattern.permute.xlu0 3
        %1990 = vperm.xlu0 %1989, %v586
        %v1991 = vpop.permute.xlu0 %1990
        %1993 = vset.pattern.permute.xlu0 3
        %1994 = vperm.xlu0 %1993, %v587
        %v1995 = vpop.permute.xlu0 %1994
        %1997 = vset.pattern.permute.xlu0 3
        %1998 = vperm.xlu0 %1997, %v588
        %v1999 = vpop.permute.xlu0 %1998
        %2001 = vset.pattern.permute.xlu0 3
        %2002 = vperm.xlu0 %2001, %v589
        %v2003 = vpop.permute.xlu0 %2002
        %2005 = vset.pattern.permute.xlu0 3
        %2006 = vperm.xlu0 %2005, %v590
        %v2007 = vpop.permute.xlu0 %2006
        %2009 = vset.pattern.permute.xlu0 3
        %2010 = vperm.xlu0 %2009, %v591
        %v2011 = vpop.permute.xlu0 %2010
        %v2013 = vlaneseq
        %v2014 = vshrl.u32 %v2013, 7
        %v2015 = vsub.s32 3, %v2014
        %v2016 = vrot.slane %v592, %v2015
        %v2017 = vmul.f32 %v1759, %v2016
        %v2018 = vmul.f32 %v1763, %v2016
        %v2019 = vmul.f32 %v1767, %v2016
        %v2020 = vmul.f32 %v1771, %v2016
        %v2021 = vmul.f32 %v1775, %v2016
        %v2022 = vmul.f32 %v1779, %v2016
        %v2023 = vmul.f32 %v1783, %v2016
        %v2024 = vmul.f32 %v1787, %v2016
        %v2025 = vmul.f32 %v1791, %v2016
        %v2026 = vmul.f32 %v1795, %v2016
        %v2027 = vmul.f32 %v1799, %v2016
        %v2028 = vmul.f32 %v1803, %v2016
        %v2029 = vmul.f32 %v1807, %v2016
        %v2030 = vmul.f32 %v1811, %v2016
        %v2031 = vmul.f32 %v1815, %v2016
        %v2032 = vmul.f32 %v1819, %v2016
        %v2033 = vmul.f32 %v1823, %v2016
        %v2034 = vmul.f32 %v1827, %v2016
        %v2035 = vmul.f32 %v1831, %v2016
        %v2036 = vmul.f32 %v1835, %v2016
        %v2037 = vmul.f32 %v1839, %v2016
        %v2038 = vmul.f32 %v1843, %v2016
        %v2039 = vmul.f32 %v1847, %v2016
        %v2040 = vmul.f32 %v1851, %v2016
        %v2041 = vmul.f32 %v1855, %v2016
        %v2042 = vmul.f32 %v1859, %v2016
        %v2043 = vmul.f32 %v1863, %v2016
        %v2044 = vmul.f32 %v1867, %v2016
        %v2045 = vmul.f32 %v1871, %v2016
        %v2046 = vmul.f32 %v1875, %v2016
        %v2047 = vmul.f32 %v1879, %v2016
        %v2048 = vmul.f32 %v1883, %v2016
        %v2049 = vmul.f32 %v1887, %v2016
        %v2050 = vmul.f32 %v1891, %v2016
        %v2051 = vmul.f32 %v1895, %v2016
        %v2052 = vmul.f32 %v1899, %v2016
        %v2053 = vmul.f32 %v1903, %v2016
        %v2054 = vmul.f32 %v1907, %v2016
        %v2055 = vmul.f32 %v1911, %v2016
        %v2056 = vmul.f32 %v1915, %v2016
        %v2057 = vmul.f32 %v1919, %v2016
        %v2058 = vmul.f32 %v1923, %v2016
        %v2059 = vmul.f32 %v1927, %v2016
        %v2060 = vmul.f32 %v1931, %v2016
        %v2061 = vmul.f32 %v1935, %v2016
        %v2062 = vmul.f32 %v1939, %v2016
        %v2063 = vmul.f32 %v1943, %v2016
        %v2064 = vmul.f32 %v1947, %v2016
        %v2065 = vmul.f32 %v1951, %v2016
        %v2066 = vmul.f32 %v1955, %v2016
        %v2067 = vmul.f32 %v1959, %v2016
        %v2068 = vmul.f32 %v1963, %v2016
        %v2069 = vmul.f32 %v1967, %v2016
        %v2070 = vmul.f32 %v1971, %v2016
        %v2071 = vmul.f32 %v1975, %v2016
        %v2072 = vmul.f32 %v1979, %v2016
        %v2073 = vmul.f32 %v1983, %v2016
        %v2074 = vmul.f32 %v1987, %v2016
        %v2075 = vmul.f32 %v1991, %v2016
        %v2076 = vmul.f32 %v1995, %v2016
        %v2077 = vmul.f32 %v1999, %v2016
        %v2078 = vmul.f32 %v2003, %v2016
        %v2079 = vmul.f32 %v2007, %v2016
        %v2080 = vmul.f32 %v2011, %v2016
        %v2081 = vadd.f32 %v1693, %v2017
        %v2082 = vadd.f32 %v1694, %v2018
        %v2083 = vadd.f32 %v1695, %v2019
        %v2084 = vadd.f32 %v1696, %v2020
        %v2085 = vadd.f32 %v1697, %v2021
        %v2086 = vadd.f32 %v1698, %v2022
        %v2087 = vadd.f32 %v1699, %v2023
        %v2088 = vadd.f32 %v1700, %v2024
        %v2089 = vadd.f32 %v1701, %v2025
        %v2090 = vadd.f32 %v1702, %v2026
        %v2091 = vadd.f32 %v1703, %v2027
        %v2092 = vadd.f32 %v1704, %v2028
        %v2093 = vadd.f32 %v1705, %v2029
        %v2094 = vadd.f32 %v1706, %v2030
        %v2095 = vadd.f32 %v1707, %v2031
        %v2096 = vadd.f32 %v1708, %v2032
        %v2097 = vadd.f32 %v1709, %v2033
        %v2098 = vadd.f32 %v1710, %v2034
        %v2099 = vadd.f32 %v1711, %v2035
        %v2100 = vadd.f32 %v1712, %v2036
        %v2101 = vadd.f32 %v1713, %v2037
        %v2102 = vadd.f32 %v1714, %v2038
        %v2103 = vadd.f32 %v1715, %v2039
        %v2104 = vadd.f32 %v1716, %v2040
        %v2105 = vadd.f32 %v1717, %v2041
        %v2106 = vadd.f32 %v1718, %v2042
        %v2107 = vadd.f32 %v1719, %v2043
        %v2108 = vadd.f32 %v1720, %v2044
        %v2109 = vadd.f32 %v1721, %v2045
        %v2110 = vadd.f32 %v1722, %v2046
        %v2111 = vadd.f32 %v1723, %v2047
        %v2112 = vadd.f32 %v1724, %v2048
        %v2113 = vadd.f32 %v1725, %v2049
        %v2114 = vadd.f32 %v1726, %v2050
        %v2115 = vadd.f32 %v1727, %v2051
        %v2116 = vadd.f32 %v1728, %v2052
        %v2117 = vadd.f32 %v1729, %v2053
        %v2118 = vadd.f32 %v1730, %v2054
        %v2119 = vadd.f32 %v1731, %v2055
        %v2120 = vadd.f32 %v1732, %v2056
        %v2121 = vadd.f32 %v1733, %v2057
        %v2122 = vadd.f32 %v1734, %v2058
        %v2123 = vadd.f32 %v1735, %v2059
        %v2124 = vadd.f32 %v1736, %v2060
        %v2125 = vadd.f32 %v1737, %v2061
        %v2126 = vadd.f32 %v1738, %v2062
        %v2127 = vadd.f32 %v1739, %v2063
        %v2128 = vadd.f32 %v1740, %v2064
        %v2129 = vadd.f32 %v1741, %v2065
        %v2130 = vadd.f32 %v1742, %v2066
        %v2131 = vadd.f32 %v1743, %v2067
        %v2132 = vadd.f32 %v1744, %v2068
        %v2133 = vadd.f32 %v1745, %v2069
        %v2134 = vadd.f32 %v1746, %v2070
        %v2135 = vadd.f32 %v1747, %v2071
        %v2136 = vadd.f32 %v1748, %v2072
        %v2137 = vadd.f32 %v1749, %v2073
        %v2138 = vadd.f32 %v1750, %v2074
        %v2139 = vadd.f32 %v1751, %v2075
        %v2140 = vadd.f32 %v1752, %v2076
        %v2141 = vadd.f32 %v1753, %v2077
        %v2142 = vadd.f32 %v1754, %v2078
        %v2143 = vadd.f32 %v1755, %v2079
        %v2144 = vadd.f32 %v1756, %v2080
        %v2145 = vld [vmem:[%s2] sm:$0x1]
        %v2147 = vlaneseq
        %v2148 = vshrl.u32 %v2147, 7
        %v2149 = vsub.s32 0, %v2148
        %v2150 = vrot.slane %v2145, %v2149
        %v2152 = vadd.f32 %v2081, %v2150
        %v2153 = vadd.f32 %v2082, %v2150
        %v2154 = vadd.f32 %v2083, %v2150
        %v2155 = vadd.f32 %v2084, %v2150
        %v2156 = vadd.f32 %v2085, %v2150
        %v2157 = vadd.f32 %v2086, %v2150
        %v2158 = vadd.f32 %v2087, %v2150
        %v2159 = vadd.f32 %v2088, %v2150
        %v2160 = vadd.f32 %v2089, %v2150
        %v2161 = vadd.f32 %v2090, %v2150
        %v2162 = vadd.f32 %v2091, %v2150
        %v2163 = vadd.f32 %v2092, %v2150
        %v2164 = vadd.f32 %v2093, %v2150
        %v2165 = vadd.f32 %v2094, %v2150
        %v2166 = vadd.f32 %v2095, %v2150
        %v2167 = vadd.f32 %v2096, %v2150
        %v2168 = vadd.f32 %v2097, %v2150
        %v2169 = vadd.f32 %v2098, %v2150
        %v2170 = vadd.f32 %v2099, %v2150
        %v2171 = vadd.f32 %v2100, %v2150
        %v2172 = vadd.f32 %v2101, %v2150
        %v2173 = vadd.f32 %v2102, %v2150
        %v2174 = vadd.f32 %v2103, %v2150
        %v2175 = vadd.f32 %v2104, %v2150
        %v2176 = vadd.f32 %v2105, %v2150
        %v2177 = vadd.f32 %v2106, %v2150
        %v2178 = vadd.f32 %v2107, %v2150
        %v2179 = vadd.f32 %v2108, %v2150
        %v2180 = vadd.f32 %v2109, %v2150
        %v2181 = vadd.f32 %v2110, %v2150
        %v2182 = vadd.f32 %v2111, %v2150
        %v2183 = vadd.f32 %v2112, %v2150
        %v2184 = vadd.f32 %v2113, %v2150
        %v2185 = vadd.f32 %v2114, %v2150
        %v2186 = vadd.f32 %v2115, %v2150
        %v2187 = vadd.f32 %v2116, %v2150
        %v2188 = vadd.f32 %v2117, %v2150
        %v2189 = vadd.f32 %v2118, %v2150
        %v2190 = vadd.f32 %v2119, %v2150
        %v2191 = vadd.f32 %v2120, %v2150
        %v2192 = vadd.f32 %v2121, %v2150
        %v2193 = vadd.f32 %v2122, %v2150
        %v2194 = vadd.f32 %v2123, %v2150
        %v2195 = vadd.f32 %v2124, %v2150
        %v2196 = vadd.f32 %v2125, %v2150
        %v2197 = vadd.f32 %v2126, %v2150
        %v2198 = vadd.f32 %v2127, %v2150
        %v2199 = vadd.f32 %v2128, %v2150
        %v2200 = vadd.f32 %v2129, %v2150
        %v2201 = vadd.f32 %v2130, %v2150
        %v2202 = vadd.f32 %v2131, %v2150
        %v2203 = vadd.f32 %v2132, %v2150
        %v2204 = vadd.f32 %v2133, %v2150
        %v2205 = vadd.f32 %v2134, %v2150
        %v2206 = vadd.f32 %v2135, %v2150
        %v2207 = vadd.f32 %v2136, %v2150
        %v2208 = vadd.f32 %v2137, %v2150
        %v2209 = vadd.f32 %v2138, %v2150
        %v2210 = vadd.f32 %v2139, %v2150
        %v2211 = vadd.f32 %v2140, %v2150
        %v2212 = vadd.f32 %v2141, %v2150
        %v2213 = vadd.f32 %v2142, %v2150
        %v2214 = vadd.f32 %v2143, %v2150
        %v2215 = vadd.f32 %v2144, %v2150
        %v2216 = vmax.f32 %v2152, 0.0
        %v2217 = vmax.f32 %v2153, 0.0
        %v2218 = vmax.f32 %v2154, 0.0
        %v2219 = vmax.f32 %v2155, 0.0
        %v2220 = vmax.f32 %v2156, 0.0
        %v2221 = vmax.f32 %v2157, 0.0
        %v2222 = vmax.f32 %v2158, 0.0
        %v2223 = vmax.f32 %v2159, 0.0
        %v2224 = vmax.f32 %v2160, 0.0
        %v2225 = vmax.f32 %v2161, 0.0
        %v2226 = vmax.f32 %v2162, 0.0
        %v2227 = vmax.f32 %v2163, 0.0
        %v2228 = vmax.f32 %v2164, 0.0
        %v2229 = vmax.f32 %v2165, 0.0
        %v2230 = vmax.f32 %v2166, 0.0
        %v2231 = vmax.f32 %v2167, 0.0
        %v2232 = vmax.f32 %v2168, 0.0
        %v2233 = vmax.f32 %v2169, 0.0
        %v2234 = vmax.f32 %v2170, 0.0
        %v2235 = vmax.f32 %v2171, 0.0
        %v2236 = vmax.f32 %v2172, 0.0
        %v2237 = vmax.f32 %v2173, 0.0
        %v2238 = vmax.f32 %v2174, 0.0
        %v2239 = vmax.f32 %v2175, 0.0
        %v2240 = vmax.f32 %v2176, 0.0
        %v2241 = vmax.f32 %v2177, 0.0
        %v2242 = vmax.f32 %v2178, 0.0
        %v2243 = vmax.f32 %v2179, 0.0
        %v2244 = vmax.f32 %v2180, 0.0
        %v2245 = vmax.f32 %v2181, 0.0
        %v2246 = vmax.f32 %v2182, 0.0
        %v2247 = vmax.f32 %v2183, 0.0
        %v2248 = vmax.f32 %v2184, 0.0
        %v2249 = vmax.f32 %v2185, 0.0
        %v2250 = vmax.f32 %v2186, 0.0
        %v2251 = vmax.f32 %v2187, 0.0
        %v2252 = vmax.f32 %v2188, 0.0
        %v2253 = vmax.f32 %v2189, 0.0
        %v2254 = vmax.f32 %v2190, 0.0
        %v2255 = vmax.f32 %v2191, 0.0
        %v2256 = vmax.f32 %v2192, 0.0
        %v2257 = vmax.f32 %v2193, 0.0
        %v2258 = vmax.f32 %v2194, 0.0
        %v2259 = vmax.f32 %v2195, 0.0
        %v2260 = vmax.f32 %v2196, 0.0
        %v2261 = vmax.f32 %v2197, 0.0
        %v2262 = vmax.f32 %v2198, 0.0
        %v2263 = vmax.f32 %v2199, 0.0
        %v2264 = vmax.f32 %v2200, 0.0
        %v2265 = vmax.f32 %v2201, 0.0
        %v2266 = vmax.f32 %v2202, 0.0
        %v2267 = vmax.f32 %v2203, 0.0
        %v2268 = vmax.f32 %v2204, 0.0
        %v2269 = vmax.f32 %v2205, 0.0
        %v2270 = vmax.f32 %v2206, 0.0
        %v2271 = vmax.f32 %v2207, 0.0
        %v2272 = vmax.f32 %v2208, 0.0
        %v2273 = vmax.f32 %v2209, 0.0
        %v2274 = vmax.f32 %v2210, 0.0
        %v2275 = vmax.f32 %v2211, 0.0
        %v2276 = vmax.f32 %v2212, 0.0
        %v2277 = vmax.f32 %v2213, 0.0
        %v2278 = vmax.f32 %v2214, 0.0
        %v2279 = vmax.f32 %v2215, 0.0
        %v2280 = vpack.c.bf16 %v2217, %v2216
        %v2281 = vpack.c.bf16 %v2219, %v2218
        %v2282 = vpack.c.bf16 %v2221, %v2220
        %v2283 = vpack.c.bf16 %v2223, %v2222
        %v2284 = vpack.c.bf16 %v2225, %v2224
        %v2285 = vpack.c.bf16 %v2227, %v2226
        %v2286 = vpack.c.bf16 %v2229, %v2228
        %v2287 = vpack.c.bf16 %v2231, %v2230
        %v2288 = vpack.c.bf16 %v2233, %v2232
        %v2289 = vpack.c.bf16 %v2235, %v2234
        %v2290 = vpack.c.bf16 %v2237, %v2236
        %v2291 = vpack.c.bf16 %v2239, %v2238
        %v2292 = vpack.c.bf16 %v2241, %v2240
        %v2293 = vpack.c.bf16 %v2243, %v2242
        %v2294 = vpack.c.bf16 %v2245, %v2244
        %v2295 = vpack.c.bf16 %v2247, %v2246
        %v2296 = vpack.c.bf16 %v2249, %v2248
        %v2297 = vpack.c.bf16 %v2251, %v2250
        %v2298 = vpack.c.bf16 %v2253, %v2252
        %v2299 = vpack.c.bf16 %v2255, %v2254
        %v2300 = vpack.c.bf16 %v2257, %v2256
        %v2301 = vpack.c.bf16 %v2259, %v2258
        %v2302 = vpack.c.bf16 %v2261, %v2260
        %v2303 = vpack.c.bf16 %v2263, %v2262
        %v2304 = vpack.c.bf16 %v2265, %v2264
        %v2305 = vpack.c.bf16 %v2267, %v2266
        %v2306 = vpack.c.bf16 %v2269, %v2268
        %v2307 = vpack.c.bf16 %v2271, %v2270
        %v2308 = vpack.c.bf16 %v2273, %v2272
        %v2309 = vpack.c.bf16 %v2275, %v2274
        %v2310 = vpack.c.bf16 %v2277, %v2276
        %v2311 = vpack.c.bf16 %v2279, %v2278
        %v2312 = vld [vmem:[%s3] sm:$0xf]
        %v2313 = vld [vmem:[%s3 + $0x4] sm:$0xf]
        %v2314 = vld [vmem:[%s3 + $0x8] sm:$0xf]
        %v2315 = vld [vmem:[%s3 + $0xc] sm:$0xf]
        %v2316 = vld [vmem:[%s3 + $0x10] sm:$0xf]
        %v2317 = vld [vmem:[%s3 + $0x14] sm:$0xf]
        %v2318 = vld [vmem:[%s3 + $0x18] sm:$0xf]
        %v2319 = vld [vmem:[%s3 + $0x1c] sm:$0xf]
        %v2320 = vld [vmem:[%s4] sm:$0x1]
        %v2322 = vlaneseq
        %v2323 = vshrl.u32 %v2322, 7
        %v2324 = vsub.s32 0, %v2323
        %v2325 = vrot.slane %v2320, %v2324
        %v2335 = vunpack.c.l.b16 %v2312
        %v2336 = vunpack.c.l.b16 %v2313
        %v2337 = vunpack.c.l.b16 %v2314
        %v2338 = vunpack.c.l.b16 %v2315
        %v2339 = vunpack.c.l.b16 %v2316
        %v2340 = vunpack.c.l.b16 %v2317
        %v2341 = vunpack.c.l.b16 %v2318
        %v2342 = vunpack.c.l.b16 %v2319
        %v2343 = vpack.c.b16 %v2336, %v2335
        %v2344 = vpack.c.b16 %v2338, %v2337
        %v2345 = vpack.c.b16 %v2340, %v2339
        %v2346 = vpack.c.b16 %v2342, %v2341
        %vm2351 = vcmask 523264
        %v2353 = vsel %vm2351, %v2280, 0
        %v2356 = vsel %vm2351, %v2281, 0
        %v2359 = vsel %vm2351, %v2282, 0
        %v2362 = vsel %vm2351, %v2283, 0
        %v2365 = vsel %vm2351, %v2284, 0
        %v2368 = vsel %vm2351, %v2285, 0
        %v2371 = vsel %vm2351, %v2286, 0
        %v2374 = vsel %vm2351, %v2287, 0
        %v2377 = vsel %vm2351, %v2288, 0
        %v2380 = vsel %vm2351, %v2289, 0
        %v2383 = vsel %vm2351, %v2290, 0
        %v2386 = vsel %vm2351, %v2291, 0
        %v2389 = vsel %vm2351, %v2292, 0
        %v2392 = vsel %vm2351, %v2293, 0
        %v2395 = vsel %vm2351, %v2294, 0
        %v2398 = vsel %vm2351, %v2295, 0
        %v2401 = vsel %vm2351, %v2296, 0
        %v2404 = vsel %vm2351, %v2297, 0
        %v2407 = vsel %vm2351, %v2298, 0
        %v2410 = vsel %vm2351, %v2299, 0
        %v2413 = vsel %vm2351, %v2300, 0
        %v2416 = vsel %vm2351, %v2301, 0
        %v2419 = vsel %vm2351, %v2302, 0
        %v2422 = vsel %vm2351, %v2303, 0
        %v2425 = vsel %vm2351, %v2304, 0
        %v2428 = vsel %vm2351, %v2305, 0
        %v2431 = vsel %vm2351, %v2306, 0
        %v2434 = vsel %vm2351, %v2307, 0
        %v2437 = vsel %vm2351, %v2308, 0
        %v2440 = vsel %vm2351, %v2309, 0
        %v2443 = vsel %vm2351, %v2310, 0
        %v2446 = vsel %vm2351, %v2311, 0
        %2448 = vmatprep.subr.bf16.mxu0 0
        %2449 = vmatpush1.bf16.msra.mxu0 %v2343
        %2450 = vmatprep.subr.bf16.mxu0 0
        %2451 = vmatpush1.bf16.msra.mxu0 %v2344
        %2452 = vmatprep.subr.bf16.mxu0 0
        %2453 = vmatpush1.bf16.msra.mxu0 %v2345
        %2454 = vmatprep.subr.bf16.mxu0 0
        %2455 = vmatpush1.bf16.msra.mxu0 %v2346
        %2456 = vmatprep.subr.bf16.mxu0 0
        %2457 = vmatpush1.bf16.msra.mxu0 0
        %2458 = vmatprep.subr.bf16.mxu0 0
        %2459 = vmatpush1.bf16.msra.mxu0 0
        %2460 = vmatprep.subr.bf16.mxu0 0
        %2461 = vmatpush1.bf16.msra.mxu0 0
        %2462 = vmatprep.subr.bf16.mxu0 0
        %2463 = vmatpush1.bf16.msra.mxu0 0
        %2464 = vmatprep.subr.bf16.mxu0 0
        %2465 = vmatpush1.bf16.msra.mxu0 0
        %2466 = vmatprep.subr.bf16.mxu0 0
        %2467 = vmatpush1.bf16.msra.mxu0 0
        %2468 = vmatprep.subr.bf16.mxu0 0
        %2469 = vmatpush1.bf16.msra.mxu0 0
        %2470 = vmatprep.subr.bf16.mxu0 0
        %2471 = vmatpush1.bf16.msra.mxu0 0
        %2472 = vmatprep.subr.bf16.mxu0 0
        %2473 = vmatpush1.bf16.msra.mxu0 0
        %2474 = vmatprep.subr.bf16.mxu0 0
        %2475 = vmatpush1.bf16.msra.mxu0 0
        %2476 = vmatprep.subr.bf16.mxu0 0
        %2477 = vmatpush1.bf16.msra.mxu0 0
        %2478 = vmatprep.subr.bf16.mxu0 0
        %2479 = vmatpush1.bf16.msra.mxu0 0
        %2480 = vmatprep.mubr.bf16.mxu0 0
        %2481 = vmatmul.mubr.bf16.gmra.mrb[0].mxu0 %v2353
        %v2482 = vpop.f32.mrb[0].mxu0
        %v2483 = vadd.f32 %v2325, %v2482
        %v2484 = vpop.f32.mrb[0].mxu0
        %v2485 = vpop.f32.mrb[0].mxu0
        %v2486 = vadd.f32 %v2325, %v2485
        %v2487 = vpop.f32.mrb[0].mxu0
        %2488 = vmatprep.mubr.bf16.mxu0 0
        %2489 = vmatmul.mubr.bf16.gmra.mrb[0].mxu0 %v2356
        %v2490 = vpop.f32.mrb[0].mxu0
        %v2491 = vadd.f32 %v2325, %v2490
        %v2492 = vpop.f32.mrb[0].mxu0
        %v2493 = vpop.f32.mrb[0].mxu0
        %v2494 = vadd.f32 %v2325, %v2493
        %v2495 = vpop.f32.mrb[0].mxu0
        %2496 = vmatprep.mubr.bf16.mxu0 0
        %2497 = vmatmul.mubr.bf16.gmra.mrb[0].mxu0 %v2359
        %v2498 = vpop.f32.mrb[0].mxu0
        %v2499 = vadd.f32 %v2325, %v2498
        %v2500 = vpop.f32.mrb[0].mxu0
        %v2501 = vpop.f32.mrb[0].mxu0
        %v2502 = vadd.f32 %v2325, %v2501
        %v2503 = vpop.f32.mrb[0].mxu0
        %2504 = vmatprep.mubr.bf16.mxu0 0
        %2505 = vmatmul.mubr.bf16.gmra.mrb[0].mxu0 %v2362
        %v2506 = vpop.f32.mrb[0].mxu0
        %v2507 = vadd.f32 %v2325, %v2506
        %v2508 = vpop.f32.mrb[0].mxu0
        %v2509 = vpop.f32.mrb[0].mxu0
        %v2510 = vadd.f32 %v2325, %v2509
        %v2511 = vpop.f32.mrb[0].mxu0
        %2512 = vmatprep.mubr.bf16.mxu0 0
        %2513 = vmatmul.mubr.bf16.gmra.mrb[0].mxu0 %v2365
        %v2514 = vpop.f32.mrb[0].mxu0
        %v2515 = vadd.f32 %v2325, %v2514
        %v2516 = vpop.f32.mrb[0].mxu0
        %v2517 = vpop.f32.mrb[0].mxu0
        %v2518 = vadd.f32 %v2325, %v2517
        %v2519 = vpop.f32.mrb[0].mxu0
        %2520 = vmatprep.mubr.bf16.mxu0 0
        %2521 = vmatmul.mubr.bf16.gmra.mrb[0].mxu0 %v2368
        %v2522 = vpop.f32.mrb[0].mxu0
        %v2523 = vadd.f32 %v2325, %v2522
        %v2524 = vpop.f32.mrb[0].mxu0
        %v2525 = vpop.f32.mrb[0].mxu0
        %v2526 = vadd.f32 %v2325, %v2525
        %v2527 = vpop.f32.mrb[0].mxu0
        %2528 = vmatprep.mubr.bf16.mxu0 0
        %2529 = vmatmul.mubr.bf16.gmra.mrb[0].mxu0 %v2371
        %v2530 = vpop.f32.mrb[0].mxu0
        %v2531 = vadd.f32 %v2325, %v2530
        %v2532 = vpop.f32.mrb[0].mxu0
        %v2533 = vpop.f32.mrb[0].mxu0
        %v2534 = vadd.f32 %v2325, %v2533
        %v2535 = vpop.f32.mrb[0].mxu0
        %2536 = vmatprep.mubr.bf16.mxu0 0
        %2537 = vmatmul.mubr.bf16.gmra.mrb[0].mxu0 %v2374
        %v2538 = vpop.f32.mrb[0].mxu0
        %v2539 = vadd.f32 %v2325, %v2538
        %v2540 = vpop.f32.mrb[0].mxu0
        %v2541 = vpop.f32.mrb[0].mxu0
        %v2542 = vadd.f32 %v2325, %v2541
        %v2543 = vpop.f32.mrb[0].mxu0
        %2544 = vmatprep.mubr.bf16.mxu0 0
        %2545 = vmatmul.mubr.bf16.gmra.mrb[0].mxu0 %v2377
        %v2546 = vpop.f32.mrb[0].mxu0
        %v2547 = vadd.f32 %v2325, %v2546
        %v2548 = vpop.f32.mrb[0].mxu0
        %v2549 = vpop.f32.mrb[0].mxu0
        %v2550 = vadd.f32 %v2325, %v2549
        %v2551 = vpop.f32.mrb[0].mxu0
        %2552 = vmatprep.mubr.bf16.mxu0 0
        %2553 = vmatmul.mubr.bf16.gmra.mrb[0].mxu0 %v2380
        %v2554 = vpop.f32.mrb[0].mxu0
        %v2555 = vadd.f32 %v2325, %v2554
        %v2556 = vpop.f32.mrb[0].mxu0
        %v2557 = vpop.f32.mrb[0].mxu0
        %v2558 = vadd.f32 %v2325, %v2557
        %v2559 = vpop.f32.mrb[0].mxu0
        %2560 = vmatprep.mubr.bf16.mxu0 0
        %2561 = vmatmul.mubr.bf16.gmra.mrb[0].mxu0 %v2383
        %v2562 = vpop.f32.mrb[0].mxu0
        %v2563 = vadd.f32 %v2325, %v2562
        %v2564 = vpop.f32.mrb[0].mxu0
        %v2565 = vpop.f32.mrb[0].mxu0
        %v2566 = vadd.f32 %v2325, %v2565
        %v2567 = vpop.f32.mrb[0].mxu0
        %2568 = vmatprep.mubr.bf16.mxu0 0
        %2569 = vmatmul.mubr.bf16.gmra.mrb[0].mxu0 %v2386
        %v2570 = vpop.f32.mrb[0].mxu0
        %v2571 = vadd.f32 %v2325, %v2570
        %v2572 = vpop.f32.mrb[0].mxu0
        %v2573 = vpop.f32.mrb[0].mxu0
        %v2574 = vadd.f32 %v2325, %v2573
        %v2575 = vpop.f32.mrb[0].mxu0
        %2576 = vmatprep.mubr.bf16.mxu0 0
        %2577 = vmatmul.mubr.bf16.gmra.mrb[0].mxu0 %v2389
        %v2578 = vpop.f32.mrb[0].mxu0
        %v2579 = vadd.f32 %v2325, %v2578
        %v2580 = vpop.f32.mrb[0].mxu0
        %v2581 = vpop.f32.mrb[0].mxu0
        %v2582 = vadd.f32 %v2325, %v2581
        %v2583 = vpop.f32.mrb[0].mxu0
        %2584 = vmatprep.mubr.bf16.mxu0 0
        %2585 = vmatmul.mubr.bf16.gmra.mrb[0].mxu0 %v2392
        %v2586 = vpop.f32.mrb[0].mxu0
        %v2587 = vadd.f32 %v2325, %v2586
        %v2588 = vpop.f32.mrb[0].mxu0
        %v2589 = vpop.f32.mrb[0].mxu0
        %v2590 = vadd.f32 %v2325, %v2589
        %v2591 = vpop.f32.mrb[0].mxu0
        %2592 = vmatprep.mubr.bf16.mxu0 0
        %2593 = vmatmul.mubr.bf16.gmra.mrb[0].mxu0 %v2395
        %v2594 = vpop.f32.mrb[0].mxu0
        %v2595 = vadd.f32 %v2325, %v2594
        %v2596 = vpop.f32.mrb[0].mxu0
        %v2597 = vpop.f32.mrb[0].mxu0
        %v2598 = vadd.f32 %v2325, %v2597
        %v2599 = vpop.f32.mrb[0].mxu0
        %2600 = vmatprep.mubr.bf16.mxu0 0
        %2601 = vmatmul.mubr.bf16.gmra.mrb[0].mxu0 %v2398
        %v2602 = vpop.f32.mrb[0].mxu0
        %v2603 = vadd.f32 %v2325, %v2602
        %v2604 = vpop.f32.mrb[0].mxu0
        %v2605 = vpop.f32.mrb[0].mxu0
        %v2606 = vadd.f32 %v2325, %v2605
        %v2607 = vpop.f32.mrb[0].mxu0
        %2608 = vmatprep.mubr.bf16.mxu0 0
        %2609 = vmatmul.mubr.bf16.gmra.mrb[0].mxu0 %v2401
        %v2610 = vpop.f32.mrb[0].mxu0
        %v2611 = vadd.f32 %v2325, %v2610
        %v2612 = vpop.f32.mrb[0].mxu0
        %v2613 = vpop.f32.mrb[0].mxu0
        %v2614 = vadd.f32 %v2325, %v2613
        %v2615 = vpop.f32.mrb[0].mxu0
        %2616 = vmatprep.mubr.bf16.mxu0 0
        %2617 = vmatmul.mubr.bf16.gmra.mrb[0].mxu0 %v2404
        %v2618 = vpop.f32.mrb[0].mxu0
        %v2619 = vadd.f32 %v2325, %v2618
        %v2620 = vpop.f32.mrb[0].mxu0
        %v2621 = vpop.f32.mrb[0].mxu0
        %v2622 = vadd.f32 %v2325, %v2621
        %v2623 = vpop.f32.mrb[0].mxu0
        %2624 = vmatprep.mubr.bf16.mxu0 0
        %2625 = vmatmul.mubr.bf16.gmra.mrb[0].mxu0 %v2407
        %v2626 = vpop.f32.mrb[0].mxu0
        %v2627 = vadd.f32 %v2325, %v2626
        %v2628 = vpop.f32.mrb[0].mxu0
        %v2629 = vpop.f32.mrb[0].mxu0
        %v2630 = vadd.f32 %v2325, %v2629
        %v2631 = vpop.f32.mrb[0].mxu0
        %2632 = vmatprep.mubr.bf16.mxu0 0
        %2633 = vmatmul.mubr.bf16.gmra.mrb[0].mxu0 %v2410
        %v2634 = vpop.f32.mrb[0].mxu0
        %v2635 = vadd.f32 %v2325, %v2634
        %v2636 = vpop.f32.mrb[0].mxu0
        %v2637 = vpop.f32.mrb[0].mxu0
        %v2638 = vadd.f32 %v2325, %v2637
        %v2639 = vpop.f32.mrb[0].mxu0
        %2640 = vmatprep.mubr.bf16.mxu0 0
        %2641 = vmatmul.mubr.bf16.gmra.mrb[0].mxu0 %v2413
        %v2642 = vpop.f32.mrb[0].mxu0
        %v2643 = vadd.f32 %v2325, %v2642
        %v2644 = vpop.f32.mrb[0].mxu0
        %v2645 = vpop.f32.mrb[0].mxu0
        %v2646 = vadd.f32 %v2325, %v2645
        %v2647 = vpop.f32.mrb[0].mxu0
        %2648 = vmatprep.mubr.bf16.mxu0 0
        %2649 = vmatmul.mubr.bf16.gmra.mrb[0].mxu0 %v2416
        %v2650 = vpop.f32.mrb[0].mxu0
        %v2651 = vadd.f32 %v2325, %v2650
        %v2652 = vpop.f32.mrb[0].mxu0
        %v2653 = vpop.f32.mrb[0].mxu0
        %v2654 = vadd.f32 %v2325, %v2653
        %v2655 = vpop.f32.mrb[0].mxu0
        %2656 = vmatprep.mubr.bf16.mxu0 0
        %2657 = vmatmul.mubr.bf16.gmra.mrb[0].mxu0 %v2419
        %v2658 = vpop.f32.mrb[0].mxu0
        %v2659 = vadd.f32 %v2325, %v2658
        %v2660 = vpop.f32.mrb[0].mxu0
        %v2661 = vpop.f32.mrb[0].mxu0
        %v2662 = vadd.f32 %v2325, %v2661
        %v2663 = vpop.f32.mrb[0].mxu0
        %2664 = vmatprep.mubr.bf16.mxu0 0
        %2665 = vmatmul.mubr.bf16.gmra.mrb[0].mxu0 %v2422
        %v2666 = vpop.f32.mrb[0].mxu0
        %v2667 = vadd.f32 %v2325, %v2666
        %v2668 = vpop.f32.mrb[0].mxu0
        %v2669 = vpop.f32.mrb[0].mxu0
        %v2670 = vadd.f32 %v2325, %v2669
        %v2671 = vpop.f32.mrb[0].mxu0
        %2672 = vmatprep.mubr.bf16.mxu0 0
        %2673 = vmatmul.mubr.bf16.gmra.mrb[0].mxu0 %v2425
        %v2674 = vpop.f32.mrb[0].mxu0
        %v2675 = vadd.f32 %v2325, %v2674
        %v2676 = vpop.f32.mrb[0].mxu0
        %v2677 = vpop.f32.mrb[0].mxu0
        %v2678 = vadd.f32 %v2325, %v2677
        %v2679 = vpop.f32.mrb[0].mxu0
        %2680 = vmatprep.mubr.bf16.mxu0 0
        %2681 = vmatmul.mubr.bf16.gmra.mrb[0].mxu0 %v2428
        %v2682 = vpop.f32.mrb[0].mxu0
        %v2683 = vadd.f32 %v2325, %v2682
        %v2684 = vpop.f32.mrb[0].mxu0
        %v2685 = vpop.f32.mrb[0].mxu0
        %v2686 = vadd.f32 %v2325, %v2685
        %v2687 = vpop.f32.mrb[0].mxu0
        %2688 = vmatprep.mubr.bf16.mxu0 0
        %2689 = vmatmul.mubr.bf16.gmra.mrb[0].mxu0 %v2431
        %v2690 = vpop.f32.mrb[0].mxu0
        %v2691 = vadd.f32 %v2325, %v2690
        %v2692 = vpop.f32.mrb[0].mxu0
        %v2693 = vpop.f32.mrb[0].mxu0
        %v2694 = vadd.f32 %v2325, %v2693
        %v2695 = vpop.f32.mrb[0].mxu0
        %2696 = vmatprep.mubr.bf16.mxu0 0
        %2697 = vmatmul.mubr.bf16.gmra.mrb[0].mxu0 %v2434
        %v2698 = vpop.f32.mrb[0].mxu0
        %v2699 = vadd.f32 %v2325, %v2698
        %v2700 = vpop.f32.mrb[0].mxu0
        %v2701 = vpop.f32.mrb[0].mxu0
        %v2702 = vadd.f32 %v2325, %v2701
        %v2703 = vpop.f32.mrb[0].mxu0
        %2704 = vmatprep.mubr.bf16.mxu0 0
        %2705 = vmatmul.mubr.bf16.gmra.mrb[0].mxu0 %v2437
        %v2706 = vpop.f32.mrb[0].mxu0
        %v2707 = vadd.f32 %v2325, %v2706
        %v2708 = vpop.f32.mrb[0].mxu0
        %v2709 = vpop.f32.mrb[0].mxu0
        %v2710 = vadd.f32 %v2325, %v2709
        %v2711 = vpop.f32.mrb[0].mxu0
        %2712 = vmatprep.mubr.bf16.mxu0 0
        %2713 = vmatmul.mubr.bf16.gmra.mrb[0].mxu0 %v2440
        %v2714 = vpop.f32.mrb[0].mxu0
        %v2715 = vadd.f32 %v2325, %v2714
        %v2716 = vpop.f32.mrb[0].mxu0
        %v2717 = vpop.f32.mrb[0].mxu0
        %v2718 = vadd.f32 %v2325, %v2717
        %v2719 = vpop.f32.mrb[0].mxu0
        %2720 = vmatprep.mubr.bf16.mxu0 0
        %2721 = vmatmul.mubr.bf16.gmra.mrb[0].mxu0 %v2443
        %v2722 = vpop.f32.mrb[0].mxu0
        %v2723 = vadd.f32 %v2325, %v2722
        %v2724 = vpop.f32.mrb[0].mxu0
        %v2725 = vpop.f32.mrb[0].mxu0
        %v2726 = vadd.f32 %v2325, %v2725
        %v2727 = vpop.f32.mrb[0].mxu0
        %2728 = vmatprep.mubr.bf16.mxu0 0
        %2729 = vmatmul.mubr.bf16.gmra.mrb[0].mxu0 %v2446
        %v2730 = vpop.f32.mrb[0].mxu0
        %v2731 = vadd.f32 %v2325, %v2730
        %v2732 = vpop.f32.mrb[0].mxu0
        %v2733 = vpop.f32.mrb[0].mxu0
        %v2734 = vadd.f32 %v2325, %v2733
        %v2735 = vpop.f32.mrb[0].mxu0
        %2736 = vdwg.mxu0
        %v2737 = vmax.f32 %v2483, 0.0
        %v2738 = vmax.f32 %v2486, 0.0
        %v2739 = vmax.f32 %v2491, 0.0
        %v2740 = vmax.f32 %v2494, 0.0
        %v2741 = vmax.f32 %v2499, 0.0
        %v2742 = vmax.f32 %v2502, 0.0
        %v2743 = vmax.f32 %v2507, 0.0
        %v2744 = vmax.f32 %v2510, 0.0
        %v2745 = vmax.f32 %v2515, 0.0
        %v2746 = vmax.f32 %v2518, 0.0
        %v2747 = vmax.f32 %v2523, 0.0
        %v2748 = vmax.f32 %v2526, 0.0
        %v2749 = vmax.f32 %v2531, 0.0
        %v2750 = vmax.f32 %v2534, 0.0
        %v2751 = vmax.f32 %v2539, 0.0
        %v2752 = vmax.f32 %v2542, 0.0
        %v2753 = vmax.f32 %v2547, 0.0
        %v2754 = vmax.f32 %v2550, 0.0
        %v2755 = vmax.f32 %v2555, 0.0
        %v2756 = vmax.f32 %v2558, 0.0
        %v2757 = vmax.f32 %v2563, 0.0
        %v2758 = vmax.f32 %v2566, 0.0
        %v2759 = vmax.f32 %v2571, 0.0
        %v2760 = vmax.f32 %v2574, 0.0
        %v2761 = vmax.f32 %v2579, 0.0
        %v2762 = vmax.f32 %v2582, 0.0
        %v2763 = vmax.f32 %v2587, 0.0
        %v2764 = vmax.f32 %v2590, 0.0
        %v2765 = vmax.f32 %v2595, 0.0
        %v2766 = vmax.f32 %v2598, 0.0
        %v2767 = vmax.f32 %v2603, 0.0
        %v2768 = vmax.f32 %v2606, 0.0
        %v2769 = vmax.f32 %v2611, 0.0
        %v2770 = vmax.f32 %v2614, 0.0
        %v2771 = vmax.f32 %v2619, 0.0
        %v2772 = vmax.f32 %v2622, 0.0
        %v2773 = vmax.f32 %v2627, 0.0
        %v2774 = vmax.f32 %v2630, 0.0
        %v2775 = vmax.f32 %v2635, 0.0
        %v2776 = vmax.f32 %v2638, 0.0
        %v2777 = vmax.f32 %v2643, 0.0
        %v2778 = vmax.f32 %v2646, 0.0
        %v2779 = vmax.f32 %v2651, 0.0
        %v2780 = vmax.f32 %v2654, 0.0
        %v2781 = vmax.f32 %v2659, 0.0
        %v2782 = vmax.f32 %v2662, 0.0
        %v2783 = vmax.f32 %v2667, 0.0
        %v2784 = vmax.f32 %v2670, 0.0
        %v2785 = vmax.f32 %v2675, 0.0
        %v2786 = vmax.f32 %v2678, 0.0
        %v2787 = vmax.f32 %v2683, 0.0
        %v2788 = vmax.f32 %v2686, 0.0
        %v2789 = vmax.f32 %v2691, 0.0
        %v2790 = vmax.f32 %v2694, 0.0
        %v2791 = vmax.f32 %v2699, 0.0
        %v2792 = vmax.f32 %v2702, 0.0
        %v2793 = vmax.f32 %v2707, 0.0
        %v2794 = vmax.f32 %v2710, 0.0
        %v2795 = vmax.f32 %v2715, 0.0
        %v2796 = vmax.f32 %v2718, 0.0
        %v2797 = vmax.f32 %v2723, 0.0
        %v2798 = vmax.f32 %v2726, 0.0
        %v2799 = vmax.f32 %v2731, 0.0
        %v2800 = vmax.f32 %v2734, 0.0
        %v2801 = vpack.c.bf16 %v2738, %v2737
        %v2802 = vpack.c.bf16 %v2740, %v2739
        %v2803 = vpack.c.bf16 %v2742, %v2741
        %v2804 = vpack.c.bf16 %v2744, %v2743
        %v2805 = vpack.c.bf16 %v2746, %v2745
        %v2806 = vpack.c.bf16 %v2748, %v2747
        %v2807 = vpack.c.bf16 %v2750, %v2749
        %v2808 = vpack.c.bf16 %v2752, %v2751
        %v2809 = vpack.c.bf16 %v2754, %v2753
        %v2810 = vpack.c.bf16 %v2756, %v2755
        %v2811 = vpack.c.bf16 %v2758, %v2757
        %v2812 = vpack.c.bf16 %v2760, %v2759
        %v2813 = vpack.c.bf16 %v2762, %v2761
        %v2814 = vpack.c.bf16 %v2764, %v2763
        %v2815 = vpack.c.bf16 %v2766, %v2765
        %v2816 = vpack.c.bf16 %v2768, %v2767
        %v2817 = vpack.c.bf16 %v2770, %v2769
        %v2818 = vpack.c.bf16 %v2772, %v2771
        %v2819 = vpack.c.bf16 %v2774, %v2773
        %v2820 = vpack.c.bf16 %v2776, %v2775
        %v2821 = vpack.c.bf16 %v2778, %v2777
        %v2822 = vpack.c.bf16 %v2780, %v2779
        %v2823 = vpack.c.bf16 %v2782, %v2781
        %v2824 = vpack.c.bf16 %v2784, %v2783
        %v2825 = vpack.c.bf16 %v2786, %v2785
        %v2826 = vpack.c.bf16 %v2788, %v2787
        %v2827 = vpack.c.bf16 %v2790, %v2789
        %v2828 = vpack.c.bf16 %v2792, %v2791
        %v2829 = vpack.c.bf16 %v2794, %v2793
        %v2830 = vpack.c.bf16 %v2796, %v2795
        %v2831 = vpack.c.bf16 %v2798, %v2797
        %v2832 = vpack.c.bf16 %v2800, %v2799
        %v2833 = vld [vmem:[#allocation3] sm:$0xff]
        %v2834 = vld [vmem:[#allocation3 + $0x8] sm:$0xff]
        %v2835 = vld [vmem:[#allocation3 + $0x10] sm:$0xff]
        %v2836 = vld [vmem:[#allocation3 + $0x18] sm:$0xff]
        %v2837 = vld [vmem:[#allocation3 + $0x20] sm:$0xff]
        %v2838 = vld [vmem:[#allocation3 + $0x28] sm:$0xff]
        %v2839 = vld [vmem:[#allocation3 + $0x30] sm:$0xff]
        %v2840 = vld [vmem:[#allocation3 + $0x38] sm:$0xff]
        %v2841 = vld [vmem:[#allocation3 + $0x40] sm:$0xff]
        %v2842 = vld [vmem:[#allocation3 + $0x48] sm:$0xff]
        %v2843 = vld [vmem:[#allocation3 + $0x50] sm:$0xff]
        %v2844 = vld [vmem:[#allocation3 + $0x58] sm:$0xff]
        %v2845 = vld [vmem:[#allocation3 + $0x60] sm:$0xff]
        %v2846 = vld [vmem:[#allocation3 + $0x68] sm:$0xff]
        %v2847 = vld [vmem:[#allocation3 + $0x70] sm:$0xff]
        %v2848 = vld [vmem:[#allocation3 + $0x78] sm:$0xff]
        %v2849 = vld [vmem:[#allocation3 + $0x80] sm:$0xff]
        %v2850 = vld [vmem:[#allocation3 + $0x88] sm:$0xff]
        %v2851 = vld [vmem:[#allocation3 + $0x90] sm:$0xff]
        %v2852 = vld [vmem:[#allocation3 + $0x98] sm:$0xff]
        %v2853 = vld [vmem:[#allocation3 + $0xa0] sm:$0xff]
        %v2854 = vld [vmem:[#allocation3 + $0xa8] sm:$0xff]
        %v2855 = vld [vmem:[#allocation3 + $0xb0] sm:$0xff]
        %v2856 = vld [vmem:[#allocation3 + $0xb8] sm:$0xff]
        %v2857 = vld [vmem:[#allocation3 + $0xc0] sm:$0xff]
        %v2858 = vld [vmem:[#allocation3 + $0xc8] sm:$0xff]
        %v2859 = vld [vmem:[#allocation3 + $0xd0] sm:$0xff]
        %v2860 = vld [vmem:[#allocation3 + $0xd8] sm:$0xff]
        %v2861 = vld [vmem:[#allocation3 + $0xe0] sm:$0xff]
        %v2862 = vld [vmem:[#allocation3 + $0xe8] sm:$0xff]
        %v2863 = vld [vmem:[#allocation3 + $0xf0] sm:$0xff]
        %v2864 = vld [vmem:[#allocation3 + $0xf8] sm:$0xff]
        %v2865 = vld [vmem:[#allocation3 + $0x100] sm:$0xff]
        %v2866 = vld [vmem:[#allocation3 + $0x108] sm:$0xff]
        %v2867 = vld [vmem:[#allocation3 + $0x110] sm:$0xff]
        %v2868 = vld [vmem:[#allocation3 + $0x118] sm:$0xff]
        %v2869 = vld [vmem:[#allocation3 + $0x120] sm:$0xff]
        %v2870 = vld [vmem:[#allocation3 + $0x128] sm:$0xff]
        %v2871 = vld [vmem:[#allocation3 + $0x130] sm:$0xff]
        %v2872 = vld [vmem:[#allocation3 + $0x138] sm:$0xff]
        %v2873 = vld [vmem:[#allocation3 + $0x140] sm:$0xff]
        %v2874 = vld [vmem:[#allocation3 + $0x148] sm:$0xff]
        %v2875 = vld [vmem:[#allocation3 + $0x150] sm:$0xff]
        %v2876 = vld [vmem:[#allocation3 + $0x158] sm:$0xff]
        %v2877 = vld [vmem:[#allocation3 + $0x160] sm:$0xff]
        %v2878 = vld [vmem:[#allocation3 + $0x168] sm:$0xff]
        %v2879 = vld [vmem:[#allocation3 + $0x170] sm:$0xff]
        %v2880 = vld [vmem:[#allocation3 + $0x178] sm:$0xff]
        %v2881 = vld [vmem:[#allocation3 + $0x180] sm:$0xff]
        %v2882 = vld [vmem:[#allocation3 + $0x188] sm:$0xff]
        %v2883 = vld [vmem:[#allocation3 + $0x190] sm:$0xff]
        %v2884 = vld [vmem:[#allocation3 + $0x198] sm:$0xff]
        %v2885 = vld [vmem:[#allocation3 + $0x1a0] sm:$0xff]
        %v2886 = vld [vmem:[#allocation3 + $0x1a8] sm:$0xff]
        %v2887 = vld [vmem:[#allocation3 + $0x1b0] sm:$0xff]
        %v2888 = vld [vmem:[#allocation3 + $0x1b8] sm:$0xff]
        %v2889 = vld [vmem:[#allocation3 + $0x1c0] sm:$0xff]
        %v2890 = vld [vmem:[#allocation3 + $0x1c8] sm:$0xff]
        %v2891 = vld [vmem:[#allocation3 + $0x1d0] sm:$0xff]
        %v2892 = vld [vmem:[#allocation3 + $0x1d8] sm:$0xff]
        %v2893 = vld [vmem:[#allocation3 + $0x1e0] sm:$0xff]
        %v2894 = vld [vmem:[#allocation3 + $0x1e8] sm:$0xff]
        %v2895 = vld [vmem:[#allocation3 + $0x1f0] sm:$0xff]
        %v2896 = vld [vmem:[#allocation3 + $0x1f8] sm:$0xff]
        %v2897 = vld [vmem:[%s6] sm:$0xff]
        %v2899 = vlaneseq
        %v2900 = vshrl.u32 %v2899, 7
        %v2901 = vsub.s32 0, %v2900
        %v2902 = vrot.slane %v2897, %v2901
        %v2903 = vlaneseq
        %v2904 = vshrl.u32 %v2903, 7
        %v2905 = vsub.s32 1, %v2904
        %v2906 = vrot.slane %v2897, %v2905
        %v2907 = vlaneseq
        %v2908 = vshrl.u32 %v2907, 7
        %v2909 = vsub.s32 2, %v2908
        %v2910 = vrot.slane %v2897, %v2909
        %v2911 = vlaneseq
        %v2912 = vshrl.u32 %v2911, 7
        %v2913 = vsub.s32 3, %v2912
        %v2914 = vrot.slane %v2897, %v2913
        %v2915 = vlaneseq
        %v2916 = vshrl.u32 %v2915, 7
        %v2917 = vsub.s32 4, %v2916
        %v2918 = vrot.slane %v2897, %v2917
        %v2919 = vlaneseq
        %v2920 = vshrl.u32 %v2919, 7
        %v2921 = vsub.s32 5, %v2920
        %v2922 = vrot.slane %v2897, %v2921
        %v2923 = vlaneseq
        %v2924 = vshrl.u32 %v2923, 7
        %v2925 = vsub.s32 6, %v2924
        %v2926 = vrot.slane %v2897, %v2925
        %v2927 = vlaneseq
        %v2928 = vshrl.u32 %v2927, 7
        %v2929 = vsub.s32 7, %v2928
        %v2930 = vrot.slane %v2897, %v2929
        %v3003 = vunpack.c.l.b16 %v2833
        %v3004 = vunpack.c.h.b16 %v2833
        %v3005 = vunpack.c.l.b16 %v2834
        %v3006 = vunpack.c.h.b16 %v2834
        %v3007 = vunpack.c.l.b16 %v2835
        %v3008 = vunpack.c.h.b16 %v2835
        %v3009 = vunpack.c.l.b16 %v2836
        %v3010 = vunpack.c.h.b16 %v2836
        %v3011 = vunpack.c.l.b16 %v2837
        %v3012 = vunpack.c.h.b16 %v2837
        %v3013 = vunpack.c.l.b16 %v2838
        %v3014 = vunpack.c.h.b16 %v2838
        %v3015 = vunpack.c.l.b16 %v2839
        %v3016 = vunpack.c.h.b16 %v2839
        %v3017 = vunpack.c.l.b16 %v2840
        %v3018 = vunpack.c.h.b16 %v2840
        %v3019 = vunpack.c.l.b16 %v2841
        %v3020 = vunpack.c.h.b16 %v2841
        %v3021 = vunpack.c.l.b16 %v2842
        %v3022 = vunpack.c.h.b16 %v2842
        %v3023 = vunpack.c.l.b16 %v2843
        %v3024 = vunpack.c.h.b16 %v2843
        %v3025 = vunpack.c.l.b16 %v2844
        %v3026 = vunpack.c.h.b16 %v2844
        %v3027 = vunpack.c.l.b16 %v2845
        %v3028 = vunpack.c.h.b16 %v2845
        %v3029 = vunpack.c.l.b16 %v2846
        %v3030 = vunpack.c.h.b16 %v2846
        %v3031 = vunpack.c.l.b16 %v2847
        %v3032 = vunpack.c.h.b16 %v2847
        %v3033 = vunpack.c.l.b16 %v2848
        %v3034 = vunpack.c.h.b16 %v2848
        %v3035 = vunpack.c.l.b16 %v2849
        %v3036 = vunpack.c.h.b16 %v2849
        %v3037 = vunpack.c.l.b16 %v2850
        %v3038 = vunpack.c.h.b16 %v2850
        %v3039 = vunpack.c.l.b16 %v2851
        %v3040 = vunpack.c.h.b16 %v2851
        %v3041 = vunpack.c.l.b16 %v2852
        %v3042 = vunpack.c.h.b16 %v2852
        %v3043 = vunpack.c.l.b16 %v2853
        %v3044 = vunpack.c.h.b16 %v2853
        %v3045 = vunpack.c.l.b16 %v2854
        %v3046 = vunpack.c.h.b16 %v2854
        %v3047 = vunpack.c.l.b16 %v2855
        %v3048 = vunpack.c.h.b16 %v2855
        %v3049 = vunpack.c.l.b16 %v2856
        %v3050 = vunpack.c.h.b16 %v2856
        %v3051 = vunpack.c.l.b16 %v2857
        %v3052 = vunpack.c.h.b16 %v2857
        %v3053 = vunpack.c.l.b16 %v2858
        %v3054 = vunpack.c.h.b16 %v2858
        %v3055 = vunpack.c.l.b16 %v2859
        %v3056 = vunpack.c.h.b16 %v2859
        %v3057 = vunpack.c.l.b16 %v2860
        %v3058 = vunpack.c.h.b16 %v2860
        %v3059 = vunpack.c.l.b16 %v2861
        %v3060 = vunpack.c.h.b16 %v2861
        %v3061 = vunpack.c.l.b16 %v2862
        %v3062 = vunpack.c.h.b16 %v2862
        %v3063 = vunpack.c.l.b16 %v2863
        %v3064 = vunpack.c.h.b16 %v2863
        %v3065 = vunpack.c.l.b16 %v2864
        %v3066 = vunpack.c.h.b16 %v2864
        %v3067 = vunpack.c.l.b16 %v2865
        %v3068 = vunpack.c.h.b16 %v2865
        %v3069 = vunpack.c.l.b16 %v2866
        %v3070 = vunpack.c.h.b16 %v2866
        %v3071 = vunpack.c.l.b16 %v2867
        %v3072 = vunpack.c.h.b16 %v2867
        %v3073 = vunpack.c.l.b16 %v2868
        %v3074 = vunpack.c.h.b16 %v2868
        %v3075 = vunpack.c.l.b16 %v2869
        %v3076 = vunpack.c.h.b16 %v2869
        %v3077 = vunpack.c.l.b16 %v2870
        %v3078 = vunpack.c.h.b16 %v2870
        %v3079 = vunpack.c.l.b16 %v2871
        %v3080 = vunpack.c.h.b16 %v2871
        %v3081 = vunpack.c.l.b16 %v2872
        %v3082 = vunpack.c.h.b16 %v2872
        %v3083 = vunpack.c.l.b16 %v2873
        %v3084 = vunpack.c.h.b16 %v2873
        %v3085 = vunpack.c.l.b16 %v2874
        %v3086 = vunpack.c.h.b16 %v2874
        %v3087 = vunpack.c.l.b16 %v2875
        %v3088 = vunpack.c.h.b16 %v2875
        %v3089 = vunpack.c.l.b16 %v2876
        %v3090 = vunpack.c.h.b16 %v2876
        %v3091 = vunpack.c.l.b16 %v2877
        %v3092 = vunpack.c.h.b16 %v2877
        %v3093 = vunpack.c.l.b16 %v2878
        %v3094 = vunpack.c.h.b16 %v2878
        %v3095 = vunpack.c.l.b16 %v2879
        %v3096 = vunpack.c.h.b16 %v2879
        %v3097 = vunpack.c.l.b16 %v2880
        %v3098 = vunpack.c.h.b16 %v2880
        %v3099 = vunpack.c.l.b16 %v2881
        %v3100 = vunpack.c.h.b16 %v2881
        %v3101 = vunpack.c.l.b16 %v2882
        %v3102 = vunpack.c.h.b16 %v2882
        %v3103 = vunpack.c.l.b16 %v2883
        %v3104 = vunpack.c.h.b16 %v2883
        %v3105 = vunpack.c.l.b16 %v2884
        %v3106 = vunpack.c.h.b16 %v2884
        %v3107 = vunpack.c.l.b16 %v2885
        %v3108 = vunpack.c.h.b16 %v2885
        %v3109 = vunpack.c.l.b16 %v2886
        %v3110 = vunpack.c.h.b16 %v2886
        %v3111 = vunpack.c.l.b16 %v2887
        %v3112 = vunpack.c.h.b16 %v2887
        %v3113 = vunpack.c.l.b16 %v2888
        %v3114 = vunpack.c.h.b16 %v2888
        %v3115 = vunpack.c.l.b16 %v2889
        %v3116 = vunpack.c.h.b16 %v2889
        %v3117 = vunpack.c.l.b16 %v2890
        %v3118 = vunpack.c.h.b16 %v2890
        %v3119 = vunpack.c.l.b16 %v2891
        %v3120 = vunpack.c.h.b16 %v2891
        %v3121 = vunpack.c.l.b16 %v2892
        %v3122 = vunpack.c.h.b16 %v2892
        %v3123 = vunpack.c.l.b16 %v2893
        %v3124 = vunpack.c.h.b16 %v2893
        %v3125 = vunpack.c.l.b16 %v2894
        %v3126 = vunpack.c.h.b16 %v2894
        %v3127 = vunpack.c.l.b16 %v2895
        %v3128 = vunpack.c.h.b16 %v2895
        %v3129 = vunpack.c.l.b16 %v2896
        %v3130 = vunpack.c.h.b16 %v2896
        %v3131 = vpack.c.b16 %v3011, %v3003
        %v3132 = vpack.c.b16 %v3012, %v3004
        %v3133 = vpack.c.b16 %v3013, %v3005
        %v3134 = vpack.c.b16 %v3014, %v3006
        %v3135 = vpack.c.b16 %v3015, %v3007
        %v3136 = vpack.c.b16 %v3016, %v3008
        %v3137 = vpack.c.b16 %v3017, %v3009
        %v3138 = vpack.c.b16 %v3018, %v3010
        %v3139 = vpack.c.b16 %v3027, %v3019
        %v3140 = vpack.c.b16 %v3028, %v3020
        %v3141 = vpack.c.b16 %v3029, %v3021
        %v3142 = vpack.c.b16 %v3030, %v3022
        %v3143 = vpack.c.b16 %v3031, %v3023
        %v3144 = vpack.c.b16 %v3032, %v3024
        %v3145 = vpack.c.b16 %v3033, %v3025
        %v3146 = vpack.c.b16 %v3034, %v3026
        %v3147 = vpack.c.b16 %v3043, %v3035
        %v3148 = vpack.c.b16 %v3044, %v3036
        %v3149 = vpack.c.b16 %v3045, %v3037
        %v3150 = vpack.c.b16 %v3046, %v3038
        %v3151 = vpack.c.b16 %v3047, %v3039
        %v3152 = vpack.c.b16 %v3048, %v3040
        %v3153 = vpack.c.b16 %v3049, %v3041
        %v3154 = vpack.c.b16 %v3050, %v3042
        %v3155 = vpack.c.b16 %v3059, %v3051
        %v3156 = vpack.c.b16 %v3060, %v3052
        %v3157 = vpack.c.b16 %v3061, %v3053
        %v3158 = vpack.c.b16 %v3062, %v3054
        %v3159 = vpack.c.b16 %v3063, %v3055
        %v3160 = vpack.c.b16 %v3064, %v3056
        %v3161 = vpack.c.b16 %v3065, %v3057
        %v3162 = vpack.c.b16 %v3066, %v3058
        %v3163 = vpack.c.b16 %v3075, %v3067
        %v3164 = vpack.c.b16 %v3076, %v3068
        %v3165 = vpack.c.b16 %v3077, %v3069
        %v3166 = vpack.c.b16 %v3078, %v3070
        %v3167 = vpack.c.b16 %v3079, %v3071
        %v3168 = vpack.c.b16 %v3080, %v3072
        %v3169 = vpack.c.b16 %v3081, %v3073
        %v3170 = vpack.c.b16 %v3082, %v3074
        %v3171 = vpack.c.b16 %v3091, %v3083
        %v3172 = vpack.c.b16 %v3092, %v3084
        %v3173 = vpack.c.b16 %v3093, %v3085
        %v3174 = vpack.c.b16 %v3094, %v3086
        %v3175 = vpack.c.b16 %v3095, %v3087
        %v3176 = vpack.c.b16 %v3096, %v3088
        %v3177 = vpack.c.b16 %v3097, %v3089
        %v3178 = vpack.c.b16 %v3098, %v3090
        %v3179 = vpack.c.b16 %v3107, %v3099
        %v3180 = vpack.c.b16 %v3108, %v3100
        %v3181 = vpack.c.b16 %v3109, %v3101
        %v3182 = vpack.c.b16 %v3110, %v3102
        %v3183 = vpack.c.b16 %v3111, %v3103
        %v3184 = vpack.c.b16 %v3112, %v3104
        %v3185 = vpack.c.b16 %v3113, %v3105
        %v3186 = vpack.c.b16 %v3114, %v3106
        %v3187 = vpack.c.b16 %v3123, %v3115
        %v3188 = vpack.c.b16 %v3124, %v3116
        %v3189 = vpack.c.b16 %v3125, %v3117
        %v3190 = vpack.c.b16 %v3126, %v3118
        %v3191 = vpack.c.b16 %v3127, %v3119
        %v3192 = vpack.c.b16 %v3128, %v3120
        %v3193 = vpack.c.b16 %v3129, %v3121
        %v3194 = vpack.c.b16 %v3130, %v3122
        %3259 = vmatprep.subr.bf16.mxu0 %v3132
        %3260 = vmatpush1.bf16.msra.mxu0 %v3131
        %3261 = vmatprep.subr.bf16.mxu0 %v3140
        %3262 = vmatpush1.bf16.msra.mxu0 %v3139
        %3263 = vmatprep.subr.bf16.mxu0 %v3148
        %3264 = vmatpush1.bf16.msra.mxu0 %v3147
        %3265 = vmatprep.subr.bf16.mxu0 %v3156
        %3266 = vmatpush1.bf16.msra.mxu0 %v3155
        %3267 = vmatprep.subr.bf16.mxu0 %v3164
        %3268 = vmatpush1.bf16.msra.mxu0 %v3163
        %3269 = vmatprep.subr.bf16.mxu0 %v3172
        %3270 = vmatpush1.bf16.msra.mxu0 %v3171
        %3271 = vmatprep.subr.bf16.mxu0 %v3180
        %3272 = vmatpush1.bf16.msra.mxu0 %v3179
        %3273 = vmatprep.subr.bf16.mxu0 %v3188
        %3274 = vmatpush1.bf16.msra.mxu0 %v3187
        %3275 = vmatprep.subr.bf16.mxu0 0
        %3276 = vmatpush1.bf16.msra.mxu0 0
        %3277 = vmatprep.subr.bf16.mxu0 0
        %3278 = vmatpush1.bf16.msra.mxu0 0
        %3279 = vmatprep.subr.bf16.mxu0 0
        %3280 = vmatpush1.bf16.msra.mxu0 0
        %3281 = vmatprep.subr.bf16.mxu0 0
        %3282 = vmatpush1.bf16.msra.mxu0 0
        %3283 = vmatprep.subr.bf16.mxu0 0
        %3284 = vmatpush1.bf16.msra.mxu0 0
        %3285 = vmatprep.subr.bf16.mxu0 0
        %3286 = vmatpush1.bf16.msra.mxu0 0
        %3287 = vmatprep.subr.bf16.mxu0 0
        %3288 = vmatpush1.bf16.msra.mxu0 0
        %3289 = vmatprep.subr.bf16.mxu0 0
        %3290 = vmatpush1.bf16.msra.mxu0 0
        %3291 = vmatprep.mubr.bf16.mxu0 0
        %3292 = vmatmul.mubr.bf16.gmra.mrb[0].mxu0 %v2801
        %v3293 = vpop.f32.mrb[0].mxu0
        %v3294 = vadd.f32 %v2902, %v3293
        %v3295 = vpop.f32.mrb[0].mxu0
        %v3296 = vadd.f32 %v2906, %v3295
        %v3297 = vpop.f32.mrb[0].mxu0
        %v3298 = vadd.f32 %v2902, %v3297
        %v3299 = vpop.f32.mrb[0].mxu0
        %v3300 = vadd.f32 %v2906, %v3299
        %3301 = vmatprep.mubr.bf16.mxu0 0
        %3302 = vmatmul.mubr.bf16.gmra.mrb[0].mxu0 %v2802
        %v3303 = vpop.f32.mrb[0].mxu0
        %v3304 = vadd.f32 %v2902, %v3303
        %v3305 = vpop.f32.mrb[0].mxu0
        %v3306 = vadd.f32 %v2906, %v3305
        %v3307 = vpop.f32.mrb[0].mxu0
        %v3308 = vadd.f32 %v2902, %v3307
        %v3309 = vpop.f32.mrb[0].mxu0
        %v3310 = vadd.f32 %v2906, %v3309
        %3311 = vmatprep.mubr.bf16.mxu0 0
        %3312 = vmatmul.mubr.bf16.gmra.mrb[0].mxu0 %v2803
        %v3313 = vpop.f32.mrb[0].mxu0
        %v3314 = vadd.f32 %v2902, %v3313
        %v3315 = vpop.f32.mrb[0].mxu0
        %v3316 = vadd.f32 %v2906, %v3315
        %v3317 = vpop.f32.mrb[0].mxu0
        %v3318 = vadd.f32 %v2902, %v3317
        %v3319 = vpop.f32.mrb[0].mxu0
        %v3320 = vadd.f32 %v2906, %v3319
        %3321 = vmatprep.mubr.bf16.mxu0 0
        %3322 = vmatmul.mubr.bf16.gmra.mrb[0].mxu0 %v2804
        %v3323 = vpop.f32.mrb[0].mxu0
        %v3324 = vadd.f32 %v2902, %v3323
        %v3325 = vpop.f32.mrb[0].mxu0
        %v3326 = vadd.f32 %v2906, %v3325
        %v3327 = vpop.f32.mrb[0].mxu0
        %v3328 = vadd.f32 %v2902, %v3327
        %v3329 = vpop.f32.mrb[0].mxu0
        %v3330 = vadd.f32 %v2906, %v3329
        %3331 = vmatprep.mubr.bf16.mxu0 0
        %3332 = vmatmul.mubr.bf16.gmra.mrb[0].mxu0 %v2805
        %v3333 = vpop.f32.mrb[0].mxu0
        %v3334 = vadd.f32 %v2902, %v3333
        %v3335 = vpop.f32.mrb[0].mxu0
        %v3336 = vadd.f32 %v2906, %v3335
        %v3337 = vpop.f32.mrb[0].mxu0
        %v3338 = vadd.f32 %v2902, %v3337
        %v3339 = vpop.f32.mrb[0].mxu0
        %v3340 = vadd.f32 %v2906, %v3339
        %3341 = vmatprep.mubr.bf16.mxu0 0
        %3342 = vmatmul.mubr.bf16.gmra.mrb[0].mxu0 %v2806
        %v3343 = vpop.f32.mrb[0].mxu0
        %v3344 = vadd.f32 %v2902, %v3343
        %v3345 = vpop.f32.mrb[0].mxu0
        %v3346 = vadd.f32 %v2906, %v3345
        %v3347 = vpop.f32.mrb[0].mxu0
        %v3348 = vadd.f32 %v2902, %v3347
        %v3349 = vpop.f32.mrb[0].mxu0
        %v3350 = vadd.f32 %v2906, %v3349
        %3351 = vmatprep.mubr.bf16.mxu0 0
        %3352 = vmatmul.mubr.bf16.gmra.mrb[0].mxu0 %v2807
        %v3353 = vpop.f32.mrb[0].mxu0
        %v3354 = vadd.f32 %v2902, %v3353
        %v3355 = vpop.f32.mrb[0].mxu0
        %v3356 = vadd.f32 %v2906, %v3355
        %v3357 = vpop.f32.mrb[0].mxu0
        %v3358 = vadd.f32 %v2902, %v3357
        %v3359 = vpop.f32.mrb[0].mxu0
        %v3360 = vadd.f32 %v2906, %v3359
        %3361 = vmatprep.mubr.bf16.mxu0 0
        %3362 = vmatmul.mubr.bf16.gmra.mrb[0].mxu0 %v2808
        %v3363 = vpop.f32.mrb[0].mxu0
        %v3364 = vadd.f32 %v2902, %v3363
        %v3365 = vpop.f32.mrb[0].mxu0
        %v3366 = vadd.f32 %v2906, %v3365
        %v3367 = vpop.f32.mrb[0].mxu0
        %v3368 = vadd.f32 %v2902, %v3367
        %v3369 = vpop.f32.mrb[0].mxu0
        %v3370 = vadd.f32 %v2906, %v3369
        %3371 = vmatprep.mubr.bf16.mxu0 0
        %3372 = vmatmul.mubr.bf16.gmra.mrb[0].mxu0 %v2809
        %v3373 = vpop.f32.mrb[0].mxu0
        %v3374 = vadd.f32 %v2902, %v3373
        %v3375 = vpop.f32.mrb[0].mxu0
        %v3376 = vadd.f32 %v2906, %v3375
        %v3377 = vpop.f32.mrb[0].mxu0
        %v3378 = vadd.f32 %v2902, %v3377
        %v3379 = vpop.f32.mrb[0].mxu0
        %v3380 = vadd.f32 %v2906, %v3379
        %3381 = vmatprep.mubr.bf16.mxu0 0
        %3382 = vmatmul.mubr.bf16.gmra.mrb[0].mxu0 %v2810
        %v3383 = vpop.f32.mrb[0].mxu0
        %v3384 = vadd.f32 %v2902, %v3383
        %v3385 = vpop.f32.mrb[0].mxu0
        %v3386 = vadd.f32 %v2906, %v3385
        %v3387 = vpop.f32.mrb[0].mxu0
        %v3388 = vadd.f32 %v2902, %v3387
        %v3389 = vpop.f32.mrb[0].mxu0
        %v3390 = vadd.f32 %v2906, %v3389
        %3391 = vmatprep.mubr.bf16.mxu0 0
        %3392 = vmatmul.mubr.bf16.gmra.mrb[0].mxu0 %v2811
        %v3393 = vpop.f32.mrb[0].mxu0
        %v3394 = vadd.f32 %v2902, %v3393
        %v3395 = vpop.f32.mrb[0].mxu0
        %v3396 = vadd.f32 %v2906, %v3395
        %v3397 = vpop.f32.mrb[0].mxu0
        %v3398 = vadd.f32 %v2902, %v3397
        %v3399 = vpop.f32.mrb[0].mxu0
        %v3400 = vadd.f32 %v2906, %v3399
        %3401 = vmatprep.mubr.bf16.mxu0 0
        %3402 = vmatmul.mubr.bf16.gmra.mrb[0].mxu0 %v2812
        %v3403 = vpop.f32.mrb[0].mxu0
        %v3404 = vadd.f32 %v2902, %v3403
        %v3405 = vpop.f32.mrb[0].mxu0
        %v3406 = vadd.f32 %v2906, %v3405
        %v3407 = vpop.f32.mrb[0].mxu0
        %v3408 = vadd.f32 %v2902, %v3407
        %v3409 = vpop.f32.mrb[0].mxu0
        %v3410 = vadd.f32 %v2906, %v3409
        %3411 = vmatprep.mubr.bf16.mxu0 0
        %3412 = vmatmul.mubr.bf16.gmra.mrb[0].mxu0 %v2813
        %v3413 = vpop.f32.mrb[0].mxu0
        %v3414 = vadd.f32 %v2902, %v3413
        %v3415 = vpop.f32.mrb[0].mxu0
        %v3416 = vadd.f32 %v2906, %v3415
        %v3417 = vpop.f32.mrb[0].mxu0
        %v3418 = vadd.f32 %v2902, %v3417
        %v3419 = vpop.f32.mrb[0].mxu0
        %v3420 = vadd.f32 %v2906, %v3419
        %3421 = vmatprep.mubr.bf16.mxu0 0
        %3422 = vmatmul.mubr.bf16.gmra.mrb[0].mxu0 %v2814
        %v3423 = vpop.f32.mrb[0].mxu0
        %v3424 = vadd.f32 %v2902, %v3423
        %v3425 = vpop.f32.mrb[0].mxu0
        %v3426 = vadd.f32 %v2906, %v3425
        %v3427 = vpop.f32.mrb[0].mxu0
        %v3428 = vadd.f32 %v2902, %v3427
        %v3429 = vpop.f32.mrb[0].mxu0
        %v3430 = vadd.f32 %v2906, %v3429
        %3431 = vmatprep.mubr.bf16.mxu0 0
        %3432 = vmatmul.mubr.bf16.gmra.mrb[0].mxu0 %v2815
        %v3433 = vpop.f32.mrb[0].mxu0
        %v3434 = vadd.f32 %v2902, %v3433
        %v3435 = vpop.f32.mrb[0].mxu0
        %v3436 = vadd.f32 %v2906, %v3435
        %v3437 = vpop.f32.mrb[0].mxu0
        %v3438 = vadd.f32 %v2902, %v3437
        %v3439 = vpop.f32.mrb[0].mxu0
        %v3440 = vadd.f32 %v2906, %v3439
        %3441 = vmatprep.mubr.bf16.mxu0 0
        %3442 = vmatmul.mubr.bf16.gmra.mrb[0].mxu0 %v2816
        %v3443 = vpop.f32.mrb[0].mxu0
        %v3444 = vadd.f32 %v2902, %v3443
        %v3445 = vpop.f32.mrb[0].mxu0
        %v3446 = vadd.f32 %v2906, %v3445
        %v3447 = vpop.f32.mrb[0].mxu0
        %v3448 = vadd.f32 %v2902, %v3447
        %v3449 = vpop.f32.mrb[0].mxu0
        %v3450 = vadd.f32 %v2906, %v3449
        %3451 = vmatprep.mubr.bf16.mxu0 0
        %3452 = vmatmul.mubr.bf16.gmra.mrb[0].mxu0 %v2817
        %v3453 = vpop.f32.mrb[0].mxu0
        %v3454 = vadd.f32 %v2902, %v3453
        %v3455 = vpop.f32.mrb[0].mxu0
        %v3456 = vadd.f32 %v2906, %v3455
        %v3457 = vpop.f32.mrb[0].mxu0
        %v3458 = vadd.f32 %v2902, %v3457
        %v3459 = vpop.f32.mrb[0].mxu0
        %v3460 = vadd.f32 %v2906, %v3459
        %3461 = vmatprep.mubr.bf16.mxu0 0
        %3462 = vmatmul.mubr.bf16.gmra.mrb[0].mxu0 %v2818
        %v3463 = vpop.f32.mrb[0].mxu0
        %v3464 = vadd.f32 %v2902, %v3463
        %v3465 = vpop.f32.mrb[0].mxu0
        %v3466 = vadd.f32 %v2906, %v3465
        %v3467 = vpop.f32.mrb[0].mxu0
        %v3468 = vadd.f32 %v2902, %v3467
        %v3469 = vpop.f32.mrb[0].mxu0
        %v3470 = vadd.f32 %v2906, %v3469
        %3471 = vmatprep.mubr.bf16.mxu0 0
        %3472 = vmatmul.mubr.bf16.gmra.mrb[0].mxu0 %v2819
        %v3473 = vpop.f32.mrb[0].mxu0
        %v3474 = vadd.f32 %v2902, %v3473
        %v3475 = vpop.f32.mrb[0].mxu0
        %v3476 = vadd.f32 %v2906, %v3475
        %v3477 = vpop.f32.mrb[0].mxu0
        %v3478 = vadd.f32 %v2902, %v3477
        %v3479 = vpop.f32.mrb[0].mxu0
        %v3480 = vadd.f32 %v2906, %v3479
        %3481 = vmatprep.mubr.bf16.mxu0 0
        %3482 = vmatmul.mubr.bf16.gmra.mrb[0].mxu0 %v2820
        %v3483 = vpop.f32.mrb[0].mxu0
        %v3484 = vadd.f32 %v2902, %v3483
        %v3485 = vpop.f32.mrb[0].mxu0
        %v3486 = vadd.f32 %v2906, %v3485
        %v3487 = vpop.f32.mrb[0].mxu0
        %v3488 = vadd.f32 %v2902, %v3487
        %v3489 = vpop.f32.mrb[0].mxu0
        %v3490 = vadd.f32 %v2906, %v3489
        %3491 = vmatprep.mubr.bf16.mxu0 0
        %3492 = vmatmul.mubr.bf16.gmra.mrb[0].mxu0 %v2821
        %v3493 = vpop.f32.mrb[0].mxu0
        %v3494 = vadd.f32 %v2902, %v3493
        %v3495 = vpop.f32.mrb[0].mxu0
        %v3496 = vadd.f32 %v2906, %v3495
        %v3497 = vpop.f32.mrb[0].mxu0
        %v3498 = vadd.f32 %v2902, %v3497
        %v3499 = vpop.f32.mrb[0].mxu0
        %v3500 = vadd.f32 %v2906, %v3499
        %3501 = vmatprep.mubr.bf16.mxu0 0
        %3502 = vmatmul.mubr.bf16.gmra.mrb[0].mxu0 %v2822
        %v3503 = vpop.f32.mrb[0].mxu0
        %v3504 = vadd.f32 %v2902, %v3503
        %v3505 = vpop.f32.mrb[0].mxu0
        %v3506 = vadd.f32 %v2906, %v3505
        %v3507 = vpop.f32.mrb[0].mxu0
        %v3508 = vadd.f32 %v2902, %v3507
        %v3509 = vpop.f32.mrb[0].mxu0
        %v3510 = vadd.f32 %v2906, %v3509
        %3511 = vmatprep.mubr.bf16.mxu0 0
        %3512 = vmatmul.mubr.bf16.gmra.mrb[0].mxu0 %v2823
        %v3513 = vpop.f32.mrb[0].mxu0
        %v3514 = vadd.f32 %v2902, %v3513
        %v3515 = vpop.f32.mrb[0].mxu0
        %v3516 = vadd.f32 %v2906, %v3515
        %v3517 = vpop.f32.mrb[0].mxu0
        %v3518 = vadd.f32 %v2902, %v3517
        %v3519 = vpop.f32.mrb[0].mxu0
        %v3520 = vadd.f32 %v2906, %v3519
        %3521 = vmatprep.mubr.bf16.mxu0 0
        %3522 = vmatmul.mubr.bf16.gmra.mrb[0].mxu0 %v2824
        %v3523 = vpop.f32.mrb[0].mxu0
        %v3524 = vadd.f32 %v2902, %v3523
        %v3525 = vpop.f32.mrb[0].mxu0
        %v3526 = vadd.f32 %v2906, %v3525
        %v3527 = vpop.f32.mrb[0].mxu0
        %v3528 = vadd.f32 %v2902, %v3527
        %v3529 = vpop.f32.mrb[0].mxu0
        %v3530 = vadd.f32 %v2906, %v3529
        %3531 = vmatprep.mubr.bf16.mxu0 0
        %3532 = vmatmul.mubr.bf16.gmra.mrb[0].mxu0 %v2825
        %v3533 = vpop.f32.mrb[0].mxu0
        %v3534 = vadd.f32 %v2902, %v3533
        %v3535 = vpop.f32.mrb[0].mxu0
        %v3536 = vadd.f32 %v2906, %v3535
        %v3537 = vpop.f32.mrb[0].mxu0
        %v3538 = vadd.f32 %v2902, %v3537
        %v3539 = vpop.f32.mrb[0].mxu0
        %v3540 = vadd.f32 %v2906, %v3539
        %3541 = vmatprep.mubr.bf16.mxu0 0
        %3542 = vmatmul.mubr.bf16.gmra.mrb[0].mxu0 %v2826
        %v3543 = vpop.f32.mrb[0].mxu0
        %v3544 = vadd.f32 %v2902, %v3543
        %v3545 = vpop.f32.mrb[0].mxu0
        %v3546 = vadd.f32 %v2906, %v3545
        %v3547 = vpop.f32.mrb[0].mxu0
        %v3548 = vadd.f32 %v2902, %v3547
        %v3549 = vpop.f32.mrb[0].mxu0
        %v3550 = vadd.f32 %v2906, %v3549
        %3551 = vmatprep.mubr.bf16.mxu0 0
        %3552 = vmatmul.mubr.bf16.gmra.mrb[0].mxu0 %v2827
        %v3553 = vpop.f32.mrb[0].mxu0
        %v3554 = vadd.f32 %v2902, %v3553
        %v3555 = vpop.f32.mrb[0].mxu0
        %v3556 = vadd.f32 %v2906, %v3555
        %v3557 = vpop.f32.mrb[0].mxu0
        %v3558 = vadd.f32 %v2902, %v3557
        %v3559 = vpop.f32.mrb[0].mxu0
        %v3560 = vadd.f32 %v2906, %v3559
        %3561 = vmatprep.mubr.bf16.mxu0 0
        %3562 = vmatmul.mubr.bf16.gmra.mrb[0].mxu0 %v2828
        %v3563 = vpop.f32.mrb[0].mxu0
        %v3564 = vadd.f32 %v2902, %v3563
        %v3565 = vpop.f32.mrb[0].mxu0
        %v3566 = vadd.f32 %v2906, %v3565
        %v3567 = vpop.f32.mrb[0].mxu0
        %v3568 = vadd.f32 %v2902, %v3567
        %v3569 = vpop.f32.mrb[0].mxu0
        %v3570 = vadd.f32 %v2906, %v3569
        %3571 = vmatprep.mubr.bf16.mxu0 0
        %3572 = vmatmul.mubr.bf16.gmra.mrb[0].mxu0 %v2829
        %v3573 = vpop.f32.mrb[0].mxu0
        %v3574 = vadd.f32 %v2902, %v3573
        %v3575 = vpop.f32.mrb[0].mxu0
        %v3576 = vadd.f32 %v2906, %v3575
        %v3577 = vpop.f32.mrb[0].mxu0
        %v3578 = vadd.f32 %v2902, %v3577
        %v3579 = vpop.f32.mrb[0].mxu0
        %v3580 = vadd.f32 %v2906, %v3579
        %3581 = vmatprep.mubr.bf16.mxu0 0
        %3582 = vmatmul.mubr.bf16.gmra.mrb[0].mxu0 %v2830
        %v3583 = vpop.f32.mrb[0].mxu0
        %v3584 = vadd.f32 %v2902, %v3583
        %v3585 = vpop.f32.mrb[0].mxu0
        %v3586 = vadd.f32 %v2906, %v3585
        %v3587 = vpop.f32.mrb[0].mxu0
        %v3588 = vadd.f32 %v2902, %v3587
        %v3589 = vpop.f32.mrb[0].mxu0
        %v3590 = vadd.f32 %v2906, %v3589
        %3591 = vmatprep.mubr.bf16.mxu0 0
        %3592 = vmatmul.mubr.bf16.gmra.mrb[0].mxu0 %v2831
        %v3593 = vpop.f32.mrb[0].mxu0
        %v3594 = vadd.f32 %v2902, %v3593
        %v3595 = vpop.f32.mrb[0].mxu0
        %v3596 = vadd.f32 %v2906, %v3595
        %v3597 = vpop.f32.mrb[0].mxu0
        %v3598 = vadd.f32 %v2902, %v3597
        %v3599 = vpop.f32.mrb[0].mxu0
        %v3600 = vadd.f32 %v2906, %v3599
        %3601 = vmatprep.mubr.bf16.mxu0 0
        %3602 = vmatmul.mubr.bf16.gmra.mrb[0].mxu0 %v2832
        %v3603 = vpop.f32.mrb[0].mxu0
        %v3604 = vadd.f32 %v2902, %v3603
        %v3605 = vpop.f32.mrb[0].mxu0
        %v3606 = vadd.f32 %v2906, %v3605
        %v3607 = vpop.f32.mrb[0].mxu0
        %v3608 = vadd.f32 %v2902, %v3607
        %v3609 = vpop.f32.mrb[0].mxu0
        %v3610 = vadd.f32 %v2906, %v3609
        %3611 = vdwg.mxu0
        %3612 = vmatprep.subr.bf16.mxu0 %v3134
        %3613 = vmatpush1.bf16.msra.mxu0 %v3133
        %3614 = vmatprep.subr.bf16.mxu0 %v3142
        %3615 = vmatpush1.bf16.msra.mxu0 %v3141
        %3616 = vmatprep.subr.bf16.mxu0 %v3150
        %3617 = vmatpush1.bf16.msra.mxu0 %v3149
        %3618 = vmatprep.subr.bf16.mxu0 %v3158
        %3619 = vmatpush1.bf16.msra.mxu0 %v3157
        %3620 = vmatprep.subr.bf16.mxu0 %v3166
        %3621 = vmatpush1.bf16.msra.mxu0 %v3165
        %3622 = vmatprep.subr.bf16.mxu0 %v3174
        %3623 = vmatpush1.bf16.msra.mxu0 %v3173
        %3624 = vmatprep.subr.bf16.mxu0 %v3182
        %3625 = vmatpush1.bf16.msra.mxu0 %v3181
        %3626 = vmatprep.subr.bf16.mxu0 %v3190
        %3627 = vmatpush1.bf16.msra.mxu0 %v3189
        %3628 = vmatprep.subr.bf16.mxu0 0
        %3629 = vmatpush1.bf16.msra.mxu0 0
        %3630 = vmatprep.subr.bf16.mxu0 0
        %3631 = vmatpush1.bf16.msra.mxu0 0
        %3632 = vmatprep.subr.bf16.mxu0 0
        %3633 = vmatpush1.bf16.msra.mxu0 0
        %3634 = vmatprep.subr.bf16.mxu0 0
        %3635 = vmatpush1.bf16.msra.mxu0 0
        %3636 = vmatprep.subr.bf16.mxu0 0
        %3637 = vmatpush1.bf16.msra.mxu0 0
        %3638 = vmatprep.subr.bf16.mxu0 0
        %3639 = vmatpush1.bf16.msra.mxu0 0
        %3640 = vmatprep.subr.bf16.mxu0 0
        %3641 = vmatpush1.bf16.msra.mxu0 0
        %3642 = vmatprep.subr.bf16.mxu0 0
        %3643 = vmatpush1.bf16.msra.mxu0 0
        %3644 = vmatprep.mubr.bf16.mxu0 0
        %3645 = vmatmul.mubr.bf16.gmra.mrb[0].mxu0 %v2801
        %v3646 = vpop.f32.mrb[0].mxu0
        %v3647 = vadd.f32 %v2910, %v3646
        %v3648 = vpop.f32.mrb[0].mxu0
        %v3649 = vadd.f32 %v2914, %v3648
        %v3650 = vpop.f32.mrb[0].mxu0
        %v3651 = vadd.f32 %v2910, %v3650
        %v3652 = vpop.f32.mrb[0].mxu0
        %v3653 = vadd.f32 %v2914, %v3652
        %3654 = vmatprep.mubr.bf16.mxu0 0
        %3655 = vmatmul.mubr.bf16.gmra.mrb[0].mxu0 %v2802
        %v3656 = vpop.f32.mrb[0].mxu0
        %v3657 = vadd.f32 %v2910, %v3656
        %v3658 = vpop.f32.mrb[0].mxu0
        %v3659 = vadd.f32 %v2914, %v3658
        %v3660 = vpop.f32.mrb[0].mxu0
        %v3661 = vadd.f32 %v2910, %v3660
        %v3662 = vpop.f32.mrb[0].mxu0
        %v3663 = vadd.f32 %v2914, %v3662
        %3664 = vmatprep.mubr.bf16.mxu0 0
        %3665 = vmatmul.mubr.bf16.gmra.mrb[0].mxu0 %v2803
        %v3666 = vpop.f32.mrb[0].mxu0
        %v3667 = vadd.f32 %v2910, %v3666
        %v3668 = vpop.f32.mrb[0].mxu0
        %v3669 = vadd.f32 %v2914, %v3668
        %v3670 = vpop.f32.mrb[0].mxu0
        %v3671 = vadd.f32 %v2910, %v3670
        %v3672 = vpop.f32.mrb[0].mxu0
        %v3673 = vadd.f32 %v2914, %v3672
        %3674 = vmatprep.mubr.bf16.mxu0 0
        %3675 = vmatmul.mubr.bf16.gmra.mrb[0].mxu0 %v2804
        %v3676 = vpop.f32.mrb[0].mxu0
        %v3677 = vadd.f32 %v2910, %v3676
        %v3678 = vpop.f32.mrb[0].mxu0
        %v3679 = vadd.f32 %v2914, %v3678
        %v3680 = vpop.f32.mrb[0].mxu0
        %v3681 = vadd.f32 %v2910, %v3680
        %v3682 = vpop.f32.mrb[0].mxu0
        %v3683 = vadd.f32 %v2914, %v3682
        %3684 = vmatprep.mubr.bf16.mxu0 0
        %3685 = vmatmul.mubr.bf16.gmra.mrb[0].mxu0 %v2805
        %v3686 = vpop.f32.mrb[0].mxu0
        %v3687 = vadd.f32 %v2910, %v3686
        %v3688 = vpop.f32.mrb[0].mxu0
        %v3689 = vadd.f32 %v2914, %v3688
        %v3690 = vpop.f32.mrb[0].mxu0
        %v3691 = vadd.f32 %v2910, %v3690
        %v3692 = vpop.f32.mrb[0].mxu0
        %v3693 = vadd.f32 %v2914, %v3692
        %3694 = vmatprep.mubr.bf16.mxu0 0
        %3695 = vmatmul.mubr.bf16.gmra.mrb[0].mxu0 %v2806
        %v3696 = vpop.f32.mrb[0].mxu0
        %v3697 = vadd.f32 %v2910, %v3696
        %v3698 = vpop.f32.mrb[0].mxu0
        %v3699 = vadd.f32 %v2914, %v3698
        %v3700 = vpop.f32.mrb[0].mxu0
        %v3701 = vadd.f32 %v2910, %v3700
        %v3702 = vpop.f32.mrb[0].mxu0
        %v3703 = vadd.f32 %v2914, %v3702
        %3704 = vmatprep.mubr.bf16.mxu0 0
        %3705 = vmatmul.mubr.bf16.gmra.mrb[0].mxu0 %v2807
        %v3706 = vpop.f32.mrb[0].mxu0
        %v3707 = vadd.f32 %v2910, %v3706
        %v3708 = vpop.f32.mrb[0].mxu0
        %v3709 = vadd.f32 %v2914, %v3708
        %v3710 = vpop.f32.mrb[0].mxu0
        %v3711 = vadd.f32 %v2910, %v3710
        %v3712 = vpop.f32.mrb[0].mxu0
        %v3713 = vadd.f32 %v2914, %v3712
        %3714 = vmatprep.mubr.bf16.mxu0 0
        %3715 = vmatmul.mubr.bf16.gmra.mrb[0].mxu0 %v2808
        %v3716 = vpop.f32.mrb[0].mxu0
        %v3717 = vadd.f32 %v2910, %v3716
        %v3718 = vpop.f32.mrb[0].mxu0
        %v3719 = vadd.f32 %v2914, %v3718
        %v3720 = vpop.f32.mrb[0].mxu0
        %v3721 = vadd.f32 %v2910, %v3720
        %v3722 = vpop.f32.mrb[0].mxu0
        %v3723 = vadd.f32 %v2914, %v3722
        %3724 = vmatprep.mubr.bf16.mxu0 0
        %3725 = vmatmul.mubr.bf16.gmra.mrb[0].mxu0 %v2809
        %v3726 = vpop.f32.mrb[0].mxu0
        %v3727 = vadd.f32 %v2910, %v3726
        %v3728 = vpop.f32.mrb[0].mxu0
        %v3729 = vadd.f32 %v2914, %v3728
        %v3730 = vpop.f32.mrb[0].mxu0
        %v3731 = vadd.f32 %v2910, %v3730
        %v3732 = vpop.f32.mrb[0].mxu0
        %v3733 = vadd.f32 %v2914, %v3732
        %3734 = vmatprep.mubr.bf16.mxu0 0
        %3735 = vmatmul.mubr.bf16.gmra.mrb[0].mxu0 %v2810
        %v3736 = vpop.f32.mrb[0].mxu0
        %v3737 = vadd.f32 %v2910, %v3736
        %v3738 = vpop.f32.mrb[0].mxu0
        %v3739 = vadd.f32 %v2914, %v3738
        %v3740 = vpop.f32.mrb[0].mxu0
        %v3741 = vadd.f32 %v2910, %v3740
        %v3742 = vpop.f32.mrb[0].mxu0
        %v3743 = vadd.f32 %v2914, %v3742
        %3744 = vmatprep.mubr.bf16.mxu0 0
        %3745 = vmatmul.mubr.bf16.gmra.mrb[0].mxu0 %v2811
        %v3746 = vpop.f32.mrb[0].mxu0
        %v3747 = vadd.f32 %v2910, %v3746
        %v3748 = vpop.f32.mrb[0].mxu0
        %v3749 = vadd.f32 %v2914, %v3748
        %v3750 = vpop.f32.mrb[0].mxu0
        %v3751 = vadd.f32 %v2910, %v3750
        %v3752 = vpop.f32.mrb[0].mxu0
        %v3753 = vadd.f32 %v2914, %v3752
        %3754 = vmatprep.mubr.bf16.mxu0 0
        %3755 = vmatmul.mubr.bf16.gmra.mrb[0].mxu0 %v2812
        %v3756 = vpop.f32.mrb[0].mxu0
        %v3757 = vadd.f32 %v2910, %v3756
        %v3758 = vpop.f32.mrb[0].mxu0
        %v3759 = vadd.f32 %v2914, %v3758
        %v3760 = vpop.f32.mrb[0].mxu0
        %v3761 = vadd.f32 %v2910, %v3760
        %v3762 = vpop.f32.mrb[0].mxu0
        %v3763 = vadd.f32 %v2914, %v3762
        %3764 = vmatprep.mubr.bf16.mxu0 0
        %3765 = vmatmul.mubr.bf16.gmra.mrb[0].mxu0 %v2813
        %v3766 = vpop.f32.mrb[0].mxu0
        %v3767 = vadd.f32 %v2910, %v3766
        %v3768 = vpop.f32.mrb[0].mxu0
        %v3769 = vadd.f32 %v2914, %v3768
        %v3770 = vpop.f32.mrb[0].mxu0
        %v3771 = vadd.f32 %v2910, %v3770
        %v3772 = vpop.f32.mrb[0].mxu0
        %v3773 = vadd.f32 %v2914, %v3772
        %3774 = vmatprep.mubr.bf16.mxu0 0
        %3775 = vmatmul.mubr.bf16.gmra.mrb[0].mxu0 %v2814
        %v3776 = vpop.f32.mrb[0].mxu0
        %v3777 = vadd.f32 %v2910, %v3776
        %v3778 = vpop.f32.mrb[0].mxu0
        %v3779 = vadd.f32 %v2914, %v3778
        %v3780 = vpop.f32.mrb[0].mxu0
        %v3781 = vadd.f32 %v2910, %v3780
        %v3782 = vpop.f32.mrb[0].mxu0
        %v3783 = vadd.f32 %v2914, %v3782
        %3784 = vmatprep.mubr.bf16.mxu0 0
        %3785 = vmatmul.mubr.bf16.gmra.mrb[0].mxu0 %v2815
        %v3786 = vpop.f32.mrb[0].mxu0
        %v3787 = vadd.f32 %v2910, %v3786
        %v3788 = vpop.f32.mrb[0].mxu0
        %v3789 = vadd.f32 %v2914, %v3788
        %v3790 = vpop.f32.mrb[0].mxu0
        %v3791 = vadd.f32 %v2910, %v3790
        %v3792 = vpop.f32.mrb[0].mxu0
        %v3793 = vadd.f32 %v2914, %v3792
        %3794 = vmatprep.mubr.bf16.mxu0 0
        %3795 = vmatmul.mubr.bf16.gmra.mrb[0].mxu0 %v2816
        %v3796 = vpop.f32.mrb[0].mxu0
        %v3797 = vadd.f32 %v2910, %v3796
        %v3798 = vpop.f32.mrb[0].mxu0
        %v3799 = vadd.f32 %v2914, %v3798
        %v3800 = vpop.f32.mrb[0].mxu0
        %v3801 = vadd.f32 %v2910, %v3800
        %v3802 = vpop.f32.mrb[0].mxu0
        %v3803 = vadd.f32 %v2914, %v3802
        %3804 = vmatprep.mubr.bf16.mxu0 0
        %3805 = vmatmul.mubr.bf16.gmra.mrb[0].mxu0 %v2817
        %v3806 = vpop.f32.mrb[0].mxu0
        %v3807 = vadd.f32 %v2910, %v3806
        %v3808 = vpop.f32.mrb[0].mxu0
        %v3809 = vadd.f32 %v2914, %v3808
        %v3810 = vpop.f32.mrb[0].mxu0
        %v3811 = vadd.f32 %v2910, %v3810
        %v3812 = vpop.f32.mrb[0].mxu0
        %v3813 = vadd.f32 %v2914, %v3812
        %3814 = vmatprep.mubr.bf16.mxu0 0
        %3815 = vmatmul.mubr.bf16.gmra.mrb[0].mxu0 %v2818
        %v3816 = vpop.f32.mrb[0].mxu0
        %v3817 = vadd.f32 %v2910, %v3816
        %v3818 = vpop.f32.mrb[0].mxu0
        %v3819 = vadd.f32 %v2914, %v3818
        %v3820 = vpop.f32.mrb[0].mxu0
        %v3821 = vadd.f32 %v2910, %v3820
        %v3822 = vpop.f32.mrb[0].mxu0
        %v3823 = vadd.f32 %v2914, %v3822
        %3824 = vmatprep.mubr.bf16.mxu0 0
        %3825 = vmatmul.mubr.bf16.gmra.mrb[0].mxu0 %v2819
        %v3826 = vpop.f32.mrb[0].mxu0
        %v3827 = vadd.f32 %v2910, %v3826
        %v3828 = vpop.f32.mrb[0].mxu0
        %v3829 = vadd.f32 %v2914, %v3828
        %v3830 = vpop.f32.mrb[0].mxu0
        %v3831 = vadd.f32 %v2910, %v3830
        %v3832 = vpop.f32.mrb[0].mxu0
        %v3833 = vadd.f32 %v2914, %v3832
        %3834 = vmatprep.mubr.bf16.mxu0 0
        %3835 = vmatmul.mubr.bf16.gmra.mrb[0].mxu0 %v2820
        %v3836 = vpop.f32.mrb[0].mxu0
        %v3837 = vadd.f32 %v2910, %v3836
        %v3838 = vpop.f32.mrb[0].mxu0
        %v3839 = vadd.f32 %v2914, %v3838
        %v3840 = vpop.f32.mrb[0].mxu0
        %v3841 = vadd.f32 %v2910, %v3840
        %v3842 = vpop.f32.mrb[0].mxu0
        %v3843 = vadd.f32 %v2914, %v3842
        %3844 = vmatprep.mubr.bf16.mxu0 0
        %3845 = vmatmul.mubr.bf16.gmra.mrb[0].mxu0 %v2821
        %v3846 = vpop.f32.mrb[0].mxu0
        %v3847 = vadd.f32 %v2910, %v3846
        %v3848 = vpop.f32.mrb[0].mxu0
        %v3849 = vadd.f32 %v2914, %v3848
        %v3850 = vpop.f32.mrb[0].mxu0
        %v3851 = vadd.f32 %v2910, %v3850
        %v3852 = vpop.f32.mrb[0].mxu0
        %v3853 = vadd.f32 %v2914, %v3852
        %3854 = vmatprep.mubr.bf16.mxu0 0
        %3855 = vmatmul.mubr.bf16.gmra.mrb[0].mxu0 %v2822
        %v3856 = vpop.f32.mrb[0].mxu0
        %v3857 = vadd.f32 %v2910, %v3856
        %v3858 = vpop.f32.mrb[0].mxu0
        %v3859 = vadd.f32 %v2914, %v3858
        %v3860 = vpop.f32.mrb[0].mxu0
        %v3861 = vadd.f32 %v2910, %v3860
        %v3862 = vpop.f32.mrb[0].mxu0
        %v3863 = vadd.f32 %v2914, %v3862
        %3864 = vmatprep.mubr.bf16.mxu0 0
        %3865 = vmatmul.mubr.bf16.gmra.mrb[0].mxu0 %v2823
        %v3866 = vpop.f32.mrb[0].mxu0
        %v3867 = vadd.f32 %v2910, %v3866
        %v3868 = vpop.f32.mrb[0].mxu0
        %v3869 = vadd.f32 %v2914, %v3868
        %v3870 = vpop.f32.mrb[0].mxu0
        %v3871 = vadd.f32 %v2910, %v3870
        %v3872 = vpop.f32.mrb[0].mxu0
        %v3873 = vadd.f32 %v2914, %v3872
        %3874 = vmatprep.mubr.bf16.mxu0 0
        %3875 = vmatmul.mubr.bf16.gmra.mrb[0].mxu0 %v2824
        %v3876 = vpop.f32.mrb[0].mxu0
        %v3877 = vadd.f32 %v2910, %v3876
        %v3878 = vpop.f32.mrb[0].mxu0
        %v3879 = vadd.f32 %v2914, %v3878
        %v3880 = vpop.f32.mrb[0].mxu0
        %v3881 = vadd.f32 %v2910, %v3880
        %v3882 = vpop.f32.mrb[0].mxu0
        %v3883 = vadd.f32 %v2914, %v3882
        %3884 = vmatprep.mubr.bf16.mxu0 0
        %3885 = vmatmul.mubr.bf16.gmra.mrb[0].mxu0 %v2825
        %v3886 = vpop.f32.mrb[0].mxu0
        %v3887 = vadd.f32 %v2910, %v3886
        %v3888 = vpop.f32.mrb[0].mxu0
        %v3889 = vadd.f32 %v2914, %v3888
        %v3890 = vpop.f32.mrb[0].mxu0
        %v3891 = vadd.f32 %v2910, %v3890
        %v3892 = vpop.f32.mrb[0].mxu0
        %v3893 = vadd.f32 %v2914, %v3892
        %3894 = vmatprep.mubr.bf16.mxu0 0
        %3895 = vmatmul.mubr.bf16.gmra.mrb[0].mxu0 %v2826
        %v3896 = vpop.f32.mrb[0].mxu0
        %v3897 = vadd.f32 %v2910, %v3896
        %v3898 = vpop.f32.mrb[0].mxu0
        %v3899 = vadd.f32 %v2914, %v3898
        %v3900 = vpop.f32.mrb[0].mxu0
        %v3901 = vadd.f32 %v2910, %v3900
        %v3902 = vpop.f32.mrb[0].mxu0
        %v3903 = vadd.f32 %v2914, %v3902
        %3904 = vmatprep.mubr.bf16.mxu0 0
        %3905 = vmatmul.mubr.bf16.gmra.mrb[0].mxu0 %v2827
        %v3906 = vpop.f32.mrb[0].mxu0
        %v3907 = vadd.f32 %v2910, %v3906
        %v3908 = vpop.f32.mrb[0].mxu0
        %v3909 = vadd.f32 %v2914, %v3908
        %v3910 = vpop.f32.mrb[0].mxu0
        %v3911 = vadd.f32 %v2910, %v3910
        %v3912 = vpop.f32.mrb[0].mxu0
        %v3913 = vadd.f32 %v2914, %v3912
        %3914 = vmatprep.mubr.bf16.mxu0 0
        %3915 = vmatmul.mubr.bf16.gmra.mrb[0].mxu0 %v2828
        %v3916 = vpop.f32.mrb[0].mxu0
        %v3917 = vadd.f32 %v2910, %v3916
        %v3918 = vpop.f32.mrb[0].mxu0
        %v3919 = vadd.f32 %v2914, %v3918
        %v3920 = vpop.f32.mrb[0].mxu0
        %v3921 = vadd.f32 %v2910, %v3920
        %v3922 = vpop.f32.mrb[0].mxu0
        %v3923 = vadd.f32 %v2914, %v3922
        %3924 = vmatprep.mubr.bf16.mxu0 0
        %3925 = vmatmul.mubr.bf16.gmra.mrb[0].mxu0 %v2829
        %v3926 = vpop.f32.mrb[0].mxu0
        %v3927 = vadd.f32 %v2910, %v3926
        %v3928 = vpop.f32.mrb[0].mxu0
        %v3929 = vadd.f32 %v2914, %v3928
        %v3930 = vpop.f32.mrb[0].mxu0
        %v3931 = vadd.f32 %v2910, %v3930
        %v3932 = vpop.f32.mrb[0].mxu0
        %v3933 = vadd.f32 %v2914, %v3932
        %3934 = vmatprep.mubr.bf16.mxu0 0
        %3935 = vmatmul.mubr.bf16.gmra.mrb[0].mxu0 %v2830
        %v3936 = vpop.f32.mrb[0].mxu0
        %v3937 = vadd.f32 %v2910, %v3936
        %v3938 = vpop.f32.mrb[0].mxu0
        %v3939 = vadd.f32 %v2914, %v3938
        %v3940 = vpop.f32.mrb[0].mxu0
        %v3941 = vadd.f32 %v2910, %v3940
        %v3942 = vpop.f32.mrb[0].mxu0
        %v3943 = vadd.f32 %v2914, %v3942
        %3944 = vmatprep.mubr.bf16.mxu0 0
        %3945 = vmatmul.mubr.bf16.gmra.mrb[0].mxu0 %v2831
        %v3946 = vpop.f32.mrb[0].mxu0
        %v3947 = vadd.f32 %v2910, %v3946
        %v3948 = vpop.f32.mrb[0].mxu0
        %v3949 = vadd.f32 %v2914, %v3948
        %v3950 = vpop.f32.mrb[0].mxu0
        %v3951 = vadd.f32 %v2910, %v3950
        %v3952 = vpop.f32.mrb[0].mxu0
        %v3953 = vadd.f32 %v2914, %v3952
        %3954 = vmatprep.mubr.bf16.mxu0 0
        %3955 = vmatmul.mubr.bf16.gmra.mrb[0].mxu0 %v2832
        %v3956 = vpop.f32.mrb[0].mxu0
        %v3957 = vadd.f32 %v2910, %v3956
        %v3958 = vpop.f32.mrb[0].mxu0
        %v3959 = vadd.f32 %v2914, %v3958
        %v3960 = vpop.f32.mrb[0].mxu0
        %v3961 = vadd.f32 %v2910, %v3960
        %v3962 = vpop.f32.mrb[0].mxu0
        %v3963 = vadd.f32 %v2914, %v3962
        %3964 = vdwg.mxu0
        %3965 = vmatprep.subr.bf16.mxu0 %v3136
        %3966 = vmatpush1.bf16.msra.mxu0 %v3135
        %3967 = vmatprep.subr.bf16.mxu0 %v3144
        %3968 = vmatpush1.bf16.msra.mxu0 %v3143
        %3969 = vmatprep.subr.bf16.mxu0 %v3152
        %3970 = vmatpush1.bf16.msra.mxu0 %v3151
        %3971 = vmatprep.subr.bf16.mxu0 %v3160
        %3972 = vmatpush1.bf16.msra.mxu0 %v3159
        %3973 = vmatprep.subr.bf16.mxu0 %v3168
        %3974 = vmatpush1.bf16.msra.mxu0 %v3167
        %3975 = vmatprep.subr.bf16.mxu0 %v3176
        %3976 = vmatpush1.bf16.msra.mxu0 %v3175
        %3977 = vmatprep.subr.bf16.mxu0 %v3184
        %3978 = vmatpush1.bf16.msra.mxu0 %v3183
        %3979 = vmatprep.subr.bf16.mxu0 %v3192
        %3980 = vmatpush1.bf16.msra.mxu0 %v3191
        %3981 = vmatprep.subr.bf16.mxu0 0
        %3982 = vmatpush1.bf16.msra.mxu0 0
        %3983 = vmatprep.subr.bf16.mxu0 0
        %3984 = vmatpush1.bf16.msra.mxu0 0
        %3985 = vmatprep.subr.bf16.mxu0 0
        %3986 = vmatpush1.bf16.msra.mxu0 0
        %3987 = vmatprep.subr.bf16.mxu0 0
        %3988 = vmatpush1.bf16.msra.mxu0 0
        %3989 = vmatprep.subr.bf16.mxu0 0
        %3990 = vmatpush1.bf16.msra.mxu0 0
        %3991 = vmatprep.subr.bf16.mxu0 0
        %3992 = vmatpush1.bf16.msra.mxu0 0
        %3993 = vmatprep.subr.bf16.mxu0 0
        %3994 = vmatpush1.bf16.msra.mxu0 0
        %3995 = vmatprep.subr.bf16.mxu0 0
        %3996 = vmatpush1.bf16.msra.mxu0 0
        %3997 = vmatprep.mubr.bf16.mxu0 0
        %3998 = vmatmul.mubr.bf16.gmra.mrb[0].mxu0 %v2801
        %v3999 = vpop.f32.mrb[0].mxu0
        %v4000 = vadd.f32 %v2918, %v3999
        %v4001 = vpop.f32.mrb[0].mxu0
        %v4002 = vadd.f32 %v2922, %v4001
        %v4003 = vpop.f32.mrb[0].mxu0
        %v4004 = vadd.f32 %v2918, %v4003
        %v4005 = vpop.f32.mrb[0].mxu0
        %v4006 = vadd.f32 %v2922, %v4005
        %4007 = vmatprep.mubr.bf16.mxu0 0
        %4008 = vmatmul.mubr.bf16.gmra.mrb[0].mxu0 %v2802
        %v4009 = vpop.f32.mrb[0].mxu0
        %v4010 = vadd.f32 %v2918, %v4009
        %v4011 = vpop.f32.mrb[0].mxu0
        %v4012 = vadd.f32 %v2922, %v4011
        %v4013 = vpop.f32.mrb[0].mxu0
        %v4014 = vadd.f32 %v2918, %v4013
        %v4015 = vpop.f32.mrb[0].mxu0
        %v4016 = vadd.f32 %v2922, %v4015
        %4017 = vmatprep.mubr.bf16.mxu0 0
        %4018 = vmatmul.mubr.bf16.gmra.mrb[0].mxu0 %v2803
        %v4019 = vpop.f32.mrb[0].mxu0
        %v4020 = vadd.f32 %v2918, %v4019
        %v4021 = vpop.f32.mrb[0].mxu0
        %v4022 = vadd.f32 %v2922, %v4021
        %v4023 = vpop.f32.mrb[0].mxu0
        %v4024 = vadd.f32 %v2918, %v4023
        %v4025 = vpop.f32.mrb[0].mxu0
        %v4026 = vadd.f32 %v2922, %v4025
        %4027 = vmatprep.mubr.bf16.mxu0 0
        %4028 = vmatmul.mubr.bf16.gmra.mrb[0].mxu0 %v2804
        %v4029 = vpop.f32.mrb[0].mxu0
        %v4030 = vadd.f32 %v2918, %v4029
        %v4031 = vpop.f32.mrb[0].mxu0
        %v4032 = vadd.f32 %v2922, %v4031
        %v4033 = vpop.f32.mrb[0].mxu0
        %v4034 = vadd.f32 %v2918, %v4033
        %v4035 = vpop.f32.mrb[0].mxu0
        %v4036 = vadd.f32 %v2922, %v4035
        %4037 = vmatprep.mubr.bf16.mxu0 0
        %4038 = vmatmul.mubr.bf16.gmra.mrb[0].mxu0 %v2805
        %v4039 = vpop.f32.mrb[0].mxu0
        %v4040 = vadd.f32 %v2918, %v4039
        %v4041 = vpop.f32.mrb[0].mxu0
        %v4042 = vadd.f32 %v2922, %v4041
        %v4043 = vpop.f32.mrb[0].mxu0
        %v4044 = vadd.f32 %v2918, %v4043
        %v4045 = vpop.f32.mrb[0].mxu0
        %v4046 = vadd.f32 %v2922, %v4045
        %4047 = vmatprep.mubr.bf16.mxu0 0
        %4048 = vmatmul.mubr.bf16.gmra.mrb[0].mxu0 %v2806
        %v4049 = vpop.f32.mrb[0].mxu0
        %v4050 = vadd.f32 %v2918, %v4049
        %v4051 = vpop.f32.mrb[0].mxu0
        %v4052 = vadd.f32 %v2922, %v4051
        %v4053 = vpop.f32.mrb[0].mxu0
        %v4054 = vadd.f32 %v2918, %v4053
        %v4055 = vpop.f32.mrb[0].mxu0
        %v4056 = vadd.f32 %v2922, %v4055
        %4057 = vmatprep.mubr.bf16.mxu0 0
        %4058 = vmatmul.mubr.bf16.gmra.mrb[0].mxu0 %v2807
        %v4059 = vpop.f32.mrb[0].mxu0
        %v4060 = vadd.f32 %v2918, %v4059
        %v4061 = vpop.f32.mrb[0].mxu0
        %v4062 = vadd.f32 %v2922, %v4061
        %v4063 = vpop.f32.mrb[0].mxu0
        %v4064 = vadd.f32 %v2918, %v4063
        %v4065 = vpop.f32.mrb[0].mxu0
        %v4066 = vadd.f32 %v2922, %v4065
        %4067 = vmatprep.mubr.bf16.mxu0 0
        %4068 = vmatmul.mubr.bf16.gmra.mrb[0].mxu0 %v2808
        %v4069 = vpop.f32.mrb[0].mxu0
        %v4070 = vadd.f32 %v2918, %v4069
        %v4071 = vpop.f32.mrb[0].mxu0
        %v4072 = vadd.f32 %v2922, %v4071
        %v4073 = vpop.f32.mrb[0].mxu0
        %v4074 = vadd.f32 %v2918, %v4073
        %v4075 = vpop.f32.mrb[0].mxu0
        %v4076 = vadd.f32 %v2922, %v4075
        %4077 = vmatprep.mubr.bf16.mxu0 0
        %4078 = vmatmul.mubr.bf16.gmra.mrb[0].mxu0 %v2809
        %v4079 = vpop.f32.mrb[0].mxu0
        %v4080 = vadd.f32 %v2918, %v4079
        %v4081 = vpop.f32.mrb[0].mxu0
        %v4082 = vadd.f32 %v2922, %v4081
        %v4083 = vpop.f32.mrb[0].mxu0
        %v4084 = vadd.f32 %v2918, %v4083
        %v4085 = vpop.f32.mrb[0].mxu0
        %v4086 = vadd.f32 %v2922, %v4085
        %4087 = vmatprep.mubr.bf16.mxu0 0
        %4088 = vmatmul.mubr.bf16.gmra.mrb[0].mxu0 %v2810
        %v4089 = vpop.f32.mrb[0].mxu0
        %v4090 = vadd.f32 %v2918, %v4089
        %v4091 = vpop.f32.mrb[0].mxu0
        %v4092 = vadd.f32 %v2922, %v4091
        %v4093 = vpop.f32.mrb[0].mxu0
        %v4094 = vadd.f32 %v2918, %v4093
        %v4095 = vpop.f32.mrb[0].mxu0
        %v4096 = vadd.f32 %v2922, %v4095
        %4097 = vmatprep.mubr.bf16.mxu0 0
        %4098 = vmatmul.mubr.bf16.gmra.mrb[0].mxu0 %v2811
        %v4099 = vpop.f32.mrb[0].mxu0
        %v4100 = vadd.f32 %v2918, %v4099
        %v4101 = vpop.f32.mrb[0].mxu0
        %v4102 = vadd.f32 %v2922, %v4101
        %v4103 = vpop.f32.mrb[0].mxu0
        %v4104 = vadd.f32 %v2918, %v4103
        %v4105 = vpop.f32.mrb[0].mxu0
        %v4106 = vadd.f32 %v2922, %v4105
        %4107 = vmatprep.mubr.bf16.mxu0 0
        %4108 = vmatmul.mubr.bf16.gmra.mrb[0].mxu0 %v2812
        %v4109 = vpop.f32.mrb[0].mxu0
        %v4110 = vadd.f32 %v2918, %v4109
        %v4111 = vpop.f32.mrb[0].mxu0
        %v4112 = vadd.f32 %v2922, %v4111
        %v4113 = vpop.f32.mrb[0].mxu0
        %v4114 = vadd.f32 %v2918, %v4113
        %v4115 = vpop.f32.mrb[0].mxu0
        %v4116 = vadd.f32 %v2922, %v4115
        %4117 = vmatprep.mubr.bf16.mxu0 0
        %4118 = vmatmul.mubr.bf16.gmra.mrb[0].mxu0 %v2813
        %v4119 = vpop.f32.mrb[0].mxu0
        %v4120 = vadd.f32 %v2918, %v4119
        %v4121 = vpop.f32.mrb[0].mxu0
        %v4122 = vadd.f32 %v2922, %v4121
        %v4123 = vpop.f32.mrb[0].mxu0
        %v4124 = vadd.f32 %v2918, %v4123
        %v4125 = vpop.f32.mrb[0].mxu0
        %v4126 = vadd.f32 %v2922, %v4125
        %4127 = vmatprep.mubr.bf16.mxu0 0
        %4128 = vmatmul.mubr.bf16.gmra.mrb[0].mxu0 %v2814
        %v4129 = vpop.f32.mrb[0].mxu0
        %v4130 = vadd.f32 %v2918, %v4129
        %v4131 = vpop.f32.mrb[0].mxu0
        %v4132 = vadd.f32 %v2922, %v4131
        %v4133 = vpop.f32.mrb[0].mxu0
        %v4134 = vadd.f32 %v2918, %v4133
        %v4135 = vpop.f32.mrb[0].mxu0
        %v4136 = vadd.f32 %v2922, %v4135
        %4137 = vmatprep.mubr.bf16.mxu0 0
        %4138 = vmatmul.mubr.bf16.gmra.mrb[0].mxu0 %v2815
        %v4139 = vpop.f32.mrb[0].mxu0
        %v4140 = vadd.f32 %v2918, %v4139
        %v4141 = vpop.f32.mrb[0].mxu0
        %v4142 = vadd.f32 %v2922, %v4141
        %v4143 = vpop.f32.mrb[0].mxu0
        %v4144 = vadd.f32 %v2918, %v4143
        %v4145 = vpop.f32.mrb[0].mxu0
        %v4146 = vadd.f32 %v2922, %v4145
        %4147 = vmatprep.mubr.bf16.mxu0 0
        %4148 = vmatmul.mubr.bf16.gmra.mrb[0].mxu0 %v2816
        %v4149 = vpop.f32.mrb[0].mxu0
        %v4150 = vadd.f32 %v2918, %v4149
        %v4151 = vpop.f32.mrb[0].mxu0
        %v4152 = vadd.f32 %v2922, %v4151
        %v4153 = vpop.f32.mrb[0].mxu0
        %v4154 = vadd.f32 %v2918, %v4153
        %v4155 = vpop.f32.mrb[0].mxu0
        %v4156 = vadd.f32 %v2922, %v4155
        %4157 = vmatprep.mubr.bf16.mxu0 0
        %4158 = vmatmul.mubr.bf16.gmra.mrb[0].mxu0 %v2817
        %v4159 = vpop.f32.mrb[0].mxu0
        %v4160 = vadd.f32 %v2918, %v4159
        %v4161 = vpop.f32.mrb[0].mxu0
        %v4162 = vadd.f32 %v2922, %v4161
        %v4163 = vpop.f32.mrb[0].mxu0
        %v4164 = vadd.f32 %v2918, %v4163
        %v4165 = vpop.f32.mrb[0].mxu0
        %v4166 = vadd.f32 %v2922, %v4165
        %4167 = vmatprep.mubr.bf16.mxu0 0
        %4168 = vmatmul.mubr.bf16.gmra.mrb[0].mxu0 %v2818
        %v4169 = vpop.f32.mrb[0].mxu0
        %v4170 = vadd.f32 %v2918, %v4169
        %v4171 = vpop.f32.mrb[0].mxu0
        %v4172 = vadd.f32 %v2922, %v4171
        %v4173 = vpop.f32.mrb[0].mxu0
        %v4174 = vadd.f32 %v2918, %v4173
        %v4175 = vpop.f32.mrb[0].mxu0
        %v4176 = vadd.f32 %v2922, %v4175
        %4177 = vmatprep.mubr.bf16.mxu0 0
        %4178 = vmatmul.mubr.bf16.gmra.mrb[0].mxu0 %v2819
        %v4179 = vpop.f32.mrb[0].mxu0
        %v4180 = vadd.f32 %v2918, %v4179
        %v4181 = vpop.f32.mrb[0].mxu0
        %v4182 = vadd.f32 %v2922, %v4181
        %v4183 = vpop.f32.mrb[0].mxu0
        %v4184 = vadd.f32 %v2918, %v4183
        %v4185 = vpop.f32.mrb[0].mxu0
        %v4186 = vadd.f32 %v2922, %v4185
        %4187 = vmatprep.mubr.bf16.mxu0 0
        %4188 = vmatmul.mubr.bf16.gmra.mrb[0].mxu0 %v2820
        %v4189 = vpop.f32.mrb[0].mxu0
        %v4190 = vadd.f32 %v2918, %v4189
        %v4191 = vpop.f32.mrb[0].mxu0
        %v4192 = vadd.f32 %v2922, %v4191
        %v4193 = vpop.f32.mrb[0].mxu0
        %v4194 = vadd.f32 %v2918, %v4193
        %v4195 = vpop.f32.mrb[0].mxu0
        %v4196 = vadd.f32 %v2922, %v4195
        %4197 = vmatprep.mubr.bf16.mxu0 0
        %4198 = vmatmul.mubr.bf16.gmra.mrb[0].mxu0 %v2821
        %v4199 = vpop.f32.mrb[0].mxu0
        %v4200 = vadd.f32 %v2918, %v4199
        %v4201 = vpop.f32.mrb[0].mxu0
        %v4202 = vadd.f32 %v2922, %v4201
        %v4203 = vpop.f32.mrb[0].mxu0
        %v4204 = vadd.f32 %v2918, %v4203
        %v4205 = vpop.f32.mrb[0].mxu0
        %v4206 = vadd.f32 %v2922, %v4205
        %4207 = vmatprep.mubr.bf16.mxu0 0
        %4208 = vmatmul.mubr.bf16.gmra.mrb[0].mxu0 %v2822
        %v4209 = vpop.f32.mrb[0].mxu0
        %v4210 = vadd.f32 %v2918, %v4209
        %v4211 = vpop.f32.mrb[0].mxu0
        %v4212 = vadd.f32 %v2922, %v4211
        %v4213 = vpop.f32.mrb[0].mxu0
        %v4214 = vadd.f32 %v2918, %v4213
        %v4215 = vpop.f32.mrb[0].mxu0
        %v4216 = vadd.f32 %v2922, %v4215
        %4217 = vmatprep.mubr.bf16.mxu0 0
        %4218 = vmatmul.mubr.bf16.gmra.mrb[0].mxu0 %v2823
        %v4219 = vpop.f32.mrb[0].mxu0
        %v4220 = vadd.f32 %v2918, %v4219
        %v4221 = vpop.f32.mrb[0].mxu0
        %v4222 = vadd.f32 %v2922, %v4221
        %v4223 = vpop.f32.mrb[0].mxu0
        %v4224 = vadd.f32 %v2918, %v4223
        %v4225 = vpop.f32.mrb[0].mxu0
        %v4226 = vadd.f32 %v2922, %v4225
        %4227 = vmatprep.mubr.bf16.mxu0 0
        %4228 = vmatmul.mubr.bf16.gmra.mrb[0].mxu0 %v2824
        %v4229 = vpop.f32.mrb[0].mxu0
        %v4230 = vadd.f32 %v2918, %v4229
        %v4231 = vpop.f32.mrb[0].mxu0
        %v4232 = vadd.f32 %v2922, %v4231
        %v4233 = vpop.f32.mrb[0].mxu0
        %v4234 = vadd.f32 %v2918, %v4233
        %v4235 = vpop.f32.mrb[0].mxu0
        %v4236 = vadd.f32 %v2922, %v4235
        %4237 = vmatprep.mubr.bf16.mxu0 0
        %4238 = vmatmul.mubr.bf16.gmra.mrb[0].mxu0 %v2825
        %v4239 = vpop.f32.mrb[0].mxu0
        %v4240 = vadd.f32 %v2918, %v4239
        %v4241 = vpop.f32.mrb[0].mxu0
        %v4242 = vadd.f32 %v2922, %v4241
        %v4243 = vpop.f32.mrb[0].mxu0
        %v4244 = vadd.f32 %v2918, %v4243
        %v4245 = vpop.f32.mrb[0].mxu0
        %v4246 = vadd.f32 %v2922, %v4245
        %4247 = vmatprep.mubr.bf16.mxu0 0
        %4248 = vmatmul.mubr.bf16.gmra.mrb[0].mxu0 %v2826
        %v4249 = vpop.f32.mrb[0].mxu0
        %v4250 = vadd.f32 %v2918, %v4249
        %v4251 = vpop.f32.mrb[0].mxu0
        %v4252 = vadd.f32 %v2922, %v4251
        %v4253 = vpop.f32.mrb[0].mxu0
        %v4254 = vadd.f32 %v2918, %v4253
        %v4255 = vpop.f32.mrb[0].mxu0
        %v4256 = vadd.f32 %v2922, %v4255
        %4257 = vmatprep.mubr.bf16.mxu0 0
        %4258 = vmatmul.mubr.bf16.gmra.mrb[0].mxu0 %v2827
        %v4259 = vpop.f32.mrb[0].mxu0
        %v4260 = vadd.f32 %v2918, %v4259
        %v4261 = vpop.f32.mrb[0].mxu0
        %v4262 = vadd.f32 %v2922, %v4261
        %v4263 = vpop.f32.mrb[0].mxu0
        %v4264 = vadd.f32 %v2918, %v4263
        %v4265 = vpop.f32.mrb[0].mxu0
        %v4266 = vadd.f32 %v2922, %v4265
        %4267 = vmatprep.mubr.bf16.mxu0 0
        %4268 = vmatmul.mubr.bf16.gmra.mrb[0].mxu0 %v2828
        %v4269 = vpop.f32.mrb[0].mxu0
        %v4270 = vadd.f32 %v2918, %v4269
        %v4271 = vpop.f32.mrb[0].mxu0
        %v4272 = vadd.f32 %v2922, %v4271
        %v4273 = vpop.f32.mrb[0].mxu0
        %v4274 = vadd.f32 %v2918, %v4273
        %v4275 = vpop.f32.mrb[0].mxu0
        %v4276 = vadd.f32 %v2922, %v4275
        %4277 = vmatprep.mubr.bf16.mxu0 0
        %4278 = vmatmul.mubr.bf16.gmra.mrb[0].mxu0 %v2829
        %v4279 = vpop.f32.mrb[0].mxu0
        %v4280 = vadd.f32 %v2918, %v4279
        %v4281 = vpop.f32.mrb[0].mxu0
        %v4282 = vadd.f32 %v2922, %v4281
        %v4283 = vpop.f32.mrb[0].mxu0
        %v4284 = vadd.f32 %v2918, %v4283
        %v4285 = vpop.f32.mrb[0].mxu0
        %v4286 = vadd.f32 %v2922, %v4285
        %4287 = vmatprep.mubr.bf16.mxu0 0
        %4288 = vmatmul.mubr.bf16.gmra.mrb[0].mxu0 %v2830
        %v4289 = vpop.f32.mrb[0].mxu0
        %v4290 = vadd.f32 %v2918, %v4289
        %v4291 = vpop.f32.mrb[0].mxu0
        %v4292 = vadd.f32 %v2922, %v4291
        %v4293 = vpop.f32.mrb[0].mxu0
        %v4294 = vadd.f32 %v2918, %v4293
        %v4295 = vpop.f32.mrb[0].mxu0
        %v4296 = vadd.f32 %v2922, %v4295
        %4297 = vmatprep.mubr.bf16.mxu0 0
        %4298 = vmatmul.mubr.bf16.gmra.mrb[0].mxu0 %v2831
        %v4299 = vpop.f32.mrb[0].mxu0
        %v4300 = vadd.f32 %v2918, %v4299
        %v4301 = vpop.f32.mrb[0].mxu0
        %v4302 = vadd.f32 %v2922, %v4301
        %v4303 = vpop.f32.mrb[0].mxu0
        %v4304 = vadd.f32 %v2918, %v4303
        %v4305 = vpop.f32.mrb[0].mxu0
        %v4306 = vadd.f32 %v2922, %v4305
        %4307 = vmatprep.mubr.bf16.mxu0 0
        %4308 = vmatmul.mubr.bf16.gmra.mrb[0].mxu0 %v2832
        %v4309 = vpop.f32.mrb[0].mxu0
        %v4310 = vadd.f32 %v2918, %v4309
        %v4311 = vpop.f32.mrb[0].mxu0
        %v4312 = vadd.f32 %v2922, %v4311
        %v4313 = vpop.f32.mrb[0].mxu0
        %v4314 = vadd.f32 %v2918, %v4313
        %v4315 = vpop.f32.mrb[0].mxu0
        %v4316 = vadd.f32 %v2922, %v4315
        %4317 = vdwg.mxu0
        %4318 = vmatprep.subr.bf16.mxu0 %v3138
        %4319 = vmatpush1.bf16.msra.mxu0 %v3137
        %4320 = vmatprep.subr.bf16.mxu0 %v3146
        %4321 = vmatpush1.bf16.msra.mxu0 %v3145
        %4322 = vmatprep.subr.bf16.mxu0 %v3154
        %4323 = vmatpush1.bf16.msra.mxu0 %v3153
        %4324 = vmatprep.subr.bf16.mxu0 %v3162
        %4325 = vmatpush1.bf16.msra.mxu0 %v3161
        %4326 = vmatprep.subr.bf16.mxu0 %v3170
        %4327 = vmatpush1.bf16.msra.mxu0 %v3169
        %4328 = vmatprep.subr.bf16.mxu0 %v3178
        %4329 = vmatpush1.bf16.msra.mxu0 %v3177
        %4330 = vmatprep.subr.bf16.mxu0 %v3186
        %4331 = vmatpush1.bf16.msra.mxu0 %v3185
        %4332 = vmatprep.subr.bf16.mxu0 %v3194
        %4333 = vmatpush1.bf16.msra.mxu0 %v3193
        %4334 = vmatprep.subr.bf16.mxu0 0
        %4335 = vmatpush1.bf16.msra.mxu0 0
        %4336 = vmatprep.subr.bf16.mxu0 0
        %4337 = vmatpush1.bf16.msra.mxu0 0
        %4338 = vmatprep.subr.bf16.mxu0 0
        %4339 = vmatpush1.bf16.msra.mxu0 0
        %4340 = vmatprep.subr.bf16.mxu0 0
        %4341 = vmatpush1.bf16.msra.mxu0 0
        %4342 = vmatprep.subr.bf16.mxu0 0
        %4343 = vmatpush1.bf16.msra.mxu0 0
        %4344 = vmatprep.subr.bf16.mxu0 0
        %4345 = vmatpush1.bf16.msra.mxu0 0
        %4346 = vmatprep.subr.bf16.mxu0 0
        %4347 = vmatpush1.bf16.msra.mxu0 0
        %4348 = vmatprep.subr.bf16.mxu0 0
        %4349 = vmatpush1.bf16.msra.mxu0 0
        %4350 = vmatprep.mubr.bf16.mxu0 0
        %4351 = vmatmul.mubr.bf16.gmra.mrb[0].mxu0 %v2801
        %v4352 = vpop.f32.mrb[0].mxu0
        %v4353 = vadd.f32 %v2926, %v4352
        %v4354 = vpop.f32.mrb[0].mxu0
        %v4355 = vadd.f32 %v2930, %v4354
        %v4356 = vpop.f32.mrb[0].mxu0
        %v4357 = vadd.f32 %v2926, %v4356
        %v4358 = vpop.f32.mrb[0].mxu0
        %v4359 = vadd.f32 %v2930, %v4358
        %4360 = vmatprep.mubr.bf16.mxu0 0
        %4361 = vmatmul.mubr.bf16.gmra.mrb[0].mxu0 %v2802
        %v4362 = vpop.f32.mrb[0].mxu0
        %v4363 = vadd.f32 %v2926, %v4362
        %v4364 = vpop.f32.mrb[0].mxu0
        %v4365 = vadd.f32 %v2930, %v4364
        %v4366 = vpop.f32.mrb[0].mxu0
        %v4367 = vadd.f32 %v2926, %v4366
        %v4368 = vpop.f32.mrb[0].mxu0
        %v4369 = vadd.f32 %v2930, %v4368
        %4370 = vmatprep.mubr.bf16.mxu0 0
        %4371 = vmatmul.mubr.bf16.gmra.mrb[0].mxu0 %v2803
        %v4372 = vpop.f32.mrb[0].mxu0
        %v4373 = vadd.f32 %v2926, %v4372
        %v4374 = vpop.f32.mrb[0].mxu0
        %v4375 = vadd.f32 %v2930, %v4374
        %v4376 = vpop.f32.mrb[0].mxu0
        %v4377 = vadd.f32 %v2926, %v4376
        %v4378 = vpop.f32.mrb[0].mxu0
        %v4379 = vadd.f32 %v2930, %v4378
        %4380 = vmatprep.mubr.bf16.mxu0 0
        %4381 = vmatmul.mubr.bf16.gmra.mrb[0].mxu0 %v2804
        %v4382 = vpop.f32.mrb[0].mxu0
        %v4383 = vadd.f32 %v2926, %v4382
        %v4384 = vpop.f32.mrb[0].mxu0
        %v4385 = vadd.f32 %v2930, %v4384
        %v4386 = vpop.f32.mrb[0].mxu0
        %v4387 = vadd.f32 %v2926, %v4386
        %v4388 = vpop.f32.mrb[0].mxu0
        %v4389 = vadd.f32 %v2930, %v4388
        %4390 = vmatprep.mubr.bf16.mxu0 0
        %4391 = vmatmul.mubr.bf16.gmra.mrb[0].mxu0 %v2805
        %v4392 = vpop.f32.mrb[0].mxu0
        %v4393 = vadd.f32 %v2926, %v4392
        %v4394 = vpop.f32.mrb[0].mxu0
        %v4395 = vadd.f32 %v2930, %v4394
        %v4396 = vpop.f32.mrb[0].mxu0
        %v4397 = vadd.f32 %v2926, %v4396
        %v4398 = vpop.f32.mrb[0].mxu0
        %v4399 = vadd.f32 %v2930, %v4398
        %4400 = vmatprep.mubr.bf16.mxu0 0
        %4401 = vmatmul.mubr.bf16.gmra.mrb[0].mxu0 %v2806
        %v4402 = vpop.f32.mrb[0].mxu0
        %v4403 = vadd.f32 %v2926, %v4402
        %v4404 = vpop.f32.mrb[0].mxu0
        %v4405 = vadd.f32 %v2930, %v4404
        %v4406 = vpop.f32.mrb[0].mxu0
        %v4407 = vadd.f32 %v2926, %v4406
        %v4408 = vpop.f32.mrb[0].mxu0
        %v4409 = vadd.f32 %v2930, %v4408
        %4410 = vmatprep.mubr.bf16.mxu0 0
        %4411 = vmatmul.mubr.bf16.gmra.mrb[0].mxu0 %v2807
        %v4412 = vpop.f32.mrb[0].mxu0
        %v4413 = vadd.f32 %v2926, %v4412
        %v4414 = vpop.f32.mrb[0].mxu0
        %v4415 = vadd.f32 %v2930, %v4414
        %v4416 = vpop.f32.mrb[0].mxu0
        %v4417 = vadd.f32 %v2926, %v4416
        %v4418 = vpop.f32.mrb[0].mxu0
        %v4419 = vadd.f32 %v2930, %v4418
        %4420 = vmatprep.mubr.bf16.mxu0 0
        %4421 = vmatmul.mubr.bf16.gmra.mrb[0].mxu0 %v2808
        %v4422 = vpop.f32.mrb[0].mxu0
        %v4423 = vadd.f32 %v2926, %v4422
        %v4424 = vpop.f32.mrb[0].mxu0
        %v4425 = vadd.f32 %v2930, %v4424
        %v4426 = vpop.f32.mrb[0].mxu0
        %v4427 = vadd.f32 %v2926, %v4426
        %v4428 = vpop.f32.mrb[0].mxu0
        %v4429 = vadd.f32 %v2930, %v4428
        %4430 = vmatprep.mubr.bf16.mxu0 0
        %4431 = vmatmul.mubr.bf16.gmra.mrb[0].mxu0 %v2809
        %v4432 = vpop.f32.mrb[0].mxu0
        %v4433 = vadd.f32 %v2926, %v4432
        %v4434 = vpop.f32.mrb[0].mxu0
        %v4435 = vadd.f32 %v2930, %v4434
        %v4436 = vpop.f32.mrb[0].mxu0
        %v4437 = vadd.f32 %v2926, %v4436
        %v4438 = vpop.f32.mrb[0].mxu0
        %v4439 = vadd.f32 %v2930, %v4438
        %4440 = vmatprep.mubr.bf16.mxu0 0
        %4441 = vmatmul.mubr.bf16.gmra.mrb[0].mxu0 %v2810
        %v4442 = vpop.f32.mrb[0].mxu0
        %v4443 = vadd.f32 %v2926, %v4442
        %v4444 = vpop.f32.mrb[0].mxu0
        %v4445 = vadd.f32 %v2930, %v4444
        %v4446 = vpop.f32.mrb[0].mxu0
        %v4447 = vadd.f32 %v2926, %v4446
        %v4448 = vpop.f32.mrb[0].mxu0
        %v4449 = vadd.f32 %v2930, %v4448
        %4450 = vmatprep.mubr.bf16.mxu0 0
        %4451 = vmatmul.mubr.bf16.gmra.mrb[0].mxu0 %v2811
        %v4452 = vpop.f32.mrb[0].mxu0
        %v4453 = vadd.f32 %v2926, %v4452
        %v4454 = vpop.f32.mrb[0].mxu0
        %v4455 = vadd.f32 %v2930, %v4454
        %v4456 = vpop.f32.mrb[0].mxu0
        %v4457 = vadd.f32 %v2926, %v4456
        %v4458 = vpop.f32.mrb[0].mxu0
        %v4459 = vadd.f32 %v2930, %v4458
        %4460 = vmatprep.mubr.bf16.mxu0 0
        %4461 = vmatmul.mubr.bf16.gmra.mrb[0].mxu0 %v2812
        %v4462 = vpop.f32.mrb[0].mxu0
        %v4463 = vadd.f32 %v2926, %v4462
        %v4464 = vpop.f32.mrb[0].mxu0
        %v4465 = vadd.f32 %v2930, %v4464
        %v4466 = vpop.f32.mrb[0].mxu0
        %v4467 = vadd.f32 %v2926, %v4466
        %v4468 = vpop.f32.mrb[0].mxu0
        %v4469 = vadd.f32 %v2930, %v4468
        %4470 = vmatprep.mubr.bf16.mxu0 0
        %4471 = vmatmul.mubr.bf16.gmra.mrb[0].mxu0 %v2813
        %v4472 = vpop.f32.mrb[0].mxu0
        %v4473 = vadd.f32 %v2926, %v4472
        %v4474 = vpop.f32.mrb[0].mxu0
        %v4475 = vadd.f32 %v2930, %v4474
        %v4476 = vpop.f32.mrb[0].mxu0
        %v4477 = vadd.f32 %v2926, %v4476
        %v4478 = vpop.f32.mrb[0].mxu0
        %v4479 = vadd.f32 %v2930, %v4478
        %4480 = vmatprep.mubr.bf16.mxu0 0
        %4481 = vmatmul.mubr.bf16.gmra.mrb[0].mxu0 %v2814
        %v4482 = vpop.f32.mrb[0].mxu0
        %v4483 = vadd.f32 %v2926, %v4482
        %v4484 = vpop.f32.mrb[0].mxu0
        %v4485 = vadd.f32 %v2930, %v4484
        %v4486 = vpop.f32.mrb[0].mxu0
        %v4487 = vadd.f32 %v2926, %v4486
        %v4488 = vpop.f32.mrb[0].mxu0
        %v4489 = vadd.f32 %v2930, %v4488
        %4490 = vmatprep.mubr.bf16.mxu0 0
        %4491 = vmatmul.mubr.bf16.gmra.mrb[0].mxu0 %v2815
        %v4492 = vpop.f32.mrb[0].mxu0
        %v4493 = vadd.f32 %v2926, %v4492
        %v4494 = vpop.f32.mrb[0].mxu0
        %v4495 = vadd.f32 %v2930, %v4494
        %v4496 = vpop.f32.mrb[0].mxu0
        %v4497 = vadd.f32 %v2926, %v4496
        %v4498 = vpop.f32.mrb[0].mxu0
        %v4499 = vadd.f32 %v2930, %v4498
        %4500 = vmatprep.mubr.bf16.mxu0 0
        %4501 = vmatmul.mubr.bf16.gmra.mrb[0].mxu0 %v2816
        %v4502 = vpop.f32.mrb[0].mxu0
        %v4503 = vadd.f32 %v2926, %v4502
        %v4504 = vpop.f32.mrb[0].mxu0
        %v4505 = vadd.f32 %v2930, %v4504
        %v4506 = vpop.f32.mrb[0].mxu0
        %v4507 = vadd.f32 %v2926, %v4506
        %v4508 = vpop.f32.mrb[0].mxu0
        %v4509 = vadd.f32 %v2930, %v4508
        %4510 = vmatprep.mubr.bf16.mxu0 0
        %4511 = vmatmul.mubr.bf16.gmra.mrb[0].mxu0 %v2817
        %v4512 = vpop.f32.mrb[0].mxu0
        %v4513 = vadd.f32 %v2926, %v4512
        %v4514 = vpop.f32.mrb[0].mxu0
        %v4515 = vadd.f32 %v2930, %v4514
        %v4516 = vpop.f32.mrb[0].mxu0
        %v4517 = vadd.f32 %v2926, %v4516
        %v4518 = vpop.f32.mrb[0].mxu0
        %v4519 = vadd.f32 %v2930, %v4518
        %4520 = vmatprep.mubr.bf16.mxu0 0
        %4521 = vmatmul.mubr.bf16.gmra.mrb[0].mxu0 %v2818
        %v4522 = vpop.f32.mrb[0].mxu0
        %v4523 = vadd.f32 %v2926, %v4522
        %v4524 = vpop.f32.mrb[0].mxu0
        %v4525 = vadd.f32 %v2930, %v4524
        %v4526 = vpop.f32.mrb[0].mxu0
        %v4527 = vadd.f32 %v2926, %v4526
        %v4528 = vpop.f32.mrb[0].mxu0
        %v4529 = vadd.f32 %v2930, %v4528
        %4530 = vmatprep.mubr.bf16.mxu0 0
        %4531 = vmatmul.mubr.bf16.gmra.mrb[0].mxu0 %v2819
        %v4532 = vpop.f32.mrb[0].mxu0
        %v4533 = vadd.f32 %v2926, %v4532
        %v4534 = vpop.f32.mrb[0].mxu0
        %v4535 = vadd.f32 %v2930, %v4534
        %v4536 = vpop.f32.mrb[0].mxu0
        %v4537 = vadd.f32 %v2926, %v4536
        %v4538 = vpop.f32.mrb[0].mxu0
        %v4539 = vadd.f32 %v2930, %v4538
        %4540 = vmatprep.mubr.bf16.mxu0 0
        %4541 = vmatmul.mubr.bf16.gmra.mrb[0].mxu0 %v2820
        %v4542 = vpop.f32.mrb[0].mxu0
        %v4543 = vadd.f32 %v2926, %v4542
        %v4544 = vpop.f32.mrb[0].mxu0
        %v4545 = vadd.f32 %v2930, %v4544
        %v4546 = vpop.f32.mrb[0].mxu0
        %v4547 = vadd.f32 %v2926, %v4546
        %v4548 = vpop.f32.mrb[0].mxu0
        %v4549 = vadd.f32 %v2930, %v4548
        %4550 = vmatprep.mubr.bf16.mxu0 0
        %4551 = vmatmul.mubr.bf16.gmra.mrb[0].mxu0 %v2821
        %v4552 = vpop.f32.mrb[0].mxu0
        %v4553 = vadd.f32 %v2926, %v4552
        %v4554 = vpop.f32.mrb[0].mxu0
        %v4555 = vadd.f32 %v2930, %v4554
        %v4556 = vpop.f32.mrb[0].mxu0
        %v4557 = vadd.f32 %v2926, %v4556
        %v4558 = vpop.f32.mrb[0].mxu0
        %v4559 = vadd.f32 %v2930, %v4558
        %4560 = vmatprep.mubr.bf16.mxu0 0
        %4561 = vmatmul.mubr.bf16.gmra.mrb[0].mxu0 %v2822
        %v4562 = vpop.f32.mrb[0].mxu0
        %v4563 = vadd.f32 %v2926, %v4562
        %v4564 = vpop.f32.mrb[0].mxu0
        %v4565 = vadd.f32 %v2930, %v4564
        %v4566 = vpop.f32.mrb[0].mxu0
        %v4567 = vadd.f32 %v2926, %v4566
        %v4568 = vpop.f32.mrb[0].mxu0
        %v4569 = vadd.f32 %v2930, %v4568
        %4570 = vmatprep.mubr.bf16.mxu0 0
        %4571 = vmatmul.mubr.bf16.gmra.mrb[0].mxu0 %v2823
        %v4572 = vpop.f32.mrb[0].mxu0
        %v4573 = vadd.f32 %v2926, %v4572
        %v4574 = vpop.f32.mrb[0].mxu0
        %v4575 = vadd.f32 %v2930, %v4574
        %v4576 = vpop.f32.mrb[0].mxu0
        %v4577 = vadd.f32 %v2926, %v4576
        %v4578 = vpop.f32.mrb[0].mxu0
        %v4579 = vadd.f32 %v2930, %v4578
        %4580 = vmatprep.mubr.bf16.mxu0 0
        %4581 = vmatmul.mubr.bf16.gmra.mrb[0].mxu0 %v2824
        %v4582 = vpop.f32.mrb[0].mxu0
        %v4583 = vadd.f32 %v2926, %v4582
        %v4584 = vpop.f32.mrb[0].mxu0
        %v4585 = vadd.f32 %v2930, %v4584
        %v4586 = vpop.f32.mrb[0].mxu0
        %v4587 = vadd.f32 %v2926, %v4586
        %v4588 = vpop.f32.mrb[0].mxu0
        %v4589 = vadd.f32 %v2930, %v4588
        %4590 = vmatprep.mubr.bf16.mxu0 0
        %4591 = vmatmul.mubr.bf16.gmra.mrb[0].mxu0 %v2825
        %v4592 = vpop.f32.mrb[0].mxu0
        %v4593 = vadd.f32 %v2926, %v4592
        %v4594 = vpop.f32.mrb[0].mxu0
        %v4595 = vadd.f32 %v2930, %v4594
        %v4596 = vpop.f32.mrb[0].mxu0
        %v4597 = vadd.f32 %v2926, %v4596
        %v4598 = vpop.f32.mrb[0].mxu0
        %v4599 = vadd.f32 %v2930, %v4598
        %4600 = vmatprep.mubr.bf16.mxu0 0
        %4601 = vmatmul.mubr.bf16.gmra.mrb[0].mxu0 %v2826
        %v4602 = vpop.f32.mrb[0].mxu0
        %v4603 = vadd.f32 %v2926, %v4602
        %v4604 = vpop.f32.mrb[0].mxu0
        %v4605 = vadd.f32 %v2930, %v4604
        %v4606 = vpop.f32.mrb[0].mxu0
        %v4607 = vadd.f32 %v2926, %v4606
        %v4608 = vpop.f32.mrb[0].mxu0
        %v4609 = vadd.f32 %v2930, %v4608
        %4610 = vmatprep.mubr.bf16.mxu0 0
        %4611 = vmatmul.mubr.bf16.gmra.mrb[0].mxu0 %v2827
        %v4612 = vpop.f32.mrb[0].mxu0
        %v4613 = vadd.f32 %v2926, %v4612
        %v4614 = vpop.f32.mrb[0].mxu0
        %v4615 = vadd.f32 %v2930, %v4614
        %v4616 = vpop.f32.mrb[0].mxu0
        %v4617 = vadd.f32 %v2926, %v4616
        %v4618 = vpop.f32.mrb[0].mxu0
        %v4619 = vadd.f32 %v2930, %v4618
        %4620 = vmatprep.mubr.bf16.mxu0 0
        %4621 = vmatmul.mubr.bf16.gmra.mrb[0].mxu0 %v2828
        %v4622 = vpop.f32.mrb[0].mxu0
        %v4623 = vadd.f32 %v2926, %v4622
        %v4624 = vpop.f32.mrb[0].mxu0
        %v4625 = vadd.f32 %v2930, %v4624
        %v4626 = vpop.f32.mrb[0].mxu0
        %v4627 = vadd.f32 %v2926, %v4626
        %v4628 = vpop.f32.mrb[0].mxu0
        %v4629 = vadd.f32 %v2930, %v4628
        %4630 = vmatprep.mubr.bf16.mxu0 0
        %4631 = vmatmul.mubr.bf16.gmra.mrb[0].mxu0 %v2829
        %v4632 = vpop.f32.mrb[0].mxu0
        %v4633 = vadd.f32 %v2926, %v4632
        %v4634 = vpop.f32.mrb[0].mxu0
        %v4635 = vadd.f32 %v2930, %v4634
        %v4636 = vpop.f32.mrb[0].mxu0
        %v4637 = vadd.f32 %v2926, %v4636
        %v4638 = vpop.f32.mrb[0].mxu0
        %v4639 = vadd.f32 %v2930, %v4638
        %4640 = vmatprep.mubr.bf16.mxu0 0
        %4641 = vmatmul.mubr.bf16.gmra.mrb[0].mxu0 %v2830
        %v4642 = vpop.f32.mrb[0].mxu0
        %v4643 = vadd.f32 %v2926, %v4642
        %v4644 = vpop.f32.mrb[0].mxu0
        %v4645 = vadd.f32 %v2930, %v4644
        %v4646 = vpop.f32.mrb[0].mxu0
        %v4647 = vadd.f32 %v2926, %v4646
        %v4648 = vpop.f32.mrb[0].mxu0
        %v4649 = vadd.f32 %v2930, %v4648
        %4650 = vmatprep.mubr.bf16.mxu0 0
        %4651 = vmatmul.mubr.bf16.gmra.mrb[0].mxu0 %v2831
        %v4652 = vpop.f32.mrb[0].mxu0
        %v4653 = vadd.f32 %v2926, %v4652
        %v4654 = vpop.f32.mrb[0].mxu0
        %v4655 = vadd.f32 %v2930, %v4654
        %v4656 = vpop.f32.mrb[0].mxu0
        %v4657 = vadd.f32 %v2926, %v4656
        %v4658 = vpop.f32.mrb[0].mxu0
        %v4659 = vadd.f32 %v2930, %v4658
        %4660 = vmatprep.mubr.bf16.mxu0 0
        %4661 = vmatmul.mubr.bf16.gmra.mrb[0].mxu0 %v2832
        %v4662 = vpop.f32.mrb[0].mxu0
        %v4663 = vadd.f32 %v2926, %v4662
        %v4664 = vpop.f32.mrb[0].mxu0
        %v4665 = vadd.f32 %v2930, %v4664
        %v4666 = vpop.f32.mrb[0].mxu0
        %v4667 = vadd.f32 %v2926, %v4666
        %v4668 = vpop.f32.mrb[0].mxu0
        %v4669 = vadd.f32 %v2930, %v4668
        %4670 = vdwg.mxu0
        %v4671 = vmax.f32 %v3294, 0.0
        %v4672 = vmax.f32 %v3296, 0.0
        %v4673 = vmax.f32 %v3647, 0.0
        %v4674 = vmax.f32 %v3649, 0.0
        %v4675 = vmax.f32 %v4000, 0.0
        %v4676 = vmax.f32 %v4002, 0.0
        %v4677 = vmax.f32 %v4353, 0.0
        %v4678 = vmax.f32 %v4355, 0.0
        %v4679 = vmax.f32 %v3298, 0.0
        %v4680 = vmax.f32 %v3300, 0.0
        %v4681 = vmax.f32 %v3651, 0.0
        %v4682 = vmax.f32 %v3653, 0.0
        %v4683 = vmax.f32 %v4004, 0.0
        %v4684 = vmax.f32 %v4006, 0.0
        %v4685 = vmax.f32 %v4357, 0.0
        %v4686 = vmax.f32 %v4359, 0.0
        %v4687 = vmax.f32 %v3304, 0.0
        %v4688 = vmax.f32 %v3306, 0.0
        %v4689 = vmax.f32 %v3657, 0.0
        %v4690 = vmax.f32 %v3659, 0.0
        %v4691 = vmax.f32 %v4010, 0.0
        %v4692 = vmax.f32 %v4012, 0.0
        %v4693 = vmax.f32 %v4363, 0.0
        %v4694 = vmax.f32 %v4365, 0.0
        %v4695 = vmax.f32 %v3308, 0.0
        %v4696 = vmax.f32 %v3310, 0.0
        %v4697 = vmax.f32 %v3661, 0.0
        %v4698 = vmax.f32 %v3663, 0.0
        %v4699 = vmax.f32 %v4014, 0.0
        %v4700 = vmax.f32 %v4016, 0.0
        %v4701 = vmax.f32 %v4367, 0.0
        %v4702 = vmax.f32 %v4369, 0.0
        %v4703 = vmax.f32 %v3314, 0.0
        %v4704 = vmax.f32 %v3316, 0.0
        %v4705 = vmax.f32 %v3667, 0.0
        %v4706 = vmax.f32 %v3669, 0.0
        %v4707 = vmax.f32 %v4020, 0.0
        %v4708 = vmax.f32 %v4022, 0.0
        %v4709 = vmax.f32 %v4373, 0.0
        %v4710 = vmax.f32 %v4375, 0.0
        %v4711 = vmax.f32 %v3318, 0.0
        %v4712 = vmax.f32 %v3320, 0.0
        %v4713 = vmax.f32 %v3671, 0.0
        %v4714 = vmax.f32 %v3673, 0.0
        %v4715 = vmax.f32 %v4024, 0.0
        %v4716 = vmax.f32 %v4026, 0.0
        %v4717 = vmax.f32 %v4377, 0.0
        %v4718 = vmax.f32 %v4379, 0.0
        %v4719 = vmax.f32 %v3324, 0.0
        %v4720 = vmax.f32 %v3326, 0.0
        %v4721 = vmax.f32 %v3677, 0.0
        %v4722 = vmax.f32 %v3679, 0.0
        %v4723 = vmax.f32 %v4030, 0.0
        %v4724 = vmax.f32 %v4032, 0.0
        %v4725 = vmax.f32 %v4383, 0.0
        %v4726 = vmax.f32 %v4385, 0.0
        %v4727 = vmax.f32 %v3328, 0.0
        %v4728 = vmax.f32 %v3330, 0.0
        %v4729 = vmax.f32 %v3681, 0.0
        %v4730 = vmax.f32 %v3683, 0.0
        %v4731 = vmax.f32 %v4034, 0.0
        %v4732 = vmax.f32 %v4036, 0.0
        %v4733 = vmax.f32 %v4387, 0.0
        %v4734 = vmax.f32 %v4389, 0.0
        %v4735 = vmax.f32 %v3334, 0.0
        %v4736 = vmax.f32 %v3336, 0.0
        %v4737 = vmax.f32 %v3687, 0.0
        %v4738 = vmax.f32 %v3689, 0.0
        %v4739 = vmax.f32 %v4040, 0.0
        %v4740 = vmax.f32 %v4042, 0.0
        %v4741 = vmax.f32 %v4393, 0.0
        %v4742 = vmax.f32 %v4395, 0.0
        %v4743 = vmax.f32 %v3338, 0.0
        %v4744 = vmax.f32 %v3340, 0.0
        %v4745 = vmax.f32 %v3691, 0.0
        %v4746 = vmax.f32 %v3693, 0.0
        %v4747 = vmax.f32 %v4044, 0.0
        %v4748 = vmax.f32 %v4046, 0.0
        %v4749 = vmax.f32 %v4397, 0.0
        %v4750 = vmax.f32 %v4399, 0.0
        %v4751 = vmax.f32 %v3344, 0.0
        %v4752 = vmax.f32 %v3346, 0.0
        %v4753 = vmax.f32 %v3697, 0.0
        %v4754 = vmax.f32 %v3699, 0.0
        %v4755 = vmax.f32 %v4050, 0.0
        %v4756 = vmax.f32 %v4052, 0.0
        %v4757 = vmax.f32 %v4403, 0.0
        %v4758 = vmax.f32 %v4405, 0.0
        %v4759 = vmax.f32 %v3348, 0.0
        %v4760 = vmax.f32 %v3350, 0.0
        %v4761 = vmax.f32 %v3701, 0.0
        %v4762 = vmax.f32 %v3703, 0.0
        %v4763 = vmax.f32 %v4054, 0.0
        %v4764 = vmax.f32 %v4056, 0.0
        %v4765 = vmax.f32 %v4407, 0.0
        %v4766 = vmax.f32 %v4409, 0.0
        %v4767 = vmax.f32 %v3354, 0.0
        %v4768 = vmax.f32 %v3356, 0.0
        %v4769 = vmax.f32 %v3707, 0.0
        %v4770 = vmax.f32 %v3709, 0.0
        %v4771 = vmax.f32 %v4060, 0.0
        %v4772 = vmax.f32 %v4062, 0.0
        %v4773 = vmax.f32 %v4413, 0.0
        %v4774 = vmax.f32 %v4415, 0.0
        %v4775 = vmax.f32 %v3358, 0.0
        %v4776 = vmax.f32 %v3360, 0.0
        %v4777 = vmax.f32 %v3711, 0.0
        %v4778 = vmax.f32 %v3713, 0.0
        %v4779 = vmax.f32 %v4064, 0.0
        %v4780 = vmax.f32 %v4066, 0.0
        %v4781 = vmax.f32 %v4417, 0.0
        %v4782 = vmax.f32 %v4419, 0.0
        %v4783 = vmax.f32 %v3364, 0.0
        %v4784 = vmax.f32 %v3366, 0.0
        %v4785 = vmax.f32 %v3717, 0.0
        %v4786 = vmax.f32 %v3719, 0.0
        %v4787 = vmax.f32 %v4070, 0.0
        %v4788 = vmax.f32 %v4072, 0.0
        %v4789 = vmax.f32 %v4423, 0.0
        %v4790 = vmax.f32 %v4425, 0.0
        %v4791 = vmax.f32 %v3368, 0.0
        %v4792 = vmax.f32 %v3370, 0.0
        %v4793 = vmax.f32 %v3721, 0.0
        %v4794 = vmax.f32 %v3723, 0.0
        %v4795 = vmax.f32 %v4074, 0.0
        %v4796 = vmax.f32 %v4076, 0.0
        %v4797 = vmax.f32 %v4427, 0.0
        %v4798 = vmax.f32 %v4429, 0.0
        %v4799 = vmax.f32 %v3374, 0.0
        %v4800 = vmax.f32 %v3376, 0.0
        %v4801 = vmax.f32 %v3727, 0.0
        %v4802 = vmax.f32 %v3729, 0.0
        %v4803 = vmax.f32 %v4080, 0.0
        %v4804 = vmax.f32 %v4082, 0.0
        %v4805 = vmax.f32 %v4433, 0.0
        %v4806 = vmax.f32 %v4435, 0.0
        %v4807 = vmax.f32 %v3378, 0.0
        %v4808 = vmax.f32 %v3380, 0.0
        %v4809 = vmax.f32 %v3731, 0.0
        %v4810 = vmax.f32 %v3733, 0.0
        %v4811 = vmax.f32 %v4084, 0.0
        %v4812 = vmax.f32 %v4086, 0.0
        %v4813 = vmax.f32 %v4437, 0.0
        %v4814 = vmax.f32 %v4439, 0.0
        %v4815 = vmax.f32 %v3384, 0.0
        %v4816 = vmax.f32 %v3386, 0.0
        %v4817 = vmax.f32 %v3737, 0.0
        %v4818 = vmax.f32 %v3739, 0.0
        %v4819 = vmax.f32 %v4090, 0.0
        %v4820 = vmax.f32 %v4092, 0.0
        %v4821 = vmax.f32 %v4443, 0.0
        %v4822 = vmax.f32 %v4445, 0.0
        %v4823 = vmax.f32 %v3388, 0.0
        %v4824 = vmax.f32 %v3390, 0.0
        %v4825 = vmax.f32 %v3741, 0.0
        %v4826 = vmax.f32 %v3743, 0.0
        %v4827 = vmax.f32 %v4094, 0.0
        %v4828 = vmax.f32 %v4096, 0.0
        %v4829 = vmax.f32 %v4447, 0.0
        %v4830 = vmax.f32 %v4449, 0.0
        %v4831 = vmax.f32 %v3394, 0.0
        %v4832 = vmax.f32 %v3396, 0.0
        %v4833 = vmax.f32 %v3747, 0.0
        %v4834 = vmax.f32 %v3749, 0.0
        %v4835 = vmax.f32 %v4100, 0.0
        %v4836 = vmax.f32 %v4102, 0.0
        %v4837 = vmax.f32 %v4453, 0.0
        %v4838 = vmax.f32 %v4455, 0.0
        %v4839 = vmax.f32 %v3398, 0.0
        %v4840 = vmax.f32 %v3400, 0.0
        %v4841 = vmax.f32 %v3751, 0.0
        %v4842 = vmax.f32 %v3753, 0.0
        %v4843 = vmax.f32 %v4104, 0.0
        %v4844 = vmax.f32 %v4106, 0.0
        %v4845 = vmax.f32 %v4457, 0.0
        %v4846 = vmax.f32 %v4459, 0.0
        %v4847 = vmax.f32 %v3404, 0.0
        %v4848 = vmax.f32 %v3406, 0.0
        %v4849 = vmax.f32 %v3757, 0.0
        %v4850 = vmax.f32 %v3759, 0.0
        %v4851 = vmax.f32 %v4110, 0.0
        %v4852 = vmax.f32 %v4112, 0.0
        %v4853 = vmax.f32 %v4463, 0.0
        %v4854 = vmax.f32 %v4465, 0.0
        %v4855 = vmax.f32 %v3408, 0.0
        %v4856 = vmax.f32 %v3410, 0.0
        %v4857 = vmax.f32 %v3761, 0.0
        %v4858 = vmax.f32 %v3763, 0.0
        %v4859 = vmax.f32 %v4114, 0.0
        %v4860 = vmax.f32 %v4116, 0.0
        %v4861 = vmax.f32 %v4467, 0.0
        %v4862 = vmax.f32 %v4469, 0.0
        %v4863 = vmax.f32 %v3414, 0.0
        %v4864 = vmax.f32 %v3416, 0.0
        %v4865 = vmax.f32 %v3767, 0.0
        %v4866 = vmax.f32 %v3769, 0.0
        %v4867 = vmax.f32 %v4120, 0.0
        %v4868 = vmax.f32 %v4122, 0.0
        %v4869 = vmax.f32 %v4473, 0.0
        %v4870 = vmax.f32 %v4475, 0.0
        %v4871 = vmax.f32 %v3418, 0.0
        %v4872 = vmax.f32 %v3420, 0.0
        %v4873 = vmax.f32 %v3771, 0.0
        %v4874 = vmax.f32 %v3773, 0.0
        %v4875 = vmax.f32 %v4124, 0.0
        %v4876 = vmax.f32 %v4126, 0.0
        %v4877 = vmax.f32 %v4477, 0.0
        %v4878 = vmax.f32 %v4479, 0.0
        %v4879 = vmax.f32 %v3424, 0.0
        %v4880 = vmax.f32 %v3426, 0.0
        %v4881 = vmax.f32 %v3777, 0.0
        %v4882 = vmax.f32 %v3779, 0.0
        %v4883 = vmax.f32 %v4130, 0.0
        %v4884 = vmax.f32 %v4132, 0.0
        %v4885 = vmax.f32 %v4483, 0.0
        %v4886 = vmax.f32 %v4485, 0.0
        %v4887 = vmax.f32 %v3428, 0.0
        %v4888 = vmax.f32 %v3430, 0.0
        %v4889 = vmax.f32 %v3781, 0.0
        %v4890 = vmax.f32 %v3783, 0.0
        %v4891 = vmax.f32 %v4134, 0.0
        %v4892 = vmax.f32 %v4136, 0.0
        %v4893 = vmax.f32 %v4487, 0.0
        %v4894 = vmax.f32 %v4489, 0.0
        %v4895 = vmax.f32 %v3434, 0.0
        %v4896 = vmax.f32 %v3436, 0.0
        %v4897 = vmax.f32 %v3787, 0.0
        %v4898 = vmax.f32 %v3789, 0.0
        %v4899 = vmax.f32 %v4140, 0.0
        %v4900 = vmax.f32 %v4142, 0.0
        %v4901 = vmax.f32 %v4493, 0.0
        %v4902 = vmax.f32 %v4495, 0.0
        %v4903 = vmax.f32 %v3438, 0.0
        %v4904 = vmax.f32 %v3440, 0.0
        %v4905 = vmax.f32 %v3791, 0.0
        %v4906 = vmax.f32 %v3793, 0.0
        %v4907 = vmax.f32 %v4144, 0.0
        %v4908 = vmax.f32 %v4146, 0.0
        %v4909 = vmax.f32 %v4497, 0.0
        %v4910 = vmax.f32 %v4499, 0.0
        %v4911 = vmax.f32 %v3444, 0.0
        %v4912 = vmax.f32 %v3446, 0.0
        %v4913 = vmax.f32 %v3797, 0.0
        %v4914 = vmax.f32 %v3799, 0.0
        %v4915 = vmax.f32 %v4150, 0.0
        %v4916 = vmax.f32 %v4152, 0.0
        %v4917 = vmax.f32 %v4503, 0.0
        %v4918 = vmax.f32 %v4505, 0.0
        %v4919 = vmax.f32 %v3448, 0.0
        %v4920 = vmax.f32 %v3450, 0.0
        %v4921 = vmax.f32 %v3801, 0.0
        %v4922 = vmax.f32 %v3803, 0.0
        %v4923 = vmax.f32 %v4154, 0.0
        %v4924 = vmax.f32 %v4156, 0.0
        %v4925 = vmax.f32 %v4507, 0.0
        %v4926 = vmax.f32 %v4509, 0.0
        %v4927 = vmax.f32 %v3454, 0.0
        %v4928 = vmax.f32 %v3456, 0.0
        %v4929 = vmax.f32 %v3807, 0.0
        %v4930 = vmax.f32 %v3809, 0.0
        %v4931 = vmax.f32 %v4160, 0.0
        %v4932 = vmax.f32 %v4162, 0.0
        %v4933 = vmax.f32 %v4513, 0.0
        %v4934 = vmax.f32 %v4515, 0.0
        %v4935 = vmax.f32 %v3458, 0.0
        %v4936 = vmax.f32 %v3460, 0.0
        %v4937 = vmax.f32 %v3811, 0.0
        %v4938 = vmax.f32 %v3813, 0.0
        %v4939 = vmax.f32 %v4164, 0.0
        %v4940 = vmax.f32 %v4166, 0.0
        %v4941 = vmax.f32 %v4517, 0.0
        %v4942 = vmax.f32 %v4519, 0.0
        %v4943 = vmax.f32 %v3464, 0.0
        %v4944 = vmax.f32 %v3466, 0.0
        %v4945 = vmax.f32 %v3817, 0.0
        %v4946 = vmax.f32 %v3819, 0.0
        %v4947 = vmax.f32 %v4170, 0.0
        %v4948 = vmax.f32 %v4172, 0.0
        %v4949 = vmax.f32 %v4523, 0.0
        %v4950 = vmax.f32 %v4525, 0.0
        %v4951 = vmax.f32 %v3468, 0.0
        %v4952 = vmax.f32 %v3470, 0.0
        %v4953 = vmax.f32 %v3821, 0.0
        %v4954 = vmax.f32 %v3823, 0.0
        %v4955 = vmax.f32 %v4174, 0.0
        %v4956 = vmax.f32 %v4176, 0.0
        %v4957 = vmax.f32 %v4527, 0.0
        %v4958 = vmax.f32 %v4529, 0.0
        %v4959 = vmax.f32 %v3474, 0.0
        %v4960 = vmax.f32 %v3476, 0.0
        %v4961 = vmax.f32 %v3827, 0.0
        %v4962 = vmax.f32 %v3829, 0.0
        %v4963 = vmax.f32 %v4180, 0.0
        %v4964 = vmax.f32 %v4182, 0.0
        %v4965 = vmax.f32 %v4533, 0.0
        %v4966 = vmax.f32 %v4535, 0.0
        %v4967 = vmax.f32 %v3478, 0.0
        %v4968 = vmax.f32 %v3480, 0.0
        %v4969 = vmax.f32 %v3831, 0.0
        %v4970 = vmax.f32 %v3833, 0.0
        %v4971 = vmax.f32 %v4184, 0.0
        %v4972 = vmax.f32 %v4186, 0.0
        %v4973 = vmax.f32 %v4537, 0.0
        %v4974 = vmax.f32 %v4539, 0.0
        %v4975 = vmax.f32 %v3484, 0.0
        %v4976 = vmax.f32 %v3486, 0.0
        %v4977 = vmax.f32 %v3837, 0.0
        %v4978 = vmax.f32 %v3839, 0.0
        %v4979 = vmax.f32 %v4190, 0.0
        %v4980 = vmax.f32 %v4192, 0.0
        %v4981 = vmax.f32 %v4543, 0.0
        %v4982 = vmax.f32 %v4545, 0.0
        %v4983 = vmax.f32 %v3488, 0.0
        %v4984 = vmax.f32 %v3490, 0.0
        %v4985 = vmax.f32 %v3841, 0.0
        %v4986 = vmax.f32 %v3843, 0.0
        %v4987 = vmax.f32 %v4194, 0.0
        %v4988 = vmax.f32 %v4196, 0.0
        %v4989 = vmax.f32 %v4547, 0.0
        %v4990 = vmax.f32 %v4549, 0.0
        %v4991 = vmax.f32 %v3494, 0.0
        %v4992 = vmax.f32 %v3496, 0.0
        %v4993 = vmax.f32 %v3847, 0.0
        %v4994 = vmax.f32 %v3849, 0.0
        %v4995 = vmax.f32 %v4200, 0.0
        %v4996 = vmax.f32 %v4202, 0.0
        %v4997 = vmax.f32 %v4553, 0.0
        %v4998 = vmax.f32 %v4555, 0.0
        %v4999 = vmax.f32 %v3498, 0.0
        %v5000 = vmax.f32 %v3500, 0.0
        %v5001 = vmax.f32 %v3851, 0.0
        %v5002 = vmax.f32 %v3853, 0.0
        %v5003 = vmax.f32 %v4204, 0.0
        %v5004 = vmax.f32 %v4206, 0.0
        %v5005 = vmax.f32 %v4557, 0.0
        %v5006 = vmax.f32 %v4559, 0.0
        %v5007 = vmax.f32 %v3504, 0.0
        %v5008 = vmax.f32 %v3506, 0.0
        %v5009 = vmax.f32 %v3857, 0.0
        %v5010 = vmax.f32 %v3859, 0.0
        %v5011 = vmax.f32 %v4210, 0.0
        %v5012 = vmax.f32 %v4212, 0.0
        %v5013 = vmax.f32 %v4563, 0.0
        %v5014 = vmax.f32 %v4565, 0.0
        %v5015 = vmax.f32 %v3508, 0.0
        %v5016 = vmax.f32 %v3510, 0.0
        %v5017 = vmax.f32 %v3861, 0.0
        %v5018 = vmax.f32 %v3863, 0.0
        %v5019 = vmax.f32 %v4214, 0.0
        %v5020 = vmax.f32 %v4216, 0.0
        %v5021 = vmax.f32 %v4567, 0.0
        %v5022 = vmax.f32 %v4569, 0.0
        %v5023 = vmax.f32 %v3514, 0.0
        %v5024 = vmax.f32 %v3516, 0.0
        %v5025 = vmax.f32 %v3867, 0.0
        %v5026 = vmax.f32 %v3869, 0.0
        %v5027 = vmax.f32 %v4220, 0.0
        %v5028 = vmax.f32 %v4222, 0.0
        %v5029 = vmax.f32 %v4573, 0.0
        %v5030 = vmax.f32 %v4575, 0.0
        %v5031 = vmax.f32 %v3518, 0.0
        %v5032 = vmax.f32 %v3520, 0.0
        %v5033 = vmax.f32 %v3871, 0.0
        %v5034 = vmax.f32 %v3873, 0.0
        %v5035 = vmax.f32 %v4224, 0.0
        %v5036 = vmax.f32 %v4226, 0.0
        %v5037 = vmax.f32 %v4577, 0.0
        %v5038 = vmax.f32 %v4579, 0.0
        %v5039 = vmax.f32 %v3524, 0.0
        %v5040 = vmax.f32 %v3526, 0.0
        %v5041 = vmax.f32 %v3877, 0.0
        %v5042 = vmax.f32 %v3879, 0.0
        %v5043 = vmax.f32 %v4230, 0.0
        %v5044 = vmax.f32 %v4232, 0.0
        %v5045 = vmax.f32 %v4583, 0.0
        %v5046 = vmax.f32 %v4585, 0.0
        %v5047 = vmax.f32 %v3528, 0.0
        %v5048 = vmax.f32 %v3530, 0.0
        %v5049 = vmax.f32 %v3881, 0.0
        %v5050 = vmax.f32 %v3883, 0.0
        %v5051 = vmax.f32 %v4234, 0.0
        %v5052 = vmax.f32 %v4236, 0.0
        %v5053 = vmax.f32 %v4587, 0.0
        %v5054 = vmax.f32 %v4589, 0.0
        %v5055 = vmax.f32 %v3534, 0.0
        %v5056 = vmax.f32 %v3536, 0.0
        %v5057 = vmax.f32 %v3887, 0.0
        %v5058 = vmax.f32 %v3889, 0.0
        %v5059 = vmax.f32 %v4240, 0.0
        %v5060 = vmax.f32 %v4242, 0.0
        %v5061 = vmax.f32 %v4593, 0.0
        %v5062 = vmax.f32 %v4595, 0.0
        %v5063 = vmax.f32 %v3538, 0.0
        %v5064 = vmax.f32 %v3540, 0.0
        %v5065 = vmax.f32 %v3891, 0.0
        %v5066 = vmax.f32 %v3893, 0.0
        %v5067 = vmax.f32 %v4244, 0.0
        %v5068 = vmax.f32 %v4246, 0.0
        %v5069 = vmax.f32 %v4597, 0.0
        %v5070 = vmax.f32 %v4599, 0.0
        %v5071 = vmax.f32 %v3544, 0.0
        %v5072 = vmax.f32 %v3546, 0.0
        %v5073 = vmax.f32 %v3897, 0.0
        %v5074 = vmax.f32 %v3899, 0.0
        %v5075 = vmax.f32 %v4250, 0.0
        %v5076 = vmax.f32 %v4252, 0.0
        %v5077 = vmax.f32 %v4603, 0.0
        %v5078 = vmax.f32 %v4605, 0.0
        %v5079 = vmax.f32 %v3548, 0.0
        %v5080 = vmax.f32 %v3550, 0.0
        %v5081 = vmax.f32 %v3901, 0.0
        %v5082 = vmax.f32 %v3903, 0.0
        %v5083 = vmax.f32 %v4254, 0.0
        %v5084 = vmax.f32 %v4256, 0.0
        %v5085 = vmax.f32 %v4607, 0.0
        %v5086 = vmax.f32 %v4609, 0.0
        %v5087 = vmax.f32 %v3554, 0.0
        %v5088 = vmax.f32 %v3556, 0.0
        %v5089 = vmax.f32 %v3907, 0.0
        %v5090 = vmax.f32 %v3909, 0.0
        %v5091 = vmax.f32 %v4260, 0.0
        %v5092 = vmax.f32 %v4262, 0.0
        %v5093 = vmax.f32 %v4613, 0.0
        %v5094 = vmax.f32 %v4615, 0.0
        %v5095 = vmax.f32 %v3558, 0.0
        %v5096 = vmax.f32 %v3560, 0.0
        %v5097 = vmax.f32 %v3911, 0.0
        %v5098 = vmax.f32 %v3913, 0.0
        %v5099 = vmax.f32 %v4264, 0.0
        %v5100 = vmax.f32 %v4266, 0.0
        %v5101 = vmax.f32 %v4617, 0.0
        %v5102 = vmax.f32 %v4619, 0.0
        %v5103 = vmax.f32 %v3564, 0.0
        %v5104 = vmax.f32 %v3566, 0.0
        %v5105 = vmax.f32 %v3917, 0.0
        %v5106 = vmax.f32 %v3919, 0.0
        %v5107 = vmax.f32 %v4270, 0.0
        %v5108 = vmax.f32 %v4272, 0.0
        %v5109 = vmax.f32 %v4623, 0.0
        %v5110 = vmax.f32 %v4625, 0.0
        %v5111 = vmax.f32 %v3568, 0.0
        %v5112 = vmax.f32 %v3570, 0.0
        %v5113 = vmax.f32 %v3921, 0.0
        %v5114 = vmax.f32 %v3923, 0.0
        %v5115 = vmax.f32 %v4274, 0.0
        %v5116 = vmax.f32 %v4276, 0.0
        %v5117 = vmax.f32 %v4627, 0.0
        %v5118 = vmax.f32 %v4629, 0.0
        %v5119 = vmax.f32 %v3574, 0.0
        %v5120 = vmax.f32 %v3576, 0.0
        %v5121 = vmax.f32 %v3927, 0.0
        %v5122 = vmax.f32 %v3929, 0.0
        %v5123 = vmax.f32 %v4280, 0.0
        %v5124 = vmax.f32 %v4282, 0.0
        %v5125 = vmax.f32 %v4633, 0.0
        %v5126 = vmax.f32 %v4635, 0.0
        %v5127 = vmax.f32 %v3578, 0.0
        %v5128 = vmax.f32 %v3580, 0.0
        %v5129 = vmax.f32 %v3931, 0.0
        %v5130 = vmax.f32 %v3933, 0.0
        %v5131 = vmax.f32 %v4284, 0.0
        %v5132 = vmax.f32 %v4286, 0.0
        %v5133 = vmax.f32 %v4637, 0.0
        %v5134 = vmax.f32 %v4639, 0.0
        %v5135 = vmax.f32 %v3584, 0.0
        %v5136 = vmax.f32 %v3586, 0.0
        %v5137 = vmax.f32 %v3937, 0.0
        %v5138 = vmax.f32 %v3939, 0.0
        %v5139 = vmax.f32 %v4290, 0.0
        %v5140 = vmax.f32 %v4292, 0.0
        %v5141 = vmax.f32 %v4643, 0.0
        %v5142 = vmax.f32 %v4645, 0.0
        %v5143 = vmax.f32 %v3588, 0.0
        %v5144 = vmax.f32 %v3590, 0.0
        %v5145 = vmax.f32 %v3941, 0.0
        %v5146 = vmax.f32 %v3943, 0.0
        %v5147 = vmax.f32 %v4294, 0.0
        %v5148 = vmax.f32 %v4296, 0.0
        %v5149 = vmax.f32 %v4647, 0.0
        %v5150 = vmax.f32 %v4649, 0.0
        %v5151 = vmax.f32 %v3594, 0.0
        %v5152 = vmax.f32 %v3596, 0.0
        %v5153 = vmax.f32 %v3947, 0.0
        %v5154 = vmax.f32 %v3949, 0.0
        %v5155 = vmax.f32 %v4300, 0.0
        %v5156 = vmax.f32 %v4302, 0.0
        %v5157 = vmax.f32 %v4653, 0.0
        %v5158 = vmax.f32 %v4655, 0.0
        %v5159 = vmax.f32 %v3598, 0.0
        %v5160 = vmax.f32 %v3600, 0.0
        %v5161 = vmax.f32 %v3951, 0.0
        %v5162 = vmax.f32 %v3953, 0.0
        %v5163 = vmax.f32 %v4304, 0.0
        %v5164 = vmax.f32 %v4306, 0.0
        %v5165 = vmax.f32 %v4657, 0.0
        %v5166 = vmax.f32 %v4659, 0.0
        %v5167 = vmax.f32 %v3604, 0.0
        %v5168 = vmax.f32 %v3606, 0.0
        %v5169 = vmax.f32 %v3957, 0.0
        %v5170 = vmax.f32 %v3959, 0.0
        %v5171 = vmax.f32 %v4310, 0.0
        %v5172 = vmax.f32 %v4312, 0.0
        %v5173 = vmax.f32 %v4663, 0.0
        %v5174 = vmax.f32 %v4665, 0.0
        %v5175 = vmax.f32 %v3608, 0.0
        %v5176 = vmax.f32 %v3610, 0.0
        %v5177 = vmax.f32 %v3961, 0.0
        %v5178 = vmax.f32 %v3963, 0.0
        %v5179 = vmax.f32 %v4314, 0.0
        %v5180 = vmax.f32 %v4316, 0.0
        %v5181 = vmax.f32 %v4667, 0.0
        %v5182 = vmax.f32 %v4669, 0.0
        %v5183 = vmax.f32 %v4671, %v4679
        %v5184 = vmax.f32 %v5183, %v4687
        %v5185 = vmax.f32 %v5184, %v4695
        %v5186 = vmax.f32 %v5185, %v4703
        %v5187 = vmax.f32 %v5186, %v4711
        %v5188 = vmax.f32 %v5187, %v4719
        %v5189 = vmax.f32 %v5188, %v4727
        %v5190 = vmax.f32 %v5189, %v4735
        %v5191 = vmax.f32 %v5190, %v4743
        %v5192 = vmax.f32 %v5191, %v4751
        %v5193 = vmax.f32 %v5192, %v4759
        %v5194 = vmax.f32 %v5193, %v4767
        %v5195 = vmax.f32 %v5194, %v4775
        %v5196 = vmax.f32 %v5195, %v4783
        %v5197 = vmax.f32 %v5196, %v4791
        %v5198 = vmax.f32 %v5197, %v4799
        %v5199 = vmax.f32 %v5198, %v4807
        %v5200 = vmax.f32 %v5199, %v4815
        %v5201 = vmax.f32 %v5200, %v4823
        %v5202 = vmax.f32 %v5201, %v4831
        %v5203 = vmax.f32 %v5202, %v4839
        %v5204 = vmax.f32 %v5203, %v4847
        %v5205 = vmax.f32 %v5204, %v4855
        %v5206 = vmax.f32 %v5205, %v4863
        %v5207 = vmax.f32 %v5206, %v4871
        %v5208 = vmax.f32 %v5207, %v4879
        %v5209 = vmax.f32 %v5208, %v4887
        %v5210 = vmax.f32 %v5209, %v4895
        %v5211 = vmax.f32 %v5210, %v4903
        %v5212 = vmax.f32 %v5211, %v4911
        %v5213 = vmax.f32 %v5212, %v4919
        %v5214 = vmax.f32 %v5213, %v4927
        %v5215 = vmax.f32 %v5214, %v4935
        %v5216 = vmax.f32 %v5215, %v4943
        %v5217 = vmax.f32 %v5216, %v4951
        %v5218 = vmax.f32 %v5217, %v4959
        %v5219 = vmax.f32 %v5218, %v4967
        %v5220 = vmax.f32 %v5219, %v4975
        %v5221 = vmax.f32 %v5220, %v4983
        %v5222 = vmax.f32 %v5221, %v4991
        %v5223 = vmax.f32 %v5222, %v4999
        %v5224 = vmax.f32 %v5223, %v5007
        %v5225 = vmax.f32 %v5224, %v5015
        %v5226 = vmax.f32 %v5225, %v5023
        %v5227 = vmax.f32 %v5226, %v5031
        %v5228 = vmax.f32 %v5227, %v5039
        %v5229 = vmax.f32 %v5228, %v5047
        %v5230 = vmax.f32 %v5229, %v5055
        %v5231 = vmax.f32 %v5230, %v5063
        %v5232 = vmax.f32 %v5231, %v5071
        %v5233 = vmax.f32 %v5232, %v5079
        %v5234 = vmax.f32 %v5233, %v5087
        %v5235 = vmax.f32 %v5234, %v5095
        %v5236 = vmax.f32 %v5235, %v5103
        %v5237 = vmax.f32 %v5236, %v5111
        %v5238 = vmax.f32 %v5237, %v5119
        %v5239 = vmax.f32 %v5238, %v5127
        %v5240 = vmax.f32 %v5239, %v5135
        %v5241 = vmax.f32 %v5240, %v5143
        %v5242 = vmax.f32 %v5241, %v5151
        %v5243 = vmax.f32 %v5242, %v5159
        %v5244 = vmax.f32 %v5243, %v5167
        %v5245 = vmax.f32 %v5244, %v5175
        %v5246 = vmax.f32 %v4672, %v4680
        %v5247 = vmax.f32 %v5246, %v4688
        %v5248 = vmax.f32 %v5247, %v4696
        %v5249 = vmax.f32 %v5248, %v4704
        %v5250 = vmax.f32 %v5249, %v4712
        %v5251 = vmax.f32 %v5250, %v4720
        %v5252 = vmax.f32 %v5251, %v4728
        %v5253 = vmax.f32 %v5252, %v4736
        %v5254 = vmax.f32 %v5253, %v4744
        %v5255 = vmax.f32 %v5254, %v4752
        %v5256 = vmax.f32 %v5255, %v4760
        %v5257 = vmax.f32 %v5256, %v4768
        %v5258 = vmax.f32 %v5257, %v4776
        %v5259 = vmax.f32 %v5258, %v4784
        %v5260 = vmax.f32 %v5259, %v4792
        %v5261 = vmax.f32 %v5260, %v4800
        %v5262 = vmax.f32 %v5261, %v4808
        %v5263 = vmax.f32 %v5262, %v4816
        %v5264 = vmax.f32 %v5263, %v4824
        %v5265 = vmax.f32 %v5264, %v4832
        %v5266 = vmax.f32 %v5265, %v4840
        %v5267 = vmax.f32 %v5266, %v4848
        %v5268 = vmax.f32 %v5267, %v4856
        %v5269 = vmax.f32 %v5268, %v4864
        %v5270 = vmax.f32 %v5269, %v4872
        %v5271 = vmax.f32 %v5270, %v4880
        %v5272 = vmax.f32 %v5271, %v4888
        %v5273 = vmax.f32 %v5272, %v4896
        %v5274 = vmax.f32 %v5273, %v4904
        %v5275 = vmax.f32 %v5274, %v4912
        %v5276 = vmax.f32 %v5275, %v4920
        %v5277 = vmax.f32 %v5276, %v4928
        %v5278 = vmax.f32 %v5277, %v4936
        %v5279 = vmax.f32 %v5278, %v4944
        %v5280 = vmax.f32 %v5279, %v4952
        %v5281 = vmax.f32 %v5280, %v4960
        %v5282 = vmax.f32 %v5281, %v4968
        %v5283 = vmax.f32 %v5282, %v4976
        %v5284 = vmax.f32 %v5283, %v4984
        %v5285 = vmax.f32 %v5284, %v4992
        %v5286 = vmax.f32 %v5285, %v5000
        %v5287 = vmax.f32 %v5286, %v5008
        %v5288 = vmax.f32 %v5287, %v5016
        %v5289 = vmax.f32 %v5288, %v5024
        %v5290 = vmax.f32 %v5289, %v5032
        %v5291 = vmax.f32 %v5290, %v5040
        %v5292 = vmax.f32 %v5291, %v5048
        %v5293 = vmax.f32 %v5292, %v5056
        %v5294 = vmax.f32 %v5293, %v5064
        %v5295 = vmax.f32 %v5294, %v5072
        %v5296 = vmax.f32 %v5295, %v5080
        %v5297 = vmax.f32 %v5296, %v5088
        %v5298 = vmax.f32 %v5297, %v5096
        %v5299 = vmax.f32 %v5298, %v5104
        %v5300 = vmax.f32 %v5299, %v5112
        %v5301 = vmax.f32 %v5300, %v5120
        %v5302 = vmax.f32 %v5301, %v5128
        %v5303 = vmax.f32 %v5302, %v5136
        %v5304 = vmax.f32 %v5303, %v5144
        %v5305 = vmax.f32 %v5304, %v5152
        %v5306 = vmax.f32 %v5305, %v5160
        %v5307 = vmax.f32 %v5306, %v5168
        %v5308 = vmax.f32 %v5307, %v5176
        %v5309 = vmax.f32 %v4673, %v4681
        %v5310 = vmax.f32 %v5309, %v4689
        %v5311 = vmax.f32 %v5310, %v4697
        %v5312 = vmax.f32 %v5311, %v4705
        %v5313 = vmax.f32 %v5312, %v4713
        %v5314 = vmax.f32 %v5313, %v4721
        %v5315 = vmax.f32 %v5314, %v4729
        %v5316 = vmax.f32 %v5315, %v4737
        %v5317 = vmax.f32 %v5316, %v4745
        %v5318 = vmax.f32 %v5317, %v4753
        %v5319 = vmax.f32 %v5318, %v4761
        %v5320 = vmax.f32 %v5319, %v4769
        %v5321 = vmax.f32 %v5320, %v4777
        %v5322 = vmax.f32 %v5321, %v4785
        %v5323 = vmax.f32 %v5322, %v4793
        %v5324 = vmax.f32 %v5323, %v4801
        %v5325 = vmax.f32 %v5324, %v4809
        %v5326 = vmax.f32 %v5325, %v4817
        %v5327 = vmax.f32 %v5326, %v4825
        %v5328 = vmax.f32 %v5327, %v4833
        %v5329 = vmax.f32 %v5328, %v4841
        %v5330 = vmax.f32 %v5329, %v4849
        %v5331 = vmax.f32 %v5330, %v4857
        %v5332 = vmax.f32 %v5331, %v4865
        %v5333 = vmax.f32 %v5332, %v4873
        %v5334 = vmax.f32 %v5333, %v4881
        %v5335 = vmax.f32 %v5334, %v4889
        %v5336 = vmax.f32 %v5335, %v4897
        %v5337 = vmax.f32 %v5336, %v4905
        %v5338 = vmax.f32 %v5337, %v4913
        %v5339 = vmax.f32 %v5338, %v4921
        %v5340 = vmax.f32 %v5339, %v4929
        %v5341 = vmax.f32 %v5340, %v4937
        %v5342 = vmax.f32 %v5341, %v4945
        %v5343 = vmax.f32 %v5342, %v4953
        %v5344 = vmax.f32 %v5343, %v4961
        %v5345 = vmax.f32 %v5344, %v4969
        %v5346 = vmax.f32 %v5345, %v4977
        %v5347 = vmax.f32 %v5346, %v4985
        %v5348 = vmax.f32 %v5347, %v4993
        %v5349 = vmax.f32 %v5348, %v5001
        %v5350 = vmax.f32 %v5349, %v5009
        %v5351 = vmax.f32 %v5350, %v5017
        %v5352 = vmax.f32 %v5351, %v5025
        %v5353 = vmax.f32 %v5352, %v5033
        %v5354 = vmax.f32 %v5353, %v5041
        %v5355 = vmax.f32 %v5354, %v5049
        %v5356 = vmax.f32 %v5355, %v5057
        %v5357 = vmax.f32 %v5356, %v5065
        %v5358 = vmax.f32 %v5357, %v5073
        %v5359 = vmax.f32 %v5358, %v5081
        %v5360 = vmax.f32 %v5359, %v5089
        %v5361 = vmax.f32 %v5360, %v5097
        %v5362 = vmax.f32 %v5361, %v5105
        %v5363 = vmax.f32 %v5362, %v5113
        %v5364 = vmax.f32 %v5363, %v5121
        %v5365 = vmax.f32 %v5364, %v5129
        %v5366 = vmax.f32 %v5365, %v5137
        %v5367 = vmax.f32 %v5366, %v5145
        %v5368 = vmax.f32 %v5367, %v5153
        %v5369 = vmax.f32 %v5368, %v5161
        %v5370 = vmax.f32 %v5369, %v5169
        %v5371 = vmax.f32 %v5370, %v5177
        %v5372 = vmax.f32 %v4674, %v4682
        %v5373 = vmax.f32 %v5372, %v4690
        %v5374 = vmax.f32 %v5373, %v4698
        %v5375 = vmax.f32 %v5374, %v4706
        %v5376 = vmax.f32 %v5375, %v4714
        %v5377 = vmax.f32 %v5376, %v4722
        %v5378 = vmax.f32 %v5377, %v4730
        %v5379 = vmax.f32 %v5378, %v4738
        %v5380 = vmax.f32 %v5379, %v4746
        %v5381 = vmax.f32 %v5380, %v4754
        %v5382 = vmax.f32 %v5381, %v4762
        %v5383 = vmax.f32 %v5382, %v4770
        %v5384 = vmax.f32 %v5383, %v4778
        %v5385 = vmax.f32 %v5384, %v4786
        %v5386 = vmax.f32 %v5385, %v4794
        %v5387 = vmax.f32 %v5386, %v4802
        %v5388 = vmax.f32 %v5387, %v4810
        %v5389 = vmax.f32 %v5388, %v4818
        %v5390 = vmax.f32 %v5389, %v4826
        %v5391 = vmax.f32 %v5390, %v4834
        %v5392 = vmax.f32 %v5391, %v4842
        %v5393 = vmax.f32 %v5392, %v4850
        %v5394 = vmax.f32 %v5393, %v4858
        %v5395 = vmax.f32 %v5394, %v4866
        %v5396 = vmax.f32 %v5395, %v4874
        %v5397 = vmax.f32 %v5396, %v4882
        %v5398 = vmax.f32 %v5397, %v4890
        %v5399 = vmax.f32 %v5398, %v4898
        %v5400 = vmax.f32 %v5399, %v4906
        %v5401 = vmax.f32 %v5400, %v4914
        %v5402 = vmax.f32 %v5401, %v4922
        %v5403 = vmax.f32 %v5402, %v4930
        %v5404 = vmax.f32 %v5403, %v4938
        %v5405 = vmax.f32 %v5404, %v4946
        %v5406 = vmax.f32 %v5405, %v4954
        %v5407 = vmax.f32 %v5406, %v4962
        %v5408 = vmax.f32 %v5407, %v4970
        %v5409 = vmax.f32 %v5408, %v4978
        %v5410 = vmax.f32 %v5409, %v4986
        %v5411 = vmax.f32 %v5410, %v4994
        %v5412 = vmax.f32 %v5411, %v5002
        %v5413 = vmax.f32 %v5412, %v5010
        %v5414 = vmax.f32 %v5413, %v5018
        %v5415 = vmax.f32 %v5414, %v5026
        %v5416 = vmax.f32 %v5415, %v5034
        %v5417 = vmax.f32 %v5416, %v5042
        %v5418 = vmax.f32 %v5417, %v5050
        %v5419 = vmax.f32 %v5418, %v5058
        %v5420 = vmax.f32 %v5419, %v5066
        %v5421 = vmax.f32 %v5420, %v5074
        %v5422 = vmax.f32 %v5421, %v5082
        %v5423 = vmax.f32 %v5422, %v5090
        %v5424 = vmax.f32 %v5423, %v5098
        %v5425 = vmax.f32 %v5424, %v5106
        %v5426 = vmax.f32 %v5425, %v5114
        %v5427 = vmax.f32 %v5426, %v5122
        %v5428 = vmax.f32 %v5427, %v5130
        %v5429 = vmax.f32 %v5428, %v5138
        %v5430 = vmax.f32 %v5429, %v5146
        %v5431 = vmax.f32 %v5430, %v5154
        %v5432 = vmax.f32 %v5431, %v5162
        %v5433 = vmax.f32 %v5432, %v5170
        %v5434 = vmax.f32 %v5433, %v5178
        %v5435 = vmax.f32 %v4675, %v4683
        %v5436 = vmax.f32 %v5435, %v4691
        %v5437 = vmax.f32 %v5436, %v4699
        %v5438 = vmax.f32 %v5437, %v4707
        %v5439 = vmax.f32 %v5438, %v4715
        %v5440 = vmax.f32 %v5439, %v4723
        %v5441 = vmax.f32 %v5440, %v4731
        %v5442 = vmax.f32 %v5441, %v4739
        %v5443 = vmax.f32 %v5442, %v4747
        %v5444 = vmax.f32 %v5443, %v4755
        %v5445 = vmax.f32 %v5444, %v4763
        %v5446 = vmax.f32 %v5445, %v4771
        %v5447 = vmax.f32 %v5446, %v4779
        %v5448 = vmax.f32 %v5447, %v4787
        %v5449 = vmax.f32 %v5448, %v4795
        %v5450 = vmax.f32 %v5449, %v4803
        %v5451 = vmax.f32 %v5450, %v4811
        %v5452 = vmax.f32 %v5451, %v4819
        %v5453 = vmax.f32 %v5452, %v4827
        %v5454 = vmax.f32 %v5453, %v4835
        %v5455 = vmax.f32 %v5454, %v4843
        %v5456 = vmax.f32 %v5455, %v4851
        %v5457 = vmax.f32 %v5456, %v4859
        %v5458 = vmax.f32 %v5457, %v4867
        %v5459 = vmax.f32 %v5458, %v4875
        %v5460 = vmax.f32 %v5459, %v4883
        %v5461 = vmax.f32 %v5460, %v4891
        %v5462 = vmax.f32 %v5461, %v4899
        %v5463 = vmax.f32 %v5462, %v4907
        %v5464 = vmax.f32 %v5463, %v4915
        %v5465 = vmax.f32 %v5464, %v4923
        %v5466 = vmax.f32 %v5465, %v4931
        %v5467 = vmax.f32 %v5466, %v4939
        %v5468 = vmax.f32 %v5467, %v4947
        %v5469 = vmax.f32 %v5468, %v4955
        %v5470 = vmax.f32 %v5469, %v4963
        %v5471 = vmax.f32 %v5470, %v4971
        %v5472 = vmax.f32 %v5471, %v4979
        %v5473 = vmax.f32 %v5472, %v4987
        %v5474 = vmax.f32 %v5473, %v4995
        %v5475 = vmax.f32 %v5474, %v5003
        %v5476 = vmax.f32 %v5475, %v5011
        %v5477 = vmax.f32 %v5476, %v5019
        %v5478 = vmax.f32 %v5477, %v5027
        %v5479 = vmax.f32 %v5478, %v5035
        %v5480 = vmax.f32 %v5479, %v5043
        %v5481 = vmax.f32 %v5480, %v5051
        %v5482 = vmax.f32 %v5481, %v5059
        %v5483 = vmax.f32 %v5482, %v5067
        %v5484 = vmax.f32 %v5483, %v5075
        %v5485 = vmax.f32 %v5484, %v5083
        %v5486 = vmax.f32 %v5485, %v5091
        %v5487 = vmax.f32 %v5486, %v5099
        %v5488 = vmax.f32 %v5487, %v5107
        %v5489 = vmax.f32 %v5488, %v5115
        %v5490 = vmax.f32 %v5489, %v5123
        %v5491 = vmax.f32 %v5490, %v5131
        %v5492 = vmax.f32 %v5491, %v5139
        %v5493 = vmax.f32 %v5492, %v5147
        %v5494 = vmax.f32 %v5493, %v5155
        %v5495 = vmax.f32 %v5494, %v5163
        %v5496 = vmax.f32 %v5495, %v5171
        %v5497 = vmax.f32 %v5496, %v5179
        %v5498 = vmax.f32 %v4676, %v4684
        %v5499 = vmax.f32 %v5498, %v4692
        %v5500 = vmax.f32 %v5499, %v4700
        %v5501 = vmax.f32 %v5500, %v4708
        %v5502 = vmax.f32 %v5501, %v4716
        %v5503 = vmax.f32 %v5502, %v4724
        %v5504 = vmax.f32 %v5503, %v4732
        %v5505 = vmax.f32 %v5504, %v4740
        %v5506 = vmax.f32 %v5505, %v4748
        %v5507 = vmax.f32 %v5506, %v4756
        %v5508 = vmax.f32 %v5507, %v4764
        %v5509 = vmax.f32 %v5508, %v4772
        %v5510 = vmax.f32 %v5509, %v4780
        %v5511 = vmax.f32 %v5510, %v4788
        %v5512 = vmax.f32 %v5511, %v4796
        %v5513 = vmax.f32 %v5512, %v4804
        %v5514 = vmax.f32 %v5513, %v4812
        %v5515 = vmax.f32 %v5514, %v4820
        %v5516 = vmax.f32 %v5515, %v4828
        %v5517 = vmax.f32 %v5516, %v4836
        %v5518 = vmax.f32 %v5517, %v4844
        %v5519 = vmax.f32 %v5518, %v4852
        %v5520 = vmax.f32 %v5519, %v4860
        %v5521 = vmax.f32 %v5520, %v4868
        %v5522 = vmax.f32 %v5521, %v4876
        %v5523 = vmax.f32 %v5522, %v4884
        %v5524 = vmax.f32 %v5523, %v4892
        %v5525 = vmax.f32 %v5524, %v4900
        %v5526 = vmax.f32 %v5525, %v4908
        %v5527 = vmax.f32 %v5526, %v4916
        %v5528 = vmax.f32 %v5527, %v4924
        %v5529 = vmax.f32 %v5528, %v4932
        %v5530 = vmax.f32 %v5529, %v4940
        %v5531 = vmax.f32 %v5530, %v4948
        %v5532 = vmax.f32 %v5531, %v4956
        %v5533 = vmax.f32 %v5532, %v4964
        %v5534 = vmax.f32 %v5533, %v4972
        %v5535 = vmax.f32 %v5534, %v4980
        %v5536 = vmax.f32 %v5535, %v4988
        %v5537 = vmax.f32 %v5536, %v4996
        %v5538 = vmax.f32 %v5537, %v5004
        %v5539 = vmax.f32 %v5538, %v5012
        %v5540 = vmax.f32 %v5539, %v5020
        %v5541 = vmax.f32 %v5540, %v5028
        %v5542 = vmax.f32 %v5541, %v5036
        %v5543 = vmax.f32 %v5542, %v5044
        %v5544 = vmax.f32 %v5543, %v5052
        %v5545 = vmax.f32 %v5544, %v5060
        %v5546 = vmax.f32 %v5545, %v5068
        %v5547 = vmax.f32 %v5546, %v5076
        %v5548 = vmax.f32 %v5547, %v5084
        %v5549 = vmax.f32 %v5548, %v5092
        %v5550 = vmax.f32 %v5549, %v5100
        %v5551 = vmax.f32 %v5550, %v5108
        %v5552 = vmax.f32 %v5551, %v5116
        %v5553 = vmax.f32 %v5552, %v5124
        %v5554 = vmax.f32 %v5553, %v5132
        %v5555 = vmax.f32 %v5554, %v5140
        %v5556 = vmax.f32 %v5555, %v5148
        %v5557 = vmax.f32 %v5556, %v5156
        %v5558 = vmax.f32 %v5557, %v5164
        %v5559 = vmax.f32 %v5558, %v5172
        %v5560 = vmax.f32 %v5559, %v5180
        %v5561 = vmax.f32 %v4677, %v4685
        %v5562 = vmax.f32 %v5561, %v4693
        %v5563 = vmax.f32 %v5562, %v4701
        %v5564 = vmax.f32 %v5563, %v4709
        %v5565 = vmax.f32 %v5564, %v4717
        %v5566 = vmax.f32 %v5565, %v4725
        %v5567 = vmax.f32 %v5566, %v4733
        %v5568 = vmax.f32 %v5567, %v4741
        %v5569 = vmax.f32 %v5568, %v4749
        %v5570 = vmax.f32 %v5569, %v4757
        %v5571 = vmax.f32 %v5570, %v4765
        %v5572 = vmax.f32 %v5571, %v4773
        %v5573 = vmax.f32 %v5572, %v4781
        %v5574 = vmax.f32 %v5573, %v4789
        %v5575 = vmax.f32 %v5574, %v4797
        %v5576 = vmax.f32 %v5575, %v4805
        %v5577 = vmax.f32 %v5576, %v4813
        %v5578 = vmax.f32 %v5577, %v4821
        %v5579 = vmax.f32 %v5578, %v4829
        %v5580 = vmax.f32 %v5579, %v4837
        %v5581 = vmax.f32 %v5580, %v4845
        %v5582 = vmax.f32 %v5581, %v4853
        %v5583 = vmax.f32 %v5582, %v4861
        %v5584 = vmax.f32 %v5583, %v4869
        %v5585 = vmax.f32 %v5584, %v4877
        %v5586 = vmax.f32 %v5585, %v4885
        %v5587 = vmax.f32 %v5586, %v4893
        %v5588 = vmax.f32 %v5587, %v4901
        %v5589 = vmax.f32 %v5588, %v4909
        %v5590 = vmax.f32 %v5589, %v4917
        %v5591 = vmax.f32 %v5590, %v4925
        %v5592 = vmax.f32 %v5591, %v4933
        %v5593 = vmax.f32 %v5592, %v4941
        %v5594 = vmax.f32 %v5593, %v4949
        %v5595 = vmax.f32 %v5594, %v4957
        %v5596 = vmax.f32 %v5595, %v4965
        %v5597 = vmax.f32 %v5596, %v4973
        %v5598 = vmax.f32 %v5597, %v4981
        %v5599 = vmax.f32 %v5598, %v4989
        %v5600 = vmax.f32 %v5599, %v4997
        %v5601 = vmax.f32 %v5600, %v5005
        %v5602 = vmax.f32 %v5601, %v5013
        %v5603 = vmax.f32 %v5602, %v5021
        %v5604 = vmax.f32 %v5603, %v5029
        %v5605 = vmax.f32 %v5604, %v5037
        %v5606 = vmax.f32 %v5605, %v5045
        %v5607 = vmax.f32 %v5606, %v5053
        %v5608 = vmax.f32 %v5607, %v5061
        %v5609 = vmax.f32 %v5608, %v5069
        %v5610 = vmax.f32 %v5609, %v5077
        %v5611 = vmax.f32 %v5610, %v5085
        %v5612 = vmax.f32 %v5611, %v5093
        %v5613 = vmax.f32 %v5612, %v5101
        %v5614 = vmax.f32 %v5613, %v5109
        %v5615 = vmax.f32 %v5614, %v5117
        %v5616 = vmax.f32 %v5615, %v5125
        %v5617 = vmax.f32 %v5616, %v5133
        %v5618 = vmax.f32 %v5617, %v5141
        %v5619 = vmax.f32 %v5618, %v5149
        %v5620 = vmax.f32 %v5619, %v5157
        %v5621 = vmax.f32 %v5620, %v5165
        %v5622 = vmax.f32 %v5621, %v5173
        %v5623 = vmax.f32 %v5622, %v5181
        %v5624 = vmax.f32 %v4678, %v4686
        %v5625 = vmax.f32 %v5624, %v4694
        %v5626 = vmax.f32 %v5625, %v4702
        %v5627 = vmax.f32 %v5626, %v4710
        %v5628 = vmax.f32 %v5627, %v4718
        %v5629 = vmax.f32 %v5628, %v4726
        %v5630 = vmax.f32 %v5629, %v4734
        %v5631 = vmax.f32 %v5630, %v4742
        %v5632 = vmax.f32 %v5631, %v4750
        %v5633 = vmax.f32 %v5632, %v4758
        %v5634 = vmax.f32 %v5633, %v4766
        %v5635 = vmax.f32 %v5634, %v4774
        %v5636 = vmax.f32 %v5635, %v4782
        %v5637 = vmax.f32 %v5636, %v4790
        %v5638 = vmax.f32 %v5637, %v4798
        %v5639 = vmax.f32 %v5638, %v4806
        %v5640 = vmax.f32 %v5639, %v4814
        %v5641 = vmax.f32 %v5640, %v4822
        %v5642 = vmax.f32 %v5641, %v4830
        %v5643 = vmax.f32 %v5642, %v4838
        %v5644 = vmax.f32 %v5643, %v4846
        %v5645 = vmax.f32 %v5644, %v4854
        %v5646 = vmax.f32 %v5645, %v4862
        %v5647 = vmax.f32 %v5646, %v4870
        %v5648 = vmax.f32 %v5647, %v4878
        %v5649 = vmax.f32 %v5648, %v4886
        %v5650 = vmax.f32 %v5649, %v4894
        %v5651 = vmax.f32 %v5650, %v4902
        %v5652 = vmax.f32 %v5651, %v4910
        %v5653 = vmax.f32 %v5652, %v4918
        %v5654 = vmax.f32 %v5653, %v4926
        %v5655 = vmax.f32 %v5654, %v4934
        %v5656 = vmax.f32 %v5655, %v4942
        %v5657 = vmax.f32 %v5656, %v4950
        %v5658 = vmax.f32 %v5657, %v4958
        %v5659 = vmax.f32 %v5658, %v4966
        %v5660 = vmax.f32 %v5659, %v4974
        %v5661 = vmax.f32 %v5660, %v4982
        %v5662 = vmax.f32 %v5661, %v4990
        %v5663 = vmax.f32 %v5662, %v4998
        %v5664 = vmax.f32 %v5663, %v5006
        %v5665 = vmax.f32 %v5664, %v5014
        %v5666 = vmax.f32 %v5665, %v5022
        %v5667 = vmax.f32 %v5666, %v5030
        %v5668 = vmax.f32 %v5667, %v5038
        %v5669 = vmax.f32 %v5668, %v5046
        %v5670 = vmax.f32 %v5669, %v5054
        %v5671 = vmax.f32 %v5670, %v5062
        %v5672 = vmax.f32 %v5671, %v5070
        %v5673 = vmax.f32 %v5672, %v5078
        %v5674 = vmax.f32 %v5673, %v5086
        %v5675 = vmax.f32 %v5674, %v5094
        %v5676 = vmax.f32 %v5675, %v5102
        %v5677 = vmax.f32 %v5676, %v5110
        %v5678 = vmax.f32 %v5677, %v5118
        %v5679 = vmax.f32 %v5678, %v5126
        %v5680 = vmax.f32 %v5679, %v5134
        %v5681 = vmax.f32 %v5680, %v5142
        %v5682 = vmax.f32 %v5681, %v5150
        %v5683 = vmax.f32 %v5682, %v5158
        %v5684 = vmax.f32 %v5683, %v5166
        %v5685 = vmax.f32 %v5684, %v5174
        %v5686 = vmax.f32 %v5685, %v5182
        %p5687 = scmp.eq.s32.totalorder %s34, 0
        // Predicated region
        $region85: #{tpu_custom_call.1} parent=71 // pred_check
          %p5688 = pneg %p5687
        $region86: #{tpu_custom_call.1} parent=71 // pred_check_branch
          %5690 = sbr.rel (%p5688) target = $region88
        $region87: #{tpu_custom_call.1} parent=71 // pred_region
          %5691 = vst [vmem:[#allocation2] sm:$0xff] %v5245
          %5692 = vst [vmem:[#allocation2 + $0x8] sm:$0xff] %v5308
          %5693 = vst [vmem:[#allocation2 + $0x10] sm:$0xff] %v5371
          %5694 = vst [vmem:[#allocation2 + $0x18] sm:$0xff] %v5434
          %5695 = vst [vmem:[#allocation2 + $0x20] sm:$0xff] %v5497
          %5696 = vst [vmem:[#allocation2 + $0x28] sm:$0xff] %v5560
          %5697 = vst [vmem:[#allocation2 + $0x30] sm:$0xff] %v5623
          %5698 = vst [vmem:[#allocation2 + $0x38] sm:$0xff] %v5686
        $region88: #{tpu_custom_call.1} parent=71 // pred_fallthru
          _
        %p5699 = scmp.gt.s32.totalorder %s34, 0
        // Predicated region
        $region89: #{tpu_custom_call.1} parent=71 // pred_check
          %p5700 = pneg %p5699
        $region90: #{tpu_custom_call.1} parent=71 // pred_check_branch
          %5702 = sbr.rel (%p5700) target = $region92
        $region91: #{tpu_custom_call.1} parent=71 // pred_region
          %v5703 = vld [vmem:[#allocation2] sm:$0xff]
          %v5704 = vld [vmem:[#allocation2 + $0x8] sm:$0xff]
          %v5705 = vld [vmem:[#allocation2 + $0x10] sm:$0xff]
          %v5706 = vld [vmem:[#allocation2 + $0x18] sm:$0xff]
          %v5707 = vld [vmem:[#allocation2 + $0x20] sm:$0xff]
          %v5708 = vld [vmem:[#allocation2 + $0x28] sm:$0xff]
          %v5709 = vld [vmem:[#allocation2 + $0x30] sm:$0xff]
          %v5710 = vld [vmem:[#allocation2 + $0x38] sm:$0xff]
          %v5711 = vmax.f32 %v5703, %v5245
          %v5712 = vmax.f32 %v5704, %v5308
          %v5713 = vmax.f32 %v5705, %v5371
          %v5714 = vmax.f32 %v5706, %v5434
          %v5715 = vmax.f32 %v5707, %v5497
          %v5716 = vmax.f32 %v5708, %v5560
          %v5717 = vmax.f32 %v5709, %v5623
          %v5718 = vmax.f32 %v5710, %v5686
          %5719 = vst [vmem:[#allocation2] sm:$0xff] %v5711
          %5720 = vst [vmem:[#allocation2 + $0x8] sm:$0xff] %v5712
          %5721 = vst [vmem:[#allocation2 + $0x10] sm:$0xff] %v5713
          %5722 = vst [vmem:[#allocation2 + $0x18] sm:$0xff] %v5714
          %5723 = vst [vmem:[#allocation2 + $0x20] sm:$0xff] %v5715
          %5724 = vst [vmem:[#allocation2 + $0x28] sm:$0xff] %v5716
          %5725 = vst [vmem:[#allocation2 + $0x30] sm:$0xff] %v5717
          %5726 = vst [vmem:[#allocation2 + $0x38] sm:$0xff] %v5718
        $region92: #{tpu_custom_call.1} parent=71 // pred_fallthru
          _
        %p5727 = scmp.eq.s32.totalorder %s34, 1
        // Predicated region
        $region93: #{tpu_custom_call.1} parent=71 // pred_check
          %p5728 = pneg %p5727
        $region94: #{tpu_custom_call.1} parent=71 // pred_check_branch
          %5730 = sbr.rel (%p5728) target = $region96
        $region95: #{tpu_custom_call.1} parent=71 // pred_region
          %v5731 = vld [vmem:[#allocation2] sm:$0xff]
          %v5732 = vld [vmem:[#allocation2 + $0x8] sm:$0xff]
          %v5733 = vld [vmem:[#allocation2 + $0x10] sm:$0xff]
          %v5734 = vld [vmem:[#allocation2 + $0x18] sm:$0xff]
          %v5735 = vld [vmem:[#allocation2 + $0x20] sm:$0xff]
          %v5736 = vld [vmem:[#allocation2 + $0x28] sm:$0xff]
          %v5737 = vld [vmem:[#allocation2 + $0x30] sm:$0xff]
          %v5738 = vld [vmem:[#allocation2 + $0x38] sm:$0xff]
          %v5739 = vrot.slane %v5731, 4
          %v5740 = vmax.f32 %v5731, %v5739
          %v5741 = vrot.slane %v5740, 2
          %v5742 = vmax.f32 %v5740, %v5741
          %v5743 = vrot.slane %v5742, 1
          %v5744 = vmax.f32 %v5742, %v5743
          %v5745 = vrot.slane %v5732, 4
          %v5746 = vmax.f32 %v5732, %v5745
          %v5747 = vrot.slane %v5746, 2
          %v5748 = vmax.f32 %v5746, %v5747
          %v5749 = vrot.slane %v5748, 1
          %v5750 = vmax.f32 %v5748, %v5749
          %v5751 = vrot.slane %v5733, 4
          %v5752 = vmax.f32 %v5733, %v5751
          %v5753 = vrot.slane %v5752, 2
          %v5754 = vmax.f32 %v5752, %v5753
          %v5755 = vrot.slane %v5754, 1
          %v5756 = vmax.f32 %v5754, %v5755
          %v5757 = vrot.slane %v5734, 4
          %v5758 = vmax.f32 %v5734, %v5757
          %v5759 = vrot.slane %v5758, 2
          %v5760 = vmax.f32 %v5758, %v5759
          %v5761 = vrot.slane %v5760, 1
          %v5762 = vmax.f32 %v5760, %v5761
          %v5763 = vrot.slane %v5735, 4
          %v5764 = vmax.f32 %v5735, %v5763
          %v5765 = vrot.slane %v5764, 2
          %v5766 = vmax.f32 %v5764, %v5765
          %v5767 = vrot.slane %v5766, 1
          %v5768 = vmax.f32 %v5766, %v5767
          %v5769 = vrot.slane %v5736, 4
          %v5770 = vmax.f32 %v5736, %v5769
          %v5771 = vrot.slane %v5770, 2
          %v5772 = vmax.f32 %v5770, %v5771
          %v5773 = vrot.slane %v5772, 1
          %v5774 = vmax.f32 %v5772, %v5773
          %v5775 = vrot.slane %v5737, 4
          %v5776 = vmax.f32 %v5737, %v5775
          %v5777 = vrot.slane %v5776, 2
          %v5778 = vmax.f32 %v5776, %v5777
          %v5779 = vrot.slane %v5778, 1
          %v5780 = vmax.f32 %v5778, %v5779
          %v5781 = vrot.slane %v5738, 4
          %v5782 = vmax.f32 %v5738, %v5781
          %v5783 = vrot.slane %v5782, 2
          %v5784 = vmax.f32 %v5782, %v5783
          %v5785 = vrot.slane %v5784, 1
          %v5786 = vmax.f32 %v5784, %v5785
          %v5787 = vpack.c.bf16 %v5744, %v5744
          %v5788 = vpack.c.bf16 %v5750, %v5750
          %v5789 = vpack.c.bf16 %v5756, %v5756
          %v5790 = vpack.c.bf16 %v5762, %v5762
          %v5791 = vpack.c.bf16 %v5768, %v5768
          %v5792 = vpack.c.bf16 %v5774, %v5774
          %v5793 = vpack.c.bf16 %v5780, %v5780
          %v5794 = vpack.c.bf16 %v5786, %v5786
          %v5795 = vld [vmem:[%s7] sm:$0xff]
          %v5796 = vld [vmem:[%s7 + $0x8] sm:$0xff]
          %v5797 = vld [vmem:[%s7 + $0x10] sm:$0xff]
          %v5798 = vld [vmem:[%s7 + $0x18] sm:$0xff]
          %v5799 = vld [vmem:[%s7 + $0x20] sm:$0xff]
          %v5800 = vld [vmem:[%s7 + $0x28] sm:$0xff]
          %v5801 = vld [vmem:[%s7 + $0x30] sm:$0xff]
          %v5802 = vld [vmem:[%s7 + $0x38] sm:$0xff]
          %v5803 = vld [vmem:[%s7 + $0x40] sm:$0xff]
          %v5804 = vld [vmem:[%s7 + $0x48] sm:$0xff]
          %v5805 = vld [vmem:[%s7 + $0x50] sm:$0xff]
          %v5806 = vld [vmem:[%s7 + $0x58] sm:$0xff]
          %v5807 = vld [vmem:[%s7 + $0x60] sm:$0xff]
          %v5808 = vld [vmem:[%s7 + $0x68] sm:$0xff]
          %v5809 = vld [vmem:[%s7 + $0x70] sm:$0xff]
          %v5810 = vld [vmem:[%s7 + $0x78] sm:$0xff]
          %v5811 = vld [vmem:[%s7 + $0x80] sm:$0xff]
          %v5812 = vld [vmem:[%s7 + $0x88] sm:$0xff]
          %v5813 = vld [vmem:[%s7 + $0x90] sm:$0xff]
          %v5814 = vld [vmem:[%s7 + $0x98] sm:$0xff]
          %v5815 = vld [vmem:[%s7 + $0xa0] sm:$0xff]
          %v5816 = vld [vmem:[%s7 + $0xa8] sm:$0xff]
          %v5817 = vld [vmem:[%s7 + $0xb0] sm:$0xff]
          %v5818 = vld [vmem:[%s7 + $0xb8] sm:$0xff]
          %v5819 = vld [vmem:[%s7 + $0xc0] sm:$0xff]
          %v5820 = vld [vmem:[%s7 + $0xc8] sm:$0xff]
          %v5821 = vld [vmem:[%s7 + $0xd0] sm:$0xff]
          %v5822 = vld [vmem:[%s7 + $0xd8] sm:$0xff]
          %v5823 = vld [vmem:[%s7 + $0xe0] sm:$0xff]
          %v5824 = vld [vmem:[%s7 + $0xe8] sm:$0xff]
          %v5825 = vld [vmem:[%s7 + $0xf0] sm:$0xff]
          %v5826 = vld [vmem:[%s7 + $0xf8] sm:$0xff]
          %v5827 = vld [vmem:[%s7 + $0x100] sm:$0xff]
          %v5828 = vld [vmem:[%s7 + $0x108] sm:$0xff]
          %v5829 = vld [vmem:[%s7 + $0x110] sm:$0xff]
          %v5830 = vld [vmem:[%s7 + $0x118] sm:$0xff]
          %v5831 = vld [vmem:[%s7 + $0x120] sm:$0xff]
          %v5832 = vld [vmem:[%s7 + $0x128] sm:$0xff]
          %v5833 = vld [vmem:[%s7 + $0x130] sm:$0xff]
          %v5834 = vld [vmem:[%s7 + $0x138] sm:$0xff]
          %v5835 = vld [vmem:[%s7 + $0x140] sm:$0xff]
          %v5836 = vld [vmem:[%s7 + $0x148] sm:$0xff]
          %v5837 = vld [vmem:[%s7 + $0x150] sm:$0xff]
          %v5838 = vld [vmem:[%s7 + $0x158] sm:$0xff]
          %v5839 = vld [vmem:[%s7 + $0x160] sm:$0xff]
          %v5840 = vld [vmem:[%s7 + $0x168] sm:$0xff]
          %v5841 = vld [vmem:[%s7 + $0x170] sm:$0xff]
          %v5842 = vld [vmem:[%s7 + $0x178] sm:$0xff]
          %v5843 = vld [vmem:[%s7 + $0x180] sm:$0xff]
          %v5844 = vld [vmem:[%s7 + $0x188] sm:$0xff]
          %v5845 = vld [vmem:[%s7 + $0x190] sm:$0xff]
          %v5846 = vld [vmem:[%s7 + $0x198] sm:$0xff]
          %v5847 = vld [vmem:[%s7 + $0x1a0] sm:$0xff]
          %v5848 = vld [vmem:[%s7 + $0x1a8] sm:$0xff]
          %v5849 = vld [vmem:[%s7 + $0x1b0] sm:$0xff]
          %v5850 = vld [vmem:[%s7 + $0x1b8] sm:$0xff]
          %v5851 = vld [vmem:[%s7 + $0x1c0] sm:$0xff]
          %v5852 = vld [vmem:[%s7 + $0x1c8] sm:$0xff]
          %v5853 = vld [vmem:[%s7 + $0x1d0] sm:$0xff]
          %v5854 = vld [vmem:[%s7 + $0x1d8] sm:$0xff]
          %v5855 = vld [vmem:[%s7 + $0x1e0] sm:$0xff]
          %v5856 = vld [vmem:[%s7 + $0x1e8] sm:$0xff]
          %v5857 = vld [vmem:[%s7 + $0x1f0] sm:$0xff]
          %v5858 = vld [vmem:[%s7 + $0x1f8] sm:$0xff]
          %v5859 = vld [vmem:[%s7 + $0x200] sm:$0xff]
          %v5860 = vld [vmem:[%s7 + $0x208] sm:$0xff]
          %v5861 = vld [vmem:[%s7 + $0x210] sm:$0xff]
          %v5862 = vld [vmem:[%s7 + $0x218] sm:$0xff]
          %v5863 = vld [vmem:[%s7 + $0x220] sm:$0xff]
          %v5864 = vld [vmem:[%s7 + $0x228] sm:$0xff]
          %v5865 = vld [vmem:[%s7 + $0x230] sm:$0xff]
          %v5866 = vld [vmem:[%s7 + $0x238] sm:$0xff]
          %v5867 = vld [vmem:[%s7 + $0x240] sm:$0xff]
          %v5868 = vld [vmem:[%s7 + $0x248] sm:$0xff]
          %v5869 = vld [vmem:[%s7 + $0x250] sm:$0xff]
          %v5870 = vld [vmem:[%s7 + $0x258] sm:$0xff]
          %v5871 = vld [vmem:[%s7 + $0x260] sm:$0xff]
          %v5872 = vld [vmem:[%s7 + $0x268] sm:$0xff]
          %v5873 = vld [vmem:[%s7 + $0x270] sm:$0xff]
          %v5874 = vld [vmem:[%s7 + $0x278] sm:$0xff]
          %v5875 = vld [vmem:[%s7 + $0x280] sm:$0xff]
          %v5876 = vld [vmem:[%s7 + $0x288] sm:$0xff]
          %v5877 = vld [vmem:[%s7 + $0x290] sm:$0xff]
          %v5878 = vld [vmem:[%s7 + $0x298] sm:$0xff]
          %v5879 = vld [vmem:[%s7 + $0x2a0] sm:$0xff]
          %v5880 = vld [vmem:[%s7 + $0x2a8] sm:$0xff]
          %v5881 = vld [vmem:[%s7 + $0x2b0] sm:$0xff]
          %v5882 = vld [vmem:[%s7 + $0x2b8] sm:$0xff]
          %v5883 = vld [vmem:[%s7 + $0x2c0] sm:$0xff]
          %v5884 = vld [vmem:[%s7 + $0x2c8] sm:$0xff]
          %v5885 = vld [vmem:[%s7 + $0x2d0] sm:$0xff]
          %v5886 = vld [vmem:[%s7 + $0x2d8] sm:$0xff]
          %v5887 = vld [vmem:[%s7 + $0x2e0] sm:$0xff]
          %v5888 = vld [vmem:[%s7 + $0x2e8] sm:$0xff]
          %v5889 = vld [vmem:[%s7 + $0x2f0] sm:$0xff]
          %v5890 = vld [vmem:[%s7 + $0x2f8] sm:$0xff]
          %v5891 = vld [vmem:[%s7 + $0x300] sm:$0xff]
          %v5892 = vld [vmem:[%s7 + $0x308] sm:$0xff]
          %v5893 = vld [vmem:[%s7 + $0x310] sm:$0xff]
          %v5894 = vld [vmem:[%s7 + $0x318] sm:$0xff]
          %v5895 = vld [vmem:[%s7 + $0x320] sm:$0xff]
          %v5896 = vld [vmem:[%s7 + $0x328] sm:$0xff]
          %v5897 = vld [vmem:[%s7 + $0x330] sm:$0xff]
          %v5898 = vld [vmem:[%s7 + $0x338] sm:$0xff]
          %v5899 = vld [vmem:[%s7 + $0x340] sm:$0xff]
          %v5900 = vld [vmem:[%s7 + $0x348] sm:$0xff]
          %v5901 = vld [vmem:[%s7 + $0x350] sm:$0xff]
          %v5902 = vld [vmem:[%s7 + $0x358] sm:$0xff]
          %v5903 = vld [vmem:[%s7 + $0x360] sm:$0xff]
          %v5904 = vld [vmem:[%s7 + $0x368] sm:$0xff]
          %v5905 = vld [vmem:[%s7 + $0x370] sm:$0xff]
          %v5906 = vld [vmem:[%s7 + $0x378] sm:$0xff]
          %v5907 = vld [vmem:[%s7 + $0x380] sm:$0xff]
          %v5908 = vld [vmem:[%s7 + $0x388] sm:$0xff]
          %v5909 = vld [vmem:[%s7 + $0x390] sm:$0xff]
          %v5910 = vld [vmem:[%s7 + $0x398] sm:$0xff]
          %v5911 = vld [vmem:[%s7 + $0x3a0] sm:$0xff]
          %v5912 = vld [vmem:[%s7 + $0x3a8] sm:$0xff]
          %v5913 = vld [vmem:[%s7 + $0x3b0] sm:$0xff]
          %v5914 = vld [vmem:[%s7 + $0x3b8] sm:$0xff]
          %v5915 = vld [vmem:[%s7 + $0x3c0] sm:$0xff]
          %v5916 = vld [vmem:[%s7 + $0x3c8] sm:$0xff]
          %v5917 = vld [vmem:[%s7 + $0x3d0] sm:$0xff]
          %v5918 = vld [vmem:[%s7 + $0x3d8] sm:$0xff]
          %v5919 = vld [vmem:[%s7 + $0x3e0] sm:$0xff]
          %v5920 = vld [vmem:[%s7 + $0x3e8] sm:$0xff]
          %v5921 = vld [vmem:[%s7 + $0x3f0] sm:$0xff]
          %v5922 = vld [vmem:[%s7 + $0x3f8] sm:$0xff]
          %v5923 = vld [vmem:[%s7 + $0x400] sm:$0xff]
          %v5924 = vld [vmem:[%s7 + $0x408] sm:$0xff]
          %v5925 = vld [vmem:[%s7 + $0x410] sm:$0xff]
          %v5926 = vld [vmem:[%s7 + $0x418] sm:$0xff]
          %v5927 = vld [vmem:[%s7 + $0x420] sm:$0xff]
          %v5928 = vld [vmem:[%s7 + $0x428] sm:$0xff]
          %v5929 = vld [vmem:[%s7 + $0x430] sm:$0xff]
          %v5930 = vld [vmem:[%s7 + $0x438] sm:$0xff]
          %v5931 = vld [vmem:[%s7 + $0x440] sm:$0xff]
          %v5932 = vld [vmem:[%s7 + $0x448] sm:$0xff]
          %v5933 = vld [vmem:[%s7 + $0x450] sm:$0xff]
          %v5934 = vld [vmem:[%s7 + $0x458] sm:$0xff]
          %v5935 = vld [vmem:[%s7 + $0x460] sm:$0xff]
          %v5936 = vld [vmem:[%s7 + $0x468] sm:$0xff]
          %v5937 = vld [vmem:[%s7 + $0x470] sm:$0xff]
          %v5938 = vld [vmem:[%s7 + $0x478] sm:$0xff]
          %v5939 = vld [vmem:[%s7 + $0x480] sm:$0xff]
          %v5940 = vld [vmem:[%s7 + $0x488] sm:$0xff]
          %v5941 = vld [vmem:[%s7 + $0x490] sm:$0xff]
          %v5942 = vld [vmem:[%s7 + $0x498] sm:$0xff]
          %v5943 = vld [vmem:[%s7 + $0x4a0] sm:$0xff]
          %v5944 = vld [vmem:[%s7 + $0x4a8] sm:$0xff]
          %v5945 = vld [vmem:[%s7 + $0x4b0] sm:$0xff]
          %v5946 = vld [vmem:[%s7 + $0x4b8] sm:$0xff]
          %v5947 = vld [vmem:[%s7 + $0x4c0] sm:$0xff]
          %v5948 = vld [vmem:[%s7 + $0x4c8] sm:$0xff]
          %v5949 = vld [vmem:[%s7 + $0x4d0] sm:$0xff]
          %v5950 = vld [vmem:[%s7 + $0x4d8] sm:$0xff]
          %v5951 = vld [vmem:[%s7 + $0x4e0] sm:$0xff]
          %v5952 = vld [vmem:[%s7 + $0x4e8] sm:$0xff]
          %v5953 = vld [vmem:[%s7 + $0x4f0] sm:$0xff]
          %v5954 = vld [vmem:[%s7 + $0x4f8] sm:$0xff]
          %v5955 = vld [vmem:[%s7 + $0x500] sm:$0xff]
          %v5956 = vld [vmem:[%s7 + $0x508] sm:$0xff]
          %v5957 = vld [vmem:[%s7 + $0x510] sm:$0xff]
          %v5958 = vld [vmem:[%s7 + $0x518] sm:$0xff]
          %v5959 = vld [vmem:[%s7 + $0x520] sm:$0xff]
          %v5960 = vld [vmem:[%s7 + $0x528] sm:$0xff]
          %v5961 = vld [vmem:[%s7 + $0x530] sm:$0xff]
          %v5962 = vld [vmem:[%s7 + $0x538] sm:$0xff]
          %v5963 = vld [vmem:[%s7 + $0x540] sm:$0xff]
          %v5964 = vld [vmem:[%s7 + $0x548] sm:$0xff]
          %v5965 = vld [vmem:[%s7 + $0x550] sm:$0xff]
          %v5966 = vld [vmem:[%s7 + $0x558] sm:$0xff]
          %v5967 = vld [vmem:[%s7 + $0x560] sm:$0xff]
          %v5968 = vld [vmem:[%s7 + $0x568] sm:$0xff]
          %v5969 = vld [vmem:[%s7 + $0x570] sm:$0xff]
          %v5970 = vld [vmem:[%s7 + $0x578] sm:$0xff]
          %v5971 = vld [vmem:[%s7 + $0x580] sm:$0xff]
          %v5972 = vld [vmem:[%s7 + $0x588] sm:$0xff]
          %v5973 = vld [vmem:[%s7 + $0x590] sm:$0xff]
          %v5974 = vld [vmem:[%s7 + $0x598] sm:$0xff]
          %v5975 = vld [vmem:[%s7 + $0x5a0] sm:$0xff]
          %v5976 = vld [vmem:[%s7 + $0x5a8] sm:$0xff]
          %v5977 = vld [vmem:[%s7 + $0x5b0] sm:$0xff]
          %v5978 = vld [vmem:[%s7 + $0x5b8] sm:$0xff]
          %v5979 = vld [vmem:[%s7 + $0x5c0] sm:$0xff]
          %v5980 = vld [vmem:[%s7 + $0x5c8] sm:$0xff]
          %v5981 = vld [vmem:[%s7 + $0x5d0] sm:$0xff]
          %v5982 = vld [vmem:[%s7 + $0x5d8] sm:$0xff]
          %v5983 = vld [vmem:[%s7 + $0x5e0] sm:$0xff]
          %v5984 = vld [vmem:[%s7 + $0x5e8] sm:$0xff]
          %v5985 = vld [vmem:[%s7 + $0x5f0] sm:$0xff]
          %v5986 = vld [vmem:[%s7 + $0x5f8] sm:$0xff]
          %v5987 = vld [vmem:[%s7 + $0x600] sm:$0xff]
          %v5988 = vld [vmem:[%s7 + $0x608] sm:$0xff]
          %v5989 = vld [vmem:[%s7 + $0x610] sm:$0xff]
          %v5990 = vld [vmem:[%s7 + $0x618] sm:$0xff]
          %v5991 = vld [vmem:[%s7 + $0x620] sm:$0xff]
          %v5992 = vld [vmem:[%s7 + $0x628] sm:$0xff]
          %v5993 = vld [vmem:[%s7 + $0x630] sm:$0xff]
          %v5994 = vld [vmem:[%s7 + $0x638] sm:$0xff]
          %v5995 = vld [vmem:[%s7 + $0x640] sm:$0xff]
          %v5996 = vld [vmem:[%s7 + $0x648] sm:$0xff]
          %v5997 = vld [vmem:[%s7 + $0x650] sm:$0xff]
          %v5998 = vld [vmem:[%s7 + $0x658] sm:$0xff]
          %v5999 = vld [vmem:[%s7 + $0x660] sm:$0xff]
          %v6000 = vld [vmem:[%s7 + $0x668] sm:$0xff]
          %v6001 = vld [vmem:[%s7 + $0x670] sm:$0xff]
          %v6002 = vld [vmem:[%s7 + $0x678] sm:$0xff]
          %v6003 = vld [vmem:[%s7 + $0x680] sm:$0xff]
          %v6004 = vld [vmem:[%s7 + $0x688] sm:$0xff]
          %v6005 = vld [vmem:[%s7 + $0x690] sm:$0xff]
          %v6006 = vld [vmem:[%s7 + $0x698] sm:$0xff]
          %v6007 = vld [vmem:[%s7 + $0x6a0] sm:$0xff]
          %v6008 = vld [vmem:[%s7 + $0x6a8] sm:$0xff]
          %v6009 = vld [vmem:[%s7 + $0x6b0] sm:$0xff]
          %v6010 = vld [vmem:[%s7 + $0x6b8] sm:$0xff]
          %v6011 = vld [vmem:[%s7 + $0x6c0] sm:$0xff]
          %v6012 = vld [vmem:[%s7 + $0x6c8] sm:$0xff]
          %v6013 = vld [vmem:[%s7 + $0x6d0] sm:$0xff]
          %v6014 = vld [vmem:[%s7 + $0x6d8] sm:$0xff]
          %v6015 = vld [vmem:[%s7 + $0x6e0] sm:$0xff]
          %v6016 = vld [vmem:[%s7 + $0x6e8] sm:$0xff]
          %v6017 = vld [vmem:[%s7 + $0x6f0] sm:$0xff]
          %v6018 = vld [vmem:[%s7 + $0x6f8] sm:$0xff]
          %v6019 = vld [vmem:[%s7 + $0x700] sm:$0xff]
          %v6020 = vld [vmem:[%s7 + $0x708] sm:$0xff]
          %v6021 = vld [vmem:[%s7 + $0x710] sm:$0xff]
          %v6022 = vld [vmem:[%s7 + $0x718] sm:$0xff]
          %v6023 = vld [vmem:[%s7 + $0x720] sm:$0xff]
          %v6024 = vld [vmem:[%s7 + $0x728] sm:$0xff]
          %v6025 = vld [vmem:[%s7 + $0x730] sm:$0xff]
          %v6026 = vld [vmem:[%s7 + $0x738] sm:$0xff]
          %v6027 = vld [vmem:[%s7 + $0x740] sm:$0xff]
          %v6028 = vld [vmem:[%s7 + $0x748] sm:$0xff]
          %v6029 = vld [vmem:[%s7 + $0x750] sm:$0xff]
          %v6030 = vld [vmem:[%s7 + $0x758] sm:$0xff]
          %v6031 = vld [vmem:[%s7 + $0x760] sm:$0xff]
          %v6032 = vld [vmem:[%s7 + $0x768] sm:$0xff]
          %v6033 = vld [vmem:[%s7 + $0x770] sm:$0xff]
          %v6034 = vld [vmem:[%s7 + $0x778] sm:$0xff]
          %v6035 = vld [vmem:[%s7 + $0x780] sm:$0xff]
          %v6036 = vld [vmem:[%s7 + $0x788] sm:$0xff]
          %v6037 = vld [vmem:[%s7 + $0x790] sm:$0xff]
          %v6038 = vld [vmem:[%s7 + $0x798] sm:$0xff]
          %v6039 = vld [vmem:[%s7 + $0x7a0] sm:$0xff]
          %v6040 = vld [vmem:[%s7 + $0x7a8] sm:$0xff]
          %v6041 = vld [vmem:[%s7 + $0x7b0] sm:$0xff]
          %v6042 = vld [vmem:[%s7 + $0x7b8] sm:$0xff]
          %v6043 = vld [vmem:[%s7 + $0x7c0] sm:$0xff]
          %v6044 = vld [vmem:[%s7 + $0x7c8] sm:$0xff]
          %v6045 = vld [vmem:[%s7 + $0x7d0] sm:$0xff]
          %v6046 = vld [vmem:[%s7 + $0x7d8] sm:$0xff]
          %v6047 = vld [vmem:[%s7 + $0x7e0] sm:$0xff]
          %v6048 = vld [vmem:[%s7 + $0x7e8] sm:$0xff]
          %v6049 = vld [vmem:[%s7 + $0x7f0] sm:$0xff]
          %v6050 = vld [vmem:[%s7 + $0x7f8] sm:$0xff]
          %v6051 = vld [vmem:[%s8] sm:$0xf]
          %v6308 = vunpack.c.l.b16 %v5795
          %v6309 = vunpack.c.h.b16 %v5795
          %v6310 = vunpack.c.l.b16 %v5796
          %v6311 = vunpack.c.h.b16 %v5796
          %v6312 = vunpack.c.l.b16 %v5797
          %v6313 = vunpack.c.h.b16 %v5797
          %v6314 = vunpack.c.l.b16 %v5798
          %v6315 = vunpack.c.h.b16 %v5798
          %v6316 = vunpack.c.l.b16 %v5799
          %v6317 = vunpack.c.h.b16 %v5799
          %v6318 = vunpack.c.l.b16 %v5800
          %v6319 = vunpack.c.h.b16 %v5800
          %v6320 = vunpack.c.l.b16 %v5801
          %v6321 = vunpack.c.h.b16 %v5801
          %v6322 = vunpack.c.l.b16 %v5802
          %v6323 = vunpack.c.h.b16 %v5802
          %v6324 = vunpack.c.l.b16 %v5803
          %v6325 = vunpack.c.h.b16 %v5803
          %v6326 = vunpack.c.l.b16 %v5804
          %v6327 = vunpack.c.h.b16 %v5804
          %v6328 = vunpack.c.l.b16 %v5805
          %v6329 = vunpack.c.h.b16 %v5805
          %v6330 = vunpack.c.l.b16 %v5806
          %v6331 = vunpack.c.h.b16 %v5806
          %v6332 = vunpack.c.l.b16 %v5807
          %v6333 = vunpack.c.h.b16 %v5807
          %v6334 = vunpack.c.l.b16 %v5808
          %v6335 = vunpack.c.h.b16 %v5808
          %v6336 = vunpack.c.l.b16 %v5809
          %v6337 = vunpack.c.h.b16 %v5809
          %v6338 = vunpack.c.l.b16 %v5810
          %v6339 = vunpack.c.h.b16 %v5810
          %v6340 = vunpack.c.l.b16 %v5811
          %v6341 = vunpack.c.h.b16 %v5811
          %v6342 = vunpack.c.l.b16 %v5812
          %v6343 = vunpack.c.h.b16 %v5812
          %v6344 = vunpack.c.l.b16 %v5813
          %v6345 = vunpack.c.h.b16 %v5813
          %v6346 = vunpack.c.l.b16 %v5814
          %v6347 = vunpack.c.h.b16 %v5814
          %v6348 = vunpack.c.l.b16 %v5815
          %v6349 = vunpack.c.h.b16 %v5815
          %v6350 = vunpack.c.l.b16 %v5816
          %v6351 = vunpack.c.h.b16 %v5816
          %v6352 = vunpack.c.l.b16 %v5817
          %v6353 = vunpack.c.h.b16 %v5817
          %v6354 = vunpack.c.l.b16 %v5818
          %v6355 = vunpack.c.h.b16 %v5818
          %v6356 = vunpack.c.l.b16 %v5819
          %v6357 = vunpack.c.h.b16 %v5819
          %v6358 = vunpack.c.l.b16 %v5820
          %v6359 = vunpack.c.h.b16 %v5820
          %v6360 = vunpack.c.l.b16 %v5821
          %v6361 = vunpack.c.h.b16 %v5821
          %v6362 = vunpack.c.l.b16 %v5822
          %v6363 = vunpack.c.h.b16 %v5822
          %v6364 = vunpack.c.l.b16 %v5823
          %v6365 = vunpack.c.h.b16 %v5823
          %v6366 = vunpack.c.l.b16 %v5824
          %v6367 = vunpack.c.h.b16 %v5824
          %v6368 = vunpack.c.l.b16 %v5825
          %v6369 = vunpack.c.h.b16 %v5825
          %v6370 = vunpack.c.l.b16 %v5826
          %v6371 = vunpack.c.h.b16 %v5826
          %v6372 = vunpack.c.l.b16 %v5827
          %v6373 = vunpack.c.h.b16 %v5827
          %v6374 = vunpack.c.l.b16 %v5828
          %v6375 = vunpack.c.h.b16 %v5828
          %v6376 = vunpack.c.l.b16 %v5829
          %v6377 = vunpack.c.h.b16 %v5829
          %v6378 = vunpack.c.l.b16 %v5830
          %v6379 = vunpack.c.h.b16 %v5830
          %v6380 = vunpack.c.l.b16 %v5831
          %v6381 = vunpack.c.h.b16 %v5831
          %v6382 = vunpack.c.l.b16 %v5832
          %v6383 = vunpack.c.h.b16 %v5832
          %v6384 = vunpack.c.l.b16 %v5833
          %v6385 = vunpack.c.h.b16 %v5833
          %v6386 = vunpack.c.l.b16 %v5834
          %v6387 = vunpack.c.h.b16 %v5834
          %v6388 = vunpack.c.l.b16 %v5835
          %v6389 = vunpack.c.h.b16 %v5835
          %v6390 = vunpack.c.l.b16 %v5836
          %v6391 = vunpack.c.h.b16 %v5836
          %v6392 = vunpack.c.l.b16 %v5837
          %v6393 = vunpack.c.h.b16 %v5837
          %v6394 = vunpack.c.l.b16 %v5838
          %v6395 = vunpack.c.h.b16 %v5838
          %v6396 = vunpack.c.l.b16 %v5839
          %v6397 = vunpack.c.h.b16 %v5839
          %v6398 = vunpack.c.l.b16 %v5840
          %v6399 = vunpack.c.h.b16 %v5840
          %v6400 = vunpack.c.l.b16 %v5841
          %v6401 = vunpack.c.h.b16 %v5841
          %v6402 = vunpack.c.l.b16 %v5842
          %v6403 = vunpack.c.h.b16 %v5842
          %v6404 = vunpack.c.l.b16 %v5843
          %v6405 = vunpack.c.h.b16 %v5843
          %v6406 = vunpack.c.l.b16 %v5844
          %v6407 = vunpack.c.h.b16 %v5844
          %v6408 = vunpack.c.l.b16 %v5845
          %v6409 = vunpack.c.h.b16 %v5845
          %v6410 = vunpack.c.l.b16 %v5846
          %v6411 = vunpack.c.h.b16 %v5846
          %v6412 = vunpack.c.l.b16 %v5847
          %v6413 = vunpack.c.h.b16 %v5847
          %v6414 = vunpack.c.l.b16 %v5848
          %v6415 = vunpack.c.h.b16 %v5848
          %v6416 = vunpack.c.l.b16 %v5849
          %v6417 = vunpack.c.h.b16 %v5849
          %v6418 = vunpack.c.l.b16 %v5850
          %v6419 = vunpack.c.h.b16 %v5850
          %v6420 = vunpack.c.l.b16 %v5851
          %v6421 = vunpack.c.h.b16 %v5851
          %v6422 = vunpack.c.l.b16 %v5852
          %v6423 = vunpack.c.h.b16 %v5852
          %v6424 = vunpack.c.l.b16 %v5853
          %v6425 = vunpack.c.h.b16 %v5853
          %v6426 = vunpack.c.l.b16 %v5854
          %v6427 = vunpack.c.h.b16 %v5854
          %v6428 = vunpack.c.l.b16 %v5855
          %v6429 = vunpack.c.h.b16 %v5855
          %v6430 = vunpack.c.l.b16 %v5856
          %v6431 = vunpack.c.h.b16 %v5856
          %v6432 = vunpack.c.l.b16 %v5857
          %v6433 = vunpack.c.h.b16 %v5857
          %v6434 = vunpack.c.l.b16 %v5858
          %v6435 = vunpack.c.h.b16 %v5858
          %v6436 = vunpack.c.l.b16 %v5859
          %v6437 = vunpack.c.h.b16 %v5859
          %v6438 = vunpack.c.l.b16 %v5860
          %v6439 = vunpack.c.h.b16 %v5860
          %v6440 = vunpack.c.l.b16 %v5861
          %v6441 = vunpack.c.h.b16 %v5861
          %v6442 = vunpack.c.l.b16 %v5862
          %v6443 = vunpack.c.h.b16 %v5862
          %v6444 = vunpack.c.l.b16 %v5863
          %v6445 = vunpack.c.h.b16 %v5863
          %v6446 = vunpack.c.l.b16 %v5864
          %v6447 = vunpack.c.h.b16 %v5864
          %v6448 = vunpack.c.l.b16 %v5865
          %v6449 = vunpack.c.h.b16 %v5865
          %v6450 = vunpack.c.l.b16 %v5866
          %v6451 = vunpack.c.h.b16 %v5866
          %v6452 = vunpack.c.l.b16 %v5867
          %v6453 = vunpack.c.h.b16 %v5867
          %v6454 = vunpack.c.l.b16 %v5868
          %v6455 = vunpack.c.h.b16 %v5868
          %v6456 = vunpack.c.l.b16 %v5869
          %v6457 = vunpack.c.h.b16 %v5869
          %v6458 = vunpack.c.l.b16 %v5870
          %v6459 = vunpack.c.h.b16 %v5870
          %v6460 = vunpack.c.l.b16 %v5871
          %v6461 = vunpack.c.h.b16 %v5871
          %v6462 = vunpack.c.l.b16 %v5872
          %v6463 = vunpack.c.h.b16 %v5872
          %v6464 = vunpack.c.l.b16 %v5873
          %v6465 = vunpack.c.h.b16 %v5873
          %v6466 = vunpack.c.l.b16 %v5874
          %v6467 = vunpack.c.h.b16 %v5874
          %v6468 = vunpack.c.l.b16 %v5875
          %v6469 = vunpack.c.h.b16 %v5875
          %v6470 = vunpack.c.l.b16 %v5876
          %v6471 = vunpack.c.h.b16 %v5876
          %v6472 = vunpack.c.l.b16 %v5877
          %v6473 = vunpack.c.h.b16 %v5877
          %v6474 = vunpack.c.l.b16 %v5878
          %v6475 = vunpack.c.h.b16 %v5878
          %v6476 = vunpack.c.l.b16 %v5879
          %v6477 = vunpack.c.h.b16 %v5879
          %v6478 = vunpack.c.l.b16 %v5880
          %v6479 = vunpack.c.h.b16 %v5880
          %v6480 = vunpack.c.l.b16 %v5881
          %v6481 = vunpack.c.h.b16 %v5881
          %v6482 = vunpack.c.l.b16 %v5882
          %v6483 = vunpack.c.h.b16 %v5882
          %v6484 = vunpack.c.l.b16 %v5883
          %v6485 = vunpack.c.h.b16 %v5883
          %v6486 = vunpack.c.l.b16 %v5884
          %v6487 = vunpack.c.h.b16 %v5884
          %v6488 = vunpack.c.l.b16 %v5885
          %v6489 = vunpack.c.h.b16 %v5885
          %v6490 = vunpack.c.l.b16 %v5886
          %v6491 = vunpack.c.h.b16 %v5886
          %v6492 = vunpack.c.l.b16 %v5887
          %v6493 = vunpack.c.h.b16 %v5887
          %v6494 = vunpack.c.l.b16 %v5888
          %v6495 = vunpack.c.h.b16 %v5888
          %v6496 = vunpack.c.l.b16 %v5889
          %v6497 = vunpack.c.h.b16 %v5889
          %v6498 = vunpack.c.l.b16 %v5890
          %v6499 = vunpack.c.h.b16 %v5890
          %v6500 = vunpack.c.l.b16 %v5891
          %v6501 = vunpack.c.h.b16 %v5891
          %v6502 = vunpack.c.l.b16 %v5892
          %v6503 = vunpack.c.h.b16 %v5892
          %v6504 = vunpack.c.l.b16 %v5893
          %v6505 = vunpack.c.h.b16 %v5893
          %v6506 = vunpack.c.l.b16 %v5894
          %v6507 = vunpack.c.h.b16 %v5894
          %v6508 = vunpack.c.l.b16 %v5895
          %v6509 = vunpack.c.h.b16 %v5895
          %v6510 = vunpack.c.l.b16 %v5896
          %v6511 = vunpack.c.h.b16 %v5896
          %v6512 = vunpack.c.l.b16 %v5897
          %v6513 = vunpack.c.h.b16 %v5897
          %v6514 = vunpack.c.l.b16 %v5898
          %v6515 = vunpack.c.h.b16 %v5898
          %v6516 = vunpack.c.l.b16 %v5899
          %v6517 = vunpack.c.h.b16 %v5899
          %v6518 = vunpack.c.l.b16 %v5900
          %v6519 = vunpack.c.h.b16 %v5900
          %v6520 = vunpack.c.l.b16 %v5901
          %v6521 = vunpack.c.h.b16 %v5901
          %v6522 = vunpack.c.l.b16 %v5902
          %v6523 = vunpack.c.h.b16 %v5902
          %v6524 = vunpack.c.l.b16 %v5903
          %v6525 = vunpack.c.h.b16 %v5903
          %v6526 = vunpack.c.l.b16 %v5904
          %v6527 = vunpack.c.h.b16 %v5904
          %v6528 = vunpack.c.l.b16 %v5905
          %v6529 = vunpack.c.h.b16 %v5905
          %v6530 = vunpack.c.l.b16 %v5906
          %v6531 = vunpack.c.h.b16 %v5906
          %v6532 = vunpack.c.l.b16 %v5907
          %v6533 = vunpack.c.h.b16 %v5907
          %v6534 = vunpack.c.l.b16 %v5908
          %v6535 = vunpack.c.h.b16 %v5908
          %v6536 = vunpack.c.l.b16 %v5909
          %v6537 = vunpack.c.h.b16 %v5909
          %v6538 = vunpack.c.l.b16 %v5910
          %v6539 = vunpack.c.h.b16 %v5910
          %v6540 = vunpack.c.l.b16 %v5911
          %v6541 = vunpack.c.h.b16 %v5911
          %v6542 = vunpack.c.l.b16 %v5912
          %v6543 = vunpack.c.h.b16 %v5912
          %v6544 = vunpack.c.l.b16 %v5913
          %v6545 = vunpack.c.h.b16 %v5913
          %v6546 = vunpack.c.l.b16 %v5914
          %v6547 = vunpack.c.h.b16 %v5914
          %v6548 = vunpack.c.l.b16 %v5915
          %v6549 = vunpack.c.h.b16 %v5915
          %v6550 = vunpack.c.l.b16 %v5916
          %v6551 = vunpack.c.h.b16 %v5916
          %v6552 = vunpack.c.l.b16 %v5917
          %v6553 = vunpack.c.h.b16 %v5917
          %v6554 = vunpack.c.l.b16 %v5918
          %v6555 = vunpack.c.h.b16 %v5918
          %v6556 = vunpack.c.l.b16 %v5919
          %v6557 = vunpack.c.h.b16 %v5919
          %v6558 = vunpack.c.l.b16 %v5920
          %v6559 = vunpack.c.h.b16 %v5920
          %v6560 = vunpack.c.l.b16 %v5921
          %v6561 = vunpack.c.h.b16 %v5921
          %v6562 = vunpack.c.l.b16 %v5922
          %v6563 = vunpack.c.h.b16 %v5922
          %v6564 = vunpack.c.l.b16 %v5923
          %v6565 = vunpack.c.h.b16 %v5923
          %v6566 = vunpack.c.l.b16 %v5924
          %v6567 = vunpack.c.h.b16 %v5924
          %v6568 = vunpack.c.l.b16 %v5925
          %v6569 = vunpack.c.h.b16 %v5925
          %v6570 = vunpack.c.l.b16 %v5926
          %v6571 = vunpack.c.h.b16 %v5926
          %v6572 = vunpack.c.l.b16 %v5927
          %v6573 = vunpack.c.h.b16 %v5927
          %v6574 = vunpack.c.l.b16 %v5928
          %v6575 = vunpack.c.h.b16 %v5928
          %v6576 = vunpack.c.l.b16 %v5929
          %v6577 = vunpack.c.h.b16 %v5929
          %v6578 = vunpack.c.l.b16 %v5930
          %v6579 = vunpack.c.h.b16 %v5930
          %v6580 = vunpack.c.l.b16 %v5931
          %v6581 = vunpack.c.h.b16 %v5931
          %v6582 = vunpack.c.l.b16 %v5932
          %v6583 = vunpack.c.h.b16 %v5932
          %v6584 = vunpack.c.l.b16 %v5933
          %v6585 = vunpack.c.h.b16 %v5933
          %v6586 = vunpack.c.l.b16 %v5934
          %v6587 = vunpack.c.h.b16 %v5934
          %v6588 = vunpack.c.l.b16 %v5935
          %v6589 = vunpack.c.h.b16 %v5935
          %v6590 = vunpack.c.l.b16 %v5936
          %v6591 = vunpack.c.h.b16 %v5936
          %v6592 = vunpack.c.l.b16 %v5937
          %v6593 = vunpack.c.h.b16 %v5937
          %v6594 = vunpack.c.l.b16 %v5938
          %v6595 = vunpack.c.h.b16 %v5938
          %v6596 = vunpack.c.l.b16 %v5939
          %v6597 = vunpack.c.h.b16 %v5939
          %v6598 = vunpack.c.l.b16 %v5940
          %v6599 = vunpack.c.h.b16 %v5940
          %v6600 = vunpack.c.l.b16 %v5941
          %v6601 = vunpack.c.h.b16 %v5941
          %v6602 = vunpack.c.l.b16 %v5942
          %v6603 = vunpack.c.h.b16 %v5942
          %v6604 = vunpack.c.l.b16 %v5943
          %v6605 = vunpack.c.h.b16 %v5943
          %v6606 = vunpack.c.l.b16 %v5944
          %v6607 = vunpack.c.h.b16 %v5944
          %v6608 = vunpack.c.l.b16 %v5945
          %v6609 = vunpack.c.h.b16 %v5945
          %v6610 = vunpack.c.l.b16 %v5946
          %v6611 = vunpack.c.h.b16 %v5946
          %v6612 = vunpack.c.l.b16 %v5947
          %v6613 = vunpack.c.h.b16 %v5947
          %v6614 = vunpack.c.l.b16 %v5948
          %v6615 = vunpack.c.h.b16 %v5948
          %v6616 = vunpack.c.l.b16 %v5949
          %v6617 = vunpack.c.h.b16 %v5949
          %v6618 = vunpack.c.l.b16 %v5950
          %v6619 = vunpack.c.h.b16 %v5950
          %v6620 = vunpack.c.l.b16 %v5951
          %v6621 = vunpack.c.h.b16 %v5951
          %v6622 = vunpack.c.l.b16 %v5952
          %v6623 = vunpack.c.h.b16 %v5952
          %v6624 = vunpack.c.l.b16 %v5953
          %v6625 = vunpack.c.h.b16 %v5953
          %v6626 = vunpack.c.l.b16 %v5954
          %v6627 = vunpack.c.h.b16 %v5954
          %v6628 = vunpack.c.l.b16 %v5955
          %v6629 = vunpack.c.h.b16 %v5955
          %v6630 = vunpack.c.l.b16 %v5956
          %v6631 = vunpack.c.h.b16 %v5956
          %v6632 = vunpack.c.l.b16 %v5957
          %v6633 = vunpack.c.h.b16 %v5957
          %v6634 = vunpack.c.l.b16 %v5958
          %v6635 = vunpack.c.h.b16 %v5958
          %v6636 = vunpack.c.l.b16 %v5959
          %v6637 = vunpack.c.h.b16 %v5959
          %v6638 = vunpack.c.l.b16 %v5960
          %v6639 = vunpack.c.h.b16 %v5960
          %v6640 = vunpack.c.l.b16 %v5961
          %v6641 = vunpack.c.h.b16 %v5961
          %v6642 = vunpack.c.l.b16 %v5962
          %v6643 = vunpack.c.h.b16 %v5962
          %v6644 = vunpack.c.l.b16 %v5963
          %v6645 = vunpack.c.h.b16 %v5963
          %v6646 = vunpack.c.l.b16 %v5964
          %v6647 = vunpack.c.h.b16 %v5964
          %v6648 = vunpack.c.l.b16 %v5965
          %v6649 = vunpack.c.h.b16 %v5965
          %v6650 = vunpack.c.l.b16 %v5966
          %v6651 = vunpack.c.h.b16 %v5966
          %v6652 = vunpack.c.l.b16 %v5967
          %v6653 = vunpack.c.h.b16 %v5967
          %v6654 = vunpack.c.l.b16 %v5968
          %v6655 = vunpack.c.h.b16 %v5968
          %v6656 = vunpack.c.l.b16 %v5969
          %v6657 = vunpack.c.h.b16 %v5969
          %v6658 = vunpack.c.l.b16 %v5970
          %v6659 = vunpack.c.h.b16 %v5970
          %v6660 = vunpack.c.l.b16 %v5971
          %v6661 = vunpack.c.h.b16 %v5971
          %v6662 = vunpack.c.l.b16 %v5972
          %v6663 = vunpack.c.h.b16 %v5972
          %v6664 = vunpack.c.l.b16 %v5973
          %v6665 = vunpack.c.h.b16 %v5973
          %v6666 = vunpack.c.l.b16 %v5974
          %v6667 = vunpack.c.h.b16 %v5974
          %v6668 = vunpack.c.l.b16 %v5975
          %v6669 = vunpack.c.h.b16 %v5975
          %v6670 = vunpack.c.l.b16 %v5976
          %v6671 = vunpack.c.h.b16 %v5976
          %v6672 = vunpack.c.l.b16 %v5977
          %v6673 = vunpack.c.h.b16 %v5977
          %v6674 = vunpack.c.l.b16 %v5978
          %v6675 = vunpack.c.h.b16 %v5978
          %v6676 = vunpack.c.l.b16 %v5979
          %v6677 = vunpack.c.h.b16 %v5979
          %v6678 = vunpack.c.l.b16 %v5980
          %v6679 = vunpack.c.h.b16 %v5980
          %v6680 = vunpack.c.l.b16 %v5981
          %v6681 = vunpack.c.h.b16 %v5981
          %v6682 = vunpack.c.l.b16 %v5982
          %v6683 = vunpack.c.h.b16 %v5982
          %v6684 = vunpack.c.l.b16 %v5983
          %v6685 = vunpack.c.h.b16 %v5983
          %v6686 = vunpack.c.l.b16 %v5984
          %v6687 = vunpack.c.h.b16 %v5984
          %v6688 = vunpack.c.l.b16 %v5985
          %v6689 = vunpack.c.h.b16 %v5985
          %v6690 = vunpack.c.l.b16 %v5986
          %v6691 = vunpack.c.h.b16 %v5986
          %v6692 = vunpack.c.l.b16 %v5987
          %v6693 = vunpack.c.h.b16 %v5987
          %v6694 = vunpack.c.l.b16 %v5988
          %v6695 = vunpack.c.h.b16 %v5988
          %v6696 = vunpack.c.l.b16 %v5989
          %v6697 = vunpack.c.h.b16 %v5989
          %v6698 = vunpack.c.l.b16 %v5990
          %v6699 = vunpack.c.h.b16 %v5990
          %v6700 = vunpack.c.l.b16 %v5991
          %v6701 = vunpack.c.h.b16 %v5991
          %v6702 = vunpack.c.l.b16 %v5992
          %v6703 = vunpack.c.h.b16 %v5992
          %v6704 = vunpack.c.l.b16 %v5993
          %v6705 = vunpack.c.h.b16 %v5993
          %v6706 = vunpack.c.l.b16 %v5994
          %v6707 = vunpack.c.h.b16 %v5994
          %v6708 = vunpack.c.l.b16 %v5995
          %v6709 = vunpack.c.h.b16 %v5995
          %v6710 = vunpack.c.l.b16 %v5996
          %v6711 = vunpack.c.h.b16 %v5996
          %v6712 = vunpack.c.l.b16 %v5997
          %v6713 = vunpack.c.h.b16 %v5997
          %v6714 = vunpack.c.l.b16 %v5998
          %v6715 = vunpack.c.h.b16 %v5998
          %v6716 = vunpack.c.l.b16 %v5999
          %v6717 = vunpack.c.h.b16 %v5999
          %v6718 = vunpack.c.l.b16 %v6000
          %v6719 = vunpack.c.h.b16 %v6000
          %v6720 = vunpack.c.l.b16 %v6001
          %v6721 = vunpack.c.h.b16 %v6001
          %v6722 = vunpack.c.l.b16 %v6002
          %v6723 = vunpack.c.h.b16 %v6002
          %v6724 = vunpack.c.l.b16 %v6003
          %v6725 = vunpack.c.h.b16 %v6003
          %v6726 = vunpack.c.l.b16 %v6004
          %v6727 = vunpack.c.h.b16 %v6004
          %v6728 = vunpack.c.l.b16 %v6005
          %v6729 = vunpack.c.h.b16 %v6005
          %v6730 = vunpack.c.l.b16 %v6006
          %v6731 = vunpack.c.h.b16 %v6006
          %v6732 = vunpack.c.l.b16 %v6007
          %v6733 = vunpack.c.h.b16 %v6007
          %v6734 = vunpack.c.l.b16 %v6008
          %v6735 = vunpack.c.h.b16 %v6008
          %v6736 = vunpack.c.l.b16 %v6009
          %v6737 = vunpack.c.h.b16 %v6009
          %v6738 = vunpack.c.l.b16 %v6010
          %v6739 = vunpack.c.h.b16 %v6010
          %v6740 = vunpack.c.l.b16 %v6011
          %v6741 = vunpack.c.h.b16 %v6011
          %v6742 = vunpack.c.l.b16 %v6012
          %v6743 = vunpack.c.h.b16 %v6012
          %v6744 = vunpack.c.l.b16 %v6013
          %v6745 = vunpack.c.h.b16 %v6013
          %v6746 = vunpack.c.l.b16 %v6014
          %v6747 = vunpack.c.h.b16 %v6014
          %v6748 = vunpack.c.l.b16 %v6015
          %v6749 = vunpack.c.h.b16 %v6015
          %v6750 = vunpack.c.l.b16 %v6016
          %v6751 = vunpack.c.h.b16 %v6016
          %v6752 = vunpack.c.l.b16 %v6017
          %v6753 = vunpack.c.h.b16 %v6017
          %v6754 = vunpack.c.l.b16 %v6018
          %v6755 = vunpack.c.h.b16 %v6018
          %v6756 = vunpack.c.l.b16 %v6019
          %v6757 = vunpack.c.h.b16 %v6019
          %v6758 = vunpack.c.l.b16 %v6020
          %v6759 = vunpack.c.h.b16 %v6020
          %v6760 = vunpack.c.l.b16 %v6021
          %v6761 = vunpack.c.h.b16 %v6021
          %v6762 = vunpack.c.l.b16 %v6022
          %v6763 = vunpack.c.h.b16 %v6022
          %v6764 = vunpack.c.l.b16 %v6023
          %v6765 = vunpack.c.h.b16 %v6023
          %v6766 = vunpack.c.l.b16 %v6024
          %v6767 = vunpack.c.h.b16 %v6024
          %v6768 = vunpack.c.l.b16 %v6025
          %v6769 = vunpack.c.h.b16 %v6025
          %v6770 = vunpack.c.l.b16 %v6026
          %v6771 = vunpack.c.h.b16 %v6026
          %v6772 = vunpack.c.l.b16 %v6027
          %v6773 = vunpack.c.h.b16 %v6027
          %v6774 = vunpack.c.l.b16 %v6028
          %v6775 = vunpack.c.h.b16 %v6028
          %v6776 = vunpack.c.l.b16 %v6029
          %v6777 = vunpack.c.h.b16 %v6029
          %v6778 = vunpack.c.l.b16 %v6030
          %v6779 = vunpack.c.h.b16 %v6030
          %v6780 = vunpack.c.l.b16 %v6031
          %v6781 = vunpack.c.h.b16 %v6031
          %v6782 = vunpack.c.l.b16 %v6032
          %v6783 = vunpack.c.h.b16 %v6032
          %v6784 = vunpack.c.l.b16 %v6033
          %v6785 = vunpack.c.h.b16 %v6033
          %v6786 = vunpack.c.l.b16 %v6034
          %v6787 = vunpack.c.h.b16 %v6034
          %v6788 = vunpack.c.l.b16 %v6035
          %v6789 = vunpack.c.h.b16 %v6035
          %v6790 = vunpack.c.l.b16 %v6036
          %v6791 = vunpack.c.h.b16 %v6036
          %v6792 = vunpack.c.l.b16 %v6037
          %v6793 = vunpack.c.h.b16 %v6037
          %v6794 = vunpack.c.l.b16 %v6038
          %v6795 = vunpack.c.h.b16 %v6038
          %v6796 = vunpack.c.l.b16 %v6039
          %v6797 = vunpack.c.h.b16 %v6039
          %v6798 = vunpack.c.l.b16 %v6040
          %v6799 = vunpack.c.h.b16 %v6040
          %v6800 = vunpack.c.l.b16 %v6041
          %v6801 = vunpack.c.h.b16 %v6041
          %v6802 = vunpack.c.l.b16 %v6042
          %v6803 = vunpack.c.h.b16 %v6042
          %v6804 = vunpack.c.l.b16 %v6043
          %v6805 = vunpack.c.h.b16 %v6043
          %v6806 = vunpack.c.l.b16 %v6044
          %v6807 = vunpack.c.h.b16 %v6044
          %v6808 = vunpack.c.l.b16 %v6045
          %v6809 = vunpack.c.h.b16 %v6045
          %v6810 = vunpack.c.l.b16 %v6046
          %v6811 = vunpack.c.h.b16 %v6046
          %v6812 = vunpack.c.l.b16 %v6047
          %v6813 = vunpack.c.h.b16 %v6047
          %v6814 = vunpack.c.l.b16 %v6048
          %v6815 = vunpack.c.h.b16 %v6048
          %v6816 = vunpack.c.l.b16 %v6049
          %v6817 = vunpack.c.h.b16 %v6049
          %v6818 = vunpack.c.l.b16 %v6050
          %v6819 = vunpack.c.h.b16 %v6050
          %v6820 = vpack.c.b16 %v6312, %v6308
          %v6821 = vpack.c.b16 %v6313, %v6309
          %v6822 = vpack.c.b16 %v6314, %v6310
          %v6823 = vpack.c.b16 %v6315, %v6311
          %v6824 = vpack.c.b16 %v6320, %v6316
          %v6825 = vpack.c.b16 %v6321, %v6317
          %v6826 = vpack.c.b16 %v6322, %v6318
          %v6827 = vpack.c.b16 %v6323, %v6319
          %v6828 = vpack.c.b16 %v6328, %v6324
          %v6829 = vpack.c.b16 %v6329, %v6325
          %v6830 = vpack.c.b16 %v6330, %v6326
          %v6831 = vpack.c.b16 %v6331, %v6327
          %v6832 = vpack.c.b16 %v6336, %v6332
          %v6833 = vpack.c.b16 %v6337, %v6333
          %v6834 = vpack.c.b16 %v6338, %v6334
          %v6835 = vpack.c.b16 %v6339, %v6335
          %v6836 = vpack.c.b16 %v6344, %v6340
          %v6837 = vpack.c.b16 %v6345, %v6341
          %v6838 = vpack.c.b16 %v6346, %v6342
          %v6839 = vpack.c.b16 %v6347, %v6343
          %v6840 = vpack.c.b16 %v6352, %v6348
          %v6841 = vpack.c.b16 %v6353, %v6349
          %v6842 = vpack.c.b16 %v6354, %v6350
          %v6843 = vpack.c.b16 %v6355, %v6351
          %v6844 = vpack.c.b16 %v6360, %v6356
          %v6845 = vpack.c.b16 %v6361, %v6357
          %v6846 = vpack.c.b16 %v6362, %v6358
          %v6847 = vpack.c.b16 %v6363, %v6359
          %v6848 = vpack.c.b16 %v6368, %v6364
          %v6849 = vpack.c.b16 %v6369, %v6365
          %v6850 = vpack.c.b16 %v6370, %v6366
          %v6851 = vpack.c.b16 %v6371, %v6367
          %v6852 = vpack.c.b16 %v6376, %v6372
          %v6853 = vpack.c.b16 %v6377, %v6373
          %v6854 = vpack.c.b16 %v6378, %v6374
          %v6855 = vpack.c.b16 %v6379, %v6375
          %v6856 = vpack.c.b16 %v6384, %v6380
          %v6857 = vpack.c.b16 %v6385, %v6381
          %v6858 = vpack.c.b16 %v6386, %v6382
          %v6859 = vpack.c.b16 %v6387, %v6383
          %v6860 = vpack.c.b16 %v6392, %v6388
          %v6861 = vpack.c.b16 %v6393, %v6389
          %v6862 = vpack.c.b16 %v6394, %v6390
          %v6863 = vpack.c.b16 %v6395, %v6391
          %v6864 = vpack.c.b16 %v6400, %v6396
          %v6865 = vpack.c.b16 %v6401, %v6397
          %v6866 = vpack.c.b16 %v6402, %v6398
          %v6867 = vpack.c.b16 %v6403, %v6399
          %v6868 = vpack.c.b16 %v6408, %v6404
          %v6869 = vpack.c.b16 %v6409, %v6405
          %v6870 = vpack.c.b16 %v6410, %v6406
          %v6871 = vpack.c.b16 %v6411, %v6407
          %v6872 = vpack.c.b16 %v6416, %v6412
          %v6873 = vpack.c.b16 %v6417, %v6413
          %v6874 = vpack.c.b16 %v6418, %v6414
          %v6875 = vpack.c.b16 %v6419, %v6415
          %v6876 = vpack.c.b16 %v6424, %v6420
          %v6877 = vpack.c.b16 %v6425, %v6421
          %v6878 = vpack.c.b16 %v6426, %v6422
          %v6879 = vpack.c.b16 %v6427, %v6423
          %v6880 = vpack.c.b16 %v6432, %v6428
          %v6881 = vpack.c.b16 %v6433, %v6429
          %v6882 = vpack.c.b16 %v6434, %v6430
          %v6883 = vpack.c.b16 %v6435, %v6431
          %v6884 = vpack.c.b16 %v6440, %v6436
          %v6885 = vpack.c.b16 %v6441, %v6437
          %v6886 = vpack.c.b16 %v6442, %v6438
          %v6887 = vpack.c.b16 %v6443, %v6439
          %v6888 = vpack.c.b16 %v6448, %v6444
          %v6889 = vpack.c.b16 %v6449, %v6445
          %v6890 = vpack.c.b16 %v6450, %v6446
          %v6891 = vpack.c.b16 %v6451, %v6447
          %v6892 = vpack.c.b16 %v6456, %v6452
          %v6893 = vpack.c.b16 %v6457, %v6453
          %v6894 = vpack.c.b16 %v6458, %v6454
          %v6895 = vpack.c.b16 %v6459, %v6455
          %v6896 = vpack.c.b16 %v6464, %v6460
          %v6897 = vpack.c.b16 %v6465, %v6461
          %v6898 = vpack.c.b16 %v6466, %v6462
          %v6899 = vpack.c.b16 %v6467, %v6463
          %v6900 = vpack.c.b16 %v6472, %v6468
          %v6901 = vpack.c.b16 %v6473, %v6469
          %v6902 = vpack.c.b16 %v6474, %v6470
          %v6903 = vpack.c.b16 %v6475, %v6471
          %v6904 = vpack.c.b16 %v6480, %v6476
          %v6905 = vpack.c.b16 %v6481, %v6477
          %v6906 = vpack.c.b16 %v6482, %v6478
          %v6907 = vpack.c.b16 %v6483, %v6479
          %v6908 = vpack.c.b16 %v6488, %v6484
          %v6909 = vpack.c.b16 %v6489, %v6485
          %v6910 = vpack.c.b16 %v6490, %v6486
          %v6911 = vpack.c.b16 %v6491, %v6487
          %v6912 = vpack.c.b16 %v6496, %v6492
          %v6913 = vpack.c.b16 %v6497, %v6493
          %v6914 = vpack.c.b16 %v6498, %v6494
          %v6915 = vpack.c.b16 %v6499, %v6495
          %v6916 = vpack.c.b16 %v6504, %v6500
          %v6917 = vpack.c.b16 %v6505, %v6501
          %v6918 = vpack.c.b16 %v6506, %v6502
          %v6919 = vpack.c.b16 %v6507, %v6503
          %v6920 = vpack.c.b16 %v6512, %v6508
          %v6921 = vpack.c.b16 %v6513, %v6509
          %v6922 = vpack.c.b16 %v6514, %v6510
          %v6923 = vpack.c.b16 %v6515, %v6511
          %v6924 = vpack.c.b16 %v6520, %v6516
          %v6925 = vpack.c.b16 %v6521, %v6517
          %v6926 = vpack.c.b16 %v6522, %v6518
          %v6927 = vpack.c.b16 %v6523, %v6519
          %v6928 = vpack.c.b16 %v6528, %v6524
          %v6929 = vpack.c.b16 %v6529, %v6525
          %v6930 = vpack.c.b16 %v6530, %v6526
          %v6931 = vpack.c.b16 %v6531, %v6527
          %v6932 = vpack.c.b16 %v6536, %v6532
          %v6933 = vpack.c.b16 %v6537, %v6533
          %v6934 = vpack.c.b16 %v6538, %v6534
          %v6935 = vpack.c.b16 %v6539, %v6535
          %v6936 = vpack.c.b16 %v6544, %v6540
          %v6937 = vpack.c.b16 %v6545, %v6541
          %v6938 = vpack.c.b16 %v6546, %v6542
          %v6939 = vpack.c.b16 %v6547, %v6543
          %v6940 = vpack.c.b16 %v6552, %v6548
          %v6941 = vpack.c.b16 %v6553, %v6549
          %v6942 = vpack.c.b16 %v6554, %v6550
          %v6943 = vpack.c.b16 %v6555, %v6551
          %v6944 = vpack.c.b16 %v6560, %v6556
          %v6945 = vpack.c.b16 %v6561, %v6557
          %v6946 = vpack.c.b16 %v6562, %v6558
          %v6947 = vpack.c.b16 %v6563, %v6559
          %v6948 = vpack.c.b16 %v6568, %v6564
          %v6949 = vpack.c.b16 %v6569, %v6565
          %v6950 = vpack.c.b16 %v6570, %v6566
          %v6951 = vpack.c.b16 %v6571, %v6567
          %v6952 = vpack.c.b16 %v6576, %v6572
          %v6953 = vpack.c.b16 %v6577, %v6573
          %v6954 = vpack.c.b16 %v6578, %v6574
          %v6955 = vpack.c.b16 %v6579, %v6575
          %v6956 = vpack.c.b16 %v6584, %v6580
          %v6957 = vpack.c.b16 %v6585, %v6581
          %v6958 = vpack.c.b16 %v6586, %v6582
          %v6959 = vpack.c.b16 %v6587, %v6583
          %v6960 = vpack.c.b16 %v6592, %v6588
          %v6961 = vpack.c.b16 %v6593, %v6589
          %v6962 = vpack.c.b16 %v6594, %v6590
          %v6963 = vpack.c.b16 %v6595, %v6591
          %v6964 = vpack.c.b16 %v6600, %v6596
          %v6965 = vpack.c.b16 %v6601, %v6597
          %v6966 = vpack.c.b16 %v6602, %v6598
          %v6967 = vpack.c.b16 %v6603, %v6599
          %v6968 = vpack.c.b16 %v6608, %v6604
          %v6969 = vpack.c.b16 %v6609, %v6605
          %v6970 = vpack.c.b16 %v6610, %v6606
          %v6971 = vpack.c.b16 %v6611, %v6607
          %v6972 = vpack.c.b16 %v6616, %v6612
          %v6973 = vpack.c.b16 %v6617, %v6613
          %v6974 = vpack.c.b16 %v6618, %v6614
          %v6975 = vpack.c.b16 %v6619, %v6615
          %v6976 = vpack.c.b16 %v6624, %v6620
          %v6977 = vpack.c.b16 %v6625, %v6621
          %v6978 = vpack.c.b16 %v6626, %v6622
          %v6979 = vpack.c.b16 %v6627, %v6623
          %v6980 = vpack.c.b16 %v6632, %v6628
          %v6981 = vpack.c.b16 %v6633, %v6629
          %v6982 = vpack.c.b16 %v6634, %v6630
          %v6983 = vpack.c.b16 %v6635, %v6631
          %v6984 = vpack.c.b16 %v6640, %v6636
          %v6985 = vpack.c.b16 %v6641, %v6637
          %v6986 = vpack.c.b16 %v6642, %v6638
          %v6987 = vpack.c.b16 %v6643, %v6639
          %v6988 = vpack.c.b16 %v6648, %v6644
          %v6989 = vpack.c.b16 %v6649, %v6645
          %v6990 = vpack.c.b16 %v6650, %v6646
          %v6991 = vpack.c.b16 %v6651, %v6647
          %v6992 = vpack.c.b16 %v6656, %v6652
          %v6993 = vpack.c.b16 %v6657, %v6653
          %v6994 = vpack.c.b16 %v6658, %v6654
          %v6995 = vpack.c.b16 %v6659, %v6655
          %v6996 = vpack.c.b16 %v6664, %v6660
          %v6997 = vpack.c.b16 %v6665, %v6661
          %v6998 = vpack.c.b16 %v6666, %v6662
          %v6999 = vpack.c.b16 %v6667, %v6663
          %v7000 = vpack.c.b16 %v6672, %v6668
          %v7001 = vpack.c.b16 %v6673, %v6669
          %v7002 = vpack.c.b16 %v6674, %v6670
          %v7003 = vpack.c.b16 %v6675, %v6671
          %v7004 = vpack.c.b16 %v6680, %v6676
          %v7005 = vpack.c.b16 %v6681, %v6677
          %v7006 = vpack.c.b16 %v6682, %v6678
          %v7007 = vpack.c.b16 %v6683, %v6679
          %v7008 = vpack.c.b16 %v6688, %v6684
          %v7009 = vpack.c.b16 %v6689, %v6685
          %v7010 = vpack.c.b16 %v6690, %v6686
          %v7011 = vpack.c.b16 %v6691, %v6687
          %v7012 = vpack.c.b16 %v6696, %v6692
          %v7013 = vpack.c.b16 %v6697, %v6693
          %v7014 = vpack.c.b16 %v6698, %v6694
          %v7015 = vpack.c.b16 %v6699, %v6695
          %v7016 = vpack.c.b16 %v6704, %v6700
          %v7017 = vpack.c.b16 %v6705, %v6701
          %v7018 = vpack.c.b16 %v6706, %v6702
          %v7019 = vpack.c.b16 %v6707, %v6703
          %v7020 = vpack.c.b16 %v6712, %v6708
          %v7021 = vpack.c.b16 %v6713, %v6709
          %v7022 = vpack.c.b16 %v6714, %v6710
          %v7023 = vpack.c.b16 %v6715, %v6711
          %v7024 = vpack.c.b16 %v6720, %v6716
          %v7025 = vpack.c.b16 %v6721, %v6717
          %v7026 = vpack.c.b16 %v6722, %v6718
          %v7027 = vpack.c.b16 %v6723, %v6719
          %v7028 = vpack.c.b16 %v6728, %v6724
          %v7029 = vpack.c.b16 %v6729, %v6725
          %v7030 = vpack.c.b16 %v6730, %v6726
          %v7031 = vpack.c.b16 %v6731, %v6727
          %v7032 = vpack.c.b16 %v6736, %v6732
          %v7033 = vpack.c.b16 %v6737, %v6733
          %v7034 = vpack.c.b16 %v6738, %v6734
          %v7035 = vpack.c.b16 %v6739, %v6735
          %v7036 = vpack.c.b16 %v6744, %v6740
          %v7037 = vpack.c.b16 %v6745, %v6741
          %v7038 = vpack.c.b16 %v6746, %v6742
          %v7039 = vpack.c.b16 %v6747, %v6743
          %v7040 = vpack.c.b16 %v6752, %v6748
          %v7041 = vpack.c.b16 %v6753, %v6749
          %v7042 = vpack.c.b16 %v6754, %v6750
          %v7043 = vpack.c.b16 %v6755, %v6751
          %v7044 = vpack.c.b16 %v6760, %v6756
          %v7045 = vpack.c.b16 %v6761, %v6757
          %v7046 = vpack.c.b16 %v6762, %v6758
          %v7047 = vpack.c.b16 %v6763, %v6759
          %v7048 = vpack.c.b16 %v6768, %v6764
          %v7049 = vpack.c.b16 %v6769, %v6765
          %v7050 = vpack.c.b16 %v6770, %v6766
          %v7051 = vpack.c.b16 %v6771, %v6767
          %v7052 = vpack.c.b16 %v6776, %v6772
          %v7053 = vpack.c.b16 %v6777, %v6773
          %v7054 = vpack.c.b16 %v6778, %v6774
          %v7055 = vpack.c.b16 %v6779, %v6775
          %v7056 = vpack.c.b16 %v6784, %v6780
          %v7057 = vpack.c.b16 %v6785, %v6781
          %v7058 = vpack.c.b16 %v6786, %v6782
          %v7059 = vpack.c.b16 %v6787, %v6783
          %v7060 = vpack.c.b16 %v6792, %v6788
          %v7061 = vpack.c.b16 %v6793, %v6789
          %v7062 = vpack.c.b16 %v6794, %v6790
          %v7063 = vpack.c.b16 %v6795, %v6791
          %v7064 = vpack.c.b16 %v6800, %v6796
          %v7065 = vpack.c.b16 %v6801, %v6797
          %v7066 = vpack.c.b16 %v6802, %v6798
          %v7067 = vpack.c.b16 %v6803, %v6799
          %v7068 = vpack.c.b16 %v6808, %v6804
          %v7069 = vpack.c.b16 %v6809, %v6805
          %v7070 = vpack.c.b16 %v6810, %v6806
          %v7071 = vpack.c.b16 %v6811, %v6807
          %v7072 = vpack.c.b16 %v6816, %v6812
          %v7073 = vpack.c.b16 %v6817, %v6813
          %v7074 = vpack.c.b16 %v6818, %v6814
          %v7075 = vpack.c.b16 %v6819, %v6815
          %v7333 = vlaneseq
          %v7334 = vshrl.u32 %v7333, 7
          %v7335 = vsub.s32 0, %v7334
          %v7336 = vrot.slane %v6051, %v7335
          %v7337 = vlaneseq
          %v7338 = vshrl.u32 %v7337, 7
          %v7339 = vsub.s32 1, %v7338
          %v7340 = vrot.slane %v6051, %v7339
          %v7341 = vlaneseq
          %v7342 = vshrl.u32 %v7341, 7
          %v7343 = vsub.s32 2, %v7342
          %v7344 = vrot.slane %v6051, %v7343
          %v7345 = vlaneseq
          %v7346 = vshrl.u32 %v7345, 7
          %v7347 = vsub.s32 3, %v7346
          %v7348 = vrot.slane %v6051, %v7347
          %7353 = vmatprep.subr.bf16.mxu0 %v6821
          %7354 = vmatpush1.bf16.msra.mxu0 %v6820
          %7355 = vmatprep.subr.bf16.mxu0 %v6825
          %7356 = vmatpush1.bf16.msra.mxu0 %v6824
          %7357 = vmatprep.subr.bf16.mxu0 %v6829
          %7358 = vmatpush1.bf16.msra.mxu0 %v6828
          %7359 = vmatprep.subr.bf16.mxu0 %v6833
          %7360 = vmatpush1.bf16.msra.mxu0 %v6832
          %7361 = vmatprep.subr.bf16.mxu0 %v6837
          %7362 = vmatpush1.bf16.msra.mxu0 %v6836
          %7363 = vmatprep.subr.bf16.mxu0 %v6841
          %7364 = vmatpush1.bf16.msra.mxu0 %v6840
          %7365 = vmatprep.subr.bf16.mxu0 %v6845
          %7366 = vmatpush1.bf16.msra.mxu0 %v6844
          %7367 = vmatprep.subr.bf16.mxu0 %v6849
          %7368 = vmatpush1.bf16.msra.mxu0 %v6848
          %7369 = vmatprep.subr.bf16.mxu0 %v6853
          %7370 = vmatpush1.bf16.msra.mxu0 %v6852
          %7371 = vmatprep.subr.bf16.mxu0 %v6857
          %7372 = vmatpush1.bf16.msra.mxu0 %v6856
          %7373 = vmatprep.subr.bf16.mxu0 %v6861
          %7374 = vmatpush1.bf16.msra.mxu0 %v6860
          %7375 = vmatprep.subr.bf16.mxu0 %v6865
          %7376 = vmatpush1.bf16.msra.mxu0 %v6864
          %7377 = vmatprep.subr.bf16.mxu0 %v6869
          %7378 = vmatpush1.bf16.msra.mxu0 %v6868
          %7379 = vmatprep.subr.bf16.mxu0 %v6873
          %7380 = vmatpush1.bf16.msra.mxu0 %v6872
          %7381 = vmatprep.subr.bf16.mxu0 %v6877
          %7382 = vmatpush1.bf16.msra.mxu0 %v6876
          %7383 = vmatprep.subr.bf16.mxu0 %v6881
          %7384 = vmatpush1.bf16.msra.mxu0 %v6880
          %7385 = vmatprep.mubr.bf16.mxu0 %v5788
          %7386 = vmatmul.mubr.bf16.gmra.mrb[0].mxu0 %v5787
          %v7387 = vpop.f32.mrb[0].mxu0
          %v7388 = vadd.f32 %v7336, %v7387
          %v7389 = vpop.f32.mrb[0].mxu0
          %v7390 = vadd.f32 %v7340, %v7389
          %v7391 = vpop.f32.mrb[0].mxu0
          %v7392 = vpop.f32.mrb[0].mxu0
          %7393 = vdwg.mxu0
          %7394 = vmatprep.subr.bf16.mxu0 %v6885
          %7395 = vmatpush1.bf16.msra.mxu0 %v6884
          %7396 = vmatprep.subr.bf16.mxu0 %v6889
          %7397 = vmatpush1.bf16.msra.mxu0 %v6888
          %7398 = vmatprep.subr.bf16.mxu0 %v6893
          %7399 = vmatpush1.bf16.msra.mxu0 %v6892
          %7400 = vmatprep.subr.bf16.mxu0 %v6897
          %7401 = vmatpush1.bf16.msra.mxu0 %v6896
          %7402 = vmatprep.subr.bf16.mxu0 %v6901
          %7403 = vmatpush1.bf16.msra.mxu0 %v6900
          %7404 = vmatprep.subr.bf16.mxu0 %v6905
          %7405 = vmatpush1.bf16.msra.mxu0 %v6904
          %7406 = vmatprep.subr.bf16.mxu0 %v6909
          %7407 = vmatpush1.bf16.msra.mxu0 %v6908
          %7408 = vmatprep.subr.bf16.mxu0 %v6913
          %7409 = vmatpush1.bf16.msra.mxu0 %v6912
          %7410 = vmatprep.subr.bf16.mxu0 %v6917
          %7411 = vmatpush1.bf16.msra.mxu0 %v6916
          %7412 = vmatprep.subr.bf16.mxu0 %v6921
          %7413 = vmatpush1.bf16.msra.mxu0 %v6920
          %7414 = vmatprep.subr.bf16.mxu0 %v6925
          %7415 = vmatpush1.bf16.msra.mxu0 %v6924
          %7416 = vmatprep.subr.bf16.mxu0 %v6929
          %7417 = vmatpush1.bf16.msra.mxu0 %v6928
          %7418 = vmatprep.subr.bf16.mxu0 %v6933
          %7419 = vmatpush1.bf16.msra.mxu0 %v6932
          %7420 = vmatprep.subr.bf16.mxu0 %v6937
          %7421 = vmatpush1.bf16.msra.mxu0 %v6936
          %7422 = vmatprep.subr.bf16.mxu0 %v6941
          %7423 = vmatpush1.bf16.msra.mxu0 %v6940
          %7424 = vmatprep.subr.bf16.mxu0 %v6945
          %7425 = vmatpush1.bf16.msra.mxu0 %v6944
          %7426 = vmatprep.mubr.bf16.mxu0 %v5790
          %7427 = vmatmul.mubr.bf16.gmra.mrb[0].mxu0 %v5789
          %v7428 = vpop.f32.mrb[0].mxu0
          %v7429 = vadd.f32 %v7388, %v7428
          %v7430 = vpop.f32.mrb[0].mxu0
          %v7431 = vadd.f32 %v7390, %v7430
          %v7432 = vpop.f32.mrb[0].mxu0
          %v7433 = vpop.f32.mrb[0].mxu0
          %7434 = vdwg.mxu0
          %7435 = vmatprep.subr.bf16.mxu0 %v6949
          %7436 = vmatpush1.bf16.msra.mxu0 %v6948
          %7437 = vmatprep.subr.bf16.mxu0 %v6953
          %7438 = vmatpush1.bf16.msra.mxu0 %v6952
          %7439 = vmatprep.subr.bf16.mxu0 %v6957
          %7440 = vmatpush1.bf16.msra.mxu0 %v6956
          %7441 = vmatprep.subr.bf16.mxu0 %v6961
          %7442 = vmatpush1.bf16.msra.mxu0 %v6960
          %7443 = vmatprep.subr.bf16.mxu0 %v6965
          %7444 = vmatpush1.bf16.msra.mxu0 %v6964
          %7445 = vmatprep.subr.bf16.mxu0 %v6969
          %7446 = vmatpush1.bf16.msra.mxu0 %v6968
          %7447 = vmatprep.subr.bf16.mxu0 %v6973
          %7448 = vmatpush1.bf16.msra.mxu0 %v6972
          %7449 = vmatprep.subr.bf16.mxu0 %v6977
          %7450 = vmatpush1.bf16.msra.mxu0 %v6976
          %7451 = vmatprep.subr.bf16.mxu0 %v6981
          %7452 = vmatpush1.bf16.msra.mxu0 %v6980
          %7453 = vmatprep.subr.bf16.mxu0 %v6985
          %7454 = vmatpush1.bf16.msra.mxu0 %v6984
          %7455 = vmatprep.subr.bf16.mxu0 %v6989
          %7456 = vmatpush1.bf16.msra.mxu0 %v6988
          %7457 = vmatprep.subr.bf16.mxu0 %v6993
          %7458 = vmatpush1.bf16.msra.mxu0 %v6992
          %7459 = vmatprep.subr.bf16.mxu0 %v6997
          %7460 = vmatpush1.bf16.msra.mxu0 %v6996
          %7461 = vmatprep.subr.bf16.mxu0 %v7001
          %7462 = vmatpush1.bf16.msra.mxu0 %v7000
          %7463 = vmatprep.subr.bf16.mxu0 %v7005
          %7464 = vmatpush1.bf16.msra.mxu0 %v7004
          %7465 = vmatprep.subr.bf16.mxu0 %v7009
          %7466 = vmatpush1.bf16.msra.mxu0 %v7008
          %7467 = vmatprep.mubr.bf16.mxu0 %v5792
          %7468 = vmatmul.mubr.bf16.gmra.mrb[0].mxu0 %v5791
          %v7469 = vpop.f32.mrb[0].mxu0
          %v7470 = vadd.f32 %v7429, %v7469
          %v7471 = vpop.f32.mrb[0].mxu0
          %v7472 = vadd.f32 %v7431, %v7471
          %v7473 = vpop.f32.mrb[0].mxu0
          %v7474 = vpop.f32.mrb[0].mxu0
          %7475 = vdwg.mxu0
          %7476 = vmatprep.subr.bf16.mxu0 %v7013
          %7477 = vmatpush1.bf16.msra.mxu0 %v7012
          %7478 = vmatprep.subr.bf16.mxu0 %v7017
          %7479 = vmatpush1.bf16.msra.mxu0 %v7016
          %7480 = vmatprep.subr.bf16.mxu0 %v7021
          %7481 = vmatpush1.bf16.msra.mxu0 %v7020
          %7482 = vmatprep.subr.bf16.mxu0 %v7025
          %7483 = vmatpush1.bf16.msra.mxu0 %v7024
          %7484 = vmatprep.subr.bf16.mxu0 %v7029
          %7485 = vmatpush1.bf16.msra.mxu0 %v7028
          %7486 = vmatprep.subr.bf16.mxu0 %v7033
          %7487 = vmatpush1.bf16.msra.mxu0 %v7032
          %7488 = vmatprep.subr.bf16.mxu0 %v7037
          %7489 = vmatpush1.bf16.msra.mxu0 %v7036
          %7490 = vmatprep.subr.bf16.mxu0 %v7041
          %7491 = vmatpush1.bf16.msra.mxu0 %v7040
          %7492 = vmatprep.subr.bf16.mxu0 %v7045
          %7493 = vmatpush1.bf16.msra.mxu0 %v7044
          %7494 = vmatprep.subr.bf16.mxu0 %v7049
          %7495 = vmatpush1.bf16.msra.mxu0 %v7048
          %7496 = vmatprep.subr.bf16.mxu0 %v7053
          %7497 = vmatpush1.bf16.msra.mxu0 %v7052
          %7498 = vmatprep.subr.bf16.mxu0 %v7057
          %7499 = vmatpush1.bf16.msra.mxu0 %v7056
          %7500 = vmatprep.subr.bf16.mxu0 %v7061
          %7501 = vmatpush1.bf16.msra.mxu0 %v7060
          %7502 = vmatprep.subr.bf16.mxu0 %v7065
          %7503 = vmatpush1.bf16.msra.mxu0 %v7064
          %7504 = vmatprep.subr.bf16.mxu0 %v7069
          %7505 = vmatpush1.bf16.msra.mxu0 %v7068
          %7506 = vmatprep.subr.bf16.mxu0 %v7073
          %7507 = vmatpush1.bf16.msra.mxu0 %v7072
          %7508 = vmatprep.mubr.bf16.mxu0 %v5794
          %7509 = vmatmul.mubr.bf16.gmra.mrb[0].mxu0 %v5793
          %v7510 = vpop.f32.mrb[0].mxu0
          %v7511 = vadd.f32 %v7470, %v7510
          %v7512 = vpop.f32.mrb[0].mxu0
          %v7513 = vadd.f32 %v7472, %v7512
          %v7514 = vpop.f32.mrb[0].mxu0
          %v7515 = vpop.f32.mrb[0].mxu0
          %7516 = vdwg.mxu0
          %7517 = vmatprep.subr.bf16.mxu0 %v6823
          %7518 = vmatpush1.bf16.msra.mxu0 %v6822
          %7519 = vmatprep.subr.bf16.mxu0 %v6827
          %7520 = vmatpush1.bf16.msra.mxu0 %v6826
          %7521 = vmatprep.subr.bf16.mxu0 %v6831
          %7522 = vmatpush1.bf16.msra.mxu0 %v6830
          %7523 = vmatprep.subr.bf16.mxu0 %v6835
          %7524 = vmatpush1.bf16.msra.mxu0 %v6834
          %7525 = vmatprep.subr.bf16.mxu0 %v6839
          %7526 = vmatpush1.bf16.msra.mxu0 %v6838
          %7527 = vmatprep.subr.bf16.mxu0 %v6843
          %7528 = vmatpush1.bf16.msra.mxu0 %v6842
          %7529 = vmatprep.subr.bf16.mxu0 %v6847
          %7530 = vmatpush1.bf16.msra.mxu0 %v6846
          %7531 = vmatprep.subr.bf16.mxu0 %v6851
          %7532 = vmatpush1.bf16.msra.mxu0 %v6850
          %7533 = vmatprep.subr.bf16.mxu0 %v6855
          %7534 = vmatpush1.bf16.msra.mxu0 %v6854
          %7535 = vmatprep.subr.bf16.mxu0 %v6859
          %7536 = vmatpush1.bf16.msra.mxu0 %v6858
          %7537 = vmatprep.subr.bf16.mxu0 %v6863
          %7538 = vmatpush1.bf16.msra.mxu0 %v6862
          %7539 = vmatprep.subr.bf16.mxu0 %v6867
          %7540 = vmatpush1.bf16.msra.mxu0 %v6866
          %7541 = vmatprep.subr.bf16.mxu0 %v6871
          %7542 = vmatpush1.bf16.msra.mxu0 %v6870
          %7543 = vmatprep.subr.bf16.mxu0 %v6875
          %7544 = vmatpush1.bf16.msra.mxu0 %v6874
          %7545 = vmatprep.subr.bf16.mxu0 %v6879
          %7546 = vmatpush1.bf16.msra.mxu0 %v6878
          %7547 = vmatprep.subr.bf16.mxu0 %v6883
          %7548 = vmatpush1.bf16.msra.mxu0 %v6882
          %7549 = vmatprep.mubr.bf16.mxu0 %v5788
          %7550 = vmatmul.mubr.bf16.gmra.mrb[0].mxu0 %v5787
          %v7551 = vpop.f32.mrb[0].mxu0
          %v7552 = vadd.f32 %v7344, %v7551
          %v7553 = vpop.f32.mrb[0].mxu0
          %v7554 = vadd.f32 %v7348, %v7553
          %v7555 = vpop.f32.mrb[0].mxu0
          %v7556 = vpop.f32.mrb[0].mxu0
          %7557 = vdwg.mxu0
          %7558 = vmatprep.subr.bf16.mxu0 %v6887
          %7559 = vmatpush1.bf16.msra.mxu0 %v6886
          %7560 = vmatprep.subr.bf16.mxu0 %v6891
          %7561 = vmatpush1.bf16.msra.mxu0 %v6890
          %7562 = vmatprep.subr.bf16.mxu0 %v6895
          %7563 = vmatpush1.bf16.msra.mxu0 %v6894
          %7564 = vmatprep.subr.bf16.mxu0 %v6899
          %7565 = vmatpush1.bf16.msra.mxu0 %v6898
          %7566 = vmatprep.subr.bf16.mxu0 %v6903
          %7567 = vmatpush1.bf16.msra.mxu0 %v6902
          %7568 = vmatprep.subr.bf16.mxu0 %v6907
          %7569 = vmatpush1.bf16.msra.mxu0 %v6906
          %7570 = vmatprep.subr.bf16.mxu0 %v6911
          %7571 = vmatpush1.bf16.msra.mxu0 %v6910
          %7572 = vmatprep.subr.bf16.mxu0 %v6915
          %7573 = vmatpush1.bf16.msra.mxu0 %v6914
          %7574 = vmatprep.subr.bf16.mxu0 %v6919
          %7575 = vmatpush1.bf16.msra.mxu0 %v6918
          %7576 = vmatprep.subr.bf16.mxu0 %v6923
          %7577 = vmatpush1.bf16.msra.mxu0 %v6922
          %7578 = vmatprep.subr.bf16.mxu0 %v6927
          %7579 = vmatpush1.bf16.msra.mxu0 %v6926
          %7580 = vmatprep.subr.bf16.mxu0 %v6931
          %7581 = vmatpush1.bf16.msra.mxu0 %v6930
          %7582 = vmatprep.subr.bf16.mxu0 %v6935
          %7583 = vmatpush1.bf16.msra.mxu0 %v6934
          %7584 = vmatprep.subr.bf16.mxu0 %v6939
          %7585 = vmatpush1.bf16.msra.mxu0 %v6938
          %7586 = vmatprep.subr.bf16.mxu0 %v6943
          %7587 = vmatpush1.bf16.msra.mxu0 %v6942
          %7588 = vmatprep.subr.bf16.mxu0 %v6947
          %7589 = vmatpush1.bf16.msra.mxu0 %v6946
          %7590 = vmatprep.mubr.bf16.mxu0 %v5790
          %7591 = vmatmul.mubr.bf16.gmra.mrb[0].mxu0 %v5789
          %v7592 = vpop.f32.mrb[0].mxu0
          %v7593 = vadd.f32 %v7552, %v7592
          %v7594 = vpop.f32.mrb[0].mxu0
          %v7595 = vadd.f32 %v7554, %v7594
          %v7596 = vpop.f32.mrb[0].mxu0
          %v7597 = vpop.f32.mrb[0].mxu0
          %7598 = vdwg.mxu0
          %7599 = vmatprep.subr.bf16.mxu0 %v6951
          %7600 = vmatpush1.bf16.msra.mxu0 %v6950
          %7601 = vmatprep.subr.bf16.mxu0 %v6955
          %7602 = vmatpush1.bf16.msra.mxu0 %v6954
          %7603 = vmatprep.subr.bf16.mxu0 %v6959
          %7604 = vmatpush1.bf16.msra.mxu0 %v6958
          %7605 = vmatprep.subr.bf16.mxu0 %v6963
          %7606 = vmatpush1.bf16.msra.mxu0 %v6962
          %7607 = vmatprep.subr.bf16.mxu0 %v6967
          %7608 = vmatpush1.bf16.msra.mxu0 %v6966
          %7609 = vmatprep.subr.bf16.mxu0 %v6971
          %7610 = vmatpush1.bf16.msra.mxu0 %v6970
          %7611 = vmatprep.subr.bf16.mxu0 %v6975
          %7612 = vmatpush1.bf16.msra.mxu0 %v6974
          %7613 = vmatprep.subr.bf16.mxu0 %v6979
          %7614 = vmatpush1.bf16.msra.mxu0 %v6978
          %7615 = vmatprep.subr.bf16.mxu0 %v6983
          %7616 = vmatpush1.bf16.msra.mxu0 %v6982
          %7617 = vmatprep.subr.bf16.mxu0 %v6987
          %7618 = vmatpush1.bf16.msra.mxu0 %v6986
          %7619 = vmatprep.subr.bf16.mxu0 %v6991
          %7620 = vmatpush1.bf16.msra.mxu0 %v6990
          %7621 = vmatprep.subr.bf16.mxu0 %v6995
          %7622 = vmatpush1.bf16.msra.mxu0 %v6994
          %7623 = vmatprep.subr.bf16.mxu0 %v6999
          %7624 = vmatpush1.bf16.msra.mxu0 %v6998
          %7625 = vmatprep.subr.bf16.mxu0 %v7003
          %7626 = vmatpush1.bf16.msra.mxu0 %v7002
          %7627 = vmatprep.subr.bf16.mxu0 %v7007
          %7628 = vmatpush1.bf16.msra.mxu0 %v7006
          %7629 = vmatprep.subr.bf16.mxu0 %v7011
          %7630 = vmatpush1.bf16.msra.mxu0 %v7010
          %7631 = vmatprep.mubr.bf16.mxu0 %v5792
          %7632 = vmatmul.mubr.bf16.gmra.mrb[0].mxu0 %v5791
          %v7633 = vpop.f32.mrb[0].mxu0
          %v7634 = vadd.f32 %v7593, %v7633
          %v7635 = vpop.f32.mrb[0].mxu0
          %v7636 = vadd.f32 %v7595, %v7635
          %v7637 = vpop.f32.mrb[0].mxu0
          %v7638 = vpop.f32.mrb[0].mxu0
          %7639 = vdwg.mxu0
          %7640 = vmatprep.subr.bf16.mxu0 %v7015
          %7641 = vmatpush1.bf16.msra.mxu0 %v7014
          %7642 = vmatprep.subr.bf16.mxu0 %v7019
          %7643 = vmatpush1.bf16.msra.mxu0 %v7018
          %7644 = vmatprep.subr.bf16.mxu0 %v7023
          %7645 = vmatpush1.bf16.msra.mxu0 %v7022
          %7646 = vmatprep.subr.bf16.mxu0 %v7027
          %7647 = vmatpush1.bf16.msra.mxu0 %v7026
          %7648 = vmatprep.subr.bf16.mxu0 %v7031
          %7649 = vmatpush1.bf16.msra.mxu0 %v7030
          %7650 = vmatprep.subr.bf16.mxu0 %v7035
          %7651 = vmatpush1.bf16.msra.mxu0 %v7034
          %7652 = vmatprep.subr.bf16.mxu0 %v7039
          %7653 = vmatpush1.bf16.msra.mxu0 %v7038
          %7654 = vmatprep.subr.bf16.mxu0 %v7043
          %7655 = vmatpush1.bf16.msra.mxu0 %v7042
          %7656 = vmatprep.subr.bf16.mxu0 %v7047
          %7657 = vmatpush1.bf16.msra.mxu0 %v7046
          %7658 = vmatprep.subr.bf16.mxu0 %v7051
          %7659 = vmatpush1.bf16.msra.mxu0 %v7050
          %7660 = vmatprep.subr.bf16.mxu0 %v7055
          %7661 = vmatpush1.bf16.msra.mxu0 %v7054
          %7662 = vmatprep.subr.bf16.mxu0 %v7059
          %7663 = vmatpush1.bf16.msra.mxu0 %v7058
          %7664 = vmatprep.subr.bf16.mxu0 %v7063
          %7665 = vmatpush1.bf16.msra.mxu0 %v7062
          %7666 = vmatprep.subr.bf16.mxu0 %v7067
          %7667 = vmatpush1.bf16.msra.mxu0 %v7066
          %7668 = vmatprep.subr.bf16.mxu0 %v7071
          %7669 = vmatpush1.bf16.msra.mxu0 %v7070
          %7670 = vmatprep.subr.bf16.mxu0 %v7075
          %7671 = vmatpush1.bf16.msra.mxu0 %v7074
          %7672 = vmatprep.mubr.bf16.mxu0 %v5794
          %7673 = vmatmul.mubr.bf16.gmra.mrb[0].mxu0 %v5793
          %v7674 = vpop.f32.mrb[0].mxu0
          %v7675 = vadd.f32 %v7634, %v7674
          %v7676 = vpop.f32.mrb[0].mxu0
          %v7677 = vadd.f32 %v7636, %v7676
          %v7678 = vpop.f32.mrb[0].mxu0
          %v7679 = vpop.f32.mrb[0].mxu0
          %7680 = vdwg.mxu0
          %v7681 = vmax.f32 %v7511, 0.0
          %v7682 = vmax.f32 %v7513, 0.0
          %v7683 = vmax.f32 %v7675, 0.0
          %v7684 = vmax.f32 %v7677, 0.0
          %v7685 = vpack.c.bf16 %v7681, %v7681
          %v7686 = vpack.c.bf16 %v7682, %v7682
          %v7687 = vpack.c.bf16 %v7683, %v7683
          %v7688 = vpack.c.bf16 %v7684, %v7684
          %v7689 = vld [vmem:[#allocation6] sm:$0xff]
          %v7690 = vld [vmem:[#allocation6 + $0x8] sm:$0xff]
          %v7691 = vld [vmem:[#allocation6 + $0x10] sm:$0xff]
          %v7692 = vld [vmem:[#allocation6 + $0x18] sm:$0xff]
          %v7693 = vld [vmem:[#allocation6 + $0x20] sm:$0xff]
          %v7694 = vld [vmem:[#allocation6 + $0x28] sm:$0xff]
          %v7695 = vld [vmem:[#allocation6 + $0x30] sm:$0xff]
          %v7696 = vld [vmem:[#allocation6 + $0x38] sm:$0xff]
          %v7697 = vld [vmem:[#allocation6 + $0x40] sm:$0xff]
          %v7698 = vld [vmem:[#allocation6 + $0x48] sm:$0xff]
          %v7699 = vld [vmem:[#allocation6 + $0x50] sm:$0xff]
          %v7700 = vld [vmem:[#allocation6 + $0x58] sm:$0xff]
          %v7701 = vld [vmem:[#allocation6 + $0x60] sm:$0xff]
          %v7702 = vld [vmem:[#allocation6 + $0x68] sm:$0xff]
          %v7703 = vld [vmem:[#allocation6 + $0x70] sm:$0xff]
          %v7704 = vld [vmem:[#allocation6 + $0x78] sm:$0xff]
          %v7705 = vld [vmem:[#allocation6 + $0x80] sm:$0xff]
          %v7706 = vld [vmem:[#allocation6 + $0x88] sm:$0xff]
          %v7707 = vld [vmem:[#allocation6 + $0x90] sm:$0xff]
          %v7708 = vld [vmem:[#allocation6 + $0x98] sm:$0xff]
          %v7709 = vld [vmem:[#allocation6 + $0xa0] sm:$0xff]
          %v7710 = vld [vmem:[#allocation6 + $0xa8] sm:$0xff]
          %v7711 = vld [vmem:[#allocation6 + $0xb0] sm:$0xff]
          %v7712 = vld [vmem:[#allocation6 + $0xb8] sm:$0xff]
          %v7713 = vld [vmem:[#allocation6 + $0xc0] sm:$0xff]
          %v7714 = vld [vmem:[#allocation6 + $0xc8] sm:$0xff]
          %v7715 = vld [vmem:[#allocation6 + $0xd0] sm:$0xff]
          %v7716 = vld [vmem:[#allocation6 + $0xd8] sm:$0xff]
          %v7717 = vld [vmem:[#allocation6 + $0xe0] sm:$0xff]
          %v7718 = vld [vmem:[#allocation6 + $0xe8] sm:$0xff]
          %v7719 = vld [vmem:[#allocation6 + $0xf0] sm:$0xff]
          %v7720 = vld [vmem:[#allocation6 + $0xf8] sm:$0xff]
          %v7721 = vld [vmem:[#allocation6 + $0x100] sm:$0xff]
          %v7722 = vld [vmem:[#allocation6 + $0x108] sm:$0xff]
          %v7723 = vld [vmem:[#allocation6 + $0x110] sm:$0xff]
          %v7724 = vld [vmem:[#allocation6 + $0x118] sm:$0xff]
          %v7725 = vld [vmem:[#allocation6 + $0x120] sm:$0xff]
          %v7726 = vld [vmem:[#allocation6 + $0x128] sm:$0xff]
          %v7727 = vld [vmem:[#allocation6 + $0x130] sm:$0xff]
          %v7728 = vld [vmem:[#allocation6 + $0x138] sm:$0xff]
          %v7729 = vld [vmem:[#allocation6 + $0x140] sm:$0xff]
          %v7730 = vld [vmem:[#allocation6 + $0x148] sm:$0xff]
          %v7731 = vld [vmem:[#allocation6 + $0x150] sm:$0xff]
          %v7732 = vld [vmem:[#allocation6 + $0x158] sm:$0xff]
          %v7733 = vld [vmem:[#allocation6 + $0x160] sm:$0xff]
          %v7734 = vld [vmem:[#allocation6 + $0x168] sm:$0xff]
          %v7735 = vld [vmem:[#allocation6 + $0x170] sm:$0xff]
          %v7736 = vld [vmem:[#allocation6 + $0x178] sm:$0xff]
          %v7737 = vld [vmem:[#allocation6 + $0x180] sm:$0xff]
          %v7738 = vld [vmem:[#allocation6 + $0x188] sm:$0xff]
          %v7739 = vld [vmem:[#allocation6 + $0x190] sm:$0xff]
          %v7740 = vld [vmem:[#allocation6 + $0x198] sm:$0xff]
          %v7741 = vld [vmem:[#allocation6 + $0x1a0] sm:$0xff]
          %v7742 = vld [vmem:[#allocation6 + $0x1a8] sm:$0xff]
          %v7743 = vld [vmem:[#allocation6 + $0x1b0] sm:$0xff]
          %v7744 = vld [vmem:[#allocation6 + $0x1b8] sm:$0xff]
          %v7745 = vld [vmem:[#allocation6 + $0x1c0] sm:$0xff]
          %v7746 = vld [vmem:[#allocation6 + $0x1c8] sm:$0xff]
          %v7747 = vld [vmem:[#allocation6 + $0x1d0] sm:$0xff]
          %v7748 = vld [vmem:[#allocation6 + $0x1d8] sm:$0xff]
          %v7749 = vld [vmem:[#allocation6 + $0x1e0] sm:$0xff]
          %v7750 = vld [vmem:[#allocation6 + $0x1e8] sm:$0xff]
          %v7751 = vld [vmem:[#allocation6 + $0x1f0] sm:$0xff]
          %v7752 = vld [vmem:[#allocation6 + $0x1f8] sm:$0xff]
          %v7753 = vld [vmem:[%s10] sm:$0x3]
          %v7818 = vunpack.c.l.b16 %v7689
          %v7819 = vunpack.c.h.b16 %v7689
          %v7820 = vunpack.c.l.b16 %v7690
          %v7821 = vunpack.c.h.b16 %v7690
          %v7822 = vunpack.c.l.b16 %v7691
          %v7823 = vunpack.c.h.b16 %v7691
          %v7824 = vunpack.c.l.b16 %v7692
          %v7825 = vunpack.c.h.b16 %v7692
          %v7826 = vunpack.c.l.b16 %v7693
          %v7827 = vunpack.c.h.b16 %v7693
          %v7828 = vunpack.c.l.b16 %v7694
          %v7829 = vunpack.c.h.b16 %v7694
          %v7830 = vunpack.c.l.b16 %v7695
          %v7831 = vunpack.c.h.b16 %v7695
          %v7832 = vunpack.c.l.b16 %v7696
          %v7833 = vunpack.c.h.b16 %v7696
          %v7834 = vunpack.c.l.b16 %v7697
          %v7835 = vunpack.c.h.b16 %v7697
          %v7836 = vunpack.c.l.b16 %v7698
          %v7837 = vunpack.c.h.b16 %v7698
          %v7838 = vunpack.c.l.b16 %v7699
          %v7839 = vunpack.c.h.b16 %v7699
          %v7840 = vunpack.c.l.b16 %v7700
          %v7841 = vunpack.c.h.b16 %v7700
          %v7842 = vunpack.c.l.b16 %v7701
          %v7843 = vunpack.c.h.b16 %v7701
          %v7844 = vunpack.c.l.b16 %v7702
          %v7845 = vunpack.c.h.b16 %v7702
          %v7846 = vunpack.c.l.b16 %v7703
          %v7847 = vunpack.c.h.b16 %v7703
          %v7848 = vunpack.c.l.b16 %v7704
          %v7849 = vunpack.c.h.b16 %v7704
          %v7850 = vunpack.c.l.b16 %v7705
          %v7851 = vunpack.c.h.b16 %v7705
          %v7852 = vunpack.c.l.b16 %v7706
          %v7853 = vunpack.c.h.b16 %v7706
          %v7854 = vunpack.c.l.b16 %v7707
          %v7855 = vunpack.c.h.b16 %v7707
          %v7856 = vunpack.c.l.b16 %v7708
          %v7857 = vunpack.c.h.b16 %v7708
          %v7858 = vunpack.c.l.b16 %v7709
          %v7859 = vunpack.c.h.b16 %v7709
          %v7860 = vunpack.c.l.b16 %v7710
          %v7861 = vunpack.c.h.b16 %v7710
          %v7862 = vunpack.c.l.b16 %v7711
          %v7863 = vunpack.c.h.b16 %v7711
          %v7864 = vunpack.c.l.b16 %v7712
          %v7865 = vunpack.c.h.b16 %v7712
          %v7866 = vunpack.c.l.b16 %v7713
          %v7867 = vunpack.c.h.b16 %v7713
          %v7868 = vunpack.c.l.b16 %v7714
          %v7869 = vunpack.c.h.b16 %v7714
          %v7870 = vunpack.c.l.b16 %v7715
          %v7871 = vunpack.c.h.b16 %v7715
          %v7872 = vunpack.c.l.b16 %v7716
          %v7873 = vunpack.c.h.b16 %v7716
          %v7874 = vunpack.c.l.b16 %v7717
          %v7875 = vunpack.c.h.b16 %v7717
          %v7876 = vunpack.c.l.b16 %v7718
          %v7877 = vunpack.c.h.b16 %v7718
          %v7878 = vunpack.c.l.b16 %v7719
          %v7879 = vunpack.c.h.b16 %v7719
          %v7880 = vunpack.c.l.b16 %v7720
          %v7881 = vunpack.c.h.b16 %v7720
          %v7882 = vunpack.c.l.b16 %v7721
          %v7883 = vunpack.c.h.b16 %v7721
          %v7884 = vunpack.c.l.b16 %v7722
          %v7885 = vunpack.c.h.b16 %v7722
          %v7886 = vunpack.c.l.b16 %v7723
          %v7887 = vunpack.c.h.b16 %v7723
          %v7888 = vunpack.c.l.b16 %v7724
          %v7889 = vunpack.c.h.b16 %v7724
          %v7890 = vunpack.c.l.b16 %v7725
          %v7891 = vunpack.c.h.b16 %v7725
          %v7892 = vunpack.c.l.b16 %v7726
          %v7893 = vunpack.c.h.b16 %v7726
          %v7894 = vunpack.c.l.b16 %v7727
          %v7895 = vunpack.c.h.b16 %v7727
          %v7896 = vunpack.c.l.b16 %v7728
          %v7897 = vunpack.c.h.b16 %v7728
          %v7898 = vunpack.c.l.b16 %v7729
          %v7899 = vunpack.c.h.b16 %v7729
          %v7900 = vunpack.c.l.b16 %v7730
          %v7901 = vunpack.c.h.b16 %v7730
          %v7902 = vunpack.c.l.b16 %v7731
          %v7903 = vunpack.c.h.b16 %v7731
          %v7904 = vunpack.c.l.b16 %v7732
          %v7905 = vunpack.c.h.b16 %v7732
          %v7906 = vunpack.c.l.b16 %v7733
          %v7907 = vunpack.c.h.b16 %v7733
          %v7908 = vunpack.c.l.b16 %v7734
          %v7909 = vunpack.c.h.b16 %v7734
          %v7910 = vunpack.c.l.b16 %v7735
          %v7911 = vunpack.c.h.b16 %v7735
          %v7912 = vunpack.c.l.b16 %v7736
          %v7913 = vunpack.c.h.b16 %v7736
          %v7914 = vunpack.c.l.b16 %v7737
          %v7915 = vunpack.c.h.b16 %v7737
          %v7916 = vunpack.c.l.b16 %v7738
          %v7917 = vunpack.c.h.b16 %v7738
          %v7918 = vunpack.c.l.b16 %v7739
          %v7919 = vunpack.c.h.b16 %v7739
          %v7920 = vunpack.c.l.b16 %v7740
          %v7921 = vunpack.c.h.b16 %v7740
          %v7922 = vunpack.c.l.b16 %v7741
          %v7923 = vunpack.c.h.b16 %v7741
          %v7924 = vunpack.c.l.b16 %v7742
          %v7925 = vunpack.c.h.b16 %v7742
          %v7926 = vunpack.c.l.b16 %v7743
          %v7927 = vunpack.c.h.b16 %v7743
          %v7928 = vunpack.c.l.b16 %v7744
          %v7929 = vunpack.c.h.b16 %v7744
          %v7930 = vunpack.c.l.b16 %v7745
          %v7931 = vunpack.c.h.b16 %v7745
          %v7932 = vunpack.c.l.b16 %v7746
          %v7933 = vunpack.c.h.b16 %v7746
          %v7934 = vunpack.c.l.b16 %v7747
          %v7935 = vunpack.c.h.b16 %v7747
          %v7936 = vunpack.c.l.b16 %v7748
          %v7937 = vunpack.c.h.b16 %v7748
          %v7938 = vunpack.c.l.b16 %v7749
          %v7939 = vunpack.c.h.b16 %v7749
          %v7940 = vunpack.c.l.b16 %v7750
          %v7941 = vunpack.c.h.b16 %v7750
          %v7942 = vunpack.c.l.b16 %v7751
          %v7943 = vunpack.c.h.b16 %v7751
          %v7944 = vunpack.c.l.b16 %v7752
          %v7945 = vunpack.c.h.b16 %v7752
          %v7946 = vpack.c.b16 %v7820, %v7818
          %v7947 = vpack.c.b16 %v7821, %v7819
          %v7948 = vpack.c.b16 %v7824, %v7822
          %v7949 = vpack.c.b16 %v7825, %v7823
          %v7950 = vpack.c.b16 %v7828, %v7826
          %v7951 = vpack.c.b16 %v7829, %v7827
          %v7952 = vpack.c.b16 %v7832, %v7830
          %v7953 = vpack.c.b16 %v7833, %v7831
          %v7954 = vpack.c.b16 %v7836, %v7834
          %v7955 = vpack.c.b16 %v7837, %v7835
          %v7956 = vpack.c.b16 %v7840, %v7838
          %v7957 = vpack.c.b16 %v7841, %v7839
          %v7958 = vpack.c.b16 %v7844, %v7842
          %v7959 = vpack.c.b16 %v7845, %v7843
          %v7960 = vpack.c.b16 %v7848, %v7846
          %v7961 = vpack.c.b16 %v7849, %v7847
          %v7962 = vpack.c.b16 %v7852, %v7850
          %v7963 = vpack.c.b16 %v7853, %v7851
          %v7964 = vpack.c.b16 %v7856, %v7854
          %v7965 = vpack.c.b16 %v7857, %v7855
          %v7966 = vpack.c.b16 %v7860, %v7858
          %v7967 = vpack.c.b16 %v7861, %v7859
          %v7968 = vpack.c.b16 %v7864, %v7862
          %v7969 = vpack.c.b16 %v7865, %v7863
          %v7970 = vpack.c.b16 %v7868, %v7866
          %v7971 = vpack.c.b16 %v7869, %v7867
          %v7972 = vpack.c.b16 %v7872, %v7870
          %v7973 = vpack.c.b16 %v7873, %v7871
          %v7974 = vpack.c.b16 %v7876, %v7874
          %v7975 = vpack.c.b16 %v7877, %v7875
          %v7976 = vpack.c.b16 %v7880, %v7878
          %v7977 = vpack.c.b16 %v7881, %v7879
          %v7978 = vpack.c.b16 %v7884, %v7882
          %v7979 = vpack.c.b16 %v7885, %v7883
          %v7980 = vpack.c.b16 %v7888, %v7886
          %v7981 = vpack.c.b16 %v7889, %v7887
          %v7982 = vpack.c.b16 %v7892, %v7890
          %v7983 = vpack.c.b16 %v7893, %v7891
          %v7984 = vpack.c.b16 %v7896, %v7894
          %v7985 = vpack.c.b16 %v7897, %v7895
          %v7986 = vpack.c.b16 %v7900, %v7898
          %v7987 = vpack.c.b16 %v7901, %v7899
          %v7988 = vpack.c.b16 %v7904, %v7902
          %v7989 = vpack.c.b16 %v7905, %v7903
          %v7990 = vpack.c.b16 %v7908, %v7906
          %v7991 = vpack.c.b16 %v7909, %v7907
          %v7992 = vpack.c.b16 %v7912, %v7910
          %v7993 = vpack.c.b16 %v7913, %v7911
          %v7994 = vpack.c.b16 %v7916, %v7914
          %v7995 = vpack.c.b16 %v7917, %v7915
          %v7996 = vpack.c.b16 %v7920, %v7918
          %v7997 = vpack.c.b16 %v7921, %v7919
          %v7998 = vpack.c.b16 %v7924, %v7922
          %v7999 = vpack.c.b16 %v7925, %v7923
          %v8000 = vpack.c.b16 %v7928, %v7926
          %v8001 = vpack.c.b16 %v7929, %v7927
          %v8002 = vpack.c.b16 %v7932, %v7930
          %v8003 = vpack.c.b16 %v7933, %v7931
          %v8004 = vpack.c.b16 %v7936, %v7934
          %v8005 = vpack.c.b16 %v7937, %v7935
          %v8006 = vpack.c.b16 %v7940, %v7938
          %v8007 = vpack.c.b16 %v7941, %v7939
          %v8008 = vpack.c.b16 %v7944, %v7942
          %v8009 = vpack.c.b16 %v7945, %v7943
          %v8075 = vlaneseq
          %v8076 = vshrl.u32 %v8075, 7
          %v8077 = vsub.s32 0, %v8076
          %v8078 = vrot.slane %v7753, %v8077
          %v8079 = vlaneseq
          %v8080 = vshrl.u32 %v8079, 7
          %v8081 = vsub.s32 1, %v8080
          %v8082 = vrot.slane %v7753, %v8081
          %8085 = vmatprep.subr.bf16.mxu0 %v7947
          %8086 = vmatpush1.bf16.msra.mxu0 %v7946
          %8087 = vmatprep.subr.bf16.mxu0 %v7949
          %8088 = vmatpush1.bf16.msra.mxu0 %v7948
          %8089 = vmatprep.subr.bf16.mxu0 %v7951
          %8090 = vmatpush1.bf16.msra.mxu0 %v7950
          %8091 = vmatprep.subr.bf16.mxu0 %v7953
          %8092 = vmatpush1.bf16.msra.mxu0 %v7952
          %8093 = vmatprep.subr.bf16.mxu0 %v7955
          %8094 = vmatpush1.bf16.msra.mxu0 %v7954
          %8095 = vmatprep.subr.bf16.mxu0 %v7957
          %8096 = vmatpush1.bf16.msra.mxu0 %v7956
          %8097 = vmatprep.subr.bf16.mxu0 %v7959
          %8098 = vmatpush1.bf16.msra.mxu0 %v7958
          %8099 = vmatprep.subr.bf16.mxu0 %v7961
          %8100 = vmatpush1.bf16.msra.mxu0 %v7960
          %8101 = vmatprep.subr.bf16.mxu0 %v7963
          %8102 = vmatpush1.bf16.msra.mxu0 %v7962
          %8103 = vmatprep.subr.bf16.mxu0 %v7965
          %8104 = vmatpush1.bf16.msra.mxu0 %v7964
          %8105 = vmatprep.subr.bf16.mxu0 %v7967
          %8106 = vmatpush1.bf16.msra.mxu0 %v7966
          %8107 = vmatprep.subr.bf16.mxu0 %v7969
          %8108 = vmatpush1.bf16.msra.mxu0 %v7968
          %8109 = vmatprep.subr.bf16.mxu0 %v7971
          %8110 = vmatpush1.bf16.msra.mxu0 %v7970
          %8111 = vmatprep.subr.bf16.mxu0 %v7973
          %8112 = vmatpush1.bf16.msra.mxu0 %v7972
          %8113 = vmatprep.subr.bf16.mxu0 %v7975
          %8114 = vmatpush1.bf16.msra.mxu0 %v7974
          %8115 = vmatprep.subr.bf16.mxu0 %v7977
          %8116 = vmatpush1.bf16.msra.mxu0 %v7976
          %8117 = vmatprep.mubr.bf16.mxu0 %v7686
          %8118 = vmatmul.mubr.bf16.gmra.mrb[0].mxu0 %v7685
          %v8119 = vpop.f32.mrb[0].mxu0
          %v8120 = vadd.f32 %v8078, %v8119
          %v8121 = vpop.f32.mrb[0].mxu0
          %v8122 = vadd.f32 %v8082, %v8121
          %v8123 = vpop.f32.mrb[0].mxu0
          %v8124 = vpop.f32.mrb[0].mxu0
          %8125 = vdwg.mxu0
          %8126 = vmatprep.subr.bf16.mxu0 %v7979
          %8127 = vmatpush1.bf16.msra.mxu0 %v7978
          %8128 = vmatprep.subr.bf16.mxu0 %v7981
          %8129 = vmatpush1.bf16.msra.mxu0 %v7980
          %8130 = vmatprep.subr.bf16.mxu0 %v7983
          %8131 = vmatpush1.bf16.msra.mxu0 %v7982
          %8132 = vmatprep.subr.bf16.mxu0 %v7985
          %8133 = vmatpush1.bf16.msra.mxu0 %v7984
          %8134 = vmatprep.subr.bf16.mxu0 %v7987
          %8135 = vmatpush1.bf16.msra.mxu0 %v7986
          %8136 = vmatprep.subr.bf16.mxu0 %v7989
          %8137 = vmatpush1.bf16.msra.mxu0 %v7988
          %8138 = vmatprep.subr.bf16.mxu0 %v7991
          %8139 = vmatpush1.bf16.msra.mxu0 %v7990
          %8140 = vmatprep.subr.bf16.mxu0 %v7993
          %8141 = vmatpush1.bf16.msra.mxu0 %v7992
          %8142 = vmatprep.subr.bf16.mxu0 %v7995
          %8143 = vmatpush1.bf16.msra.mxu0 %v7994
          %8144 = vmatprep.subr.bf16.mxu0 %v7997
          %8145 = vmatpush1.bf16.msra.mxu0 %v7996
          %8146 = vmatprep.subr.bf16.mxu0 %v7999
          %8147 = vmatpush1.bf16.msra.mxu0 %v7998
          %8148 = vmatprep.subr.bf16.mxu0 %v8001
          %8149 = vmatpush1.bf16.msra.mxu0 %v8000
          %8150 = vmatprep.subr.bf16.mxu0 %v8003
          %8151 = vmatpush1.bf16.msra.mxu0 %v8002
          %8152 = vmatprep.subr.bf16.mxu0 %v8005
          %8153 = vmatpush1.bf16.msra.mxu0 %v8004
          %8154 = vmatprep.subr.bf16.mxu0 %v8007
          %8155 = vmatpush1.bf16.msra.mxu0 %v8006
          %8156 = vmatprep.subr.bf16.mxu0 %v8009
          %8157 = vmatpush1.bf16.msra.mxu0 %v8008
          %8158 = vmatprep.mubr.bf16.mxu0 %v7688
          %8159 = vmatmul.mubr.bf16.gmra.mrb[0].mxu0 %v7687
          %v8160 = vpop.f32.mrb[0].mxu0
          %v8161 = vadd.f32 %v8120, %v8160
          %v8162 = vpop.f32.mrb[0].mxu0
          %v8163 = vadd.f32 %v8122, %v8162
          %v8164 = vpop.f32.mrb[0].mxu0
          %v8165 = vpop.f32.mrb[0].mxu0
          %8166 = vdwg.mxu0
          %v8167 = vmax.f32 %v8161, 0.0
          %v8168 = vmax.f32 %v8163, 0.0
          %v8169 = vpack.c.bf16 %v8167, %v8167
          %v8170 = vpack.c.bf16 %v8168, %v8168
          %v8171 = vld [vmem:[#allocation8] sm:$0xf]
          %v8172 = vld [vmem:[#allocation8 + $0x4] sm:$0xf]
          %v8173 = vld [vmem:[#allocation8 + $0x8] sm:$0xf]
          %v8174 = vld [vmem:[#allocation8 + $0xc] sm:$0xf]
          %v8175 = vld [vmem:[#allocation8 + $0x10] sm:$0xf]
          %v8176 = vld [vmem:[#allocation8 + $0x14] sm:$0xf]
          %v8177 = vld [vmem:[#allocation8 + $0x18] sm:$0xf]
          %v8178 = vld [vmem:[#allocation8 + $0x1c] sm:$0xf]
          %v8179 = vld [vmem:[#allocation8 + $0x20] sm:$0xf]
          %v8180 = vld [vmem:[#allocation8 + $0x24] sm:$0xf]
          %v8181 = vld [vmem:[#allocation8 + $0x28] sm:$0xf]
          %v8182 = vld [vmem:[#allocation8 + $0x2c] sm:$0xf]
          %v8183 = vld [vmem:[#allocation8 + $0x30] sm:$0xf]
          %v8184 = vld [vmem:[#allocation8 + $0x34] sm:$0xf]
          %v8185 = vld [vmem:[#allocation8 + $0x38] sm:$0xf]
          %v8186 = vld [vmem:[#allocation8 + $0x3c] sm:$0xf]
          %v8187 = vld [vmem:[#allocation8 + $0x40] sm:$0xf]
          %v8188 = vld [vmem:[#allocation8 + $0x44] sm:$0xf]
          %v8189 = vld [vmem:[#allocation8 + $0x48] sm:$0xf]
          %v8190 = vld [vmem:[#allocation8 + $0x4c] sm:$0xf]
          %v8191 = vld [vmem:[#allocation8 + $0x50] sm:$0xf]
          %v8192 = vld [vmem:[#allocation8 + $0x54] sm:$0xf]
          %v8193 = vld [vmem:[#allocation8 + $0x58] sm:$0xf]
          %v8194 = vld [vmem:[#allocation8 + $0x5c] sm:$0xf]
          %v8195 = vld [vmem:[#allocation8 + $0x60] sm:$0xf]
          %v8196 = vld [vmem:[#allocation8 + $0x64] sm:$0xf]
          %v8197 = vld [vmem:[#allocation8 + $0x68] sm:$0xf]
          %v8198 = vld [vmem:[#allocation8 + $0x6c] sm:$0xf]
          %v8199 = vld [vmem:[#allocation8 + $0x70] sm:$0xf]
          %v8200 = vld [vmem:[#allocation8 + $0x74] sm:$0xf]
          %v8201 = vld [vmem:[#allocation8 + $0x78] sm:$0xf]
          %v8202 = vld [vmem:[#allocation8 + $0x7c] sm:$0xf]
          %v8203 = vld [vmem:[%s12] sm:$0x1]
          %v8236 = vunpack.c.l.b16 %v8171
          %v8237 = vunpack.c.l.b16 %v8172
          %v8238 = vunpack.c.l.b16 %v8173
          %v8239 = vunpack.c.l.b16 %v8174
          %v8240 = vunpack.c.l.b16 %v8175
          %v8241 = vunpack.c.l.b16 %v8176
          %v8242 = vunpack.c.l.b16 %v8177
          %v8243 = vunpack.c.l.b16 %v8178
          %v8244 = vunpack.c.l.b16 %v8179
          %v8245 = vunpack.c.l.b16 %v8180
          %v8246 = vunpack.c.l.b16 %v8181
          %v8247 = vunpack.c.l.b16 %v8182
          %v8248 = vunpack.c.l.b16 %v8183
          %v8249 = vunpack.c.l.b16 %v8184
          %v8250 = vunpack.c.l.b16 %v8185
          %v8251 = vunpack.c.l.b16 %v8186
          %v8252 = vunpack.c.l.b16 %v8187
          %v8253 = vunpack.c.l.b16 %v8188
          %v8254 = vunpack.c.l.b16 %v8189
          %v8255 = vunpack.c.l.b16 %v8190
          %v8256 = vunpack.c.l.b16 %v8191
          %v8257 = vunpack.c.l.b16 %v8192
          %v8258 = vunpack.c.l.b16 %v8193
          %v8259 = vunpack.c.l.b16 %v8194
          %v8260 = vunpack.c.l.b16 %v8195
          %v8261 = vunpack.c.l.b16 %v8196
          %v8262 = vunpack.c.l.b16 %v8197
          %v8263 = vunpack.c.l.b16 %v8198
          %v8264 = vunpack.c.l.b16 %v8199
          %v8265 = vunpack.c.l.b16 %v8200
          %v8266 = vunpack.c.l.b16 %v8201
          %v8267 = vunpack.c.l.b16 %v8202
          %v8268 = vpack.c.b16 %v8237, %v8236
          %v8269 = vpack.c.b16 %v8239, %v8238
          %v8270 = vpack.c.b16 %v8241, %v8240
          %v8271 = vpack.c.b16 %v8243, %v8242
          %v8272 = vpack.c.b16 %v8245, %v8244
          %v8273 = vpack.c.b16 %v8247, %v8246
          %v8274 = vpack.c.b16 %v8249, %v8248
          %v8275 = vpack.c.b16 %v8251, %v8250
          %v8276 = vpack.c.b16 %v8253, %v8252
          %v8277 = vpack.c.b16 %v8255, %v8254
          %v8278 = vpack.c.b16 %v8257, %v8256
          %v8279 = vpack.c.b16 %v8259, %v8258
          %v8280 = vpack.c.b16 %v8261, %v8260
          %v8281 = vpack.c.b16 %v8263, %v8262
          %v8282 = vpack.c.b16 %v8265, %v8264
          %v8283 = vpack.c.b16 %v8267, %v8266
          %8300 = vmatprep.subr.bf16.mxu0 0
          %8301 = vmatpush1.bf16.msra.mxu0 %v8268
          %8302 = vmatprep.subr.bf16.mxu0 0
          %8303 = vmatpush1.bf16.msra.mxu0 %v8269
          %8304 = vmatprep.subr.bf16.mxu0 0
          %8305 = vmatpush1.bf16.msra.mxu0 %v8270
          %8306 = vmatprep.subr.bf16.mxu0 0
          %8307 = vmatpush1.bf16.msra.mxu0 %v8271
          %8308 = vmatprep.subr.bf16.mxu0 0
          %8309 = vmatpush1.bf16.msra.mxu0 %v8272
          %8310 = vmatprep.subr.bf16.mxu0 0
          %8311 = vmatpush1.bf16.msra.mxu0 %v8273
          %8312 = vmatprep.subr.bf16.mxu0 0
          %8313 = vmatpush1.bf16.msra.mxu0 %v8274
          %8314 = vmatprep.subr.bf16.mxu0 0
          %8315 = vmatpush1.bf16.msra.mxu0 %v8275
          %8316 = vmatprep.subr.bf16.mxu0 0
          %8317 = vmatpush1.bf16.msra.mxu0 %v8276
          %8318 = vmatprep.subr.bf16.mxu0 0
          %8319 = vmatpush1.bf16.msra.mxu0 %v8277
          %8320 = vmatprep.subr.bf16.mxu0 0
          %8321 = vmatpush1.bf16.msra.mxu0 %v8278
          %8322 = vmatprep.subr.bf16.mxu0 0
          %8323 = vmatpush1.bf16.msra.mxu0 %v8279
          %8324 = vmatprep.subr.bf16.mxu0 0
          %8325 = vmatpush1.bf16.msra.mxu0 %v8280
          %8326 = vmatprep.subr.bf16.mxu0 0
          %8327 = vmatpush1.bf16.msra.mxu0 %v8281
          %8328 = vmatprep.subr.bf16.mxu0 0
          %8329 = vmatpush1.bf16.msra.mxu0 %v8282
          %8330 = vmatprep.subr.bf16.mxu0 0
          %8331 = vmatpush1.bf16.msra.mxu0 %v8283
          %8332 = vmatprep.mubr.bf16.mxu0 %v8170
          %8333 = vmatmul.mubr.bf16.gmra.mrb[0].mxu0 %v8169
          %v8334 = vpop.f32.mrb[0].mxu0
          %v8335 = vadd.f32 %v8203, %v8334
          %v8336 = vpop.f32.mrb[0].mxu0
          %v8337 = vpop.f32.mrb[0].mxu0
          %v8338 = vpop.f32.mrb[0].mxu0
          %8339 = vdwg.mxu0
          %8340 = vst [vmem:[%s512] sm:$0x1] %v8335
        $region96: #{tpu_custom_call.1} parent=71 // pred_fallthru
          _
        %s8341 = sand.u32 %s334, 1
        %s8342 = scalar_lea.sflag [#allocation5], %s8341
        %s8343 = sand.u32 %s334, 1
        %s8344 = scalar_lea.vmem [#allocation9], %s8343
        // Predicated region
        $region97: #{tpu_custom_call.1} parent=71 // pred_check
          %p8345 = pneg %p344
        $region98: #{tpu_custom_call.1} parent=71 // pred_check_branch
          %8347 = sbr.rel (%p8345) target = $region100
        $region99: #{tpu_custom_call.1} parent=71 // pred_region
          %s8349 = ssub.s32 16, 16
          %8350 = vsyncadd %s8342, %s8349
          %s8351 = smul.addr %s33, 16
          %s8352 = scalar_lea.hbm %s13, %s8351
          %s8354 = sshll.u32 %s8344, 4
          %s8355 = int_to_ptr.vmem [resolvable:$true] %s8354
          %8357 = dma.vmem_to_hbm [thread:$0]  %s8355, 16, %s8352, %s8342
        $region100: #{tpu_custom_call.1} parent=71 // pred_fallthru
          _
      $region72: #{tpu_custom_call.1} parent=5 // pred_fallthru
        _
      %p8358 = scmp.le.s32.totalorder 2, %s24
      // Predicated region
      $region101: #{tpu_custom_call.1} parent=5 // pred_check
        %p8359 = pneg %p8358
      $region102: #{tpu_custom_call.1} parent=5 // pred_check_branch
        %8361 = sbr.rel (%p8359) target = $region104
      $region103: #{tpu_custom_call.1} parent=5 // pred_region
        %s8362 = ssub.s32 %s24, 2
        // Predicated region
        $region105: #{tpu_custom_call.1} parent=103 // pred_check
          %p8363 = pneg %p350
        $region106: #{tpu_custom_call.1} parent=103 // pred_check_branch
          %8365 = sbr.rel (%p8363) target = $region108
        $region107: #{tpu_custom_call.1} parent=103 // pred_region
          %s8366 = sand.u32 %s335, 1
          %s8367 = scalar_lea.sflag [#allocation5], %s8366
          %s8368 = sand.u32 %s335, 1
          %s8369 = scalar_lea.vmem [#allocation9], %s8368
          %8370 = dma.done %s8367, 16
        $region108: #{tpu_custom_call.1} parent=103 // pred_fallthru
          _
      $region104: #{tpu_custom_call.1} parent=5 // pred_fallthru
        _
    $region6: #{tpu_custom_call.1} parent=1 // loop_footer
      %s28 = sadd.s32 1, %s24
    $region7: #{tpu_custom_call.1} parent=1 // loop_footer_branch
      %23 = sbr.rel target = $region3
    $region8: #{tpu_custom_call.1} parent=1 // loop_exit
      _
    %8371 = vsyncpa [#allocation4], 1
    %s8372 = scalar_lea.sflag [#allocation4], 1
    %8373 = vsyncpa %s8372, 1
    %8374 = vsyncpa [#allocation7], 1
    %8375 = vsyncpa [#allocation5], 1
    %s8376 = scalar_lea.sflag [#allocation5], 1
    %8377 = vsyncpa %s8376, 1

</llo_original>
